<compile_context>
chip_gen: v7x
topology: tpu7x:2x2x1
jax: 0.10.0
libtpu: 0.0.40
codegen_flags: <defaults>
</compile_context>

<pallas_src>
import jax
import jax.numpy as jnp
import numpy as np
from jax.experimental import pallas as pl
from jax.experimental.pallas import tpu as pltpu


HIDDEN = 512
LEAKY_SLOPE = 0.01  # torch.nn.LeakyReLU default


def _leaky_relu(x):
    return jnp.where(x > 0, x, LEAKY_SLOPE * x)


def icm_kernel(
    # activations
    x_sn_ref,      # (2B, input)  f32: rows [0:B]=state, [B:2B]=next_state
    action_ref,    # (B, out)     f32
    # feature: Linear(input, 512)
    wf_ref, bf_ref,
    # fused es-consumer weights: [wi1s | wfn1s]  (512, 1024) bf16
    w_es_ref,
    # inverse_net rest
    wi1n_ref, bi1_ref, wi2_ref, bi2_ref,
    # fused action weights: [wfn1a | wr1a | wfn2a]  (out, 1536) bf16
    w_a_ref, bfn1_ref, br1_ref, bfn2_ref,
    # residual block (single shared weight set, as in the PyTorch [module]*4)
    wr1s_ref, wr2_ref, br2_ref,
    # forward_net_2 state-half
    wfn2s_ref,
    # outputs
    real_next_ref, pred_next_ref, pred_action_ref, impact_ref,
):
    f32 = jnp.float32
    bf16 = jnp.bfloat16
    B = action_ref.shape[0]

    # ---- feature encoder: single fused (2B, input) @ (input, 512) pass ----
    x_sn = x_sn_ref[...].astype(bf16)
    enc = jnp.dot(x_sn, wf_ref[...], preferred_element_type=f32) + bf_ref[...]
    es = enc[:B]            # encode_state
    ens = enc[B:]           # encode_next_state
    real_next_ref[...] = ens

    # impact_bonus = mse_loss(es, ens, reduction='none').mean(-1)   (f32)
    diff = es - ens
    impact_ref[...] = jnp.mean(diff * diff, axis=-1, keepdims=True)

    es_b = es.astype(bf16)
    ens_b = ens.astype(bf16)
    a_b = action_ref[...].astype(bf16)

    # ---- es through fused [wi1s | wfn1s]: one (B,512)@(512,1024) pass ----
    es_out = jnp.dot(es_b, w_es_ref[...], preferred_element_type=f32)  # (B, 1024)

    # ---- inverse_net: Linear(1024,512) split-sum, ReLU, Linear(512,out) ----
    h = es_out[:, :HIDDEN] \
        + jnp.dot(ens_b, wi1n_ref[...], preferred_element_type=f32) \
        + bi1_ref[...]
    h = jnp.maximum(h, 0.0)
    pred_action_ref[...] = (
        jnp.dot(h.astype(bf16), wi2_ref[...], preferred_element_type=f32)
        + bi2_ref[...])

    # ---- loop-invariant action contributions (one (B,out)@(out,1536) pass) ----
    a_out = jnp.dot(a_b, w_a_ref[...], preferred_element_type=f32)  # (B, 1536)
    a_fn1 = a_out[:, :HIDDEN] + bfn1_ref[...]                 # forward_net_1 half
    a_r1 = a_out[:, HIDDEN:2 * HIDDEN] + br1_ref[...]         # residual half
    a_fn2 = a_out[:, 2 * HIDDEN:] + bfn2_ref[...]             # forward_net_2 half

    # ---- forward_net_1(cat(es, action)) ----
    po = _leaky_relu(es_out[:, HIDDEN:] + a_fn1)

    wr1s = wr1s_ref[...]
    wr2 = wr2_ref[...]
    br2 = br2_ref[...]

    def residual_block(x):
        # Sequential(Linear(out+512,512), LeakyReLU, Linear(512,512)) on cat(x, action)
        y = _leaky_relu(
            jnp.dot(x.astype(bf16), wr1s, preferred_element_type=f32) + a_r1)
        return jnp.dot(y.astype(bf16), wr2, preferred_element_type=f32) + br2

    # two residual iterations (4 shared-weight block applications)
    for _ in range(2):
        pf = residual_block(po)
        po = residual_block(pf) + po

    # ---- forward_net_2(cat(po, action)) ----
    pred_next_ref[...] = (
        jnp.dot(po.astype(bf16), wfn2s_ref[...], preferred_element_type=f32)
        + a_fn2)


def init_params(key, input_size, output_size):
    """Deterministic synthetic init, kaiming_uniform_(a=1.0)-style bounds, zero bias.

    Weights are stored as bf16 (already fused where the kernel wants them);
    biases stay f32.
    """
    f32 = jnp.float32
    bf16 = jnp.bfloat16

    def kaiming(k, fan_in, fan_out):
        bound = (3.0 / fan_in) ** 0.5  # sqrt(6 / ((1 + a^2) * fan_in)), a = 1
        return jax.random.uniform(k, (fan_in, fan_out), f32, -bound, bound)

    ks = jax.random.split(key, 8)
    p = {}
    # feature
    p["wf"] = kaiming(ks[0], input_size, HIDDEN).astype(bf16)
    p["bf"] = jnp.zeros((1, HIDDEN), f32)
    # inverse_net layer 1: weight (1024 -> 512), split into state / next_state halves
    wi1 = kaiming(ks[1], 2 * HIDDEN, HIDDEN)
    wi1s, wi1n = wi1[:HIDDEN], wi1[HIDDEN:]
    p["wi1n"] = wi1n.astype(bf16)
    p["bi1"] = jnp.zeros((1, HIDDEN), f32)
    p["wi2"] = kaiming(ks[2], HIDDEN, output_size).astype(bf16)
    p["bi2"] = jnp.zeros((1, output_size), f32)
    # forward_net_1: weight (out+512 -> 512), split into feature / action halves
    wfn1 = kaiming(ks[3], HIDDEN + output_size, HIDDEN)
    wfn1s, wfn1a = wfn1[:HIDDEN], wfn1[HIDDEN:]
    p["bfn1"] = jnp.zeros((1, HIDDEN), f32)
    # residual block (single shared set of weights, reused by all 4 applications)
    wr1 = kaiming(ks[4], HIDDEN + output_size, HIDDEN)
    wr1s, wr1a = wr1[:HIDDEN], wr1[HIDDEN:]
    p["wr1s"] = wr1s.astype(bf16)
    p["br1"] = jnp.zeros((1, HIDDEN), f32)
    p["wr2"] = kaiming(ks[5], HIDDEN, HIDDEN).astype(bf16)
    p["br2"] = jnp.zeros((1, HIDDEN), f32)
    # forward_net_2
    wfn2 = kaiming(ks[6], HIDDEN + output_size, HIDDEN)
    wfn2s, wfn2a = wfn2[:HIDDEN], wfn2[HIDDEN:]
    p["wfn2s"] = wfn2s.astype(bf16)
    p["bfn2"] = jnp.zeros((1, HIDDEN), f32)

    # fused matrices used by the kernel
    p["w_es"] = jnp.concatenate([wi1s, wfn1s], axis=1).astype(bf16)        # (512, 1024)
    p["w_a"] = jnp.concatenate([wfn1a, wr1a, wfn2a], axis=1).astype(bf16)  # (out, 1536)
    return p


def icm_forward(state, next_state, action, params):
    """Pallas implementation of ICMModel.forward (use_action_embedding=False).

    Returns (real_next_state_feature, pred_next_state_feature, pred_action,
             action, impact_bonus) matching the PyTorch module.
    """
    B = state.shape[0]
    output_size = action.shape[1]

    # Stack state / next_state so the feature encoder runs as one matmul.
    x_sn = jnp.concatenate([state, next_state], axis=0)  # (2B, input)

    inputs = [
        x_sn, action,
        params["wf"], params["bf"],
        params["w_es"],
        params["wi1n"], params["bi1"], params["wi2"], params["bi2"],
        params["w_a"], params["bfn1"], params["br1"], params["bfn2"],
        params["wr1s"], params["wr2"], params["br2"],
        params["wfn2s"],
    ]

    out_shapes = (
        jax.ShapeDtypeStruct((B, HIDDEN), jnp.float32),       # real_next_state_feature
        jax.ShapeDtypeStruct((B, HIDDEN), jnp.float32),       # pred_next_state_feature
        jax.ShapeDtypeStruct((B, output_size), jnp.float32),  # pred_action
        jax.ShapeDtypeStruct((B, 1), jnp.float32),            # impact_bonus (squeezed below)
    )

    vmem_spec = pl.BlockSpec(memory_space=pltpu.MemorySpace.VMEM)
    real_next, pred_next, pred_action, impact = pl.pallas_call(
        icm_kernel,
        out_shape=out_shapes,
        in_specs=[vmem_spec] * len(inputs),
        out_specs=(vmem_spec,) * len(out_shapes),
    )(*inputs)

    impact_bonus = impact.reshape(B)
    return real_next, pred_next, pred_action, action, impact_bonus


def icm_reference(state, next_state, action, p):
    """Pure-JAX f32 reference using the same bf16-stored weights (upcast)."""
    f32 = jnp.float32
    wf = p["wf"].astype(f32)
    es = state @ wf + p["bf"]
    ens = next_state @ wf + p["bf"]
    impact = jnp.mean((es - ens) ** 2, axis=-1)

    wi1s = p["w_es"][:, :HIDDEN].astype(f32)
    wfn1s = p["w_es"][:, HIDDEN:].astype(f32)
    h = jnp.maximum(es @ wi1s + ens @ p["wi1n"].astype(f32) + p["bi1"], 0.0)
    pred_action = h @ p["wi2"].astype(f32) + p["bi2"]

    wa = p["w_a"].astype(f32)
    a_fn1 = action @ wa[:, :HIDDEN] + p["bfn1"]
    a_r1 = action @ wa[:, HIDDEN:2 * HIDDEN] + p["br1"]
    a_fn2 = action @ wa[:, 2 * HIDDEN:] + p["bfn2"]

    po = _leaky_relu(es @ wfn1s + a_fn1)
    wr1s = p["wr1s"].astype(f32)
    wr2 = p["wr2"].astype(f32)

    def block(x):
        y = _leaky_relu(x @ wr1s + a_r1)
        return y @ wr2 + p["br2"]

    for _ in range(2):
        pf = block(po)
        po = block(pf) + po

    pred_next = po @ p["wfn2s"].astype(f32) + a_fn2
    return ens, pred_next, pred_action, action, impact


if __name__ == "__main__":
    # Small shapes consistent with the module: state dim 32, action dim 16, batch 8.
    B, INPUT_SIZE, OUTPUT_SIZE = 8, 32, 16

    key = jax.random.PRNGKey(0)
    k_state, k_next, k_action, k_params = jax.random.split(key, 4)

    state = jax.random.normal(k_state, (B, INPUT_SIZE), jnp.float32)
    next_state = jax.random.normal(k_next, (B, INPUT_SIZE), jnp.float32)
    action = jax.random.normal(k_action, (B, OUTPUT_SIZE), jnp.float32)

    params = init_params(k_params, INPUT_SIZE, OUTPUT_SIZE)

    # TODO(synk): use_action_embedding=True branch (extra Linear(out, 32)) not
    # exercised; it would just be one more in-kernel matmul on `action`.
    outs = icm_forward(state, next_state, action, params)
    outs = jax.block_until_ready(outs)

    real_next, pred_next, pred_action, action_out, impact_bonus = outs
    assert real_next.shape == (B, HIDDEN)
    assert pred_next.shape == (B, HIDDEN)
    assert pred_action.shape == (B, OUTPUT_SIZE)
    assert action_out.shape == (B, OUTPUT_SIZE)
    assert impact_bonus.shape == (B,)

    # Validate against an f32 reference (tolerance because matmul inputs are bf16).
    r_next, r_pred_next, r_pred_action, _, r_impact = icm_reference(
        state, next_state, action, params)
    np.testing.assert_allclose(np.asarray(real_next), np.asarray(r_next),
                               rtol=0.1, atol=0.05)
    np.testing.assert_allclose(np.asarray(pred_next), np.asarray(r_pred_next),
                               rtol=0.1, atol=0.05)
    np.testing.assert_allclose(np.asarray(pred_action), np.asarray(r_pred_action),
                               rtol=0.1, atol=0.05)
    np.testing.assert_allclose(np.asarray(impact_bonus), np.asarray(r_impact),
                               rtol=0.1, atol=0.05)

    print("KERNEL_OK")
</pallas_src>

<mosaic_0001>
module attributes {stable_mosaic.version = 11 : i64} {
  func.func @icm_kernel(%arg0: memref<16x32xf32, #tpu.memory_space<vmem>>, %arg1: memref<8x16xf32, #tpu.memory_space<vmem>>, %arg2: memref<32x512xbf16, #tpu.memory_space<vmem>>, %arg3: memref<1x512xf32, #tpu.memory_space<vmem>>, %arg4: memref<512x1024xbf16, #tpu.memory_space<vmem>>, %arg5: memref<512x512xbf16, #tpu.memory_space<vmem>>, %arg6: memref<1x512xf32, #tpu.memory_space<vmem>>, %arg7: memref<512x16xbf16, #tpu.memory_space<vmem>>, %arg8: memref<1x16xf32, #tpu.memory_space<vmem>>, %arg9: memref<16x1536xbf16, #tpu.memory_space<vmem>>, %arg10: memref<1x512xf32, #tpu.memory_space<vmem>>, %arg11: memref<1x512xf32, #tpu.memory_space<vmem>>, %arg12: memref<1x512xf32, #tpu.memory_space<vmem>>, %arg13: memref<512x512xbf16, #tpu.memory_space<vmem>>, %arg14: memref<512x512xbf16, #tpu.memory_space<vmem>>, %arg15: memref<1x512xf32, #tpu.memory_space<vmem>>, %arg16: memref<512x512xbf16, #tpu.memory_space<vmem>>, %arg17: memref<8x512xf32, #tpu.memory_space<vmem>>, %arg18: memref<8x512xf32, #tpu.memory_space<vmem>>, %arg19: memref<8x16xf32, #tpu.memory_space<vmem>>, %arg20: memref<8x1xf32, #tpu.memory_space<vmem>>) attributes {dimension_semantics = [], scalar_prefetch = 0 : i64, scratch_operands = 0 : i64, tpu.core_type = #tpu.core_type<tc>} {
    %c0 = arith.constant 0 : index
    %c0_0 = arith.constant 0 : index
    %0 = vector.load %arg0[%c0, %c0_0] : memref<16x32xf32, #tpu.memory_space<vmem>>, vector<16x32xf32>
    %1 = arith.truncf %0 : vector<16x32xf32> to vector<16x32xbf16>
    %c0_1 = arith.constant 0 : index
    %c0_2 = arith.constant 0 : index
    %2 = vector.load %arg2[%c0_1, %c0_2] : memref<32x512xbf16, #tpu.memory_space<vmem>>, vector<32x512xbf16>
    %cst = arith.constant dense<0.000000e+00> : vector<16x512xf32>
    %3 = tpu.matmul %1, %2, %cst {dimension_numbers = #tpu.dot_dimension_numbers<[1], [0], [0], [1], [0, 0, 1, 1], [], []>} : vector<16x32xbf16>, vector<32x512xbf16>, vector<16x512xf32> -> vector<16x512xf32>
    %c0_3 = arith.constant 0 : index
    %c0_4 = arith.constant 0 : index
    %4 = vector.load %arg3[%c0_3, %c0_4] : memref<1x512xf32, #tpu.memory_space<vmem>>, vector<1x512xf32>
    %5 = vector.broadcast %4 : vector<1x512xf32> to vector<16x512xf32>
    %6 = arith.addf %3, %5 : vector<16x512xf32>
    %7 = vector.extract_strided_slice %6 {offsets = [0, 0], sizes = [8, 512], strides = [1, 1]} : vector<16x512xf32> to vector<8x512xf32>
    %8 = vector.extract_strided_slice %6 {offsets = [8, 0], sizes = [8, 512], strides = [1, 1]} : vector<16x512xf32> to vector<8x512xf32>
    %c0_5 = arith.constant 0 : index
    %c0_6 = arith.constant 0 : index
    %9 = vector.load %arg17[%c0_5, %c0_6] : memref<8x512xf32, #tpu.memory_space<vmem>>, vector<8x512xf32>
    tpu.vector_store %arg17[%c0_5, %c0_6], %8 {strides = array<i32>} : memref<8x512xf32, #tpu.memory_space<vmem>>, vector<8x512xf32>,
    %10 = arith.subf %7, %8 : vector<8x512xf32>
    %11 = arith.mulf %10, %10 : vector<8x512xf32>
    %cst_7 = arith.constant dense<0.000000e+00> : vector<8xf32>
    %12 = vector.multi_reduction <add>, %11, %cst_7 [1] : vector<8x512xf32> to vector<8xf32>
    %13 = vector.shape_cast %12 : vector<8xf32> to vector<8x1xf32>
    %cst_8 = arith.constant 5.120000e+02 : f32
    %14 = vector.broadcast %cst_8 : f32 to vector<8x1xf32>
    %15 = arith.divf %13, %14 : vector<8x1xf32>
    %c0_9 = arith.constant 0 : index
    %c0_10 = arith.constant 0 : index
    %16 = vector.load %arg20[%c0_9, %c0_10] : memref<8x1xf32, #tpu.memory_space<vmem>>, vector<8x1xf32>
    tpu.vector_store %arg20[%c0_9, %c0_10], %15 {strides = array<i32>} : memref<8x1xf32, #tpu.memory_space<vmem>>, vector<8x1xf32>,
    %17 = arith.truncf %7 : vector<8x512xf32> to vector<8x512xbf16>
    %18 = arith.truncf %8 : vector<8x512xf32> to vector<8x512xbf16>
    %c0_11 = arith.constant 0 : index
    %c0_12 = arith.constant 0 : index
    %19 = vector.load %arg1[%c0_11, %c0_12] : memref<8x16xf32, #tpu.memory_space<vmem>>, vector<8x16xf32>
    %20 = arith.truncf %19 : vector<8x16xf32> to vector<8x16xbf16>
    %c0_13 = arith.constant 0 : index
    %c0_14 = arith.constant 0 : index
    %21 = vector.load %arg4[%c0_13, %c0_14] : memref<512x1024xbf16, #tpu.memory_space<vmem>>, vector<512x1024xbf16>
    %cst_15 = arith.constant dense<0.000000e+00> : vector<8x1024xf32>
    %22 = tpu.matmul %17, %21, %cst_15 {dimension_numbers = #tpu.dot_dimension_numbers<[1], [0], [0], [1], [0, 0, 1, 1], [], []>} : vector<8x512xbf16>, vector<512x1024xbf16>, vector<8x1024xf32> -> vector<8x1024xf32>
    %23 = vector.extract_strided_slice %22 {offsets = [0, 0], sizes = [8, 512], strides = [1, 1]} : vector<8x1024xf32> to vector<8x512xf32>
    %c0_16 = arith.constant 0 : index
    %c0_17 = arith.constant 0 : index
    %24 = vector.load %arg5[%c0_16, %c0_17] : memref<512x512xbf16, #tpu.memory_space<vmem>>, vector<512x512xbf16>
    %cst_18 = arith.constant dense<0.000000e+00> : vector<8x512xf32>
    %25 = tpu.matmul %18, %24, %cst_18 {dimension_numbers = #tpu.dot_dimension_numbers<[1], [0], [0], [1], [0, 0, 1, 1], [], []>} : vector<8x512xbf16>, vector<512x512xbf16>, vector<8x512xf32> -> vector<8x512xf32>
    %26 = arith.addf %23, %25 : vector<8x512xf32>
    %c0_19 = arith.constant 0 : index
    %c0_20 = arith.constant 0 : index
    %27 = vector.load %arg6[%c0_19, %c0_20] : memref<1x512xf32, #tpu.memory_space<vmem>>, vector<1x512xf32>
    %28 = vector.broadcast %27 : vector<1x512xf32> to vector<8x512xf32>
    %29 = arith.addf %26, %28 : vector<8x512xf32>
    %cst_21 = arith.constant 0.000000e+00 : f32
    %30 = vector.broadcast %cst_21 : f32 to vector<8x512xf32>
    %31 = arith.maximumf %29, %30 : vector<8x512xf32>
    %32 = arith.truncf %31 : vector<8x512xf32> to vector<8x512xbf16>
    %c0_22 = arith.constant 0 : index
    %c0_23 = arith.constant 0 : index
    %33 = vector.load %arg7[%c0_22, %c0_23] : memref<512x16xbf16, #tpu.memory_space<vmem>>, vector<512x16xbf16>
    %cst_24 = arith.constant dense<0.000000e+00> : vector<8x16xf32>
    %34 = tpu.matmul %32, %33, %cst_24 {dimension_numbers = #tpu.dot_dimension_numbers<[1], [0], [0], [1], [0, 0, 1, 1], [], []>} : vector<8x512xbf16>, vector<512x16xbf16>, vector<8x16xf32> -> vector<8x16xf32>
    %c0_25 = arith.constant 0 : index
    %c0_26 = arith.constant 0 : index
    %35 = vector.load %arg8[%c0_25, %c0_26] : memref<1x16xf32, #tpu.memory_space<vmem>>, vector<1x16xf32>
    %36 = vector.broadcast %35 : vector<1x16xf32> to vector<8x16xf32>
    %37 = arith.addf %34, %36 : vector<8x16xf32>
    %c0_27 = arith.constant 0 : index
    %c0_28 = arith.constant 0 : index
    %38 = vector.load %arg19[%c0_27, %c0_28] : memref<8x16xf32, #tpu.memory_space<vmem>>, vector<8x16xf32>
    tpu.vector_store %arg19[%c0_27, %c0_28], %37 {strides = array<i32>} : memref<8x16xf32, #tpu.memory_space<vmem>>, vector<8x16xf32>,
    %c0_29 = arith.constant 0 : index
    %c0_30 = arith.constant 0 : index
    %39 = vector.load %arg9[%c0_29, %c0_30] : memref<16x1536xbf16, #tpu.memory_space<vmem>>, vector<16x1536xbf16>
    %cst_31 = arith.constant dense<0.000000e+00> : vector<8x1536xf32>
    %40 = tpu.matmul %20, %39, %cst_31 {dimension_numbers = #tpu.dot_dimension_numbers<[1], [0], [0], [1], [0, 0, 1, 1], [], []>} : vector<8x16xbf16>, vector<16x1536xbf16>, vector<8x1536xf32> -> vector<8x1536xf32>
    %41 = vector.extract_strided_slice %40 {offsets = [0, 0], sizes = [8, 512], strides = [1, 1]} : vector<8x1536xf32> to vector<8x512xf32>
    %c0_32 = arith.constant 0 : index
    %c0_33 = arith.constant 0 : index
    %42 = vector.load %arg10[%c0_32, %c0_33] : memref<1x512xf32, #tpu.memory_space<vmem>>, vector<1x512xf32>
    %43 = vector.broadcast %42 : vector<1x512xf32> to vector<8x512xf32>
    %44 = arith.addf %41, %43 : vector<8x512xf32>
    %45 = vector.extract_strided_slice %40 {offsets = [0, 512], sizes = [8, 512], strides = [1, 1]} : vector<8x1536xf32> to vector<8x512xf32>
    %c0_34 = arith.constant 0 : index
    %c0_35 = arith.constant 0 : index
    %46 = vector.load %arg11[%c0_34, %c0_35] : memref<1x512xf32, #tpu.memory_space<vmem>>, vector<1x512xf32>
    %47 = vector.broadcast %46 : vector<1x512xf32> to vector<8x512xf32>
    %48 = arith.addf %45, %47 : vector<8x512xf32>
    %49 = vector.extract_strided_slice %40 {offsets = [0, 1024], sizes = [8, 512], strides = [1, 1]} : vector<8x1536xf32> to vector<8x512xf32>
    %c0_36 = arith.constant 0 : index
    %c0_37 = arith.constant 0 : index
    %50 = vector.load %arg12[%c0_36, %c0_37] : memref<1x512xf32, #tpu.memory_space<vmem>>, vector<1x512xf32>
    %51 = vector.broadcast %50 : vector<1x512xf32> to vector<8x512xf32>
    %52 = arith.addf %49, %51 : vector<8x512xf32>
    %53 = vector.extract_strided_slice %22 {offsets = [0, 512], sizes = [8, 512], strides = [1, 1]} : vector<8x1024xf32> to vector<8x512xf32>
    %54 = arith.addf %53, %44 : vector<8x512xf32>
    %cst_38 = arith.constant 0.000000e+00 : f32
    %55 = vector.broadcast %cst_38 : f32 to vector<8x512xf32>
    %56 = arith.cmpf ogt, %54, %55 : vector<8x512xf32>
    %cst_39 = arith.constant 0.00999999977 : f32
    %57 = vector.broadcast %cst_39 : f32 to vector<8x512xf32>
    %58 = arith.mulf %57, %54 : vector<8x512xf32>
    %59 = arith.select %56, %54, %58 : vector<8x512xi1>, vector<8x512xf32>
    %c0_40 = arith.constant 0 : index
    %c0_41 = arith.constant 0 : index
    %60 = vector.load %arg13[%c0_40, %c0_41] : memref<512x512xbf16, #tpu.memory_space<vmem>>, vector<512x512xbf16>
    %c0_42 = arith.constant 0 : index
    %c0_43 = arith.constant 0 : index
    %61 = vector.load %arg14[%c0_42, %c0_43] : memref<512x512xbf16, #tpu.memory_space<vmem>>, vector<512x512xbf16>
    %c0_44 = arith.constant 0 : index
    %c0_45 = arith.constant 0 : index
    %62 = vector.load %arg15[%c0_44, %c0_45] : memref<1x512xf32, #tpu.memory_space<vmem>>, vector<1x512xf32>
    %63 = arith.truncf %59 : vector<8x512xf32> to vector<8x512xbf16>
    %cst_46 = arith.constant dense<0.000000e+00> : vector<8x512xf32>
    %64 = tpu.matmul %63, %60, %cst_46 {dimension_numbers = #tpu.dot_dimension_numbers<[1], [0], [0], [1], [0, 0, 1, 1], [], []>} : vector<8x512xbf16>, vector<512x512xbf16>, vector<8x512xf32> -> vector<8x512xf32>
    %65 = arith.addf %64, %48 : vector<8x512xf32>
    %cst_47 = arith.constant 0.000000e+00 : f32
    %66 = vector.broadcast %cst_47 : f32 to vector<8x512xf32>
    %67 = arith.cmpf ogt, %65, %66 : vector<8x512xf32>
    %cst_48 = arith.constant 0.00999999977 : f32
    %68 = vector.broadcast %cst_48 : f32 to vector<8x512xf32>
    %69 = arith.mulf %68, %65 : vector<8x512xf32>
    %70 = arith.select %67, %65, %69 : vector<8x512xi1>, vector<8x512xf32>
    %71 = arith.truncf %70 : vector<8x512xf32> to vector<8x512xbf16>
    %cst_49 = arith.constant dense<0.000000e+00> : vector<8x512xf32>
    %72 = tpu.matmul %71, %61, %cst_49 {dimension_numbers = #tpu.dot_dimension_numbers<[1], [0], [0], [1], [0, 0, 1, 1], [], []>} : vector<8x512xbf16>, vector<512x512xbf16>, vector<8x512xf32> -> vector<8x512xf32>
    %73 = vector.broadcast %62 : vector<1x512xf32> to vector<8x512xf32>
    %74 = arith.addf %72, %73 : vector<8x512xf32>
    %75 = arith.truncf %74 : vector<8x512xf32> to vector<8x512xbf16>
    %cst_50 = arith.constant dense<0.000000e+00> : vector<8x512xf32>
    %76 = tpu.matmul %75, %60, %cst_50 {dimension_numbers = #tpu.dot_dimension_numbers<[1], [0], [0], [1], [0, 0, 1, 1], [], []>} : vector<8x512xbf16>, vector<512x512xbf16>, vector<8x512xf32> -> vector<8x512xf32>
    %77 = arith.addf %76, %48 : vector<8x512xf32>
    %cst_51 = arith.constant 0.000000e+00 : f32
    %78 = vector.broadcast %cst_51 : f32 to vector<8x512xf32>
    %79 = arith.cmpf ogt, %77, %78 : vector<8x512xf32>
    %cst_52 = arith.constant 0.00999999977 : f32
    %80 = vector.broadcast %cst_52 : f32 to vector<8x512xf32>
    %81 = arith.mulf %80, %77 : vector<8x512xf32>
    %82 = arith.select %79, %77, %81 : vector<8x512xi1>, vector<8x512xf32>
    %83 = arith.truncf %82 : vector<8x512xf32> to vector<8x512xbf16>
    %cst_53 = arith.constant dense<0.000000e+00> : vector<8x512xf32>
    %84 = tpu.matmul %83, %61, %cst_53 {dimension_numbers = #tpu.dot_dimension_numbers<[1], [0], [0], [1], [0, 0, 1, 1], [], []>} : vector<8x512xbf16>, vector<512x512xbf16>, vector<8x512xf32> -> vector<8x512xf32>
    %85 = vector.broadcast %62 : vector<1x512xf32> to vector<8x512xf32>
    %86 = arith.addf %84, %85 : vector<8x512xf32>
    %87 = arith.addf %86, %59 : vector<8x512xf32>
    %88 = arith.truncf %87 : vector<8x512xf32> to vector<8x512xbf16>
    %cst_54 = arith.constant dense<0.000000e+00> : vector<8x512xf32>
    %89 = tpu.matmul %88, %60, %cst_54 {dimension_numbers = #tpu.dot_dimension_numbers<[1], [0], [0], [1], [0, 0, 1, 1], [], []>} : vector<8x512xbf16>, vector<512x512xbf16>, vector<8x512xf32> -> vector<8x512xf32>
    %90 = arith.addf %89, %48 : vector<8x512xf32>
    %cst_55 = arith.constant 0.000000e+00 : f32
    %91 = vector.broadcast %cst_55 : f32 to vector<8x512xf32>
    %92 = arith.cmpf ogt, %90, %91 : vector<8x512xf32>
    %cst_56 = arith.constant 0.00999999977 : f32
    %93 = vector.broadcast %cst_56 : f32 to vector<8x512xf32>
    %94 = arith.mulf %93, %90 : vector<8x512xf32>
    %95 = arith.select %92, %90, %94 : vector<8x512xi1>, vector<8x512xf32>
    %96 = arith.truncf %95 : vector<8x512xf32> to vector<8x512xbf16>
    %cst_57 = arith.constant dense<0.000000e+00> : vector<8x512xf32>
    %97 = tpu.matmul %96, %61, %cst_57 {dimension_numbers = #tpu.dot_dimension_numbers<[1], [0], [0], [1], [0, 0, 1, 1], [], []>} : vector<8x512xbf16>, vector<512x512xbf16>, vector<8x512xf32> -> vector<8x512xf32>
    %98 = vector.broadcast %62 : vector<1x512xf32> to vector<8x512xf32>
    %99 = arith.addf %97, %98 : vector<8x512xf32>
    %100 = arith.truncf %99 : vector<8x512xf32> to vector<8x512xbf16>
    %cst_58 = arith.constant dense<0.000000e+00> : vector<8x512xf32>
    %101 = tpu.matmul %100, %60, %cst_58 {dimension_numbers = #tpu.dot_dimension_numbers<[1], [0], [0], [1], [0, 0, 1, 1], [], []>} : vector<8x512xbf16>, vector<512x512xbf16>, vector<8x512xf32> -> vector<8x512xf32>
    %102 = arith.addf %101, %48 : vector<8x512xf32>
    %cst_59 = arith.constant 0.000000e+00 : f32
    %103 = vector.broadcast %cst_59 : f32 to vector<8x512xf32>
    %104 = arith.cmpf ogt, %102, %103 : vector<8x512xf32>
    %cst_60 = arith.constant 0.00999999977 : f32
    %105 = vector.broadcast %cst_60 : f32 to vector<8x512xf32>
    %106 = arith.mulf %105, %102 : vector<8x512xf32>
    %107 = arith.select %104, %102, %106 : vector<8x512xi1>, vector<8x512xf32>
    %108 = arith.truncf %107 : vector<8x512xf32> to vector<8x512xbf16>
    %cst_61 = arith.constant dense<0.000000e+00> : vector<8x512xf32>
    %109 = tpu.matmul %108, %61, %cst_61 {dimension_numbers = #tpu.dot_dimension_numbers<[1], [0], [0], [1], [0, 0, 1, 1], [], []>} : vector<8x512xbf16>, vector<512x512xbf16>, vector<8x512xf32> -> vector<8x512xf32>
    %110 = vector.broadcast %62 : vector<1x512xf32> to vector<8x512xf32>
    %111 = arith.addf %109, %110 : vector<8x512xf32>
    %112 = arith.addf %111, %87 : vector<8x512xf32>
    %113 = arith.truncf %112 : vector<8x512xf32> to vector<8x512xbf16>
    %c0_62 = arith.constant 0 : index
    %c0_63 = arith.constant 0 : index
    %114 = vector.load %arg16[%c0_62, %c0_63] : memref<512x512xbf16, #tpu.memory_space<vmem>>, vector<512x512xbf16>
    %cst_64 = arith.constant dense<0.000000e+00> : vector<8x512xf32>
    %115 = tpu.matmul %113, %114, %cst_64 {dimension_numbers = #tpu.dot_dimension_numbers<[1], [0], [0], [1], [0, 0, 1, 1], [], []>} : vector<8x512xbf16>, vector<512x512xbf16>, vector<8x512xf32> -> vector<8x512xf32>
    %116 = arith.addf %115, %52 : vector<8x512xf32>
    %c0_65 = arith.constant 0 : index
    %c0_66 = arith.constant 0 : index
    %117 = vector.load %arg18[%c0_65, %c0_66] : memref<8x512xf32, #tpu.memory_space<vmem>>, vector<8x512xf32>
    tpu.vector_store %arg18[%c0_65, %c0_66], %116 {strides = array<i32>} : memref<8x512xf32, #tpu.memory_space<vmem>>, vector<8x512xf32>,
    return
  }
}

</mosaic_0001>

<llo_original>
// kernel: tpu_custom_call.1
$region0: #{tpu_custom_call.1}
  #allocation0 [shape = 'u32[]', space=smem, size = 0x4, offset = 0x4, fixed_abs, tag = 'smem constant byte address 0x4 - core index']
  #allocation1 [shape = 'u32[144,128]{1,0:T(1,128)}', space=vmem, size = 0x12000, scoped, tag = 'internal scratch']
  %s0 = inlined_call_operand.vmem [shape: f32[16,32], index: 0, kind: input, shape index: {}]
  %s1 = inlined_call_operand.vmem [shape: f32[8,16], index: 1, kind: input, shape index: {}]
  %s2 = inlined_call_operand.vmem [shape: bf16[32,512], index: 2, kind: input, shape index: {}]
  %s3 = inlined_call_operand.vmem [shape: f32[1,512], index: 3, kind: input, shape index: {}]
  %s4 = inlined_call_operand.hbm [shape: bf16[512,1024], index: 4, kind: input, shape index: {}]
  %s5 = inlined_call_operand.hbm [shape: bf16[512,512], index: 5, kind: input, shape index: {}]
  %s6 = inlined_call_operand.vmem [shape: f32[1,512], index: 6, kind: input, shape index: {}]
  %s7 = inlined_call_operand.vmem [shape: bf16[512,16], index: 7, kind: input, shape index: {}]
  %s8 = inlined_call_operand.vmem [shape: f32[1,16], index: 8, kind: input, shape index: {}]
  %s9 = inlined_call_operand.vmem [shape: bf16[16,1536], index: 9, kind: input, shape index: {}]
  %s10 = inlined_call_operand.vmem [shape: f32[1,512], index: 10, kind: input, shape index: {}]
  %s11 = inlined_call_operand.vmem [shape: f32[1,512], index: 11, kind: input, shape index: {}]
  %s12 = inlined_call_operand.vmem [shape: f32[1,512], index: 12, kind: input, shape index: {}]
  %s13 = inlined_call_operand.hbm [shape: bf16[512,512], index: 13, kind: input, shape index: {}]
  %s14 = inlined_call_operand.hbm [shape: bf16[512,512], index: 14, kind: input, shape index: {}]
  %s15 = inlined_call_operand.vmem [shape: f32[1,512], index: 15, kind: input, shape index: {}]
  %s16 = inlined_call_operand.hbm [shape: bf16[512,512], index: 16, kind: input, shape index: {}]
  %s17 = inlined_call_operand.hbm [shape: f32[8,512], index: 17, kind: output, shape index: {0}]
  %s18 = inlined_call_operand.hbm [shape: f32[8,512], index: 18, kind: output, shape index: {1}]
  %s19 = inlined_call_operand.hbm [shape: f32[8,16], index: 19, kind: output, shape index: {2}]
  %s20 = inlined_call_operand.vmem [shape: f32[8,1], index: 20, kind: output, shape index: {3}]
  %21 = xla_tuple %s17, %s18, %s19, %s20
  %s22 = sld [smem:[#allocation0]]
  $region122: #{tpu_custom_call.1} parent=0
    _
  %s24 = ssub.s32 1, %s22
  %s25 = scalar_select 0, %s24, %s22
  $region1: #{tpu_custom_call.1} parent=0
    #allocation2 [shape = 'u8[1048576]{0}', space=vmem, size = 0x100000, scoped, tag = 'input window, operand 4, single buffered']
    #allocation3 [shape = 's32[1]{0}', space=sflag, size = 0x4, scoped, tag = 'scoped memory for tpu_custom_call.1']
    #allocation4 [shape = 's32[1]{0}', space=sflag, size = 0x4, scoped, tag = 'scoped memory for tpu_custom_call.1']
    #allocation5 [shape = 'u8[524288]{0}', space=vmem, size = 0x80000, scoped, tag = 'input window, operand 5, single buffered']
    #allocation6 [shape = 's32[1]{0}', space=sflag, size = 0x4, scoped, tag = 'scoped memory for tpu_custom_call.1']
    #allocation7 [shape = 'u8[524288]{0}', space=vmem, size = 0x80000, scoped, tag = 'input window, operand 13, single buffered']
    #allocation8 [shape = 'u8[524288]{0}', space=vmem, size = 0x80000, scoped, tag = 'input window, operand 14, single buffered']
    #allocation9 [shape = 's32[1]{0}', space=sflag, size = 0x4, scoped, tag = 'scoped memory for tpu_custom_call.1']
    #allocation10 [shape = 'u8[524288]{0}', space=vmem, size = 0x80000, scoped, tag = 'input window, operand 16, single buffered']
    #allocation11 [shape = 'u8[16384]{0}', space=vmem, size = 0x4000, scoped, tag = 'output window, operand 0, single buffered']
    #allocation12 [shape = 'u8[16384]{0}', space=vmem, size = 0x4000, scoped, tag = 'output window, operand 1, single buffered']
    #allocation13 [shape = 's32[1]{0}', space=sflag, size = 0x4, scoped, tag = 'scoped memory for tpu_custom_call.1']
    #allocation14 [shape = 'u8[4096]{0}', space=vmem, size = 0x1000, scoped, tag = 'output window, operand 2, single buffered']
    %26 = vsyncpa [#allocation3], 0
    %27 = vsyncpa [#allocation6], 0
    %28 = vsyncpa [#allocation9], 0
    %29 = vsyncpa [#allocation4], 0
    %30 = vsyncpa [#allocation13], 0
    // Predicated region
    $region2: #{tpu_custom_call.1} parent=1 // pred_check
      _
    $region3: #{tpu_custom_call.1} parent=1 // pred_check_branch
      %32 = sbr.rel (0) target = $region5
    $region4: #{tpu_custom_call.1} parent=1 // pred_region
      _
    $region5: #{tpu_custom_call.1} parent=1 // pred_fallthru
      _
    // Predicated region
    $region6: #{tpu_custom_call.1} parent=1 // pred_check
      _
    $region7: #{tpu_custom_call.1} parent=1 // pred_check_branch
      %34 = sbr.rel (0) target = $region9
    $region8: #{tpu_custom_call.1} parent=1 // pred_region
      _
    $region9: #{tpu_custom_call.1} parent=1 // pred_fallthru
      _
    // Predicated region
    $region10: #{tpu_custom_call.1} parent=1 // pred_check
      _
    $region11: #{tpu_custom_call.1} parent=1 // pred_check_branch
      %36 = sbr.rel (0) target = $region13
    $region12: #{tpu_custom_call.1} parent=1 // pred_region
      _
    $region13: #{tpu_custom_call.1} parent=1 // pred_fallthru
      _
    // Predicated region
    $region14: #{tpu_custom_call.1} parent=1 // pred_check
      _
    $region15: #{tpu_custom_call.1} parent=1 // pred_check_branch
      %38 = sbr.rel (0) target = $region17
    $region16: #{tpu_custom_call.1} parent=1 // pred_region
      _
    $region17: #{tpu_custom_call.1} parent=1 // pred_fallthru
      _
    // Predicated region
    $region18: #{tpu_custom_call.1} parent=1 // pred_check
      _
    $region19: #{tpu_custom_call.1} parent=1 // pred_check_branch
      %40 = sbr.rel (0) target = $region21
    $region20: #{tpu_custom_call.1} parent=1 // pred_region
      %s42 = ssub.s32 32768, 32768
      %43 = vsyncadd [#allocation3], %s42
      %s44 = sshll.u32 [#allocation2], 4
      %s45 = int_to_ptr.vmem [resolvable:$true] %s44
      %50 = dma.hbm_to_vmem [thread:$0]  %s4, 32768, %s45, [#allocation3], 512, 512, 32
    $region21: #{tpu_custom_call.1} parent=1 // pred_fallthru
      _
    // Predicated region
    $region22: #{tpu_custom_call.1} parent=1 // pred_check
      _
    $region23: #{tpu_custom_call.1} parent=1 // pred_check_branch
      %52 = sbr.rel (0) target = $region25
    $region24: #{tpu_custom_call.1} parent=1 // pred_region
      %s54 = ssub.s32 16384, 16384
      %55 = vsyncadd [#allocation6], %s54
      %s56 = sshll.u32 [#allocation5], 4
      %s57 = int_to_ptr.vmem [resolvable:$true] %s56
      %62 = dma.hbm_to_vmem [thread:$0]  %s5, 16384, %s57, [#allocation6], 256, 256, 16
    $region25: #{tpu_custom_call.1} parent=1 // pred_fallthru
      _
    // Predicated region
    $region26: #{tpu_custom_call.1} parent=1 // pred_check
      _
    $region27: #{tpu_custom_call.1} parent=1 // pred_check_branch
      %64 = sbr.rel (0) target = $region29
    $region28: #{tpu_custom_call.1} parent=1 // pred_region
      _
    $region29: #{tpu_custom_call.1} parent=1 // pred_fallthru
      _
    // Predicated region
    $region30: #{tpu_custom_call.1} parent=1 // pred_check
      _
    $region31: #{tpu_custom_call.1} parent=1 // pred_check_branch
      %66 = sbr.rel (0) target = $region33
    $region32: #{tpu_custom_call.1} parent=1 // pred_region
      _
    $region33: #{tpu_custom_call.1} parent=1 // pred_fallthru
      _
    // Predicated region
    $region34: #{tpu_custom_call.1} parent=1 // pred_check
      _
    $region35: #{tpu_custom_call.1} parent=1 // pred_check_branch
      %68 = sbr.rel (0) target = $region37
    $region36: #{tpu_custom_call.1} parent=1 // pred_region
      _
    $region37: #{tpu_custom_call.1} parent=1 // pred_fallthru
      _
    // Predicated region
    $region38: #{tpu_custom_call.1} parent=1 // pred_check
      _
    $region39: #{tpu_custom_call.1} parent=1 // pred_check_branch
      %70 = sbr.rel (0) target = $region41
    $region40: #{tpu_custom_call.1} parent=1 // pred_region
      _
    $region41: #{tpu_custom_call.1} parent=1 // pred_fallthru
      _
    // Predicated region
    $region42: #{tpu_custom_call.1} parent=1 // pred_check
      _
    $region43: #{tpu_custom_call.1} parent=1 // pred_check_branch
      %72 = sbr.rel (0) target = $region45
    $region44: #{tpu_custom_call.1} parent=1 // pred_region
      _
    $region45: #{tpu_custom_call.1} parent=1 // pred_fallthru
      _
    // Predicated region
    $region46: #{tpu_custom_call.1} parent=1 // pred_check
      _
    $region47: #{tpu_custom_call.1} parent=1 // pred_check_branch
      %74 = sbr.rel (0) target = $region49
    $region48: #{tpu_custom_call.1} parent=1 // pred_region
      _
    $region49: #{tpu_custom_call.1} parent=1 // pred_fallthru
      _
    // Predicated region
    $region50: #{tpu_custom_call.1} parent=1 // pred_check
      _
    $region51: #{tpu_custom_call.1} parent=1 // pred_check_branch
      %76 = sbr.rel (0) target = $region53
    $region52: #{tpu_custom_call.1} parent=1 // pred_region
      _
    $region53: #{tpu_custom_call.1} parent=1 // pred_fallthru
      _
    // Predicated region
    $region54: #{tpu_custom_call.1} parent=1 // pred_check
      _
    $region55: #{tpu_custom_call.1} parent=1 // pred_check_branch
      %78 = sbr.rel (0) target = $region57
    $region56: #{tpu_custom_call.1} parent=1 // pred_region
      %s80 = ssub.s32 16384, 16384
      %81 = vsyncadd [#allocation6], %s80
      %s82 = sshll.u32 [#allocation7], 4
      %s83 = int_to_ptr.vmem [resolvable:$true] %s82
      %88 = dma.hbm_to_vmem [thread:$0]  %s13, 16384, %s83, [#allocation6], 256, 256, 16
    $region57: #{tpu_custom_call.1} parent=1 // pred_fallthru
      _
    // Predicated region
    $region58: #{tpu_custom_call.1} parent=1 // pred_check
      _
    $region59: #{tpu_custom_call.1} parent=1 // pred_check_branch
      %90 = sbr.rel (0) target = $region61
    $region60: #{tpu_custom_call.1} parent=1 // pred_region
      %s92 = ssub.s32 16384, 16384
      %93 = vsyncadd [#allocation9], %s92
      %s94 = sshll.u32 [#allocation8], 4
      %s95 = int_to_ptr.vmem [resolvable:$true] %s94
      %100 = dma.hbm_to_vmem [thread:$0]  %s14, 16384, %s95, [#allocation9], 256, 256, 16
    $region61: #{tpu_custom_call.1} parent=1 // pred_fallthru
      _
    // Predicated region
    $region62: #{tpu_custom_call.1} parent=1 // pred_check
      _
    $region63: #{tpu_custom_call.1} parent=1 // pred_check_branch
      %102 = sbr.rel (0) target = $region65
    $region64: #{tpu_custom_call.1} parent=1 // pred_region
      _
    $region65: #{tpu_custom_call.1} parent=1 // pred_fallthru
      _
    // Predicated region
    $region66: #{tpu_custom_call.1} parent=1 // pred_check
      _
    $region67: #{tpu_custom_call.1} parent=1 // pred_check_branch
      %104 = sbr.rel (0) target = $region69
    $region68: #{tpu_custom_call.1} parent=1 // pred_region
      %s106 = ssub.s32 16384, 16384
      %107 = vsyncadd [#allocation9], %s106
      %s108 = sshll.u32 [#allocation10], 4
      %s109 = int_to_ptr.vmem [resolvable:$true] %s108
      %114 = dma.hbm_to_vmem [thread:$0]  %s16, 16384, %s109, [#allocation9], 256, 256, 16
    $region69: #{tpu_custom_call.1} parent=1 // pred_fallthru
      _
    // Predicated region
    $region70: #{tpu_custom_call.1} parent=1 // pred_check
      _
    $region71: #{tpu_custom_call.1} parent=1 // pred_check_branch
      %116 = sbr.rel (0) target = $region73
    $region72: #{tpu_custom_call.1} parent=1 // pred_region
      %117 = dma.done [#allocation3], 32768
    $region73: #{tpu_custom_call.1} parent=1 // pred_fallthru
      _
    // Predicated region
    $region74: #{tpu_custom_call.1} parent=1 // pred_check
      _
    $region75: #{tpu_custom_call.1} parent=1 // pred_check_branch
      %119 = sbr.rel (0) target = $region77
    $region76: #{tpu_custom_call.1} parent=1 // pred_region
      %120 = dma.done [#allocation6], 16384
    $region77: #{tpu_custom_call.1} parent=1 // pred_fallthru
      _
    // Predicated region
    $region78: #{tpu_custom_call.1} parent=1 // pred_check
      _
    $region79: #{tpu_custom_call.1} parent=1 // pred_check_branch
      %122 = sbr.rel (0) target = $region81
    $region80: #{tpu_custom_call.1} parent=1 // pred_region
      %123 = dma.done [#allocation6], 16384
    $region81: #{tpu_custom_call.1} parent=1 // pred_fallthru
      _
    // Predicated region
    $region82: #{tpu_custom_call.1} parent=1 // pred_check
      _
    $region83: #{tpu_custom_call.1} parent=1 // pred_check_branch
      %125 = sbr.rel (0) target = $region85
    $region84: #{tpu_custom_call.1} parent=1 // pred_region
      %126 = dma.done [#allocation9], 16384
    $region85: #{tpu_custom_call.1} parent=1 // pred_fallthru
      _
    // Predicated region
    $region86: #{tpu_custom_call.1} parent=1 // pred_check
      _
    $region87: #{tpu_custom_call.1} parent=1 // pred_check_branch
      %128 = sbr.rel (0) target = $region89
    $region88: #{tpu_custom_call.1} parent=1 // pred_region
      %129 = dma.done [#allocation9], 16384
    $region89: #{tpu_custom_call.1} parent=1 // pred_fallthru
      _
    %v131 = vld [vmem:[%s0] sm:$0xff]
    %v132 = vld [vmem:[%s0 + $0x8] sm:$0xff]
    %v133 = vpack.c.bf16 %v132, %v131
    %v134 = vld [vmem:[%s2] sm:$0xff]
    %v135 = vld [vmem:[%s2 + $0x8] sm:$0xff]
    %v136 = vld [vmem:[%s2 + $0x10] sm:$0xff]
    %v137 = vld [vmem:[%s2 + $0x18] sm:$0xff]
    %v138 = vld [vmem:[%s2 + $0x20] sm:$0xff]
    %v139 = vld [vmem:[%s2 + $0x28] sm:$0xff]
    %v140 = vld [vmem:[%s2 + $0x30] sm:$0xff]
    %v141 = vld [vmem:[%s2 + $0x38] sm:$0xff]
    %v142 = vld [vmem:[%s3] sm:$0xf]
    %v144 = vlaneseq
    %v145 = vshrl.u32 %v144, 7
    %v146 = vsub.s32 0, %v145
    %v147 = vrot.slane %v142, %v146
    %v148 = vlaneseq
    %v149 = vshrl.u32 %v148, 7
    %v150 = vsub.s32 1, %v149
    %v151 = vrot.slane %v142, %v150
    %v152 = vlaneseq
    %v153 = vshrl.u32 %v152, 7
    %v154 = vsub.s32 2, %v153
    %v155 = vrot.slane %v142, %v154
    %v156 = vlaneseq
    %v157 = vshrl.u32 %v156, 7
    %v158 = vsub.s32 3, %v157
    %v159 = vrot.slane %v142, %v158
    %v172 = vunpack.c.l.b16 %v134
    %v173 = vunpack.c.h.b16 %v134
    %v174 = vunpack.c.l.b16 %v135
    %v175 = vunpack.c.h.b16 %v135
    %v176 = vunpack.c.l.b16 %v136
    %v177 = vunpack.c.h.b16 %v136
    %v178 = vunpack.c.l.b16 %v137
    %v179 = vunpack.c.h.b16 %v137
    %v180 = vunpack.c.l.b16 %v138
    %v181 = vunpack.c.h.b16 %v138
    %v182 = vunpack.c.l.b16 %v139
    %v183 = vunpack.c.h.b16 %v139
    %v184 = vunpack.c.l.b16 %v140
    %v185 = vunpack.c.h.b16 %v140
    %v186 = vunpack.c.l.b16 %v141
    %v187 = vunpack.c.h.b16 %v141
    %v188 = vpack.c.b16 %v176, %v172
    %v189 = vpack.c.b16 %v177, %v173
    %v190 = vpack.c.b16 %v178, %v174
    %v191 = vpack.c.b16 %v179, %v175
    %v192 = vpack.c.b16 %v184, %v180
    %v193 = vpack.c.b16 %v185, %v181
    %v194 = vpack.c.b16 %v186, %v182
    %v195 = vpack.c.b16 %v187, %v183
    %vm204 = vcmask 261120
    %v206 = vsel %vm204, %v133, 0
    %208 = vmatprep.subr.bf16.mxu0 %v189
    %209 = vmatpush1.bf16.msra.mxu0 %v188
    %210 = vmatprep.subr.bf16.mxu0 %v193
    %211 = vmatpush1.bf16.msra.mxu0 %v192
    %212 = vmatprep.subr.bf16.mxu0 0
    %213 = vmatpush1.bf16.msra.mxu0 0
    %214 = vmatprep.subr.bf16.mxu0 0
    %215 = vmatpush1.bf16.msra.mxu0 0
    %216 = vmatprep.subr.bf16.mxu0 0
    %217 = vmatpush1.bf16.msra.mxu0 0
    %218 = vmatprep.subr.bf16.mxu0 0
    %219 = vmatpush1.bf16.msra.mxu0 0
    %220 = vmatprep.subr.bf16.mxu0 0
    %221 = vmatpush1.bf16.msra.mxu0 0
    %222 = vmatprep.subr.bf16.mxu0 0
    %223 = vmatpush1.bf16.msra.mxu0 0
    %224 = vmatprep.subr.bf16.mxu0 0
    %225 = vmatpush1.bf16.msra.mxu0 0
    %226 = vmatprep.subr.bf16.mxu0 0
    %227 = vmatpush1.bf16.msra.mxu0 0
    %228 = vmatprep.subr.bf16.mxu0 0
    %229 = vmatpush1.bf16.msra.mxu0 0
    %230 = vmatprep.subr.bf16.mxu0 0
    %231 = vmatpush1.bf16.msra.mxu0 0
    %232 = vmatprep.subr.bf16.mxu0 0
    %233 = vmatpush1.bf16.msra.mxu0 0
    %234 = vmatprep.subr.bf16.mxu0 0
    %235 = vmatpush1.bf16.msra.mxu0 0
    %236 = vmatprep.subr.bf16.mxu0 0
    %237 = vmatpush1.bf16.msra.mxu0 0
    %238 = vmatprep.subr.bf16.mxu0 0
    %239 = vmatpush1.bf16.msra.mxu0 0
    %240 = vmatprep.mubr.bf16.mxu0 0
    %241 = vmatmul.mubr.bf16.gmra.mrb[0].mxu0 %v206
    %v242 = vpop.f32.mrb[0].mxu0
    %v243 = vadd.f32 %v147, %v242
    %v244 = vpop.f32.mrb[0].mxu0
    %v245 = vadd.f32 %v151, %v244
    %v246 = vpop.f32.mrb[0].mxu0
    %v247 = vadd.f32 %v147, %v246
    %v248 = vpop.f32.mrb[0].mxu0
    %v249 = vadd.f32 %v151, %v248
    %250 = vdwg.mxu0
    %251 = vmatprep.subr.bf16.mxu0 %v191
    %252 = vmatpush1.bf16.msra.mxu0 %v190
    %253 = vmatprep.subr.bf16.mxu0 %v195
    %254 = vmatpush1.bf16.msra.mxu0 %v194
    %255 = vmatprep.subr.bf16.mxu0 0
    %256 = vmatpush1.bf16.msra.mxu0 0
    %257 = vmatprep.subr.bf16.mxu0 0
    %258 = vmatpush1.bf16.msra.mxu0 0
    %259 = vmatprep.subr.bf16.mxu0 0
    %260 = vmatpush1.bf16.msra.mxu0 0
    %261 = vmatprep.subr.bf16.mxu0 0
    %262 = vmatpush1.bf16.msra.mxu0 0
    %263 = vmatprep.subr.bf16.mxu0 0
    %264 = vmatpush1.bf16.msra.mxu0 0
    %265 = vmatprep.subr.bf16.mxu0 0
    %266 = vmatpush1.bf16.msra.mxu0 0
    %267 = vmatprep.subr.bf16.mxu0 0
    %268 = vmatpush1.bf16.msra.mxu0 0
    %269 = vmatprep.subr.bf16.mxu0 0
    %270 = vmatpush1.bf16.msra.mxu0 0
    %271 = vmatprep.subr.bf16.mxu0 0
    %272 = vmatpush1.bf16.msra.mxu0 0
    %273 = vmatprep.subr.bf16.mxu0 0
    %274 = vmatpush1.bf16.msra.mxu0 0
    %275 = vmatprep.subr.bf16.mxu0 0
    %276 = vmatpush1.bf16.msra.mxu0 0
    %277 = vmatprep.subr.bf16.mxu0 0
    %278 = vmatpush1.bf16.msra.mxu0 0
    %279 = vmatprep.subr.bf16.mxu0 0
    %280 = vmatpush1.bf16.msra.mxu0 0
    %281 = vmatprep.subr.bf16.mxu0 0
    %282 = vmatpush1.bf16.msra.mxu0 0
    %283 = vmatprep.mubr.bf16.mxu0 0
    %284 = vmatmul.mubr.bf16.gmra.mrb[0].mxu0 %v206
    %v285 = vpop.f32.mrb[0].mxu0
    %v286 = vadd.f32 %v155, %v285
    %v287 = vpop.f32.mrb[0].mxu0
    %v288 = vadd.f32 %v159, %v287
    %v289 = vpop.f32.mrb[0].mxu0
    %v290 = vadd.f32 %v155, %v289
    %v291 = vpop.f32.mrb[0].mxu0
    %v292 = vadd.f32 %v159, %v291
    %293 = vdwg.mxu0
    %294 = vst [vmem:[#allocation11] sm:$0xff] %v247
    %295 = vst [vmem:[#allocation11 + $0x8] sm:$0xff] %v249
    %296 = vst [vmem:[#allocation11 + $0x10] sm:$0xff] %v290
    %297 = vst [vmem:[#allocation11 + $0x18] sm:$0xff] %v292
    %v298 = vsub.f32 %v243, %v247
    %v299 = vsub.f32 %v245, %v249
    %v300 = vsub.f32 %v286, %v290
    %v301 = vsub.f32 %v288, %v292
    %v302 = vmul.f32 %v298, %v298
    %v303 = vmul.f32 %v299, %v299
    %v304 = vmul.f32 %v300, %v300
    %v305 = vmul.f32 %v301, %v301
    %v306 = vadd.f32 %v302, %v303
    %v307 = vadd.f32 %v306, %v304
    %v308 = vadd.f32 %v307, %v305
    %309 = vadd.xlane.f32.xlu0 %v308
    %v310 = vpop.xlane.xlu0 %309
    %v311 = vrcp.pop 512.0
    %v312 = vmul.f32 %v310, %v311
    %vm313 = vcmask 7168
    %314 = vst.msk [vmem:[%s20] sm:$0xff] %vm313, %v312
    %v315 = vpack.c.bf16 %v243, %v243
    %v316 = vpack.c.bf16 %v245, %v245
    %v317 = vpack.c.bf16 %v286, %v286
    %v318 = vpack.c.bf16 %v288, %v288
    %v319 = vpack.c.bf16 %v247, %v247
    %v320 = vpack.c.bf16 %v249, %v249
    %v321 = vpack.c.bf16 %v290, %v290
    %v322 = vpack.c.bf16 %v292, %v292
    %v323 = vld [vmem:[%s1] sm:$0xff]
    %v324 = vpack.c.bf16 %v323, %v323
    %v325 = vld [vmem:[#allocation2] sm:$0xff]
    %v326 = vld [vmem:[#allocation2 + $0x8] sm:$0xff]
    %v327 = vld [vmem:[#allocation2 + $0x10] sm:$0xff]
    %v328 = vld [vmem:[#allocation2 + $0x18] sm:$0xff]
    %v329 = vld [vmem:[#allocation2 + $0x20] sm:$0xff]
    %v330 = vld [vmem:[#allocation2 + $0x28] sm:$0xff]
    %v331 = vld [vmem:[#allocation2 + $0x30] sm:$0xff]
    %v332 = vld [vmem:[#allocation2 + $0x38] sm:$0xff]
    %v333 = vld [vmem:[#allocation2 + $0x40] sm:$0xff]
    %v334 = vld [vmem:[#allocation2 + $0x48] sm:$0xff]
    %v335 = vld [vmem:[#allocation2 + $0x50] sm:$0xff]
    %v336 = vld [vmem:[#allocation2 + $0x58] sm:$0xff]
    %v337 = vld [vmem:[#allocation2 + $0x60] sm:$0xff]
    %v338 = vld [vmem:[#allocation2 + $0x68] sm:$0xff]
    %v339 = vld [vmem:[#allocation2 + $0x70] sm:$0xff]
    %v340 = vld [vmem:[#allocation2 + $0x78] sm:$0xff]
    %v341 = vld [vmem:[#allocation2 + $0x80] sm:$0xff]
    %v342 = vld [vmem:[#allocation2 + $0x88] sm:$0xff]
    %v343 = vld [vmem:[#allocation2 + $0x90] sm:$0xff]
    %v344 = vld [vmem:[#allocation2 + $0x98] sm:$0xff]
    %v345 = vld [vmem:[#allocation2 + $0xa0] sm:$0xff]
    %v346 = vld [vmem:[#allocation2 + $0xa8] sm:$0xff]
    %v347 = vld [vmem:[#allocation2 + $0xb0] sm:$0xff]
    %v348 = vld [vmem:[#allocation2 + $0xb8] sm:$0xff]
    %v349 = vld [vmem:[#allocation2 + $0xc0] sm:$0xff]
    %v350 = vld [vmem:[#allocation2 + $0xc8] sm:$0xff]
    %v351 = vld [vmem:[#allocation2 + $0xd0] sm:$0xff]
    %v352 = vld [vmem:[#allocation2 + $0xd8] sm:$0xff]
    %v353 = vld [vmem:[#allocation2 + $0xe0] sm:$0xff]
    %v354 = vld [vmem:[#allocation2 + $0xe8] sm:$0xff]
    %v355 = vld [vmem:[#allocation2 + $0xf0] sm:$0xff]
    %v356 = vld [vmem:[#allocation2 + $0xf8] sm:$0xff]
    %v357 = vld [vmem:[#allocation2 + $0x100] sm:$0xff]
    %v358 = vld [vmem:[#allocation2 + $0x108] sm:$0xff]
    %v359 = vld [vmem:[#allocation2 + $0x110] sm:$0xff]
    %v360 = vld [vmem:[#allocation2 + $0x118] sm:$0xff]
    %v361 = vld [vmem:[#allocation2 + $0x120] sm:$0xff]
    %v362 = vld [vmem:[#allocation2 + $0x128] sm:$0xff]
    %v363 = vld [vmem:[#allocation2 + $0x130] sm:$0xff]
    %v364 = vld [vmem:[#allocation2 + $0x138] sm:$0xff]
    %v365 = vld [vmem:[#allocation2 + $0x140] sm:$0xff]
    %v366 = vld [vmem:[#allocation2 + $0x148] sm:$0xff]
    %v367 = vld [vmem:[#allocation2 + $0x150] sm:$0xff]
    %v368 = vld [vmem:[#allocation2 + $0x158] sm:$0xff]
    %v369 = vld [vmem:[#allocation2 + $0x160] sm:$0xff]
    %v370 = vld [vmem:[#allocation2 + $0x168] sm:$0xff]
    %v371 = vld [vmem:[#allocation2 + $0x170] sm:$0xff]
    %v372 = vld [vmem:[#allocation2 + $0x178] sm:$0xff]
    %v373 = vld [vmem:[#allocation2 + $0x180] sm:$0xff]
    %v374 = vld [vmem:[#allocation2 + $0x188] sm:$0xff]
    %v375 = vld [vmem:[#allocation2 + $0x190] sm:$0xff]
    %v376 = vld [vmem:[#allocation2 + $0x198] sm:$0xff]
    %v377 = vld [vmem:[#allocation2 + $0x1a0] sm:$0xff]
    %v378 = vld [vmem:[#allocation2 + $0x1a8] sm:$0xff]
    %v379 = vld [vmem:[#allocation2 + $0x1b0] sm:$0xff]
    %v380 = vld [vmem:[#allocation2 + $0x1b8] sm:$0xff]
    %v381 = vld [vmem:[#allocation2 + $0x1c0] sm:$0xff]
    %v382 = vld [vmem:[#allocation2 + $0x1c8] sm:$0xff]
    %v383 = vld [vmem:[#allocation2 + $0x1d0] sm:$0xff]
    %v384 = vld [vmem:[#allocation2 + $0x1d8] sm:$0xff]
    %v385 = vld [vmem:[#allocation2 + $0x1e0] sm:$0xff]
    %v386 = vld [vmem:[#allocation2 + $0x1e8] sm:$0xff]
    %v387 = vld [vmem:[#allocation2 + $0x1f0] sm:$0xff]
    %v388 = vld [vmem:[#allocation2 + $0x1f8] sm:$0xff]
    %v389 = vld [vmem:[#allocation2 + $0x200] sm:$0xff]
    %v390 = vld [vmem:[#allocation2 + $0x208] sm:$0xff]
    %v391 = vld [vmem:[#allocation2 + $0x210] sm:$0xff]
    %v392 = vld [vmem:[#allocation2 + $0x218] sm:$0xff]
    %v393 = vld [vmem:[#allocation2 + $0x220] sm:$0xff]
    %v394 = vld [vmem:[#allocation2 + $0x228] sm:$0xff]
    %v395 = vld [vmem:[#allocation2 + $0x230] sm:$0xff]
    %v396 = vld [vmem:[#allocation2 + $0x238] sm:$0xff]
    %v397 = vld [vmem:[#allocation2 + $0x240] sm:$0xff]
    %v398 = vld [vmem:[#allocation2 + $0x248] sm:$0xff]
    %v399 = vld [vmem:[#allocation2 + $0x250] sm:$0xff]
    %v400 = vld [vmem:[#allocation2 + $0x258] sm:$0xff]
    %v401 = vld [vmem:[#allocation2 + $0x260] sm:$0xff]
    %v402 = vld [vmem:[#allocation2 + $0x268] sm:$0xff]
    %v403 = vld [vmem:[#allocation2 + $0x270] sm:$0xff]
    %v404 = vld [vmem:[#allocation2 + $0x278] sm:$0xff]
    %v405 = vld [vmem:[#allocation2 + $0x280] sm:$0xff]
    %v406 = vld [vmem:[#allocation2 + $0x288] sm:$0xff]
    %v407 = vld [vmem:[#allocation2 + $0x290] sm:$0xff]
    %v408 = vld [vmem:[#allocation2 + $0x298] sm:$0xff]
    %v409 = vld [vmem:[#allocation2 + $0x2a0] sm:$0xff]
    %v410 = vld [vmem:[#allocation2 + $0x2a8] sm:$0xff]
    %v411 = vld [vmem:[#allocation2 + $0x2b0] sm:$0xff]
    %v412 = vld [vmem:[#allocation2 + $0x2b8] sm:$0xff]
    %v413 = vld [vmem:[#allocation2 + $0x2c0] sm:$0xff]
    %v414 = vld [vmem:[#allocation2 + $0x2c8] sm:$0xff]
    %v415 = vld [vmem:[#allocation2 + $0x2d0] sm:$0xff]
    %v416 = vld [vmem:[#allocation2 + $0x2d8] sm:$0xff]
    %v417 = vld [vmem:[#allocation2 + $0x2e0] sm:$0xff]
    %v418 = vld [vmem:[#allocation2 + $0x2e8] sm:$0xff]
    %v419 = vld [vmem:[#allocation2 + $0x2f0] sm:$0xff]
    %v420 = vld [vmem:[#allocation2 + $0x2f8] sm:$0xff]
    %v421 = vld [vmem:[#allocation2 + $0x300] sm:$0xff]
    %v422 = vld [vmem:[#allocation2 + $0x308] sm:$0xff]
    %v423 = vld [vmem:[#allocation2 + $0x310] sm:$0xff]
    %v424 = vld [vmem:[#allocation2 + $0x318] sm:$0xff]
    %v425 = vld [vmem:[#allocation2 + $0x320] sm:$0xff]
    %v426 = vld [vmem:[#allocation2 + $0x328] sm:$0xff]
    %v427 = vld [vmem:[#allocation2 + $0x330] sm:$0xff]
    %v428 = vld [vmem:[#allocation2 + $0x338] sm:$0xff]
    %v429 = vld [vmem:[#allocation2 + $0x340] sm:$0xff]
    %v430 = vld [vmem:[#allocation2 + $0x348] sm:$0xff]
    %v431 = vld [vmem:[#allocation2 + $0x350] sm:$0xff]
    %v432 = vld [vmem:[#allocation2 + $0x358] sm:$0xff]
    %v433 = vld [vmem:[#allocation2 + $0x360] sm:$0xff]
    %v434 = vld [vmem:[#allocation2 + $0x368] sm:$0xff]
    %v435 = vld [vmem:[#allocation2 + $0x370] sm:$0xff]
    %v436 = vld [vmem:[#allocation2 + $0x378] sm:$0xff]
    %v437 = vld [vmem:[#allocation2 + $0x380] sm:$0xff]
    %v438 = vld [vmem:[#allocation2 + $0x388] sm:$0xff]
    %v439 = vld [vmem:[#allocation2 + $0x390] sm:$0xff]
    %v440 = vld [vmem:[#allocation2 + $0x398] sm:$0xff]
    %v441 = vld [vmem:[#allocation2 + $0x3a0] sm:$0xff]
    %v442 = vld [vmem:[#allocation2 + $0x3a8] sm:$0xff]
    %v443 = vld [vmem:[#allocation2 + $0x3b0] sm:$0xff]
    %v444 = vld [vmem:[#allocation2 + $0x3b8] sm:$0xff]
    %v445 = vld [vmem:[#allocation2 + $0x3c0] sm:$0xff]
    %v446 = vld [vmem:[#allocation2 + $0x3c8] sm:$0xff]
    %v447 = vld [vmem:[#allocation2 + $0x3d0] sm:$0xff]
    %v448 = vld [vmem:[#allocation2 + $0x3d8] sm:$0xff]
    %v449 = vld [vmem:[#allocation2 + $0x3e0] sm:$0xff]
    %v450 = vld [vmem:[#allocation2 + $0x3e8] sm:$0xff]
    %v451 = vld [vmem:[#allocation2 + $0x3f0] sm:$0xff]
    %v452 = vld [vmem:[#allocation2 + $0x3f8] sm:$0xff]
    %v453 = vld [vmem:[#allocation2 + $0x400] sm:$0xff]
    %v454 = vld [vmem:[#allocation2 + $0x408] sm:$0xff]
    %v455 = vld [vmem:[#allocation2 + $0x410] sm:$0xff]
    %v456 = vld [vmem:[#allocation2 + $0x418] sm:$0xff]
    %v457 = vld [vmem:[#allocation2 + $0x420] sm:$0xff]
    %v458 = vld [vmem:[#allocation2 + $0x428] sm:$0xff]
    %v459 = vld [vmem:[#allocation2 + $0x430] sm:$0xff]
    %v460 = vld [vmem:[#allocation2 + $0x438] sm:$0xff]
    %v461 = vld [vmem:[#allocation2 + $0x440] sm:$0xff]
    %v462 = vld [vmem:[#allocation2 + $0x448] sm:$0xff]
    %v463 = vld [vmem:[#allocation2 + $0x450] sm:$0xff]
    %v464 = vld [vmem:[#allocation2 + $0x458] sm:$0xff]
    %v465 = vld [vmem:[#allocation2 + $0x460] sm:$0xff]
    %v466 = vld [vmem:[#allocation2 + $0x468] sm:$0xff]
    %v467 = vld [vmem:[#allocation2 + $0x470] sm:$0xff]
    %v468 = vld [vmem:[#allocation2 + $0x478] sm:$0xff]
    %v469 = vld [vmem:[#allocation2 + $0x480] sm:$0xff]
    %v470 = vld [vmem:[#allocation2 + $0x488] sm:$0xff]
    %v471 = vld [vmem:[#allocation2 + $0x490] sm:$0xff]
    %v472 = vld [vmem:[#allocation2 + $0x498] sm:$0xff]
    %v473 = vld [vmem:[#allocation2 + $0x4a0] sm:$0xff]
    %v474 = vld [vmem:[#allocation2 + $0x4a8] sm:$0xff]
    %v475 = vld [vmem:[#allocation2 + $0x4b0] sm:$0xff]
    %v476 = vld [vmem:[#allocation2 + $0x4b8] sm:$0xff]
    %v477 = vld [vmem:[#allocation2 + $0x4c0] sm:$0xff]
    %v478 = vld [vmem:[#allocation2 + $0x4c8] sm:$0xff]
    %v479 = vld [vmem:[#allocation2 + $0x4d0] sm:$0xff]
    %v480 = vld [vmem:[#allocation2 + $0x4d8] sm:$0xff]
    %v481 = vld [vmem:[#allocation2 + $0x4e0] sm:$0xff]
    %v482 = vld [vmem:[#allocation2 + $0x4e8] sm:$0xff]
    %v483 = vld [vmem:[#allocation2 + $0x4f0] sm:$0xff]
    %v484 = vld [vmem:[#allocation2 + $0x4f8] sm:$0xff]
    %v485 = vld [vmem:[#allocation2 + $0x500] sm:$0xff]
    %v486 = vld [vmem:[#allocation2 + $0x508] sm:$0xff]
    %v487 = vld [vmem:[#allocation2 + $0x510] sm:$0xff]
    %v488 = vld [vmem:[#allocation2 + $0x518] sm:$0xff]
    %v489 = vld [vmem:[#allocation2 + $0x520] sm:$0xff]
    %v490 = vld [vmem:[#allocation2 + $0x528] sm:$0xff]
    %v491 = vld [vmem:[#allocation2 + $0x530] sm:$0xff]
    %v492 = vld [vmem:[#allocation2 + $0x538] sm:$0xff]
    %v493 = vld [vmem:[#allocation2 + $0x540] sm:$0xff]
    %v494 = vld [vmem:[#allocation2 + $0x548] sm:$0xff]
    %v495 = vld [vmem:[#allocation2 + $0x550] sm:$0xff]
    %v496 = vld [vmem:[#allocation2 + $0x558] sm:$0xff]
    %v497 = vld [vmem:[#allocation2 + $0x560] sm:$0xff]
    %v498 = vld [vmem:[#allocation2 + $0x568] sm:$0xff]
    %v499 = vld [vmem:[#allocation2 + $0x570] sm:$0xff]
    %v500 = vld [vmem:[#allocation2 + $0x578] sm:$0xff]
    %v501 = vld [vmem:[#allocation2 + $0x580] sm:$0xff]
    %v502 = vld [vmem:[#allocation2 + $0x588] sm:$0xff]
    %v503 = vld [vmem:[#allocation2 + $0x590] sm:$0xff]
    %v504 = vld [vmem:[#allocation2 + $0x598] sm:$0xff]
    %v505 = vld [vmem:[#allocation2 + $0x5a0] sm:$0xff]
    %v506 = vld [vmem:[#allocation2 + $0x5a8] sm:$0xff]
    %v507 = vld [vmem:[#allocation2 + $0x5b0] sm:$0xff]
    %v508 = vld [vmem:[#allocation2 + $0x5b8] sm:$0xff]
    %v509 = vld [vmem:[#allocation2 + $0x5c0] sm:$0xff]
    %v510 = vld [vmem:[#allocation2 + $0x5c8] sm:$0xff]
    %v511 = vld [vmem:[#allocation2 + $0x5d0] sm:$0xff]
    %v512 = vld [vmem:[#allocation2 + $0x5d8] sm:$0xff]
    %v513 = vld [vmem:[#allocation2 + $0x5e0] sm:$0xff]
    %v514 = vld [vmem:[#allocation2 + $0x5e8] sm:$0xff]
    %v515 = vld [vmem:[#allocation2 + $0x5f0] sm:$0xff]
    %v516 = vld [vmem:[#allocation2 + $0x5f8] sm:$0xff]
    %v517 = vld [vmem:[#allocation2 + $0x600] sm:$0xff]
    %v518 = vld [vmem:[#allocation2 + $0x608] sm:$0xff]
    %v519 = vld [vmem:[#allocation2 + $0x610] sm:$0xff]
    %v520 = vld [vmem:[#allocation2 + $0x618] sm:$0xff]
    %v521 = vld [vmem:[#allocation2 + $0x620] sm:$0xff]
    %v522 = vld [vmem:[#allocation2 + $0x628] sm:$0xff]
    %v523 = vld [vmem:[#allocation2 + $0x630] sm:$0xff]
    %v524 = vld [vmem:[#allocation2 + $0x638] sm:$0xff]
    %v525 = vld [vmem:[#allocation2 + $0x640] sm:$0xff]
    %v526 = vld [vmem:[#allocation2 + $0x648] sm:$0xff]
    %v527 = vld [vmem:[#allocation2 + $0x650] sm:$0xff]
    %v528 = vld [vmem:[#allocation2 + $0x658] sm:$0xff]
    %v529 = vld [vmem:[#allocation2 + $0x660] sm:$0xff]
    %v530 = vld [vmem:[#allocation2 + $0x668] sm:$0xff]
    %v531 = vld [vmem:[#allocation2 + $0x670] sm:$0xff]
    %v532 = vld [vmem:[#allocation2 + $0x678] sm:$0xff]
    %v533 = vld [vmem:[#allocation2 + $0x680] sm:$0xff]
    %v534 = vld [vmem:[#allocation2 + $0x688] sm:$0xff]
    %v535 = vld [vmem:[#allocation2 + $0x690] sm:$0xff]
    %v536 = vld [vmem:[#allocation2 + $0x698] sm:$0xff]
    %v537 = vld [vmem:[#allocation2 + $0x6a0] sm:$0xff]
    %v538 = vld [vmem:[#allocation2 + $0x6a8] sm:$0xff]
    %v539 = vld [vmem:[#allocation2 + $0x6b0] sm:$0xff]
    %v540 = vld [vmem:[#allocation2 + $0x6b8] sm:$0xff]
    %v541 = vld [vmem:[#allocation2 + $0x6c0] sm:$0xff]
    %v542 = vld [vmem:[#allocation2 + $0x6c8] sm:$0xff]
    %v543 = vld [vmem:[#allocation2 + $0x6d0] sm:$0xff]
    %v544 = vld [vmem:[#allocation2 + $0x6d8] sm:$0xff]
    %v545 = vld [vmem:[#allocation2 + $0x6e0] sm:$0xff]
    %v546 = vld [vmem:[#allocation2 + $0x6e8] sm:$0xff]
    %v547 = vld [vmem:[#allocation2 + $0x6f0] sm:$0xff]
    %v548 = vld [vmem:[#allocation2 + $0x6f8] sm:$0xff]
    %v549 = vld [vmem:[#allocation2 + $0x700] sm:$0xff]
    %v550 = vld [vmem:[#allocation2 + $0x708] sm:$0xff]
    %v551 = vld [vmem:[#allocation2 + $0x710] sm:$0xff]
    %v552 = vld [vmem:[#allocation2 + $0x718] sm:$0xff]
    %v553 = vld [vmem:[#allocation2 + $0x720] sm:$0xff]
    %v554 = vld [vmem:[#allocation2 + $0x728] sm:$0xff]
    %v555 = vld [vmem:[#allocation2 + $0x730] sm:$0xff]
    %v556 = vld [vmem:[#allocation2 + $0x738] sm:$0xff]
    %v557 = vld [vmem:[#allocation2 + $0x740] sm:$0xff]
    %v558 = vld [vmem:[#allocation2 + $0x748] sm:$0xff]
    %v559 = vld [vmem:[#allocation2 + $0x750] sm:$0xff]
    %v560 = vld [vmem:[#allocation2 + $0x758] sm:$0xff]
    %v561 = vld [vmem:[#allocation2 + $0x760] sm:$0xff]
    %v562 = vld [vmem:[#allocation2 + $0x768] sm:$0xff]
    %v563 = vld [vmem:[#allocation2 + $0x770] sm:$0xff]
    %v564 = vld [vmem:[#allocation2 + $0x778] sm:$0xff]
    %v565 = vld [vmem:[#allocation2 + $0x780] sm:$0xff]
    %v566 = vld [vmem:[#allocation2 + $0x788] sm:$0xff]
    %v567 = vld [vmem:[#allocation2 + $0x790] sm:$0xff]
    %v568 = vld [vmem:[#allocation2 + $0x798] sm:$0xff]
    %v569 = vld [vmem:[#allocation2 + $0x7a0] sm:$0xff]
    %v570 = vld [vmem:[#allocation2 + $0x7a8] sm:$0xff]
    %v571 = vld [vmem:[#allocation2 + $0x7b0] sm:$0xff]
    %v572 = vld [vmem:[#allocation2 + $0x7b8] sm:$0xff]
    %v573 = vld [vmem:[#allocation2 + $0x7c0] sm:$0xff]
    %v574 = vld [vmem:[#allocation2 + $0x7c8] sm:$0xff]
    %v575 = vld [vmem:[#allocation2 + $0x7d0] sm:$0xff]
    %v576 = vld [vmem:[#allocation2 + $0x7d8] sm:$0xff]
    %v577 = vld [vmem:[#allocation2 + $0x7e0] sm:$0xff]
    %v578 = vld [vmem:[#allocation2 + $0x7e8] sm:$0xff]
    %v579 = vld [vmem:[#allocation2 + $0x7f0] sm:$0xff]
    %v580 = vld [vmem:[#allocation2 + $0x7f8] sm:$0xff]
    %v837 = vunpack.c.l.b16 %v325
    %v838 = vunpack.c.h.b16 %v325
    %v839 = vunpack.c.l.b16 %v326
    %v840 = vunpack.c.h.b16 %v326
    %v841 = vunpack.c.l.b16 %v327
    %v842 = vunpack.c.h.b16 %v327
    %v843 = vunpack.c.l.b16 %v328
    %v844 = vunpack.c.h.b16 %v328
    %v845 = vunpack.c.l.b16 %v329
    %v846 = vunpack.c.h.b16 %v329
    %v847 = vunpack.c.l.b16 %v330
    %v848 = vunpack.c.h.b16 %v330
    %v849 = vunpack.c.l.b16 %v331
    %v850 = vunpack.c.h.b16 %v331
    %v851 = vunpack.c.l.b16 %v332
    %v852 = vunpack.c.h.b16 %v332
    %v853 = vunpack.c.l.b16 %v333
    %v854 = vunpack.c.h.b16 %v333
    %v855 = vunpack.c.l.b16 %v334
    %v856 = vunpack.c.h.b16 %v334
    %v857 = vunpack.c.l.b16 %v335
    %v858 = vunpack.c.h.b16 %v335
    %v859 = vunpack.c.l.b16 %v336
    %v860 = vunpack.c.h.b16 %v336
    %v861 = vunpack.c.l.b16 %v337
    %v862 = vunpack.c.h.b16 %v337
    %v863 = vunpack.c.l.b16 %v338
    %v864 = vunpack.c.h.b16 %v338
    %v865 = vunpack.c.l.b16 %v339
    %v866 = vunpack.c.h.b16 %v339
    %v867 = vunpack.c.l.b16 %v340
    %v868 = vunpack.c.h.b16 %v340
    %v869 = vunpack.c.l.b16 %v341
    %v870 = vunpack.c.h.b16 %v341
    %v871 = vunpack.c.l.b16 %v342
    %v872 = vunpack.c.h.b16 %v342
    %v873 = vunpack.c.l.b16 %v343
    %v874 = vunpack.c.h.b16 %v343
    %v875 = vunpack.c.l.b16 %v344
    %v876 = vunpack.c.h.b16 %v344
    %v877 = vunpack.c.l.b16 %v345
    %v878 = vunpack.c.h.b16 %v345
    %v879 = vunpack.c.l.b16 %v346
    %v880 = vunpack.c.h.b16 %v346
    %v881 = vunpack.c.l.b16 %v347
    %v882 = vunpack.c.h.b16 %v347
    %v883 = vunpack.c.l.b16 %v348
    %v884 = vunpack.c.h.b16 %v348
    %v885 = vunpack.c.l.b16 %v349
    %v886 = vunpack.c.h.b16 %v349
    %v887 = vunpack.c.l.b16 %v350
    %v888 = vunpack.c.h.b16 %v350
    %v889 = vunpack.c.l.b16 %v351
    %v890 = vunpack.c.h.b16 %v351
    %v891 = vunpack.c.l.b16 %v352
    %v892 = vunpack.c.h.b16 %v352
    %v893 = vunpack.c.l.b16 %v353
    %v894 = vunpack.c.h.b16 %v353
    %v895 = vunpack.c.l.b16 %v354
    %v896 = vunpack.c.h.b16 %v354
    %v897 = vunpack.c.l.b16 %v355
    %v898 = vunpack.c.h.b16 %v355
    %v899 = vunpack.c.l.b16 %v356
    %v900 = vunpack.c.h.b16 %v356
    %v901 = vunpack.c.l.b16 %v357
    %v902 = vunpack.c.h.b16 %v357
    %v903 = vunpack.c.l.b16 %v358
    %v904 = vunpack.c.h.b16 %v358
    %v905 = vunpack.c.l.b16 %v359
    %v906 = vunpack.c.h.b16 %v359
    %v907 = vunpack.c.l.b16 %v360
    %v908 = vunpack.c.h.b16 %v360
    %v909 = vunpack.c.l.b16 %v361
    %v910 = vunpack.c.h.b16 %v361
    %v911 = vunpack.c.l.b16 %v362
    %v912 = vunpack.c.h.b16 %v362
    %v913 = vunpack.c.l.b16 %v363
    %v914 = vunpack.c.h.b16 %v363
    %v915 = vunpack.c.l.b16 %v364
    %v916 = vunpack.c.h.b16 %v364
    %v917 = vunpack.c.l.b16 %v365
    %v918 = vunpack.c.h.b16 %v365
    %v919 = vunpack.c.l.b16 %v366
    %v920 = vunpack.c.h.b16 %v366
    %v921 = vunpack.c.l.b16 %v367
    %v922 = vunpack.c.h.b16 %v367
    %v923 = vunpack.c.l.b16 %v368
    %v924 = vunpack.c.h.b16 %v368
    %v925 = vunpack.c.l.b16 %v369
    %v926 = vunpack.c.h.b16 %v369
    %v927 = vunpack.c.l.b16 %v370
    %v928 = vunpack.c.h.b16 %v370
    %v929 = vunpack.c.l.b16 %v371
    %v930 = vunpack.c.h.b16 %v371
    %v931 = vunpack.c.l.b16 %v372
    %v932 = vunpack.c.h.b16 %v372
    %v933 = vunpack.c.l.b16 %v373
    %v934 = vunpack.c.h.b16 %v373
    %v935 = vunpack.c.l.b16 %v374
    %v936 = vunpack.c.h.b16 %v374
    %v937 = vunpack.c.l.b16 %v375
    %v938 = vunpack.c.h.b16 %v375
    %v939 = vunpack.c.l.b16 %v376
    %v940 = vunpack.c.h.b16 %v376
    %v941 = vunpack.c.l.b16 %v377
    %v942 = vunpack.c.h.b16 %v377
    %v943 = vunpack.c.l.b16 %v378
    %v944 = vunpack.c.h.b16 %v378
    %v945 = vunpack.c.l.b16 %v379
    %v946 = vunpack.c.h.b16 %v379
    %v947 = vunpack.c.l.b16 %v380
    %v948 = vunpack.c.h.b16 %v380
    %v949 = vunpack.c.l.b16 %v381
    %v950 = vunpack.c.h.b16 %v381
    %v951 = vunpack.c.l.b16 %v382
    %v952 = vunpack.c.h.b16 %v382
    %v953 = vunpack.c.l.b16 %v383
    %v954 = vunpack.c.h.b16 %v383
    %v955 = vunpack.c.l.b16 %v384
    %v956 = vunpack.c.h.b16 %v384
    %v957 = vunpack.c.l.b16 %v385
    %v958 = vunpack.c.h.b16 %v385
    %v959 = vunpack.c.l.b16 %v386
    %v960 = vunpack.c.h.b16 %v386
    %v961 = vunpack.c.l.b16 %v387
    %v962 = vunpack.c.h.b16 %v387
    %v963 = vunpack.c.l.b16 %v388
    %v964 = vunpack.c.h.b16 %v388
    %v965 = vunpack.c.l.b16 %v389
    %v966 = vunpack.c.h.b16 %v389
    %v967 = vunpack.c.l.b16 %v390
    %v968 = vunpack.c.h.b16 %v390
    %v969 = vunpack.c.l.b16 %v391
    %v970 = vunpack.c.h.b16 %v391
    %v971 = vunpack.c.l.b16 %v392
    %v972 = vunpack.c.h.b16 %v392
    %v973 = vunpack.c.l.b16 %v393
    %v974 = vunpack.c.h.b16 %v393
    %v975 = vunpack.c.l.b16 %v394
    %v976 = vunpack.c.h.b16 %v394
    %v977 = vunpack.c.l.b16 %v395
    %v978 = vunpack.c.h.b16 %v395
    %v979 = vunpack.c.l.b16 %v396
    %v980 = vunpack.c.h.b16 %v396
    %v981 = vunpack.c.l.b16 %v397
    %v982 = vunpack.c.h.b16 %v397
    %v983 = vunpack.c.l.b16 %v398
    %v984 = vunpack.c.h.b16 %v398
    %v985 = vunpack.c.l.b16 %v399
    %v986 = vunpack.c.h.b16 %v399
    %v987 = vunpack.c.l.b16 %v400
    %v988 = vunpack.c.h.b16 %v400
    %v989 = vunpack.c.l.b16 %v401
    %v990 = vunpack.c.h.b16 %v401
    %v991 = vunpack.c.l.b16 %v402
    %v992 = vunpack.c.h.b16 %v402
    %v993 = vunpack.c.l.b16 %v403
    %v994 = vunpack.c.h.b16 %v403
    %v995 = vunpack.c.l.b16 %v404
    %v996 = vunpack.c.h.b16 %v404
    %v997 = vunpack.c.l.b16 %v405
    %v998 = vunpack.c.h.b16 %v405
    %v999 = vunpack.c.l.b16 %v406
    %v1000 = vunpack.c.h.b16 %v406
    %v1001 = vunpack.c.l.b16 %v407
    %v1002 = vunpack.c.h.b16 %v407
    %v1003 = vunpack.c.l.b16 %v408
    %v1004 = vunpack.c.h.b16 %v408
    %v1005 = vunpack.c.l.b16 %v409
    %v1006 = vunpack.c.h.b16 %v409
    %v1007 = vunpack.c.l.b16 %v410
    %v1008 = vunpack.c.h.b16 %v410
    %v1009 = vunpack.c.l.b16 %v411
    %v1010 = vunpack.c.h.b16 %v411
    %v1011 = vunpack.c.l.b16 %v412
    %v1012 = vunpack.c.h.b16 %v412
    %v1013 = vunpack.c.l.b16 %v413
    %v1014 = vunpack.c.h.b16 %v413
    %v1015 = vunpack.c.l.b16 %v414
    %v1016 = vunpack.c.h.b16 %v414
    %v1017 = vunpack.c.l.b16 %v415
    %v1018 = vunpack.c.h.b16 %v415
    %v1019 = vunpack.c.l.b16 %v416
    %v1020 = vunpack.c.h.b16 %v416
    %v1021 = vunpack.c.l.b16 %v417
    %v1022 = vunpack.c.h.b16 %v417
    %v1023 = vunpack.c.l.b16 %v418
    %v1024 = vunpack.c.h.b16 %v418
    %v1025 = vunpack.c.l.b16 %v419
    %v1026 = vunpack.c.h.b16 %v419
    %v1027 = vunpack.c.l.b16 %v420
    %v1028 = vunpack.c.h.b16 %v420
    %v1029 = vunpack.c.l.b16 %v421
    %v1030 = vunpack.c.h.b16 %v421
    %v1031 = vunpack.c.l.b16 %v422
    %v1032 = vunpack.c.h.b16 %v422
    %v1033 = vunpack.c.l.b16 %v423
    %v1034 = vunpack.c.h.b16 %v423
    %v1035 = vunpack.c.l.b16 %v424
    %v1036 = vunpack.c.h.b16 %v424
    %v1037 = vunpack.c.l.b16 %v425
    %v1038 = vunpack.c.h.b16 %v425
    %v1039 = vunpack.c.l.b16 %v426
    %v1040 = vunpack.c.h.b16 %v426
    %v1041 = vunpack.c.l.b16 %v427
    %v1042 = vunpack.c.h.b16 %v427
    %v1043 = vunpack.c.l.b16 %v428
    %v1044 = vunpack.c.h.b16 %v428
    %v1045 = vunpack.c.l.b16 %v429
    %v1046 = vunpack.c.h.b16 %v429
    %v1047 = vunpack.c.l.b16 %v430
    %v1048 = vunpack.c.h.b16 %v430
    %v1049 = vunpack.c.l.b16 %v431
    %v1050 = vunpack.c.h.b16 %v431
    %v1051 = vunpack.c.l.b16 %v432
    %v1052 = vunpack.c.h.b16 %v432
    %v1053 = vunpack.c.l.b16 %v433
    %v1054 = vunpack.c.h.b16 %v433
    %v1055 = vunpack.c.l.b16 %v434
    %v1056 = vunpack.c.h.b16 %v434
    %v1057 = vunpack.c.l.b16 %v435
    %v1058 = vunpack.c.h.b16 %v435
    %v1059 = vunpack.c.l.b16 %v436
    %v1060 = vunpack.c.h.b16 %v436
    %v1061 = vunpack.c.l.b16 %v437
    %v1062 = vunpack.c.h.b16 %v437
    %v1063 = vunpack.c.l.b16 %v438
    %v1064 = vunpack.c.h.b16 %v438
    %v1065 = vunpack.c.l.b16 %v439
    %v1066 = vunpack.c.h.b16 %v439
    %v1067 = vunpack.c.l.b16 %v440
    %v1068 = vunpack.c.h.b16 %v440
    %v1069 = vunpack.c.l.b16 %v441
    %v1070 = vunpack.c.h.b16 %v441
    %v1071 = vunpack.c.l.b16 %v442
    %v1072 = vunpack.c.h.b16 %v442
    %v1073 = vunpack.c.l.b16 %v443
    %v1074 = vunpack.c.h.b16 %v443
    %v1075 = vunpack.c.l.b16 %v444
    %v1076 = vunpack.c.h.b16 %v444
    %v1077 = vunpack.c.l.b16 %v445
    %v1078 = vunpack.c.h.b16 %v445
    %v1079 = vunpack.c.l.b16 %v446
    %v1080 = vunpack.c.h.b16 %v446
    %v1081 = vunpack.c.l.b16 %v447
    %v1082 = vunpack.c.h.b16 %v447
    %v1083 = vunpack.c.l.b16 %v448
    %v1084 = vunpack.c.h.b16 %v448
    %v1085 = vunpack.c.l.b16 %v449
    %v1086 = vunpack.c.h.b16 %v449
    %v1087 = vunpack.c.l.b16 %v450
    %v1088 = vunpack.c.h.b16 %v450
    %v1089 = vunpack.c.l.b16 %v451
    %v1090 = vunpack.c.h.b16 %v451
    %v1091 = vunpack.c.l.b16 %v452
    %v1092 = vunpack.c.h.b16 %v452
    %v1093 = vunpack.c.l.b16 %v453
    %v1094 = vunpack.c.h.b16 %v453
    %v1095 = vunpack.c.l.b16 %v454
    %v1096 = vunpack.c.h.b16 %v454
    %v1097 = vunpack.c.l.b16 %v455
    %v1098 = vunpack.c.h.b16 %v455
    %v1099 = vunpack.c.l.b16 %v456
    %v1100 = vunpack.c.h.b16 %v456
    %v1101 = vunpack.c.l.b16 %v457
    %v1102 = vunpack.c.h.b16 %v457
    %v1103 = vunpack.c.l.b16 %v458
    %v1104 = vunpack.c.h.b16 %v458
    %v1105 = vunpack.c.l.b16 %v459
    %v1106 = vunpack.c.h.b16 %v459
    %v1107 = vunpack.c.l.b16 %v460
    %v1108 = vunpack.c.h.b16 %v460
    %v1109 = vunpack.c.l.b16 %v461
    %v1110 = vunpack.c.h.b16 %v461
    %v1111 = vunpack.c.l.b16 %v462
    %v1112 = vunpack.c.h.b16 %v462
    %v1113 = vunpack.c.l.b16 %v463
    %v1114 = vunpack.c.h.b16 %v463
    %v1115 = vunpack.c.l.b16 %v464
    %v1116 = vunpack.c.h.b16 %v464
    %v1117 = vunpack.c.l.b16 %v465
    %v1118 = vunpack.c.h.b16 %v465
    %v1119 = vunpack.c.l.b16 %v466
    %v1120 = vunpack.c.h.b16 %v466
    %v1121 = vunpack.c.l.b16 %v467
    %v1122 = vunpack.c.h.b16 %v467
    %v1123 = vunpack.c.l.b16 %v468
    %v1124 = vunpack.c.h.b16 %v468
    %v1125 = vunpack.c.l.b16 %v469
    %v1126 = vunpack.c.h.b16 %v469
    %v1127 = vunpack.c.l.b16 %v470
    %v1128 = vunpack.c.h.b16 %v470
    %v1129 = vunpack.c.l.b16 %v471
    %v1130 = vunpack.c.h.b16 %v471
    %v1131 = vunpack.c.l.b16 %v472
    %v1132 = vunpack.c.h.b16 %v472
    %v1133 = vunpack.c.l.b16 %v473
    %v1134 = vunpack.c.h.b16 %v473
    %v1135 = vunpack.c.l.b16 %v474
    %v1136 = vunpack.c.h.b16 %v474
    %v1137 = vunpack.c.l.b16 %v475
    %v1138 = vunpack.c.h.b16 %v475
    %v1139 = vunpack.c.l.b16 %v476
    %v1140 = vunpack.c.h.b16 %v476
    %v1141 = vunpack.c.l.b16 %v477
    %v1142 = vunpack.c.h.b16 %v477
    %v1143 = vunpack.c.l.b16 %v478
    %v1144 = vunpack.c.h.b16 %v478
    %v1145 = vunpack.c.l.b16 %v479
    %v1146 = vunpack.c.h.b16 %v479
    %v1147 = vunpack.c.l.b16 %v480
    %v1148 = vunpack.c.h.b16 %v480
    %v1149 = vunpack.c.l.b16 %v481
    %v1150 = vunpack.c.h.b16 %v481
    %v1151 = vunpack.c.l.b16 %v482
    %v1152 = vunpack.c.h.b16 %v482
    %v1153 = vunpack.c.l.b16 %v483
    %v1154 = vunpack.c.h.b16 %v483
    %v1155 = vunpack.c.l.b16 %v484
    %v1156 = vunpack.c.h.b16 %v484
    %v1157 = vunpack.c.l.b16 %v485
    %v1158 = vunpack.c.h.b16 %v485
    %v1159 = vunpack.c.l.b16 %v486
    %v1160 = vunpack.c.h.b16 %v486
    %v1161 = vunpack.c.l.b16 %v487
    %v1162 = vunpack.c.h.b16 %v487
    %v1163 = vunpack.c.l.b16 %v488
    %v1164 = vunpack.c.h.b16 %v488
    %v1165 = vunpack.c.l.b16 %v489
    %v1166 = vunpack.c.h.b16 %v489
    %v1167 = vunpack.c.l.b16 %v490
    %v1168 = vunpack.c.h.b16 %v490
    %v1169 = vunpack.c.l.b16 %v491
    %v1170 = vunpack.c.h.b16 %v491
    %v1171 = vunpack.c.l.b16 %v492
    %v1172 = vunpack.c.h.b16 %v492
    %v1173 = vunpack.c.l.b16 %v493
    %v1174 = vunpack.c.h.b16 %v493
    %v1175 = vunpack.c.l.b16 %v494
    %v1176 = vunpack.c.h.b16 %v494
    %v1177 = vunpack.c.l.b16 %v495
    %v1178 = vunpack.c.h.b16 %v495
    %v1179 = vunpack.c.l.b16 %v496
    %v1180 = vunpack.c.h.b16 %v496
    %v1181 = vunpack.c.l.b16 %v497
    %v1182 = vunpack.c.h.b16 %v497
    %v1183 = vunpack.c.l.b16 %v498
    %v1184 = vunpack.c.h.b16 %v498
    %v1185 = vunpack.c.l.b16 %v499
    %v1186 = vunpack.c.h.b16 %v499
    %v1187 = vunpack.c.l.b16 %v500
    %v1188 = vunpack.c.h.b16 %v500
    %v1189 = vunpack.c.l.b16 %v501
    %v1190 = vunpack.c.h.b16 %v501
    %v1191 = vunpack.c.l.b16 %v502
    %v1192 = vunpack.c.h.b16 %v502
    %v1193 = vunpack.c.l.b16 %v503
    %v1194 = vunpack.c.h.b16 %v503
    %v1195 = vunpack.c.l.b16 %v504
    %v1196 = vunpack.c.h.b16 %v504
    %v1197 = vunpack.c.l.b16 %v505
    %v1198 = vunpack.c.h.b16 %v505
    %v1199 = vunpack.c.l.b16 %v506
    %v1200 = vunpack.c.h.b16 %v506
    %v1201 = vunpack.c.l.b16 %v507
    %v1202 = vunpack.c.h.b16 %v507
    %v1203 = vunpack.c.l.b16 %v508
    %v1204 = vunpack.c.h.b16 %v508
    %v1205 = vunpack.c.l.b16 %v509
    %v1206 = vunpack.c.h.b16 %v509
    %v1207 = vunpack.c.l.b16 %v510
    %v1208 = vunpack.c.h.b16 %v510
    %v1209 = vunpack.c.l.b16 %v511
    %v1210 = vunpack.c.h.b16 %v511
    %v1211 = vunpack.c.l.b16 %v512
    %v1212 = vunpack.c.h.b16 %v512
    %v1213 = vunpack.c.l.b16 %v513
    %v1214 = vunpack.c.h.b16 %v513
    %v1215 = vunpack.c.l.b16 %v514
    %v1216 = vunpack.c.h.b16 %v514
    %v1217 = vunpack.c.l.b16 %v515
    %v1218 = vunpack.c.h.b16 %v515
    %v1219 = vunpack.c.l.b16 %v516
    %v1220 = vunpack.c.h.b16 %v516
    %v1221 = vunpack.c.l.b16 %v517
    %v1222 = vunpack.c.h.b16 %v517
    %v1223 = vunpack.c.l.b16 %v518
    %v1224 = vunpack.c.h.b16 %v518
    %v1225 = vunpack.c.l.b16 %v519
    %v1226 = vunpack.c.h.b16 %v519
    %v1227 = vunpack.c.l.b16 %v520
    %v1228 = vunpack.c.h.b16 %v520
    %v1229 = vunpack.c.l.b16 %v521
    %v1230 = vunpack.c.h.b16 %v521
    %v1231 = vunpack.c.l.b16 %v522
    %v1232 = vunpack.c.h.b16 %v522
    %v1233 = vunpack.c.l.b16 %v523
    %v1234 = vunpack.c.h.b16 %v523
    %v1235 = vunpack.c.l.b16 %v524
    %v1236 = vunpack.c.h.b16 %v524
    %v1237 = vunpack.c.l.b16 %v525
    %v1238 = vunpack.c.h.b16 %v525
    %v1239 = vunpack.c.l.b16 %v526
    %v1240 = vunpack.c.h.b16 %v526
    %v1241 = vunpack.c.l.b16 %v527
    %v1242 = vunpack.c.h.b16 %v527
    %v1243 = vunpack.c.l.b16 %v528
    %v1244 = vunpack.c.h.b16 %v528
    %v1245 = vunpack.c.l.b16 %v529
    %v1246 = vunpack.c.h.b16 %v529
    %v1247 = vunpack.c.l.b16 %v530
    %v1248 = vunpack.c.h.b16 %v530
    %v1249 = vunpack.c.l.b16 %v531
    %v1250 = vunpack.c.h.b16 %v531
    %v1251 = vunpack.c.l.b16 %v532
    %v1252 = vunpack.c.h.b16 %v532
    %v1253 = vunpack.c.l.b16 %v533
    %v1254 = vunpack.c.h.b16 %v533
    %v1255 = vunpack.c.l.b16 %v534
    %v1256 = vunpack.c.h.b16 %v534
    %v1257 = vunpack.c.l.b16 %v535
    %v1258 = vunpack.c.h.b16 %v535
    %v1259 = vunpack.c.l.b16 %v536
    %v1260 = vunpack.c.h.b16 %v536
    %v1261 = vunpack.c.l.b16 %v537
    %v1262 = vunpack.c.h.b16 %v537
    %v1263 = vunpack.c.l.b16 %v538
    %v1264 = vunpack.c.h.b16 %v538
    %v1265 = vunpack.c.l.b16 %v539
    %v1266 = vunpack.c.h.b16 %v539
    %v1267 = vunpack.c.l.b16 %v540
    %v1268 = vunpack.c.h.b16 %v540
    %v1269 = vunpack.c.l.b16 %v541
    %v1270 = vunpack.c.h.b16 %v541
    %v1271 = vunpack.c.l.b16 %v542
    %v1272 = vunpack.c.h.b16 %v542
    %v1273 = vunpack.c.l.b16 %v543
    %v1274 = vunpack.c.h.b16 %v543
    %v1275 = vunpack.c.l.b16 %v544
    %v1276 = vunpack.c.h.b16 %v544
    %v1277 = vunpack.c.l.b16 %v545
    %v1278 = vunpack.c.h.b16 %v545
    %v1279 = vunpack.c.l.b16 %v546
    %v1280 = vunpack.c.h.b16 %v546
    %v1281 = vunpack.c.l.b16 %v547
    %v1282 = vunpack.c.h.b16 %v547
    %v1283 = vunpack.c.l.b16 %v548
    %v1284 = vunpack.c.h.b16 %v548
    %v1285 = vunpack.c.l.b16 %v549
    %v1286 = vunpack.c.h.b16 %v549
    %v1287 = vunpack.c.l.b16 %v550
    %v1288 = vunpack.c.h.b16 %v550
    %v1289 = vunpack.c.l.b16 %v551
    %v1290 = vunpack.c.h.b16 %v551
    %v1291 = vunpack.c.l.b16 %v552
    %v1292 = vunpack.c.h.b16 %v552
    %v1293 = vunpack.c.l.b16 %v553
    %v1294 = vunpack.c.h.b16 %v553
    %v1295 = vunpack.c.l.b16 %v554
    %v1296 = vunpack.c.h.b16 %v554
    %v1297 = vunpack.c.l.b16 %v555
    %v1298 = vunpack.c.h.b16 %v555
    %v1299 = vunpack.c.l.b16 %v556
    %v1300 = vunpack.c.h.b16 %v556
    %v1301 = vunpack.c.l.b16 %v557
    %v1302 = vunpack.c.h.b16 %v557
    %v1303 = vunpack.c.l.b16 %v558
    %v1304 = vunpack.c.h.b16 %v558
    %v1305 = vunpack.c.l.b16 %v559
    %v1306 = vunpack.c.h.b16 %v559
    %v1307 = vunpack.c.l.b16 %v560
    %v1308 = vunpack.c.h.b16 %v560
    %v1309 = vunpack.c.l.b16 %v561
    %v1310 = vunpack.c.h.b16 %v561
    %v1311 = vunpack.c.l.b16 %v562
    %v1312 = vunpack.c.h.b16 %v562
    %v1313 = vunpack.c.l.b16 %v563
    %v1314 = vunpack.c.h.b16 %v563
    %v1315 = vunpack.c.l.b16 %v564
    %v1316 = vunpack.c.h.b16 %v564
    %v1317 = vunpack.c.l.b16 %v565
    %v1318 = vunpack.c.h.b16 %v565
    %v1319 = vunpack.c.l.b16 %v566
    %v1320 = vunpack.c.h.b16 %v566
    %v1321 = vunpack.c.l.b16 %v567
    %v1322 = vunpack.c.h.b16 %v567
    %v1323 = vunpack.c.l.b16 %v568
    %v1324 = vunpack.c.h.b16 %v568
    %v1325 = vunpack.c.l.b16 %v569
    %v1326 = vunpack.c.h.b16 %v569
    %v1327 = vunpack.c.l.b16 %v570
    %v1328 = vunpack.c.h.b16 %v570
    %v1329 = vunpack.c.l.b16 %v571
    %v1330 = vunpack.c.h.b16 %v571
    %v1331 = vunpack.c.l.b16 %v572
    %v1332 = vunpack.c.h.b16 %v572
    %v1333 = vunpack.c.l.b16 %v573
    %v1334 = vunpack.c.h.b16 %v573
    %v1335 = vunpack.c.l.b16 %v574
    %v1336 = vunpack.c.h.b16 %v574
    %v1337 = vunpack.c.l.b16 %v575
    %v1338 = vunpack.c.h.b16 %v575
    %v1339 = vunpack.c.l.b16 %v576
    %v1340 = vunpack.c.h.b16 %v576
    %v1341 = vunpack.c.l.b16 %v577
    %v1342 = vunpack.c.h.b16 %v577
    %v1343 = vunpack.c.l.b16 %v578
    %v1344 = vunpack.c.h.b16 %v578
    %v1345 = vunpack.c.l.b16 %v579
    %v1346 = vunpack.c.h.b16 %v579
    %v1347 = vunpack.c.l.b16 %v580
    %v1348 = vunpack.c.h.b16 %v580
    %v1349 = vpack.c.b16 %v845, %v837
    %v1350 = vpack.c.b16 %v846, %v838
    %v1351 = vpack.c.b16 %v847, %v839
    %v1352 = vpack.c.b16 %v848, %v840
    %v1353 = vpack.c.b16 %v849, %v841
    %v1354 = vpack.c.b16 %v850, %v842
    %v1355 = vpack.c.b16 %v851, %v843
    %v1356 = vpack.c.b16 %v852, %v844
    %v1357 = vpack.c.b16 %v861, %v853
    %v1358 = vpack.c.b16 %v862, %v854
    %v1359 = vpack.c.b16 %v863, %v855
    %v1360 = vpack.c.b16 %v864, %v856
    %v1361 = vpack.c.b16 %v865, %v857
    %v1362 = vpack.c.b16 %v866, %v858
    %v1363 = vpack.c.b16 %v867, %v859
    %v1364 = vpack.c.b16 %v868, %v860
    %v1365 = vpack.c.b16 %v877, %v869
    %v1366 = vpack.c.b16 %v878, %v870
    %v1367 = vpack.c.b16 %v879, %v871
    %v1368 = vpack.c.b16 %v880, %v872
    %v1369 = vpack.c.b16 %v881, %v873
    %v1370 = vpack.c.b16 %v882, %v874
    %v1371 = vpack.c.b16 %v883, %v875
    %v1372 = vpack.c.b16 %v884, %v876
    %v1373 = vpack.c.b16 %v893, %v885
    %v1374 = vpack.c.b16 %v894, %v886
    %v1375 = vpack.c.b16 %v895, %v887
    %v1376 = vpack.c.b16 %v896, %v888
    %v1377 = vpack.c.b16 %v897, %v889
    %v1378 = vpack.c.b16 %v898, %v890
    %v1379 = vpack.c.b16 %v899, %v891
    %v1380 = vpack.c.b16 %v900, %v892
    %v1381 = vpack.c.b16 %v909, %v901
    %v1382 = vpack.c.b16 %v910, %v902
    %v1383 = vpack.c.b16 %v911, %v903
    %v1384 = vpack.c.b16 %v912, %v904
    %v1385 = vpack.c.b16 %v913, %v905
    %v1386 = vpack.c.b16 %v914, %v906
    %v1387 = vpack.c.b16 %v915, %v907
    %v1388 = vpack.c.b16 %v916, %v908
    %v1389 = vpack.c.b16 %v925, %v917
    %v1390 = vpack.c.b16 %v926, %v918
    %v1391 = vpack.c.b16 %v927, %v919
    %v1392 = vpack.c.b16 %v928, %v920
    %v1393 = vpack.c.b16 %v929, %v921
    %v1394 = vpack.c.b16 %v930, %v922
    %v1395 = vpack.c.b16 %v931, %v923
    %v1396 = vpack.c.b16 %v932, %v924
    %v1397 = vpack.c.b16 %v941, %v933
    %v1398 = vpack.c.b16 %v942, %v934
    %v1399 = vpack.c.b16 %v943, %v935
    %v1400 = vpack.c.b16 %v944, %v936
    %v1401 = vpack.c.b16 %v945, %v937
    %v1402 = vpack.c.b16 %v946, %v938
    %v1403 = vpack.c.b16 %v947, %v939
    %v1404 = vpack.c.b16 %v948, %v940
    %v1405 = vpack.c.b16 %v957, %v949
    %v1406 = vpack.c.b16 %v958, %v950
    %v1407 = vpack.c.b16 %v959, %v951
    %v1408 = vpack.c.b16 %v960, %v952
    %v1409 = vpack.c.b16 %v961, %v953
    %v1410 = vpack.c.b16 %v962, %v954
    %v1411 = vpack.c.b16 %v963, %v955
    %v1412 = vpack.c.b16 %v964, %v956
    %v1413 = vpack.c.b16 %v973, %v965
    %v1414 = vpack.c.b16 %v974, %v966
    %v1415 = vpack.c.b16 %v975, %v967
    %v1416 = vpack.c.b16 %v976, %v968
    %v1417 = vpack.c.b16 %v977, %v969
    %v1418 = vpack.c.b16 %v978, %v970
    %v1419 = vpack.c.b16 %v979, %v971
    %v1420 = vpack.c.b16 %v980, %v972
    %v1421 = vpack.c.b16 %v989, %v981
    %v1422 = vpack.c.b16 %v990, %v982
    %v1423 = vpack.c.b16 %v991, %v983
    %v1424 = vpack.c.b16 %v992, %v984
    %v1425 = vpack.c.b16 %v993, %v985
    %v1426 = vpack.c.b16 %v994, %v986
    %v1427 = vpack.c.b16 %v995, %v987
    %v1428 = vpack.c.b16 %v996, %v988
    %v1429 = vpack.c.b16 %v1005, %v997
    %v1430 = vpack.c.b16 %v1006, %v998
    %v1431 = vpack.c.b16 %v1007, %v999
    %v1432 = vpack.c.b16 %v1008, %v1000
    %v1433 = vpack.c.b16 %v1009, %v1001
    %v1434 = vpack.c.b16 %v1010, %v1002
    %v1435 = vpack.c.b16 %v1011, %v1003
    %v1436 = vpack.c.b16 %v1012, %v1004
    %v1437 = vpack.c.b16 %v1021, %v1013
    %v1438 = vpack.c.b16 %v1022, %v1014
    %v1439 = vpack.c.b16 %v1023, %v1015
    %v1440 = vpack.c.b16 %v1024, %v1016
    %v1441 = vpack.c.b16 %v1025, %v1017
    %v1442 = vpack.c.b16 %v1026, %v1018
    %v1443 = vpack.c.b16 %v1027, %v1019
    %v1444 = vpack.c.b16 %v1028, %v1020
    %v1445 = vpack.c.b16 %v1037, %v1029
    %v1446 = vpack.c.b16 %v1038, %v1030
    %v1447 = vpack.c.b16 %v1039, %v1031
    %v1448 = vpack.c.b16 %v1040, %v1032
    %v1449 = vpack.c.b16 %v1041, %v1033
    %v1450 = vpack.c.b16 %v1042, %v1034
    %v1451 = vpack.c.b16 %v1043, %v1035
    %v1452 = vpack.c.b16 %v1044, %v1036
    %v1453 = vpack.c.b16 %v1053, %v1045
    %v1454 = vpack.c.b16 %v1054, %v1046
    %v1455 = vpack.c.b16 %v1055, %v1047
    %v1456 = vpack.c.b16 %v1056, %v1048
    %v1457 = vpack.c.b16 %v1057, %v1049
    %v1458 = vpack.c.b16 %v1058, %v1050
    %v1459 = vpack.c.b16 %v1059, %v1051
    %v1460 = vpack.c.b16 %v1060, %v1052
    %v1461 = vpack.c.b16 %v1069, %v1061
    %v1462 = vpack.c.b16 %v1070, %v1062
    %v1463 = vpack.c.b16 %v1071, %v1063
    %v1464 = vpack.c.b16 %v1072, %v1064
    %v1465 = vpack.c.b16 %v1073, %v1065
    %v1466 = vpack.c.b16 %v1074, %v1066
    %v1467 = vpack.c.b16 %v1075, %v1067
    %v1468 = vpack.c.b16 %v1076, %v1068
    %v1469 = vpack.c.b16 %v1085, %v1077
    %v1470 = vpack.c.b16 %v1086, %v1078
    %v1471 = vpack.c.b16 %v1087, %v1079
    %v1472 = vpack.c.b16 %v1088, %v1080
    %v1473 = vpack.c.b16 %v1089, %v1081
    %v1474 = vpack.c.b16 %v1090, %v1082
    %v1475 = vpack.c.b16 %v1091, %v1083
    %v1476 = vpack.c.b16 %v1092, %v1084
    %v1477 = vpack.c.b16 %v1101, %v1093
    %v1478 = vpack.c.b16 %v1102, %v1094
    %v1479 = vpack.c.b16 %v1103, %v1095
    %v1480 = vpack.c.b16 %v1104, %v1096
    %v1481 = vpack.c.b16 %v1105, %v1097
    %v1482 = vpack.c.b16 %v1106, %v1098
    %v1483 = vpack.c.b16 %v1107, %v1099
    %v1484 = vpack.c.b16 %v1108, %v1100
    %v1485 = vpack.c.b16 %v1117, %v1109
    %v1486 = vpack.c.b16 %v1118, %v1110
    %v1487 = vpack.c.b16 %v1119, %v1111
    %v1488 = vpack.c.b16 %v1120, %v1112
    %v1489 = vpack.c.b16 %v1121, %v1113
    %v1490 = vpack.c.b16 %v1122, %v1114
    %v1491 = vpack.c.b16 %v1123, %v1115
    %v1492 = vpack.c.b16 %v1124, %v1116
    %v1493 = vpack.c.b16 %v1133, %v1125
    %v1494 = vpack.c.b16 %v1134, %v1126
    %v1495 = vpack.c.b16 %v1135, %v1127
    %v1496 = vpack.c.b16 %v1136, %v1128
    %v1497 = vpack.c.b16 %v1137, %v1129
    %v1498 = vpack.c.b16 %v1138, %v1130
    %v1499 = vpack.c.b16 %v1139, %v1131
    %v1500 = vpack.c.b16 %v1140, %v1132
    %v1501 = vpack.c.b16 %v1149, %v1141
    %v1502 = vpack.c.b16 %v1150, %v1142
    %v1503 = vpack.c.b16 %v1151, %v1143
    %v1504 = vpack.c.b16 %v1152, %v1144
    %v1505 = vpack.c.b16 %v1153, %v1145
    %v1506 = vpack.c.b16 %v1154, %v1146
    %v1507 = vpack.c.b16 %v1155, %v1147
    %v1508 = vpack.c.b16 %v1156, %v1148
    %v1509 = vpack.c.b16 %v1165, %v1157
    %v1510 = vpack.c.b16 %v1166, %v1158
    %v1511 = vpack.c.b16 %v1167, %v1159
    %v1512 = vpack.c.b16 %v1168, %v1160
    %v1513 = vpack.c.b16 %v1169, %v1161
    %v1514 = vpack.c.b16 %v1170, %v1162
    %v1515 = vpack.c.b16 %v1171, %v1163
    %v1516 = vpack.c.b16 %v1172, %v1164
    %v1517 = vpack.c.b16 %v1181, %v1173
    %v1518 = vpack.c.b16 %v1182, %v1174
    %v1519 = vpack.c.b16 %v1183, %v1175
    %v1520 = vpack.c.b16 %v1184, %v1176
    %v1521 = vpack.c.b16 %v1185, %v1177
    %v1522 = vpack.c.b16 %v1186, %v1178
    %v1523 = vpack.c.b16 %v1187, %v1179
    %v1524 = vpack.c.b16 %v1188, %v1180
    %v1525 = vpack.c.b16 %v1197, %v1189
    %v1526 = vpack.c.b16 %v1198, %v1190
    %v1527 = vpack.c.b16 %v1199, %v1191
    %v1528 = vpack.c.b16 %v1200, %v1192
    %v1529 = vpack.c.b16 %v1201, %v1193
    %v1530 = vpack.c.b16 %v1202, %v1194
    %v1531 = vpack.c.b16 %v1203, %v1195
    %v1532 = vpack.c.b16 %v1204, %v1196
    %v1533 = vpack.c.b16 %v1213, %v1205
    %v1534 = vpack.c.b16 %v1214, %v1206
    %v1535 = vpack.c.b16 %v1215, %v1207
    %v1536 = vpack.c.b16 %v1216, %v1208
    %v1537 = vpack.c.b16 %v1217, %v1209
    %v1538 = vpack.c.b16 %v1218, %v1210
    %v1539 = vpack.c.b16 %v1219, %v1211
    %v1540 = vpack.c.b16 %v1220, %v1212
    %v1541 = vpack.c.b16 %v1229, %v1221
    %v1542 = vpack.c.b16 %v1230, %v1222
    %v1543 = vpack.c.b16 %v1231, %v1223
    %v1544 = vpack.c.b16 %v1232, %v1224
    %v1545 = vpack.c.b16 %v1233, %v1225
    %v1546 = vpack.c.b16 %v1234, %v1226
    %v1547 = vpack.c.b16 %v1235, %v1227
    %v1548 = vpack.c.b16 %v1236, %v1228
    %v1549 = vpack.c.b16 %v1245, %v1237
    %v1550 = vpack.c.b16 %v1246, %v1238
    %v1551 = vpack.c.b16 %v1247, %v1239
    %v1552 = vpack.c.b16 %v1248, %v1240
    %v1553 = vpack.c.b16 %v1249, %v1241
    %v1554 = vpack.c.b16 %v1250, %v1242
    %v1555 = vpack.c.b16 %v1251, %v1243
    %v1556 = vpack.c.b16 %v1252, %v1244
    %v1557 = vpack.c.b16 %v1261, %v1253
    %v1558 = vpack.c.b16 %v1262, %v1254
    %v1559 = vpack.c.b16 %v1263, %v1255
    %v1560 = vpack.c.b16 %v1264, %v1256
    %v1561 = vpack.c.b16 %v1265, %v1257
    %v1562 = vpack.c.b16 %v1266, %v1258
    %v1563 = vpack.c.b16 %v1267, %v1259
    %v1564 = vpack.c.b16 %v1268, %v1260
    %v1565 = vpack.c.b16 %v1277, %v1269
    %v1566 = vpack.c.b16 %v1278, %v1270
    %v1567 = vpack.c.b16 %v1279, %v1271
    %v1568 = vpack.c.b16 %v1280, %v1272
    %v1569 = vpack.c.b16 %v1281, %v1273
    %v1570 = vpack.c.b16 %v1282, %v1274
    %v1571 = vpack.c.b16 %v1283, %v1275
    %v1572 = vpack.c.b16 %v1284, %v1276
    %v1573 = vpack.c.b16 %v1293, %v1285
    %v1574 = vpack.c.b16 %v1294, %v1286
    %v1575 = vpack.c.b16 %v1295, %v1287
    %v1576 = vpack.c.b16 %v1296, %v1288
    %v1577 = vpack.c.b16 %v1297, %v1289
    %v1578 = vpack.c.b16 %v1298, %v1290
    %v1579 = vpack.c.b16 %v1299, %v1291
    %v1580 = vpack.c.b16 %v1300, %v1292
    %v1581 = vpack.c.b16 %v1309, %v1301
    %v1582 = vpack.c.b16 %v1310, %v1302
    %v1583 = vpack.c.b16 %v1311, %v1303
    %v1584 = vpack.c.b16 %v1312, %v1304
    %v1585 = vpack.c.b16 %v1313, %v1305
    %v1586 = vpack.c.b16 %v1314, %v1306
    %v1587 = vpack.c.b16 %v1315, %v1307
    %v1588 = vpack.c.b16 %v1316, %v1308
    %v1589 = vpack.c.b16 %v1325, %v1317
    %v1590 = vpack.c.b16 %v1326, %v1318
    %v1591 = vpack.c.b16 %v1327, %v1319
    %v1592 = vpack.c.b16 %v1328, %v1320
    %v1593 = vpack.c.b16 %v1329, %v1321
    %v1594 = vpack.c.b16 %v1330, %v1322
    %v1595 = vpack.c.b16 %v1331, %v1323
    %v1596 = vpack.c.b16 %v1332, %v1324
    %v1597 = vpack.c.b16 %v1341, %v1333
    %v1598 = vpack.c.b16 %v1342, %v1334
    %v1599 = vpack.c.b16 %v1343, %v1335
    %v1600 = vpack.c.b16 %v1344, %v1336
    %v1601 = vpack.c.b16 %v1345, %v1337
    %v1602 = vpack.c.b16 %v1346, %v1338
    %v1603 = vpack.c.b16 %v1347, %v1339
    %v1604 = vpack.c.b16 %v1348, %v1340
    %1861 = vmatprep.subr.bf16.mxu0 %v1350
    %1862 = vmatpush1.bf16.msra.mxu0 %v1349
    %1863 = vmatprep.subr.bf16.mxu0 %v1358
    %1864 = vmatpush1.bf16.msra.mxu0 %v1357
    %1865 = vmatprep.subr.bf16.mxu0 %v1366
    %1866 = vmatpush1.bf16.msra.mxu0 %v1365
    %1867 = vmatprep.subr.bf16.mxu0 %v1374
    %1868 = vmatpush1.bf16.msra.mxu0 %v1373
    %1869 = vmatprep.subr.bf16.mxu0 %v1382
    %1870 = vmatpush1.bf16.msra.mxu0 %v1381
    %1871 = vmatprep.subr.bf16.mxu0 %v1390
    %1872 = vmatpush1.bf16.msra.mxu0 %v1389
    %1873 = vmatprep.subr.bf16.mxu0 %v1398
    %1874 = vmatpush1.bf16.msra.mxu0 %v1397
    %1875 = vmatprep.subr.bf16.mxu0 %v1406
    %1876 = vmatpush1.bf16.msra.mxu0 %v1405
    %1877 = vmatprep.subr.bf16.mxu0 %v1414
    %1878 = vmatpush1.bf16.msra.mxu0 %v1413
    %1879 = vmatprep.subr.bf16.mxu0 %v1422
    %1880 = vmatpush1.bf16.msra.mxu0 %v1421
    %1881 = vmatprep.subr.bf16.mxu0 %v1430
    %1882 = vmatpush1.bf16.msra.mxu0 %v1429
    %1883 = vmatprep.subr.bf16.mxu0 %v1438
    %1884 = vmatpush1.bf16.msra.mxu0 %v1437
    %1885 = vmatprep.subr.bf16.mxu0 %v1446
    %1886 = vmatpush1.bf16.msra.mxu0 %v1445
    %1887 = vmatprep.subr.bf16.mxu0 %v1454
    %1888 = vmatpush1.bf16.msra.mxu0 %v1453
    %1889 = vmatprep.subr.bf16.mxu0 %v1462
    %1890 = vmatpush1.bf16.msra.mxu0 %v1461
    %1891 = vmatprep.subr.bf16.mxu0 %v1470
    %1892 = vmatpush1.bf16.msra.mxu0 %v1469
    %1893 = vmatprep.mubr.bf16.mxu0 %v316
    %1894 = vmatmul.mubr.bf16.gmra.mrb[0].mxu0 %v315
    %v1895 = vpop.f32.mrb[0].mxu0
    %v1896 = vadd.f32 0.0, %v1895
    %v1897 = vpop.f32.mrb[0].mxu0
    %v1898 = vadd.f32 0.0, %v1897
    %v1899 = vpop.f32.mrb[0].mxu0
    %v1900 = vpop.f32.mrb[0].mxu0
    %1901 = vdwg.mxu0
    %1902 = vmatprep.subr.bf16.mxu0 %v1478
    %1903 = vmatpush1.bf16.msra.mxu0 %v1477
    %1904 = vmatprep.subr.bf16.mxu0 %v1486
    %1905 = vmatpush1.bf16.msra.mxu0 %v1485
    %1906 = vmatprep.subr.bf16.mxu0 %v1494
    %1907 = vmatpush1.bf16.msra.mxu0 %v1493
    %1908 = vmatprep.subr.bf16.mxu0 %v1502
    %1909 = vmatpush1.bf16.msra.mxu0 %v1501
    %1910 = vmatprep.subr.bf16.mxu0 %v1510
    %1911 = vmatpush1.bf16.msra.mxu0 %v1509
    %1912 = vmatprep.subr.bf16.mxu0 %v1518
    %1913 = vmatpush1.bf16.msra.mxu0 %v1517
    %1914 = vmatprep.subr.bf16.mxu0 %v1526
    %1915 = vmatpush1.bf16.msra.mxu0 %v1525
    %1916 = vmatprep.subr.bf16.mxu0 %v1534
    %1917 = vmatpush1.bf16.msra.mxu0 %v1533
    %1918 = vmatprep.subr.bf16.mxu0 %v1542
    %1919 = vmatpush1.bf16.msra.mxu0 %v1541
    %1920 = vmatprep.subr.bf16.mxu0 %v1550
    %1921 = vmatpush1.bf16.msra.mxu0 %v1549
    %1922 = vmatprep.subr.bf16.mxu0 %v1558
    %1923 = vmatpush1.bf16.msra.mxu0 %v1557
    %1924 = vmatprep.subr.bf16.mxu0 %v1566
    %1925 = vmatpush1.bf16.msra.mxu0 %v1565
    %1926 = vmatprep.subr.bf16.mxu0 %v1574
    %1927 = vmatpush1.bf16.msra.mxu0 %v1573
    %1928 = vmatprep.subr.bf16.mxu0 %v1582
    %1929 = vmatpush1.bf16.msra.mxu0 %v1581
    %1930 = vmatprep.subr.bf16.mxu0 %v1590
    %1931 = vmatpush1.bf16.msra.mxu0 %v1589
    %1932 = vmatprep.subr.bf16.mxu0 %v1598
    %1933 = vmatpush1.bf16.msra.mxu0 %v1597
    %1934 = vmatprep.mubr.bf16.mxu0 %v318
    %1935 = vmatmul.mubr.bf16.gmra.mrb[0].mxu0 %v317
    %v1936 = vpop.f32.mrb[0].mxu0
    %v1937 = vadd.f32 %v1896, %v1936
    %v1938 = vpop.f32.mrb[0].mxu0
    %v1939 = vadd.f32 %v1898, %v1938
    %v1940 = vpop.f32.mrb[0].mxu0
    %v1941 = vpop.f32.mrb[0].mxu0
    %1942 = vdwg.mxu0
    %1943 = vmatprep.subr.bf16.mxu0 %v1352
    %1944 = vmatpush1.bf16.msra.mxu0 %v1351
    %1945 = vmatprep.subr.bf16.mxu0 %v1360
    %1946 = vmatpush1.bf16.msra.mxu0 %v1359
    %1947 = vmatprep.subr.bf16.mxu0 %v1368
    %1948 = vmatpush1.bf16.msra.mxu0 %v1367
    %1949 = vmatprep.subr.bf16.mxu0 %v1376
    %1950 = vmatpush1.bf16.msra.mxu0 %v1375
    %1951 = vmatprep.subr.bf16.mxu0 %v1384
    %1952 = vmatpush1.bf16.msra.mxu0 %v1383
    %1953 = vmatprep.subr.bf16.mxu0 %v1392
    %1954 = vmatpush1.bf16.msra.mxu0 %v1391
    %1955 = vmatprep.subr.bf16.mxu0 %v1400
    %1956 = vmatpush1.bf16.msra.mxu0 %v1399
    %1957 = vmatprep.subr.bf16.mxu0 %v1408
    %1958 = vmatpush1.bf16.msra.mxu0 %v1407
    %1959 = vmatprep.subr.bf16.mxu0 %v1416
    %1960 = vmatpush1.bf16.msra.mxu0 %v1415
    %1961 = vmatprep.subr.bf16.mxu0 %v1424
    %1962 = vmatpush1.bf16.msra.mxu0 %v1423
    %1963 = vmatprep.subr.bf16.mxu0 %v1432
    %1964 = vmatpush1.bf16.msra.mxu0 %v1431
    %1965 = vmatprep.subr.bf16.mxu0 %v1440
    %1966 = vmatpush1.bf16.msra.mxu0 %v1439
    %1967 = vmatprep.subr.bf16.mxu0 %v1448
    %1968 = vmatpush1.bf16.msra.mxu0 %v1447
    %1969 = vmatprep.subr.bf16.mxu0 %v1456
    %1970 = vmatpush1.bf16.msra.mxu0 %v1455
    %1971 = vmatprep.subr.bf16.mxu0 %v1464
    %1972 = vmatpush1.bf16.msra.mxu0 %v1463
    %1973 = vmatprep.subr.bf16.mxu0 %v1472
    %1974 = vmatpush1.bf16.msra.mxu0 %v1471
    %1975 = vmatprep.mubr.bf16.mxu0 %v316
    %1976 = vmatmul.mubr.bf16.gmra.mrb[0].mxu0 %v315
    %v1977 = vpop.f32.mrb[0].mxu0
    %v1978 = vadd.f32 0.0, %v1977
    %v1979 = vpop.f32.mrb[0].mxu0
    %v1980 = vadd.f32 0.0, %v1979
    %v1981 = vpop.f32.mrb[0].mxu0
    %v1982 = vpop.f32.mrb[0].mxu0
    %1983 = vdwg.mxu0
    %1984 = vmatprep.subr.bf16.mxu0 %v1480
    %1985 = vmatpush1.bf16.msra.mxu0 %v1479
    %1986 = vmatprep.subr.bf16.mxu0 %v1488
    %1987 = vmatpush1.bf16.msra.mxu0 %v1487
    %1988 = vmatprep.subr.bf16.mxu0 %v1496
    %1989 = vmatpush1.bf16.msra.mxu0 %v1495
    %1990 = vmatprep.subr.bf16.mxu0 %v1504
    %1991 = vmatpush1.bf16.msra.mxu0 %v1503
    %1992 = vmatprep.subr.bf16.mxu0 %v1512
    %1993 = vmatpush1.bf16.msra.mxu0 %v1511
    %1994 = vmatprep.subr.bf16.mxu0 %v1520
    %1995 = vmatpush1.bf16.msra.mxu0 %v1519
    %1996 = vmatprep.subr.bf16.mxu0 %v1528
    %1997 = vmatpush1.bf16.msra.mxu0 %v1527
    %1998 = vmatprep.subr.bf16.mxu0 %v1536
    %1999 = vmatpush1.bf16.msra.mxu0 %v1535
    %2000 = vmatprep.subr.bf16.mxu0 %v1544
    %2001 = vmatpush1.bf16.msra.mxu0 %v1543
    %2002 = vmatprep.subr.bf16.mxu0 %v1552
    %2003 = vmatpush1.bf16.msra.mxu0 %v1551
    %2004 = vmatprep.subr.bf16.mxu0 %v1560
    %2005 = vmatpush1.bf16.msra.mxu0 %v1559
    %2006 = vmatprep.subr.bf16.mxu0 %v1568
    %2007 = vmatpush1.bf16.msra.mxu0 %v1567
    %2008 = vmatprep.subr.bf16.mxu0 %v1576
    %2009 = vmatpush1.bf16.msra.mxu0 %v1575
    %2010 = vmatprep.subr.bf16.mxu0 %v1584
    %2011 = vmatpush1.bf16.msra.mxu0 %v1583
    %2012 = vmatprep.subr.bf16.mxu0 %v1592
    %2013 = vmatpush1.bf16.msra.mxu0 %v1591
    %2014 = vmatprep.subr.bf16.mxu0 %v1600
    %2015 = vmatpush1.bf16.msra.mxu0 %v1599
    %2016 = vmatprep.mubr.bf16.mxu0 %v318
    %2017 = vmatmul.mubr.bf16.gmra.mrb[0].mxu0 %v317
    %v2018 = vpop.f32.mrb[0].mxu0
    %v2019 = vadd.f32 %v1978, %v2018
    %v2020 = vpop.f32.mrb[0].mxu0
    %v2021 = vadd.f32 %v1980, %v2020
    %v2022 = vpop.f32.mrb[0].mxu0
    %v2023 = vpop.f32.mrb[0].mxu0
    %2024 = vdwg.mxu0
    %2025 = vmatprep.subr.bf16.mxu0 %v1354
    %2026 = vmatpush1.bf16.msra.mxu0 %v1353
    %2027 = vmatprep.subr.bf16.mxu0 %v1362
    %2028 = vmatpush1.bf16.msra.mxu0 %v1361
    %2029 = vmatprep.subr.bf16.mxu0 %v1370
    %2030 = vmatpush1.bf16.msra.mxu0 %v1369
    %2031 = vmatprep.subr.bf16.mxu0 %v1378
    %2032 = vmatpush1.bf16.msra.mxu0 %v1377
    %2033 = vmatprep.subr.bf16.mxu0 %v1386
    %2034 = vmatpush1.bf16.msra.mxu0 %v1385
    %2035 = vmatprep.subr.bf16.mxu0 %v1394
    %2036 = vmatpush1.bf16.msra.mxu0 %v1393
    %2037 = vmatprep.subr.bf16.mxu0 %v1402
    %2038 = vmatpush1.bf16.msra.mxu0 %v1401
    %2039 = vmatprep.subr.bf16.mxu0 %v1410
    %2040 = vmatpush1.bf16.msra.mxu0 %v1409
    %2041 = vmatprep.subr.bf16.mxu0 %v1418
    %2042 = vmatpush1.bf16.msra.mxu0 %v1417
    %2043 = vmatprep.subr.bf16.mxu0 %v1426
    %2044 = vmatpush1.bf16.msra.mxu0 %v1425
    %2045 = vmatprep.subr.bf16.mxu0 %v1434
    %2046 = vmatpush1.bf16.msra.mxu0 %v1433
    %2047 = vmatprep.subr.bf16.mxu0 %v1442
    %2048 = vmatpush1.bf16.msra.mxu0 %v1441
    %2049 = vmatprep.subr.bf16.mxu0 %v1450
    %2050 = vmatpush1.bf16.msra.mxu0 %v1449
    %2051 = vmatprep.subr.bf16.mxu0 %v1458
    %2052 = vmatpush1.bf16.msra.mxu0 %v1457
    %2053 = vmatprep.subr.bf16.mxu0 %v1466
    %2054 = vmatpush1.bf16.msra.mxu0 %v1465
    %2055 = vmatprep.subr.bf16.mxu0 %v1474
    %2056 = vmatpush1.bf16.msra.mxu0 %v1473
    %2057 = vmatprep.mubr.bf16.mxu0 %v316
    %2058 = vmatmul.mubr.bf16.gmra.mrb[0].mxu0 %v315
    %v2059 = vpop.f32.mrb[0].mxu0
    %v2060 = vadd.f32 0.0, %v2059
    %v2061 = vpop.f32.mrb[0].mxu0
    %v2062 = vadd.f32 0.0, %v2061
    %v2063 = vpop.f32.mrb[0].mxu0
    %v2064 = vpop.f32.mrb[0].mxu0
    %2065 = vdwg.mxu0
    %2066 = vmatprep.subr.bf16.mxu0 %v1482
    %2067 = vmatpush1.bf16.msra.mxu0 %v1481
    %2068 = vmatprep.subr.bf16.mxu0 %v1490
    %2069 = vmatpush1.bf16.msra.mxu0 %v1489
    %2070 = vmatprep.subr.bf16.mxu0 %v1498
    %2071 = vmatpush1.bf16.msra.mxu0 %v1497
    %2072 = vmatprep.subr.bf16.mxu0 %v1506
    %2073 = vmatpush1.bf16.msra.mxu0 %v1505
    %2074 = vmatprep.subr.bf16.mxu0 %v1514
    %2075 = vmatpush1.bf16.msra.mxu0 %v1513
    %2076 = vmatprep.subr.bf16.mxu0 %v1522
    %2077 = vmatpush1.bf16.msra.mxu0 %v1521
    %2078 = vmatprep.subr.bf16.mxu0 %v1530
    %2079 = vmatpush1.bf16.msra.mxu0 %v1529
    %2080 = vmatprep.subr.bf16.mxu0 %v1538
    %2081 = vmatpush1.bf16.msra.mxu0 %v1537
    %2082 = vmatprep.subr.bf16.mxu0 %v1546
    %2083 = vmatpush1.bf16.msra.mxu0 %v1545
    %2084 = vmatprep.subr.bf16.mxu0 %v1554
    %2085 = vmatpush1.bf16.msra.mxu0 %v1553
    %2086 = vmatprep.subr.bf16.mxu0 %v1562
    %2087 = vmatpush1.bf16.msra.mxu0 %v1561
    %2088 = vmatprep.subr.bf16.mxu0 %v1570
    %2089 = vmatpush1.bf16.msra.mxu0 %v1569
    %2090 = vmatprep.subr.bf16.mxu0 %v1578
    %2091 = vmatpush1.bf16.msra.mxu0 %v1577
    %2092 = vmatprep.subr.bf16.mxu0 %v1586
    %2093 = vmatpush1.bf16.msra.mxu0 %v1585
    %2094 = vmatprep.subr.bf16.mxu0 %v1594
    %2095 = vmatpush1.bf16.msra.mxu0 %v1593
    %2096 = vmatprep.subr.bf16.mxu0 %v1602
    %2097 = vmatpush1.bf16.msra.mxu0 %v1601
    %2098 = vmatprep.mubr.bf16.mxu0 %v318
    %2099 = vmatmul.mubr.bf16.gmra.mrb[0].mxu0 %v317
    %v2100 = vpop.f32.mrb[0].mxu0
    %v2101 = vadd.f32 %v2060, %v2100
    %v2102 = vpop.f32.mrb[0].mxu0
    %v2103 = vadd.f32 %v2062, %v2102
    %v2104 = vpop.f32.mrb[0].mxu0
    %v2105 = vpop.f32.mrb[0].mxu0
    %2106 = vdwg.mxu0
    %2107 = vmatprep.subr.bf16.mxu0 %v1356
    %2108 = vmatpush1.bf16.msra.mxu0 %v1355
    %2109 = vmatprep.subr.bf16.mxu0 %v1364
    %2110 = vmatpush1.bf16.msra.mxu0 %v1363
    %2111 = vmatprep.subr.bf16.mxu0 %v1372
    %2112 = vmatpush1.bf16.msra.mxu0 %v1371
    %2113 = vmatprep.subr.bf16.mxu0 %v1380
    %2114 = vmatpush1.bf16.msra.mxu0 %v1379
    %2115 = vmatprep.subr.bf16.mxu0 %v1388
    %2116 = vmatpush1.bf16.msra.mxu0 %v1387
    %2117 = vmatprep.subr.bf16.mxu0 %v1396
    %2118 = vmatpush1.bf16.msra.mxu0 %v1395
    %2119 = vmatprep.subr.bf16.mxu0 %v1404
    %2120 = vmatpush1.bf16.msra.mxu0 %v1403
    %2121 = vmatprep.subr.bf16.mxu0 %v1412
    %2122 = vmatpush1.bf16.msra.mxu0 %v1411
    %2123 = vmatprep.subr.bf16.mxu0 %v1420
    %2124 = vmatpush1.bf16.msra.mxu0 %v1419
    %2125 = vmatprep.subr.bf16.mxu0 %v1428
    %2126 = vmatpush1.bf16.msra.mxu0 %v1427
    %2127 = vmatprep.subr.bf16.mxu0 %v1436
    %2128 = vmatpush1.bf16.msra.mxu0 %v1435
    %2129 = vmatprep.subr.bf16.mxu0 %v1444
    %2130 = vmatpush1.bf16.msra.mxu0 %v1443
    %2131 = vmatprep.subr.bf16.mxu0 %v1452
    %2132 = vmatpush1.bf16.msra.mxu0 %v1451
    %2133 = vmatprep.subr.bf16.mxu0 %v1460
    %2134 = vmatpush1.bf16.msra.mxu0 %v1459
    %2135 = vmatprep.subr.bf16.mxu0 %v1468
    %2136 = vmatpush1.bf16.msra.mxu0 %v1467
    %2137 = vmatprep.subr.bf16.mxu0 %v1476
    %2138 = vmatpush1.bf16.msra.mxu0 %v1475
    %2139 = vmatprep.mubr.bf16.mxu0 %v316
    %2140 = vmatmul.mubr.bf16.gmra.mrb[0].mxu0 %v315
    %v2141 = vpop.f32.mrb[0].mxu0
    %v2142 = vadd.f32 0.0, %v2141
    %v2143 = vpop.f32.mrb[0].mxu0
    %v2144 = vadd.f32 0.0, %v2143
    %v2145 = vpop.f32.mrb[0].mxu0
    %v2146 = vpop.f32.mrb[0].mxu0
    %2147 = vdwg.mxu0
    %2148 = vmatprep.subr.bf16.mxu0 %v1484
    %2149 = vmatpush1.bf16.msra.mxu0 %v1483
    %2150 = vmatprep.subr.bf16.mxu0 %v1492
    %2151 = vmatpush1.bf16.msra.mxu0 %v1491
    %2152 = vmatprep.subr.bf16.mxu0 %v1500
    %2153 = vmatpush1.bf16.msra.mxu0 %v1499
    %2154 = vmatprep.subr.bf16.mxu0 %v1508
    %2155 = vmatpush1.bf16.msra.mxu0 %v1507
    %2156 = vmatprep.subr.bf16.mxu0 %v1516
    %2157 = vmatpush1.bf16.msra.mxu0 %v1515
    %2158 = vmatprep.subr.bf16.mxu0 %v1524
    %2159 = vmatpush1.bf16.msra.mxu0 %v1523
    %2160 = vmatprep.subr.bf16.mxu0 %v1532
    %2161 = vmatpush1.bf16.msra.mxu0 %v1531
    %2162 = vmatprep.subr.bf16.mxu0 %v1540
    %2163 = vmatpush1.bf16.msra.mxu0 %v1539
    %2164 = vmatprep.subr.bf16.mxu0 %v1548
    %2165 = vmatpush1.bf16.msra.mxu0 %v1547
    %2166 = vmatprep.subr.bf16.mxu0 %v1556
    %2167 = vmatpush1.bf16.msra.mxu0 %v1555
    %2168 = vmatprep.subr.bf16.mxu0 %v1564
    %2169 = vmatpush1.bf16.msra.mxu0 %v1563
    %2170 = vmatprep.subr.bf16.mxu0 %v1572
    %2171 = vmatpush1.bf16.msra.mxu0 %v1571
    %2172 = vmatprep.subr.bf16.mxu0 %v1580
    %2173 = vmatpush1.bf16.msra.mxu0 %v1579
    %2174 = vmatprep.subr.bf16.mxu0 %v1588
    %2175 = vmatpush1.bf16.msra.mxu0 %v1587
    %2176 = vmatprep.subr.bf16.mxu0 %v1596
    %2177 = vmatpush1.bf16.msra.mxu0 %v1595
    %2178 = vmatprep.subr.bf16.mxu0 %v1604
    %2179 = vmatpush1.bf16.msra.mxu0 %v1603
    %2180 = vmatprep.mubr.bf16.mxu0 %v318
    %2181 = vmatmul.mubr.bf16.gmra.mrb[0].mxu0 %v317
    %v2182 = vpop.f32.mrb[0].mxu0
    %v2183 = vadd.f32 %v2142, %v2182
    %v2184 = vpop.f32.mrb[0].mxu0
    %v2185 = vadd.f32 %v2144, %v2184
    %v2186 = vpop.f32.mrb[0].mxu0
    %v2187 = vpop.f32.mrb[0].mxu0
    %2188 = vdwg.mxu0
    %v2189 = vld [vmem:[#allocation5] sm:$0xff]
    %v2190 = vld [vmem:[#allocation5 + $0x8] sm:$0xff]
    %v2191 = vld [vmem:[#allocation5 + $0x10] sm:$0xff]
    %v2192 = vld [vmem:[#allocation5 + $0x18] sm:$0xff]
    %v2193 = vld [vmem:[#allocation5 + $0x20] sm:$0xff]
    %v2194 = vld [vmem:[#allocation5 + $0x28] sm:$0xff]
    %v2195 = vld [vmem:[#allocation5 + $0x30] sm:$0xff]
    %v2196 = vld [vmem:[#allocation5 + $0x38] sm:$0xff]
    %v2197 = vld [vmem:[#allocation5 + $0x40] sm:$0xff]
    %v2198 = vld [vmem:[#allocation5 + $0x48] sm:$0xff]
    %v2199 = vld [vmem:[#allocation5 + $0x50] sm:$0xff]
    %v2200 = vld [vmem:[#allocation5 + $0x58] sm:$0xff]
    %v2201 = vld [vmem:[#allocation5 + $0x60] sm:$0xff]
    %v2202 = vld [vmem:[#allocation5 + $0x68] sm:$0xff]
    %v2203 = vld [vmem:[#allocation5 + $0x70] sm:$0xff]
    %v2204 = vld [vmem:[#allocation5 + $0x78] sm:$0xff]
    %v2205 = vld [vmem:[#allocation5 + $0x80] sm:$0xff]
    %v2206 = vld [vmem:[#allocation5 + $0x88] sm:$0xff]
    %v2207 = vld [vmem:[#allocation5 + $0x90] sm:$0xff]
    %v2208 = vld [vmem:[#allocation5 + $0x98] sm:$0xff]
    %v2209 = vld [vmem:[#allocation5 + $0xa0] sm:$0xff]
    %v2210 = vld [vmem:[#allocation5 + $0xa8] sm:$0xff]
    %v2211 = vld [vmem:[#allocation5 + $0xb0] sm:$0xff]
    %v2212 = vld [vmem:[#allocation5 + $0xb8] sm:$0xff]
    %v2213 = vld [vmem:[#allocation5 + $0xc0] sm:$0xff]
    %v2214 = vld [vmem:[#allocation5 + $0xc8] sm:$0xff]
    %v2215 = vld [vmem:[#allocation5 + $0xd0] sm:$0xff]
    %v2216 = vld [vmem:[#allocation5 + $0xd8] sm:$0xff]
    %v2217 = vld [vmem:[#allocation5 + $0xe0] sm:$0xff]
    %v2218 = vld [vmem:[#allocation5 + $0xe8] sm:$0xff]
    %v2219 = vld [vmem:[#allocation5 + $0xf0] sm:$0xff]
    %v2220 = vld [vmem:[#allocation5 + $0xf8] sm:$0xff]
    %v2221 = vld [vmem:[#allocation5 + $0x100] sm:$0xff]
    %v2222 = vld [vmem:[#allocation5 + $0x108] sm:$0xff]
    %v2223 = vld [vmem:[#allocation5 + $0x110] sm:$0xff]
    %v2224 = vld [vmem:[#allocation5 + $0x118] sm:$0xff]
    %v2225 = vld [vmem:[#allocation5 + $0x120] sm:$0xff]
    %v2226 = vld [vmem:[#allocation5 + $0x128] sm:$0xff]
    %v2227 = vld [vmem:[#allocation5 + $0x130] sm:$0xff]
    %v2228 = vld [vmem:[#allocation5 + $0x138] sm:$0xff]
    %v2229 = vld [vmem:[#allocation5 + $0x140] sm:$0xff]
    %v2230 = vld [vmem:[#allocation5 + $0x148] sm:$0xff]
    %v2231 = vld [vmem:[#allocation5 + $0x150] sm:$0xff]
    %v2232 = vld [vmem:[#allocation5 + $0x158] sm:$0xff]
    %v2233 = vld [vmem:[#allocation5 + $0x160] sm:$0xff]
    %v2234 = vld [vmem:[#allocation5 + $0x168] sm:$0xff]
    %v2235 = vld [vmem:[#allocation5 + $0x170] sm:$0xff]
    %v2236 = vld [vmem:[#allocation5 + $0x178] sm:$0xff]
    %v2237 = vld [vmem:[#allocation5 + $0x180] sm:$0xff]
    %v2238 = vld [vmem:[#allocation5 + $0x188] sm:$0xff]
    %v2239 = vld [vmem:[#allocation5 + $0x190] sm:$0xff]
    %v2240 = vld [vmem:[#allocation5 + $0x198] sm:$0xff]
    %v2241 = vld [vmem:[#allocation5 + $0x1a0] sm:$0xff]
    %v2242 = vld [vmem:[#allocation5 + $0x1a8] sm:$0xff]
    %v2243 = vld [vmem:[#allocation5 + $0x1b0] sm:$0xff]
    %v2244 = vld [vmem:[#allocation5 + $0x1b8] sm:$0xff]
    %v2245 = vld [vmem:[#allocation5 + $0x1c0] sm:$0xff]
    %v2246 = vld [vmem:[#allocation5 + $0x1c8] sm:$0xff]
    %v2247 = vld [vmem:[#allocation5 + $0x1d0] sm:$0xff]
    %v2248 = vld [vmem:[#allocation5 + $0x1d8] sm:$0xff]
    %v2249 = vld [vmem:[#allocation5 + $0x1e0] sm:$0xff]
    %v2250 = vld [vmem:[#allocation5 + $0x1e8] sm:$0xff]
    %v2251 = vld [vmem:[#allocation5 + $0x1f0] sm:$0xff]
    %v2252 = vld [vmem:[#allocation5 + $0x1f8] sm:$0xff]
    %v2253 = vld [vmem:[#allocation5 + $0x200] sm:$0xff]
    %v2254 = vld [vmem:[#allocation5 + $0x208] sm:$0xff]
    %v2255 = vld [vmem:[#allocation5 + $0x210] sm:$0xff]
    %v2256 = vld [vmem:[#allocation5 + $0x218] sm:$0xff]
    %v2257 = vld [vmem:[#allocation5 + $0x220] sm:$0xff]
    %v2258 = vld [vmem:[#allocation5 + $0x228] sm:$0xff]
    %v2259 = vld [vmem:[#allocation5 + $0x230] sm:$0xff]
    %v2260 = vld [vmem:[#allocation5 + $0x238] sm:$0xff]
    %v2261 = vld [vmem:[#allocation5 + $0x240] sm:$0xff]
    %v2262 = vld [vmem:[#allocation5 + $0x248] sm:$0xff]
    %v2263 = vld [vmem:[#allocation5 + $0x250] sm:$0xff]
    %v2264 = vld [vmem:[#allocation5 + $0x258] sm:$0xff]
    %v2265 = vld [vmem:[#allocation5 + $0x260] sm:$0xff]
    %v2266 = vld [vmem:[#allocation5 + $0x268] sm:$0xff]
    %v2267 = vld [vmem:[#allocation5 + $0x270] sm:$0xff]
    %v2268 = vld [vmem:[#allocation5 + $0x278] sm:$0xff]
    %v2269 = vld [vmem:[#allocation5 + $0x280] sm:$0xff]
    %v2270 = vld [vmem:[#allocation5 + $0x288] sm:$0xff]
    %v2271 = vld [vmem:[#allocation5 + $0x290] sm:$0xff]
    %v2272 = vld [vmem:[#allocation5 + $0x298] sm:$0xff]
    %v2273 = vld [vmem:[#allocation5 + $0x2a0] sm:$0xff]
    %v2274 = vld [vmem:[#allocation5 + $0x2a8] sm:$0xff]
    %v2275 = vld [vmem:[#allocation5 + $0x2b0] sm:$0xff]
    %v2276 = vld [vmem:[#allocation5 + $0x2b8] sm:$0xff]
    %v2277 = vld [vmem:[#allocation5 + $0x2c0] sm:$0xff]
    %v2278 = vld [vmem:[#allocation5 + $0x2c8] sm:$0xff]
    %v2279 = vld [vmem:[#allocation5 + $0x2d0] sm:$0xff]
    %v2280 = vld [vmem:[#allocation5 + $0x2d8] sm:$0xff]
    %v2281 = vld [vmem:[#allocation5 + $0x2e0] sm:$0xff]
    %v2282 = vld [vmem:[#allocation5 + $0x2e8] sm:$0xff]
    %v2283 = vld [vmem:[#allocation5 + $0x2f0] sm:$0xff]
    %v2284 = vld [vmem:[#allocation5 + $0x2f8] sm:$0xff]
    %v2285 = vld [vmem:[#allocation5 + $0x300] sm:$0xff]
    %v2286 = vld [vmem:[#allocation5 + $0x308] sm:$0xff]
    %v2287 = vld [vmem:[#allocation5 + $0x310] sm:$0xff]
    %v2288 = vld [vmem:[#allocation5 + $0x318] sm:$0xff]
    %v2289 = vld [vmem:[#allocation5 + $0x320] sm:$0xff]
    %v2290 = vld [vmem:[#allocation5 + $0x328] sm:$0xff]
    %v2291 = vld [vmem:[#allocation5 + $0x330] sm:$0xff]
    %v2292 = vld [vmem:[#allocation5 + $0x338] sm:$0xff]
    %v2293 = vld [vmem:[#allocation5 + $0x340] sm:$0xff]
    %v2294 = vld [vmem:[#allocation5 + $0x348] sm:$0xff]
    %v2295 = vld [vmem:[#allocation5 + $0x350] sm:$0xff]
    %v2296 = vld [vmem:[#allocation5 + $0x358] sm:$0xff]
    %v2297 = vld [vmem:[#allocation5 + $0x360] sm:$0xff]
    %v2298 = vld [vmem:[#allocation5 + $0x368] sm:$0xff]
    %v2299 = vld [vmem:[#allocation5 + $0x370] sm:$0xff]
    %v2300 = vld [vmem:[#allocation5 + $0x378] sm:$0xff]
    %v2301 = vld [vmem:[#allocation5 + $0x380] sm:$0xff]
    %v2302 = vld [vmem:[#allocation5 + $0x388] sm:$0xff]
    %v2303 = vld [vmem:[#allocation5 + $0x390] sm:$0xff]
    %v2304 = vld [vmem:[#allocation5 + $0x398] sm:$0xff]
    %v2305 = vld [vmem:[#allocation5 + $0x3a0] sm:$0xff]
    %v2306 = vld [vmem:[#allocation5 + $0x3a8] sm:$0xff]
    %v2307 = vld [vmem:[#allocation5 + $0x3b0] sm:$0xff]
    %v2308 = vld [vmem:[#allocation5 + $0x3b8] sm:$0xff]
    %v2309 = vld [vmem:[#allocation5 + $0x3c0] sm:$0xff]
    %v2310 = vld [vmem:[#allocation5 + $0x3c8] sm:$0xff]
    %v2311 = vld [vmem:[#allocation5 + $0x3d0] sm:$0xff]
    %v2312 = vld [vmem:[#allocation5 + $0x3d8] sm:$0xff]
    %v2313 = vld [vmem:[#allocation5 + $0x3e0] sm:$0xff]
    %v2314 = vld [vmem:[#allocation5 + $0x3e8] sm:$0xff]
    %v2315 = vld [vmem:[#allocation5 + $0x3f0] sm:$0xff]
    %v2316 = vld [vmem:[#allocation5 + $0x3f8] sm:$0xff]
    %v2445 = vunpack.c.l.b16 %v2189
    %v2446 = vunpack.c.h.b16 %v2189
    %v2447 = vunpack.c.l.b16 %v2190
    %v2448 = vunpack.c.h.b16 %v2190
    %v2449 = vunpack.c.l.b16 %v2191
    %v2450 = vunpack.c.h.b16 %v2191
    %v2451 = vunpack.c.l.b16 %v2192
    %v2452 = vunpack.c.h.b16 %v2192
    %v2453 = vunpack.c.l.b16 %v2193
    %v2454 = vunpack.c.h.b16 %v2193
    %v2455 = vunpack.c.l.b16 %v2194
    %v2456 = vunpack.c.h.b16 %v2194
    %v2457 = vunpack.c.l.b16 %v2195
    %v2458 = vunpack.c.h.b16 %v2195
    %v2459 = vunpack.c.l.b16 %v2196
    %v2460 = vunpack.c.h.b16 %v2196
    %v2461 = vunpack.c.l.b16 %v2197
    %v2462 = vunpack.c.h.b16 %v2197
    %v2463 = vunpack.c.l.b16 %v2198
    %v2464 = vunpack.c.h.b16 %v2198
    %v2465 = vunpack.c.l.b16 %v2199
    %v2466 = vunpack.c.h.b16 %v2199
    %v2467 = vunpack.c.l.b16 %v2200
    %v2468 = vunpack.c.h.b16 %v2200
    %v2469 = vunpack.c.l.b16 %v2201
    %v2470 = vunpack.c.h.b16 %v2201
    %v2471 = vunpack.c.l.b16 %v2202
    %v2472 = vunpack.c.h.b16 %v2202
    %v2473 = vunpack.c.l.b16 %v2203
    %v2474 = vunpack.c.h.b16 %v2203
    %v2475 = vunpack.c.l.b16 %v2204
    %v2476 = vunpack.c.h.b16 %v2204
    %v2477 = vunpack.c.l.b16 %v2205
    %v2478 = vunpack.c.h.b16 %v2205
    %v2479 = vunpack.c.l.b16 %v2206
    %v2480 = vunpack.c.h.b16 %v2206
    %v2481 = vunpack.c.l.b16 %v2207
    %v2482 = vunpack.c.h.b16 %v2207
    %v2483 = vunpack.c.l.b16 %v2208
    %v2484 = vunpack.c.h.b16 %v2208
    %v2485 = vunpack.c.l.b16 %v2209
    %v2486 = vunpack.c.h.b16 %v2209
    %v2487 = vunpack.c.l.b16 %v2210
    %v2488 = vunpack.c.h.b16 %v2210
    %v2489 = vunpack.c.l.b16 %v2211
    %v2490 = vunpack.c.h.b16 %v2211
    %v2491 = vunpack.c.l.b16 %v2212
    %v2492 = vunpack.c.h.b16 %v2212
    %v2493 = vunpack.c.l.b16 %v2213
    %v2494 = vunpack.c.h.b16 %v2213
    %v2495 = vunpack.c.l.b16 %v2214
    %v2496 = vunpack.c.h.b16 %v2214
    %v2497 = vunpack.c.l.b16 %v2215
    %v2498 = vunpack.c.h.b16 %v2215
    %v2499 = vunpack.c.l.b16 %v2216
    %v2500 = vunpack.c.h.b16 %v2216
    %v2501 = vunpack.c.l.b16 %v2217
    %v2502 = vunpack.c.h.b16 %v2217
    %v2503 = vunpack.c.l.b16 %v2218
    %v2504 = vunpack.c.h.b16 %v2218
    %v2505 = vunpack.c.l.b16 %v2219
    %v2506 = vunpack.c.h.b16 %v2219
    %v2507 = vunpack.c.l.b16 %v2220
    %v2508 = vunpack.c.h.b16 %v2220
    %v2509 = vunpack.c.l.b16 %v2221
    %v2510 = vunpack.c.h.b16 %v2221
    %v2511 = vunpack.c.l.b16 %v2222
    %v2512 = vunpack.c.h.b16 %v2222
    %v2513 = vunpack.c.l.b16 %v2223
    %v2514 = vunpack.c.h.b16 %v2223
    %v2515 = vunpack.c.l.b16 %v2224
    %v2516 = vunpack.c.h.b16 %v2224
    %v2517 = vunpack.c.l.b16 %v2225
    %v2518 = vunpack.c.h.b16 %v2225
    %v2519 = vunpack.c.l.b16 %v2226
    %v2520 = vunpack.c.h.b16 %v2226
    %v2521 = vunpack.c.l.b16 %v2227
    %v2522 = vunpack.c.h.b16 %v2227
    %v2523 = vunpack.c.l.b16 %v2228
    %v2524 = vunpack.c.h.b16 %v2228
    %v2525 = vunpack.c.l.b16 %v2229
    %v2526 = vunpack.c.h.b16 %v2229
    %v2527 = vunpack.c.l.b16 %v2230
    %v2528 = vunpack.c.h.b16 %v2230
    %v2529 = vunpack.c.l.b16 %v2231
    %v2530 = vunpack.c.h.b16 %v2231
    %v2531 = vunpack.c.l.b16 %v2232
    %v2532 = vunpack.c.h.b16 %v2232
    %v2533 = vunpack.c.l.b16 %v2233
    %v2534 = vunpack.c.h.b16 %v2233
    %v2535 = vunpack.c.l.b16 %v2234
    %v2536 = vunpack.c.h.b16 %v2234
    %v2537 = vunpack.c.l.b16 %v2235
    %v2538 = vunpack.c.h.b16 %v2235
    %v2539 = vunpack.c.l.b16 %v2236
    %v2540 = vunpack.c.h.b16 %v2236
    %v2541 = vunpack.c.l.b16 %v2237
    %v2542 = vunpack.c.h.b16 %v2237
    %v2543 = vunpack.c.l.b16 %v2238
    %v2544 = vunpack.c.h.b16 %v2238
    %v2545 = vunpack.c.l.b16 %v2239
    %v2546 = vunpack.c.h.b16 %v2239
    %v2547 = vunpack.c.l.b16 %v2240
    %v2548 = vunpack.c.h.b16 %v2240
    %v2549 = vunpack.c.l.b16 %v2241
    %v2550 = vunpack.c.h.b16 %v2241
    %v2551 = vunpack.c.l.b16 %v2242
    %v2552 = vunpack.c.h.b16 %v2242
    %v2553 = vunpack.c.l.b16 %v2243
    %v2554 = vunpack.c.h.b16 %v2243
    %v2555 = vunpack.c.l.b16 %v2244
    %v2556 = vunpack.c.h.b16 %v2244
    %v2557 = vunpack.c.l.b16 %v2245
    %v2558 = vunpack.c.h.b16 %v2245
    %v2559 = vunpack.c.l.b16 %v2246
    %v2560 = vunpack.c.h.b16 %v2246
    %v2561 = vunpack.c.l.b16 %v2247
    %v2562 = vunpack.c.h.b16 %v2247
    %v2563 = vunpack.c.l.b16 %v2248
    %v2564 = vunpack.c.h.b16 %v2248
    %v2565 = vunpack.c.l.b16 %v2249
    %v2566 = vunpack.c.h.b16 %v2249
    %v2567 = vunpack.c.l.b16 %v2250
    %v2568 = vunpack.c.h.b16 %v2250
    %v2569 = vunpack.c.l.b16 %v2251
    %v2570 = vunpack.c.h.b16 %v2251
    %v2571 = vunpack.c.l.b16 %v2252
    %v2572 = vunpack.c.h.b16 %v2252
    %v2573 = vunpack.c.l.b16 %v2253
    %v2574 = vunpack.c.h.b16 %v2253
    %v2575 = vunpack.c.l.b16 %v2254
    %v2576 = vunpack.c.h.b16 %v2254
    %v2577 = vunpack.c.l.b16 %v2255
    %v2578 = vunpack.c.h.b16 %v2255
    %v2579 = vunpack.c.l.b16 %v2256
    %v2580 = vunpack.c.h.b16 %v2256
    %v2581 = vunpack.c.l.b16 %v2257
    %v2582 = vunpack.c.h.b16 %v2257
    %v2583 = vunpack.c.l.b16 %v2258
    %v2584 = vunpack.c.h.b16 %v2258
    %v2585 = vunpack.c.l.b16 %v2259
    %v2586 = vunpack.c.h.b16 %v2259
    %v2587 = vunpack.c.l.b16 %v2260
    %v2588 = vunpack.c.h.b16 %v2260
    %v2589 = vunpack.c.l.b16 %v2261
    %v2590 = vunpack.c.h.b16 %v2261
    %v2591 = vunpack.c.l.b16 %v2262
    %v2592 = vunpack.c.h.b16 %v2262
    %v2593 = vunpack.c.l.b16 %v2263
    %v2594 = vunpack.c.h.b16 %v2263
    %v2595 = vunpack.c.l.b16 %v2264
    %v2596 = vunpack.c.h.b16 %v2264
    %v2597 = vunpack.c.l.b16 %v2265
    %v2598 = vunpack.c.h.b16 %v2265
    %v2599 = vunpack.c.l.b16 %v2266
    %v2600 = vunpack.c.h.b16 %v2266
    %v2601 = vunpack.c.l.b16 %v2267
    %v2602 = vunpack.c.h.b16 %v2267
    %v2603 = vunpack.c.l.b16 %v2268
    %v2604 = vunpack.c.h.b16 %v2268
    %v2605 = vunpack.c.l.b16 %v2269
    %v2606 = vunpack.c.h.b16 %v2269
    %v2607 = vunpack.c.l.b16 %v2270
    %v2608 = vunpack.c.h.b16 %v2270
    %v2609 = vunpack.c.l.b16 %v2271
    %v2610 = vunpack.c.h.b16 %v2271
    %v2611 = vunpack.c.l.b16 %v2272
    %v2612 = vunpack.c.h.b16 %v2272
    %v2613 = vunpack.c.l.b16 %v2273
    %v2614 = vunpack.c.h.b16 %v2273
    %v2615 = vunpack.c.l.b16 %v2274
    %v2616 = vunpack.c.h.b16 %v2274
    %v2617 = vunpack.c.l.b16 %v2275
    %v2618 = vunpack.c.h.b16 %v2275
    %v2619 = vunpack.c.l.b16 %v2276
    %v2620 = vunpack.c.h.b16 %v2276
    %v2621 = vunpack.c.l.b16 %v2277
    %v2622 = vunpack.c.h.b16 %v2277
    %v2623 = vunpack.c.l.b16 %v2278
    %v2624 = vunpack.c.h.b16 %v2278
    %v2625 = vunpack.c.l.b16 %v2279
    %v2626 = vunpack.c.h.b16 %v2279
    %v2627 = vunpack.c.l.b16 %v2280
    %v2628 = vunpack.c.h.b16 %v2280
    %v2629 = vunpack.c.l.b16 %v2281
    %v2630 = vunpack.c.h.b16 %v2281
    %v2631 = vunpack.c.l.b16 %v2282
    %v2632 = vunpack.c.h.b16 %v2282
    %v2633 = vunpack.c.l.b16 %v2283
    %v2634 = vunpack.c.h.b16 %v2283
    %v2635 = vunpack.c.l.b16 %v2284
    %v2636 = vunpack.c.h.b16 %v2284
    %v2637 = vunpack.c.l.b16 %v2285
    %v2638 = vunpack.c.h.b16 %v2285
    %v2639 = vunpack.c.l.b16 %v2286
    %v2640 = vunpack.c.h.b16 %v2286
    %v2641 = vunpack.c.l.b16 %v2287
    %v2642 = vunpack.c.h.b16 %v2287
    %v2643 = vunpack.c.l.b16 %v2288
    %v2644 = vunpack.c.h.b16 %v2288
    %v2645 = vunpack.c.l.b16 %v2289
    %v2646 = vunpack.c.h.b16 %v2289
    %v2647 = vunpack.c.l.b16 %v2290
    %v2648 = vunpack.c.h.b16 %v2290
    %v2649 = vunpack.c.l.b16 %v2291
    %v2650 = vunpack.c.h.b16 %v2291
    %v2651 = vunpack.c.l.b16 %v2292
    %v2652 = vunpack.c.h.b16 %v2292
    %v2653 = vunpack.c.l.b16 %v2293
    %v2654 = vunpack.c.h.b16 %v2293
    %v2655 = vunpack.c.l.b16 %v2294
    %v2656 = vunpack.c.h.b16 %v2294
    %v2657 = vunpack.c.l.b16 %v2295
    %v2658 = vunpack.c.h.b16 %v2295
    %v2659 = vunpack.c.l.b16 %v2296
    %v2660 = vunpack.c.h.b16 %v2296
    %v2661 = vunpack.c.l.b16 %v2297
    %v2662 = vunpack.c.h.b16 %v2297
    %v2663 = vunpack.c.l.b16 %v2298
    %v2664 = vunpack.c.h.b16 %v2298
    %v2665 = vunpack.c.l.b16 %v2299
    %v2666 = vunpack.c.h.b16 %v2299
    %v2667 = vunpack.c.l.b16 %v2300
    %v2668 = vunpack.c.h.b16 %v2300
    %v2669 = vunpack.c.l.b16 %v2301
    %v2670 = vunpack.c.h.b16 %v2301
    %v2671 = vunpack.c.l.b16 %v2302
    %v2672 = vunpack.c.h.b16 %v2302
    %v2673 = vunpack.c.l.b16 %v2303
    %v2674 = vunpack.c.h.b16 %v2303
    %v2675 = vunpack.c.l.b16 %v2304
    %v2676 = vunpack.c.h.b16 %v2304
    %v2677 = vunpack.c.l.b16 %v2305
    %v2678 = vunpack.c.h.b16 %v2305
    %v2679 = vunpack.c.l.b16 %v2306
    %v2680 = vunpack.c.h.b16 %v2306
    %v2681 = vunpack.c.l.b16 %v2307
    %v2682 = vunpack.c.h.b16 %v2307
    %v2683 = vunpack.c.l.b16 %v2308
    %v2684 = vunpack.c.h.b16 %v2308
    %v2685 = vunpack.c.l.b16 %v2309
    %v2686 = vunpack.c.h.b16 %v2309
    %v2687 = vunpack.c.l.b16 %v2310
    %v2688 = vunpack.c.h.b16 %v2310
    %v2689 = vunpack.c.l.b16 %v2311
    %v2690 = vunpack.c.h.b16 %v2311
    %v2691 = vunpack.c.l.b16 %v2312
    %v2692 = vunpack.c.h.b16 %v2312
    %v2693 = vunpack.c.l.b16 %v2313
    %v2694 = vunpack.c.h.b16 %v2313
    %v2695 = vunpack.c.l.b16 %v2314
    %v2696 = vunpack.c.h.b16 %v2314
    %v2697 = vunpack.c.l.b16 %v2315
    %v2698 = vunpack.c.h.b16 %v2315
    %v2699 = vunpack.c.l.b16 %v2316
    %v2700 = vunpack.c.h.b16 %v2316
    %v2701 = vpack.c.b16 %v2449, %v2445
    %v2702 = vpack.c.b16 %v2450, %v2446
    %v2703 = vpack.c.b16 %v2451, %v2447
    %v2704 = vpack.c.b16 %v2452, %v2448
    %v2705 = vpack.c.b16 %v2457, %v2453
    %v2706 = vpack.c.b16 %v2458, %v2454
    %v2707 = vpack.c.b16 %v2459, %v2455
    %v2708 = vpack.c.b16 %v2460, %v2456
    %v2709 = vpack.c.b16 %v2465, %v2461
    %v2710 = vpack.c.b16 %v2466, %v2462
    %v2711 = vpack.c.b16 %v2467, %v2463
    %v2712 = vpack.c.b16 %v2468, %v2464
    %v2713 = vpack.c.b16 %v2473, %v2469
    %v2714 = vpack.c.b16 %v2474, %v2470
    %v2715 = vpack.c.b16 %v2475, %v2471
    %v2716 = vpack.c.b16 %v2476, %v2472
    %v2717 = vpack.c.b16 %v2481, %v2477
    %v2718 = vpack.c.b16 %v2482, %v2478
    %v2719 = vpack.c.b16 %v2483, %v2479
    %v2720 = vpack.c.b16 %v2484, %v2480
    %v2721 = vpack.c.b16 %v2489, %v2485
    %v2722 = vpack.c.b16 %v2490, %v2486
    %v2723 = vpack.c.b16 %v2491, %v2487
    %v2724 = vpack.c.b16 %v2492, %v2488
    %v2725 = vpack.c.b16 %v2497, %v2493
    %v2726 = vpack.c.b16 %v2498, %v2494
    %v2727 = vpack.c.b16 %v2499, %v2495
    %v2728 = vpack.c.b16 %v2500, %v2496
    %v2729 = vpack.c.b16 %v2505, %v2501
    %v2730 = vpack.c.b16 %v2506, %v2502
    %v2731 = vpack.c.b16 %v2507, %v2503
    %v2732 = vpack.c.b16 %v2508, %v2504
    %v2733 = vpack.c.b16 %v2513, %v2509
    %v2734 = vpack.c.b16 %v2514, %v2510
    %v2735 = vpack.c.b16 %v2515, %v2511
    %v2736 = vpack.c.b16 %v2516, %v2512
    %v2737 = vpack.c.b16 %v2521, %v2517
    %v2738 = vpack.c.b16 %v2522, %v2518
    %v2739 = vpack.c.b16 %v2523, %v2519
    %v2740 = vpack.c.b16 %v2524, %v2520
    %v2741 = vpack.c.b16 %v2529, %v2525
    %v2742 = vpack.c.b16 %v2530, %v2526
    %v2743 = vpack.c.b16 %v2531, %v2527
    %v2744 = vpack.c.b16 %v2532, %v2528
    %v2745 = vpack.c.b16 %v2537, %v2533
    %v2746 = vpack.c.b16 %v2538, %v2534
    %v2747 = vpack.c.b16 %v2539, %v2535
    %v2748 = vpack.c.b16 %v2540, %v2536
    %v2749 = vpack.c.b16 %v2545, %v2541
    %v2750 = vpack.c.b16 %v2546, %v2542
    %v2751 = vpack.c.b16 %v2547, %v2543
    %v2752 = vpack.c.b16 %v2548, %v2544
    %v2753 = vpack.c.b16 %v2553, %v2549
    %v2754 = vpack.c.b16 %v2554, %v2550
    %v2755 = vpack.c.b16 %v2555, %v2551
    %v2756 = vpack.c.b16 %v2556, %v2552
    %v2757 = vpack.c.b16 %v2561, %v2557
    %v2758 = vpack.c.b16 %v2562, %v2558
    %v2759 = vpack.c.b16 %v2563, %v2559
    %v2760 = vpack.c.b16 %v2564, %v2560
    %v2761 = vpack.c.b16 %v2569, %v2565
    %v2762 = vpack.c.b16 %v2570, %v2566
    %v2763 = vpack.c.b16 %v2571, %v2567
    %v2764 = vpack.c.b16 %v2572, %v2568
    %v2765 = vpack.c.b16 %v2577, %v2573
    %v2766 = vpack.c.b16 %v2578, %v2574
    %v2767 = vpack.c.b16 %v2579, %v2575
    %v2768 = vpack.c.b16 %v2580, %v2576
    %v2769 = vpack.c.b16 %v2585, %v2581
    %v2770 = vpack.c.b16 %v2586, %v2582
    %v2771 = vpack.c.b16 %v2587, %v2583
    %v2772 = vpack.c.b16 %v2588, %v2584
    %v2773 = vpack.c.b16 %v2593, %v2589
    %v2774 = vpack.c.b16 %v2594, %v2590
    %v2775 = vpack.c.b16 %v2595, %v2591
    %v2776 = vpack.c.b16 %v2596, %v2592
    %v2777 = vpack.c.b16 %v2601, %v2597
    %v2778 = vpack.c.b16 %v2602, %v2598
    %v2779 = vpack.c.b16 %v2603, %v2599
    %v2780 = vpack.c.b16 %v2604, %v2600
    %v2781 = vpack.c.b16 %v2609, %v2605
    %v2782 = vpack.c.b16 %v2610, %v2606
    %v2783 = vpack.c.b16 %v2611, %v2607
    %v2784 = vpack.c.b16 %v2612, %v2608
    %v2785 = vpack.c.b16 %v2617, %v2613
    %v2786 = vpack.c.b16 %v2618, %v2614
    %v2787 = vpack.c.b16 %v2619, %v2615
    %v2788 = vpack.c.b16 %v2620, %v2616
    %v2789 = vpack.c.b16 %v2625, %v2621
    %v2790 = vpack.c.b16 %v2626, %v2622
    %v2791 = vpack.c.b16 %v2627, %v2623
    %v2792 = vpack.c.b16 %v2628, %v2624
    %v2793 = vpack.c.b16 %v2633, %v2629
    %v2794 = vpack.c.b16 %v2634, %v2630
    %v2795 = vpack.c.b16 %v2635, %v2631
    %v2796 = vpack.c.b16 %v2636, %v2632
    %v2797 = vpack.c.b16 %v2641, %v2637
    %v2798 = vpack.c.b16 %v2642, %v2638
    %v2799 = vpack.c.b16 %v2643, %v2639
    %v2800 = vpack.c.b16 %v2644, %v2640
    %v2801 = vpack.c.b16 %v2649, %v2645
    %v2802 = vpack.c.b16 %v2650, %v2646
    %v2803 = vpack.c.b16 %v2651, %v2647
    %v2804 = vpack.c.b16 %v2652, %v2648
    %v2805 = vpack.c.b16 %v2657, %v2653
    %v2806 = vpack.c.b16 %v2658, %v2654
    %v2807 = vpack.c.b16 %v2659, %v2655
    %v2808 = vpack.c.b16 %v2660, %v2656
    %v2809 = vpack.c.b16 %v2665, %v2661
    %v2810 = vpack.c.b16 %v2666, %v2662
    %v2811 = vpack.c.b16 %v2667, %v2663
    %v2812 = vpack.c.b16 %v2668, %v2664
    %v2813 = vpack.c.b16 %v2673, %v2669
    %v2814 = vpack.c.b16 %v2674, %v2670
    %v2815 = vpack.c.b16 %v2675, %v2671
    %v2816 = vpack.c.b16 %v2676, %v2672
    %v2817 = vpack.c.b16 %v2681, %v2677
    %v2818 = vpack.c.b16 %v2682, %v2678
    %v2819 = vpack.c.b16 %v2683, %v2679
    %v2820 = vpack.c.b16 %v2684, %v2680
    %v2821 = vpack.c.b16 %v2689, %v2685
    %v2822 = vpack.c.b16 %v2690, %v2686
    %v2823 = vpack.c.b16 %v2691, %v2687
    %v2824 = vpack.c.b16 %v2692, %v2688
    %v2825 = vpack.c.b16 %v2697, %v2693
    %v2826 = vpack.c.b16 %v2698, %v2694
    %v2827 = vpack.c.b16 %v2699, %v2695
    %v2828 = vpack.c.b16 %v2700, %v2696
    %2957 = vmatprep.subr.bf16.mxu0 %v2702
    %2958 = vmatpush1.bf16.msra.mxu0 %v2701
    %2959 = vmatprep.subr.bf16.mxu0 %v2706
    %2960 = vmatpush1.bf16.msra.mxu0 %v2705
    %2961 = vmatprep.subr.bf16.mxu0 %v2710
    %2962 = vmatpush1.bf16.msra.mxu0 %v2709
    %2963 = vmatprep.subr.bf16.mxu0 %v2714
    %2964 = vmatpush1.bf16.msra.mxu0 %v2713
    %2965 = vmatprep.subr.bf16.mxu0 %v2718
    %2966 = vmatpush1.bf16.msra.mxu0 %v2717
    %2967 = vmatprep.subr.bf16.mxu0 %v2722
    %2968 = vmatpush1.bf16.msra.mxu0 %v2721
    %2969 = vmatprep.subr.bf16.mxu0 %v2726
    %2970 = vmatpush1.bf16.msra.mxu0 %v2725
    %2971 = vmatprep.subr.bf16.mxu0 %v2730
    %2972 = vmatpush1.bf16.msra.mxu0 %v2729
    %2973 = vmatprep.subr.bf16.mxu0 %v2734
    %2974 = vmatpush1.bf16.msra.mxu0 %v2733
    %2975 = vmatprep.subr.bf16.mxu0 %v2738
    %2976 = vmatpush1.bf16.msra.mxu0 %v2737
    %2977 = vmatprep.subr.bf16.mxu0 %v2742
    %2978 = vmatpush1.bf16.msra.mxu0 %v2741
    %2979 = vmatprep.subr.bf16.mxu0 %v2746
    %2980 = vmatpush1.bf16.msra.mxu0 %v2745
    %2981 = vmatprep.subr.bf16.mxu0 %v2750
    %2982 = vmatpush1.bf16.msra.mxu0 %v2749
    %2983 = vmatprep.subr.bf16.mxu0 %v2754
    %2984 = vmatpush1.bf16.msra.mxu0 %v2753
    %2985 = vmatprep.subr.bf16.mxu0 %v2758
    %2986 = vmatpush1.bf16.msra.mxu0 %v2757
    %2987 = vmatprep.subr.bf16.mxu0 %v2762
    %2988 = vmatpush1.bf16.msra.mxu0 %v2761
    %2989 = vmatprep.mubr.bf16.mxu0 %v320
    %2990 = vmatmul.mubr.bf16.gmra.mrb[0].mxu0 %v319
    %v2991 = vpop.f32.mrb[0].mxu0
    %v2992 = vadd.f32 0.0, %v2991
    %v2993 = vpop.f32.mrb[0].mxu0
    %v2994 = vadd.f32 0.0, %v2993
    %v2995 = vpop.f32.mrb[0].mxu0
    %v2996 = vpop.f32.mrb[0].mxu0
    %2997 = vdwg.mxu0
    %2998 = vmatprep.subr.bf16.mxu0 %v2766
    %2999 = vmatpush1.bf16.msra.mxu0 %v2765
    %3000 = vmatprep.subr.bf16.mxu0 %v2770
    %3001 = vmatpush1.bf16.msra.mxu0 %v2769
    %3002 = vmatprep.subr.bf16.mxu0 %v2774
    %3003 = vmatpush1.bf16.msra.mxu0 %v2773
    %3004 = vmatprep.subr.bf16.mxu0 %v2778
    %3005 = vmatpush1.bf16.msra.mxu0 %v2777
    %3006 = vmatprep.subr.bf16.mxu0 %v2782
    %3007 = vmatpush1.bf16.msra.mxu0 %v2781
    %3008 = vmatprep.subr.bf16.mxu0 %v2786
    %3009 = vmatpush1.bf16.msra.mxu0 %v2785
    %3010 = vmatprep.subr.bf16.mxu0 %v2790
    %3011 = vmatpush1.bf16.msra.mxu0 %v2789
    %3012 = vmatprep.subr.bf16.mxu0 %v2794
    %3013 = vmatpush1.bf16.msra.mxu0 %v2793
    %3014 = vmatprep.subr.bf16.mxu0 %v2798
    %3015 = vmatpush1.bf16.msra.mxu0 %v2797
    %3016 = vmatprep.subr.bf16.mxu0 %v2802
    %3017 = vmatpush1.bf16.msra.mxu0 %v2801
    %3018 = vmatprep.subr.bf16.mxu0 %v2806
    %3019 = vmatpush1.bf16.msra.mxu0 %v2805
    %3020 = vmatprep.subr.bf16.mxu0 %v2810
    %3021 = vmatpush1.bf16.msra.mxu0 %v2809
    %3022 = vmatprep.subr.bf16.mxu0 %v2814
    %3023 = vmatpush1.bf16.msra.mxu0 %v2813
    %3024 = vmatprep.subr.bf16.mxu0 %v2818
    %3025 = vmatpush1.bf16.msra.mxu0 %v2817
    %3026 = vmatprep.subr.bf16.mxu0 %v2822
    %3027 = vmatpush1.bf16.msra.mxu0 %v2821
    %3028 = vmatprep.subr.bf16.mxu0 %v2826
    %3029 = vmatpush1.bf16.msra.mxu0 %v2825
    %3030 = vmatprep.mubr.bf16.mxu0 %v322
    %3031 = vmatmul.mubr.bf16.gmra.mrb[0].mxu0 %v321
    %v3032 = vpop.f32.mrb[0].mxu0
    %v3033 = vadd.f32 %v2992, %v3032
    %v3034 = vpop.f32.mrb[0].mxu0
    %v3035 = vadd.f32 %v2994, %v3034
    %v3036 = vpop.f32.mrb[0].mxu0
    %v3037 = vpop.f32.mrb[0].mxu0
    %3038 = vdwg.mxu0
    %3039 = vmatprep.subr.bf16.mxu0 %v2704
    %3040 = vmatpush1.bf16.msra.mxu0 %v2703
    %3041 = vmatprep.subr.bf16.mxu0 %v2708
    %3042 = vmatpush1.bf16.msra.mxu0 %v2707
    %3043 = vmatprep.subr.bf16.mxu0 %v2712
    %3044 = vmatpush1.bf16.msra.mxu0 %v2711
    %3045 = vmatprep.subr.bf16.mxu0 %v2716
    %3046 = vmatpush1.bf16.msra.mxu0 %v2715
    %3047 = vmatprep.subr.bf16.mxu0 %v2720
    %3048 = vmatpush1.bf16.msra.mxu0 %v2719
    %3049 = vmatprep.subr.bf16.mxu0 %v2724
    %3050 = vmatpush1.bf16.msra.mxu0 %v2723
    %3051 = vmatprep.subr.bf16.mxu0 %v2728
    %3052 = vmatpush1.bf16.msra.mxu0 %v2727
    %3053 = vmatprep.subr.bf16.mxu0 %v2732
    %3054 = vmatpush1.bf16.msra.mxu0 %v2731
    %3055 = vmatprep.subr.bf16.mxu0 %v2736
    %3056 = vmatpush1.bf16.msra.mxu0 %v2735
    %3057 = vmatprep.subr.bf16.mxu0 %v2740
    %3058 = vmatpush1.bf16.msra.mxu0 %v2739
    %3059 = vmatprep.subr.bf16.mxu0 %v2744
    %3060 = vmatpush1.bf16.msra.mxu0 %v2743
    %3061 = vmatprep.subr.bf16.mxu0 %v2748
    %3062 = vmatpush1.bf16.msra.mxu0 %v2747
    %3063 = vmatprep.subr.bf16.mxu0 %v2752
    %3064 = vmatpush1.bf16.msra.mxu0 %v2751
    %3065 = vmatprep.subr.bf16.mxu0 %v2756
    %3066 = vmatpush1.bf16.msra.mxu0 %v2755
    %3067 = vmatprep.subr.bf16.mxu0 %v2760
    %3068 = vmatpush1.bf16.msra.mxu0 %v2759
    %3069 = vmatprep.subr.bf16.mxu0 %v2764
    %3070 = vmatpush1.bf16.msra.mxu0 %v2763
    %3071 = vmatprep.mubr.bf16.mxu0 %v320
    %3072 = vmatmul.mubr.bf16.gmra.mrb[0].mxu0 %v319
    %v3073 = vpop.f32.mrb[0].mxu0
    %v3074 = vadd.f32 0.0, %v3073
    %v3075 = vpop.f32.mrb[0].mxu0
    %v3076 = vadd.f32 0.0, %v3075
    %v3077 = vpop.f32.mrb[0].mxu0
    %v3078 = vpop.f32.mrb[0].mxu0
    %3079 = vdwg.mxu0
    %3080 = vmatprep.subr.bf16.mxu0 %v2768
    %3081 = vmatpush1.bf16.msra.mxu0 %v2767
    %3082 = vmatprep.subr.bf16.mxu0 %v2772
    %3083 = vmatpush1.bf16.msra.mxu0 %v2771
    %3084 = vmatprep.subr.bf16.mxu0 %v2776
    %3085 = vmatpush1.bf16.msra.mxu0 %v2775
    %3086 = vmatprep.subr.bf16.mxu0 %v2780
    %3087 = vmatpush1.bf16.msra.mxu0 %v2779
    %3088 = vmatprep.subr.bf16.mxu0 %v2784
    %3089 = vmatpush1.bf16.msra.mxu0 %v2783
    %3090 = vmatprep.subr.bf16.mxu0 %v2788
    %3091 = vmatpush1.bf16.msra.mxu0 %v2787
    %3092 = vmatprep.subr.bf16.mxu0 %v2792
    %3093 = vmatpush1.bf16.msra.mxu0 %v2791
    %3094 = vmatprep.subr.bf16.mxu0 %v2796
    %3095 = vmatpush1.bf16.msra.mxu0 %v2795
    %3096 = vmatprep.subr.bf16.mxu0 %v2800
    %3097 = vmatpush1.bf16.msra.mxu0 %v2799
    %3098 = vmatprep.subr.bf16.mxu0 %v2804
    %3099 = vmatpush1.bf16.msra.mxu0 %v2803
    %3100 = vmatprep.subr.bf16.mxu0 %v2808
    %3101 = vmatpush1.bf16.msra.mxu0 %v2807
    %3102 = vmatprep.subr.bf16.mxu0 %v2812
    %3103 = vmatpush1.bf16.msra.mxu0 %v2811
    %3104 = vmatprep.subr.bf16.mxu0 %v2816
    %3105 = vmatpush1.bf16.msra.mxu0 %v2815
    %3106 = vmatprep.subr.bf16.mxu0 %v2820
    %3107 = vmatpush1.bf16.msra.mxu0 %v2819
    %3108 = vmatprep.subr.bf16.mxu0 %v2824
    %3109 = vmatpush1.bf16.msra.mxu0 %v2823
    %3110 = vmatprep.subr.bf16.mxu0 %v2828
    %3111 = vmatpush1.bf16.msra.mxu0 %v2827
    %3112 = vmatprep.mubr.bf16.mxu0 %v322
    %3113 = vmatmul.mubr.bf16.gmra.mrb[0].mxu0 %v321
    %v3114 = vpop.f32.mrb[0].mxu0
    %v3115 = vadd.f32 %v3074, %v3114
    %v3116 = vpop.f32.mrb[0].mxu0
    %v3117 = vadd.f32 %v3076, %v3116
    %v3118 = vpop.f32.mrb[0].mxu0
    %v3119 = vpop.f32.mrb[0].mxu0
    %3120 = vdwg.mxu0
    %v3121 = vadd.f32 %v1937, %v3033
    %v3122 = vadd.f32 %v1939, %v3035
    %v3123 = vadd.f32 %v2019, %v3115
    %v3124 = vadd.f32 %v2021, %v3117
    %v3125 = vld [vmem:[%s6] sm:$0xf]
    %v3127 = vlaneseq
    %v3128 = vshrl.u32 %v3127, 7
    %v3129 = vsub.s32 0, %v3128
    %v3130 = vrot.slane %v3125, %v3129
    %v3131 = vlaneseq
    %v3132 = vshrl.u32 %v3131, 7
    %v3133 = vsub.s32 1, %v3132
    %v3134 = vrot.slane %v3125, %v3133
    %v3135 = vlaneseq
    %v3136 = vshrl.u32 %v3135, 7
    %v3137 = vsub.s32 2, %v3136
    %v3138 = vrot.slane %v3125, %v3137
    %v3139 = vlaneseq
    %v3140 = vshrl.u32 %v3139, 7
    %v3141 = vsub.s32 3, %v3140
    %v3142 = vrot.slane %v3125, %v3141
    %v3147 = vadd.f32 %v3121, %v3130
    %v3148 = vadd.f32 %v3122, %v3134
    %v3149 = vadd.f32 %v3123, %v3138
    %v3150 = vadd.f32 %v3124, %v3142
    %v3151 = vmax.f32 %v3147, 0.0
    %v3152 = vmax.f32 %v3148, 0.0
    %v3153 = vmax.f32 %v3149, 0.0
    %v3154 = vmax.f32 %v3150, 0.0
    %v3155 = vpack.c.bf16 %v3151, %v3151
    %v3156 = vpack.c.bf16 %v3152, %v3152
    %v3157 = vpack.c.bf16 %v3153, %v3153
    %v3158 = vpack.c.bf16 %v3154, %v3154
    %v3159 = vld [vmem:[%s7] sm:$0xf]
    %v3160 = vld [vmem:[%s7 + $0x4] sm:$0xf]
    %v3161 = vld [vmem:[%s7 + $0x8] sm:$0xf]
    %v3162 = vld [vmem:[%s7 + $0xc] sm:$0xf]
    %v3163 = vld [vmem:[%s7 + $0x10] sm:$0xf]
    %v3164 = vld [vmem:[%s7 + $0x14] sm:$0xf]
    %v3165 = vld [vmem:[%s7 + $0x18] sm:$0xf]
    %v3166 = vld [vmem:[%s7 + $0x1c] sm:$0xf]
    %v3167 = vld [vmem:[%s7 + $0x20] sm:$0xf]
    %v3168 = vld [vmem:[%s7 + $0x24] sm:$0xf]
    %v3169 = vld [vmem:[%s7 + $0x28] sm:$0xf]
    %v3170 = vld [vmem:[%s7 + $0x2c] sm:$0xf]
    %v3171 = vld [vmem:[%s7 + $0x30] sm:$0xf]
    %v3172 = vld [vmem:[%s7 + $0x34] sm:$0xf]
    %v3173 = vld [vmem:[%s7 + $0x38] sm:$0xf]
    %v3174 = vld [vmem:[%s7 + $0x3c] sm:$0xf]
    %v3175 = vld [vmem:[%s7 + $0x40] sm:$0xf]
    %v3176 = vld [vmem:[%s7 + $0x44] sm:$0xf]
    %v3177 = vld [vmem:[%s7 + $0x48] sm:$0xf]
    %v3178 = vld [vmem:[%s7 + $0x4c] sm:$0xf]
    %v3179 = vld [vmem:[%s7 + $0x50] sm:$0xf]
    %v3180 = vld [vmem:[%s7 + $0x54] sm:$0xf]
    %v3181 = vld [vmem:[%s7 + $0x58] sm:$0xf]
    %v3182 = vld [vmem:[%s7 + $0x5c] sm:$0xf]
    %v3183 = vld [vmem:[%s7 + $0x60] sm:$0xf]
    %v3184 = vld [vmem:[%s7 + $0x64] sm:$0xf]
    %v3185 = vld [vmem:[%s7 + $0x68] sm:$0xf]
    %v3186 = vld [vmem:[%s7 + $0x6c] sm:$0xf]
    %v3187 = vld [vmem:[%s7 + $0x70] sm:$0xf]
    %v3188 = vld [vmem:[%s7 + $0x74] sm:$0xf]
    %v3189 = vld [vmem:[%s7 + $0x78] sm:$0xf]
    %v3190 = vld [vmem:[%s7 + $0x7c] sm:$0xf]
    %v3191 = vld [vmem:[%s7 + $0x80] sm:$0xf]
    %v3192 = vld [vmem:[%s7 + $0x84] sm:$0xf]
    %v3193 = vld [vmem:[%s7 + $0x88] sm:$0xf]
    %v3194 = vld [vmem:[%s7 + $0x8c] sm:$0xf]
    %v3195 = vld [vmem:[%s7 + $0x90] sm:$0xf]
    %v3196 = vld [vmem:[%s7 + $0x94] sm:$0xf]
    %v3197 = vld [vmem:[%s7 + $0x98] sm:$0xf]
    %v3198 = vld [vmem:[%s7 + $0x9c] sm:$0xf]
    %v3199 = vld [vmem:[%s7 + $0xa0] sm:$0xf]
    %v3200 = vld [vmem:[%s7 + $0xa4] sm:$0xf]
    %v3201 = vld [vmem:[%s7 + $0xa8] sm:$0xf]
    %v3202 = vld [vmem:[%s7 + $0xac] sm:$0xf]
    %v3203 = vld [vmem:[%s7 + $0xb0] sm:$0xf]
    %v3204 = vld [vmem:[%s7 + $0xb4] sm:$0xf]
    %v3205 = vld [vmem:[%s7 + $0xb8] sm:$0xf]
    %v3206 = vld [vmem:[%s7 + $0xbc] sm:$0xf]
    %v3207 = vld [vmem:[%s7 + $0xc0] sm:$0xf]
    %v3208 = vld [vmem:[%s7 + $0xc4] sm:$0xf]
    %v3209 = vld [vmem:[%s7 + $0xc8] sm:$0xf]
    %v3210 = vld [vmem:[%s7 + $0xcc] sm:$0xf]
    %v3211 = vld [vmem:[%s7 + $0xd0] sm:$0xf]
    %v3212 = vld [vmem:[%s7 + $0xd4] sm:$0xf]
    %v3213 = vld [vmem:[%s7 + $0xd8] sm:$0xf]
    %v3214 = vld [vmem:[%s7 + $0xdc] sm:$0xf]
    %v3215 = vld [vmem:[%s7 + $0xe0] sm:$0xf]
    %v3216 = vld [vmem:[%s7 + $0xe4] sm:$0xf]
    %v3217 = vld [vmem:[%s7 + $0xe8] sm:$0xf]
    %v3218 = vld [vmem:[%s7 + $0xec] sm:$0xf]
    %v3219 = vld [vmem:[%s7 + $0xf0] sm:$0xf]
    %v3220 = vld [vmem:[%s7 + $0xf4] sm:$0xf]
    %v3221 = vld [vmem:[%s7 + $0xf8] sm:$0xf]
    %v3222 = vld [vmem:[%s7 + $0xfc] sm:$0xf]
    %v3223 = vld [vmem:[%s8] sm:$0x1]
    %v3225 = vlaneseq
    %v3226 = vshrl.u32 %v3225, 7
    %v3227 = vsub.s32 0, %v3226
    %v3228 = vrot.slane %v3223, %v3227
    %v3294 = vunpack.c.l.b16 %v3159
    %v3295 = vunpack.c.l.b16 %v3160
    %v3296 = vunpack.c.l.b16 %v3161
    %v3297 = vunpack.c.l.b16 %v3162
    %v3298 = vunpack.c.l.b16 %v3163
    %v3299 = vunpack.c.l.b16 %v3164
    %v3300 = vunpack.c.l.b16 %v3165
    %v3301 = vunpack.c.l.b16 %v3166
    %v3302 = vunpack.c.l.b16 %v3167
    %v3303 = vunpack.c.l.b16 %v3168
    %v3304 = vunpack.c.l.b16 %v3169
    %v3305 = vunpack.c.l.b16 %v3170
    %v3306 = vunpack.c.l.b16 %v3171
    %v3307 = vunpack.c.l.b16 %v3172
    %v3308 = vunpack.c.l.b16 %v3173
    %v3309 = vunpack.c.l.b16 %v3174
    %v3310 = vunpack.c.l.b16 %v3175
    %v3311 = vunpack.c.l.b16 %v3176
    %v3312 = vunpack.c.l.b16 %v3177
    %v3313 = vunpack.c.l.b16 %v3178
    %v3314 = vunpack.c.l.b16 %v3179
    %v3315 = vunpack.c.l.b16 %v3180
    %v3316 = vunpack.c.l.b16 %v3181
    %v3317 = vunpack.c.l.b16 %v3182
    %v3318 = vunpack.c.l.b16 %v3183
    %v3319 = vunpack.c.l.b16 %v3184
    %v3320 = vunpack.c.l.b16 %v3185
    %v3321 = vunpack.c.l.b16 %v3186
    %v3322 = vunpack.c.l.b16 %v3187
    %v3323 = vunpack.c.l.b16 %v3188
    %v3324 = vunpack.c.l.b16 %v3189
    %v3325 = vunpack.c.l.b16 %v3190
    %v3326 = vunpack.c.l.b16 %v3191
    %v3327 = vunpack.c.l.b16 %v3192
    %v3328 = vunpack.c.l.b16 %v3193
    %v3329 = vunpack.c.l.b16 %v3194
    %v3330 = vunpack.c.l.b16 %v3195
    %v3331 = vunpack.c.l.b16 %v3196
    %v3332 = vunpack.c.l.b16 %v3197
    %v3333 = vunpack.c.l.b16 %v3198
    %v3334 = vunpack.c.l.b16 %v3199
    %v3335 = vunpack.c.l.b16 %v3200
    %v3336 = vunpack.c.l.b16 %v3201
    %v3337 = vunpack.c.l.b16 %v3202
    %v3338 = vunpack.c.l.b16 %v3203
    %v3339 = vunpack.c.l.b16 %v3204
    %v3340 = vunpack.c.l.b16 %v3205
    %v3341 = vunpack.c.l.b16 %v3206
    %v3342 = vunpack.c.l.b16 %v3207
    %v3343 = vunpack.c.l.b16 %v3208
    %v3344 = vunpack.c.l.b16 %v3209
    %v3345 = vunpack.c.l.b16 %v3210
    %v3346 = vunpack.c.l.b16 %v3211
    %v3347 = vunpack.c.l.b16 %v3212
    %v3348 = vunpack.c.l.b16 %v3213
    %v3349 = vunpack.c.l.b16 %v3214
    %v3350 = vunpack.c.l.b16 %v3215
    %v3351 = vunpack.c.l.b16 %v3216
    %v3352 = vunpack.c.l.b16 %v3217
    %v3353 = vunpack.c.l.b16 %v3218
    %v3354 = vunpack.c.l.b16 %v3219
    %v3355 = vunpack.c.l.b16 %v3220
    %v3356 = vunpack.c.l.b16 %v3221
    %v3357 = vunpack.c.l.b16 %v3222
    %v3358 = vpack.c.b16 %v3295, %v3294
    %v3359 = vpack.c.b16 %v3297, %v3296
    %v3360 = vpack.c.b16 %v3299, %v3298
    %v3361 = vpack.c.b16 %v3301, %v3300
    %v3362 = vpack.c.b16 %v3303, %v3302
    %v3363 = vpack.c.b16 %v3305, %v3304
    %v3364 = vpack.c.b16 %v3307, %v3306
    %v3365 = vpack.c.b16 %v3309, %v3308
    %v3366 = vpack.c.b16 %v3311, %v3310
    %v3367 = vpack.c.b16 %v3313, %v3312
    %v3368 = vpack.c.b16 %v3315, %v3314
    %v3369 = vpack.c.b16 %v3317, %v3316
    %v3370 = vpack.c.b16 %v3319, %v3318
    %v3371 = vpack.c.b16 %v3321, %v3320
    %v3372 = vpack.c.b16 %v3323, %v3322
    %v3373 = vpack.c.b16 %v3325, %v3324
    %v3374 = vpack.c.b16 %v3327, %v3326
    %v3375 = vpack.c.b16 %v3329, %v3328
    %v3376 = vpack.c.b16 %v3331, %v3330
    %v3377 = vpack.c.b16 %v3333, %v3332
    %v3378 = vpack.c.b16 %v3335, %v3334
    %v3379 = vpack.c.b16 %v3337, %v3336
    %v3380 = vpack.c.b16 %v3339, %v3338
    %v3381 = vpack.c.b16 %v3341, %v3340
    %v3382 = vpack.c.b16 %v3343, %v3342
    %v3383 = vpack.c.b16 %v3345, %v3344
    %v3384 = vpack.c.b16 %v3347, %v3346
    %v3385 = vpack.c.b16 %v3349, %v3348
    %v3386 = vpack.c.b16 %v3351, %v3350
    %v3387 = vpack.c.b16 %v3353, %v3352
    %v3388 = vpack.c.b16 %v3355, %v3354
    %v3389 = vpack.c.b16 %v3357, %v3356
    %3422 = vmatprep.subr.bf16.mxu0 0
    %3423 = vmatpush1.bf16.msra.mxu0 %v3358
    %3424 = vmatprep.subr.bf16.mxu0 0
    %3425 = vmatpush1.bf16.msra.mxu0 %v3359
    %3426 = vmatprep.subr.bf16.mxu0 0
    %3427 = vmatpush1.bf16.msra.mxu0 %v3360
    %3428 = vmatprep.subr.bf16.mxu0 0
    %3429 = vmatpush1.bf16.msra.mxu0 %v3361
    %3430 = vmatprep.subr.bf16.mxu0 0
    %3431 = vmatpush1.bf16.msra.mxu0 %v3362
    %3432 = vmatprep.subr.bf16.mxu0 0
    %3433 = vmatpush1.bf16.msra.mxu0 %v3363
    %3434 = vmatprep.subr.bf16.mxu0 0
    %3435 = vmatpush1.bf16.msra.mxu0 %v3364
    %3436 = vmatprep.subr.bf16.mxu0 0
    %3437 = vmatpush1.bf16.msra.mxu0 %v3365
    %3438 = vmatprep.subr.bf16.mxu0 0
    %3439 = vmatpush1.bf16.msra.mxu0 %v3366
    %3440 = vmatprep.subr.bf16.mxu0 0
    %3441 = vmatpush1.bf16.msra.mxu0 %v3367
    %3442 = vmatprep.subr.bf16.mxu0 0
    %3443 = vmatpush1.bf16.msra.mxu0 %v3368
    %3444 = vmatprep.subr.bf16.mxu0 0
    %3445 = vmatpush1.bf16.msra.mxu0 %v3369
    %3446 = vmatprep.subr.bf16.mxu0 0
    %3447 = vmatpush1.bf16.msra.mxu0 %v3370
    %3448 = vmatprep.subr.bf16.mxu0 0
    %3449 = vmatpush1.bf16.msra.mxu0 %v3371
    %3450 = vmatprep.subr.bf16.mxu0 0
    %3451 = vmatpush1.bf16.msra.mxu0 %v3372
    %3452 = vmatprep.subr.bf16.mxu0 0
    %3453 = vmatpush1.bf16.msra.mxu0 %v3373
    %3454 = vmatprep.mubr.bf16.mxu0 %v3156
    %3455 = vmatmul.mubr.bf16.gmra.mrb[0].mxu0 %v3155
    %v3456 = vpop.f32.mrb[0].mxu0
    %v3457 = vadd.f32 %v3228, %v3456
    %v3458 = vpop.f32.mrb[0].mxu0
    %v3459 = vpop.f32.mrb[0].mxu0
    %v3460 = vpop.f32.mrb[0].mxu0
    %3461 = vdwg.mxu0
    %3462 = vmatprep.subr.bf16.mxu0 0
    %3463 = vmatpush1.bf16.msra.mxu0 %v3374
    %3464 = vmatprep.subr.bf16.mxu0 0
    %3465 = vmatpush1.bf16.msra.mxu0 %v3375
    %3466 = vmatprep.subr.bf16.mxu0 0
    %3467 = vmatpush1.bf16.msra.mxu0 %v3376
    %3468 = vmatprep.subr.bf16.mxu0 0
    %3469 = vmatpush1.bf16.msra.mxu0 %v3377
    %3470 = vmatprep.subr.bf16.mxu0 0
    %3471 = vmatpush1.bf16.msra.mxu0 %v3378
    %3472 = vmatprep.subr.bf16.mxu0 0
    %3473 = vmatpush1.bf16.msra.mxu0 %v3379
    %3474 = vmatprep.subr.bf16.mxu0 0
    %3475 = vmatpush1.bf16.msra.mxu0 %v3380
    %3476 = vmatprep.subr.bf16.mxu0 0
    %3477 = vmatpush1.bf16.msra.mxu0 %v3381
    %3478 = vmatprep.subr.bf16.mxu0 0
    %3479 = vmatpush1.bf16.msra.mxu0 %v3382
    %3480 = vmatprep.subr.bf16.mxu0 0
    %3481 = vmatpush1.bf16.msra.mxu0 %v3383
    %3482 = vmatprep.subr.bf16.mxu0 0
    %3483 = vmatpush1.bf16.msra.mxu0 %v3384
    %3484 = vmatprep.subr.bf16.mxu0 0
    %3485 = vmatpush1.bf16.msra.mxu0 %v3385
    %3486 = vmatprep.subr.bf16.mxu0 0
    %3487 = vmatpush1.bf16.msra.mxu0 %v3386
    %3488 = vmatprep.subr.bf16.mxu0 0
    %3489 = vmatpush1.bf16.msra.mxu0 %v3387
    %3490 = vmatprep.subr.bf16.mxu0 0
    %3491 = vmatpush1.bf16.msra.mxu0 %v3388
    %3492 = vmatprep.subr.bf16.mxu0 0
    %3493 = vmatpush1.bf16.msra.mxu0 %v3389
    %3494 = vmatprep.mubr.bf16.mxu0 %v3158
    %3495 = vmatmul.mubr.bf16.gmra.mrb[0].mxu0 %v3157
    %v3496 = vpop.f32.mrb[0].mxu0
    %v3497 = vadd.f32 %v3457, %v3496
    %v3498 = vpop.f32.mrb[0].mxu0
    %v3499 = vpop.f32.mrb[0].mxu0
    %v3500 = vpop.f32.mrb[0].mxu0
    %3501 = vdwg.mxu0
    %vm3502 = vcmask 130048
    %3503 = vst.msk [vmem:[#allocation14] sm:$0xff] %vm3502, %v3497
    %v3504 = vld [vmem:[%s9] sm:$0xff]
    %v3505 = vld [vmem:[%s9 + $0x8] sm:$0xff]
    %v3506 = vld [vmem:[%s9 + $0x10] sm:$0xff]
    %v3507 = vld [vmem:[%s9 + $0x18] sm:$0xff]
    %v3508 = vld [vmem:[%s9 + $0x20] sm:$0xff]
    %v3509 = vld [vmem:[%s9 + $0x28] sm:$0xff]
    %v3510 = vld [vmem:[%s9 + $0x30] sm:$0xff]
    %v3511 = vld [vmem:[%s9 + $0x38] sm:$0xff]
    %v3512 = vld [vmem:[%s9 + $0x40] sm:$0xff]
    %v3513 = vld [vmem:[%s9 + $0x48] sm:$0xff]
    %v3514 = vld [vmem:[%s9 + $0x50] sm:$0xff]
    %v3515 = vld [vmem:[%s9 + $0x58] sm:$0xff]
    %v3528 = vunpack.c.l.b16 %v3504
    %v3529 = vunpack.c.h.b16 %v3504
    %v3530 = vunpack.c.l.b16 %v3505
    %v3531 = vunpack.c.h.b16 %v3505
    %v3532 = vunpack.c.l.b16 %v3506
    %v3533 = vunpack.c.h.b16 %v3506
    %v3534 = vunpack.c.l.b16 %v3507
    %v3535 = vunpack.c.h.b16 %v3507
    %v3536 = vunpack.c.l.b16 %v3508
    %v3537 = vunpack.c.h.b16 %v3508
    %v3538 = vunpack.c.l.b16 %v3509
    %v3539 = vunpack.c.h.b16 %v3509
    %v3540 = vunpack.c.l.b16 %v3510
    %v3541 = vunpack.c.h.b16 %v3510
    %v3542 = vunpack.c.l.b16 %v3511
    %v3543 = vunpack.c.h.b16 %v3511
    %v3544 = vunpack.c.l.b16 %v3512
    %v3545 = vunpack.c.h.b16 %v3512
    %v3546 = vunpack.c.l.b16 %v3513
    %v3547 = vunpack.c.h.b16 %v3513
    %v3548 = vunpack.c.l.b16 %v3514
    %v3549 = vunpack.c.h.b16 %v3514
    %v3550 = vunpack.c.l.b16 %v3515
    %v3551 = vunpack.c.h.b16 %v3515
    %v3552 = vpack.c.b16 %v3540, %v3528
    %v3553 = vpack.c.b16 %v3541, %v3529
    %v3554 = vpack.c.b16 %v3542, %v3530
    %v3555 = vpack.c.b16 %v3543, %v3531
    %v3556 = vpack.c.b16 %v3544, %v3532
    %v3557 = vpack.c.b16 %v3545, %v3533
    %v3558 = vpack.c.b16 %v3546, %v3534
    %v3559 = vpack.c.b16 %v3547, %v3535
    %v3560 = vpack.c.b16 %v3548, %v3536
    %v3561 = vpack.c.b16 %v3549, %v3537
    %v3562 = vpack.c.b16 %v3550, %v3538
    %v3563 = vpack.c.b16 %v3551, %v3539
    %v3577 = vsel %vm3502, %v324, 0
    %3579 = vmatprep.subr.bf16.mxu0 %v3553
    %3580 = vmatpush1.bf16.msra.mxu0 %v3552
    %3581 = vmatprep.subr.bf16.mxu0 0
    %3582 = vmatpush1.bf16.msra.mxu0 0
    %3583 = vmatprep.subr.bf16.mxu0 0
    %3584 = vmatpush1.bf16.msra.mxu0 0
    %3585 = vmatprep.subr.bf16.mxu0 0
    %3586 = vmatpush1.bf16.msra.mxu0 0
    %3587 = vmatprep.subr.bf16.mxu0 0
    %3588 = vmatpush1.bf16.msra.mxu0 0
    %3589 = vmatprep.subr.bf16.mxu0 0
    %3590 = vmatpush1.bf16.msra.mxu0 0
    %3591 = vmatprep.subr.bf16.mxu0 0
    %3592 = vmatpush1.bf16.msra.mxu0 0
    %3593 = vmatprep.subr.bf16.mxu0 0
    %3594 = vmatpush1.bf16.msra.mxu0 0
    %3595 = vmatprep.subr.bf16.mxu0 0
    %3596 = vmatpush1.bf16.msra.mxu0 0
    %3597 = vmatprep.subr.bf16.mxu0 0
    %3598 = vmatpush1.bf16.msra.mxu0 0
    %3599 = vmatprep.subr.bf16.mxu0 0
    %3600 = vmatpush1.bf16.msra.mxu0 0
    %3601 = vmatprep.subr.bf16.mxu0 0
    %3602 = vmatpush1.bf16.msra.mxu0 0
    %3603 = vmatprep.subr.bf16.mxu0 0
    %3604 = vmatpush1.bf16.msra.mxu0 0
    %3605 = vmatprep.subr.bf16.mxu0 0
    %3606 = vmatpush1.bf16.msra.mxu0 0
    %3607 = vmatprep.subr.bf16.mxu0 0
    %3608 = vmatpush1.bf16.msra.mxu0 0
    %3609 = vmatprep.subr.bf16.mxu0 0
    %3610 = vmatpush1.bf16.msra.mxu0 0
    %3611 = vmatprep.mubr.bf16.mxu0 0
    %3612 = vmatmul.mubr.bf16.gmra.mrb[0].mxu0 %v3577
    %v3613 = vpop.f32.mrb[0].mxu0
    %v3614 = vadd.f32 0.0, %v3613
    %v3615 = vpop.f32.mrb[0].mxu0
    %v3616 = vadd.f32 0.0, %v3615
    %v3617 = vpop.f32.mrb[0].mxu0
    %v3618 = vpop.f32.mrb[0].mxu0
    %3619 = vdwg.mxu0
    %3620 = vmatprep.subr.bf16.mxu0 %v3555
    %3621 = vmatpush1.bf16.msra.mxu0 %v3554
    %3622 = vmatprep.subr.bf16.mxu0 0
    %3623 = vmatpush1.bf16.msra.mxu0 0
    %3624 = vmatprep.subr.bf16.mxu0 0
    %3625 = vmatpush1.bf16.msra.mxu0 0
    %3626 = vmatprep.subr.bf16.mxu0 0
    %3627 = vmatpush1.bf16.msra.mxu0 0
    %3628 = vmatprep.subr.bf16.mxu0 0
    %3629 = vmatpush1.bf16.msra.mxu0 0
    %3630 = vmatprep.subr.bf16.mxu0 0
    %3631 = vmatpush1.bf16.msra.mxu0 0
    %3632 = vmatprep.subr.bf16.mxu0 0
    %3633 = vmatpush1.bf16.msra.mxu0 0
    %3634 = vmatprep.subr.bf16.mxu0 0
    %3635 = vmatpush1.bf16.msra.mxu0 0
    %3636 = vmatprep.subr.bf16.mxu0 0
    %3637 = vmatpush1.bf16.msra.mxu0 0
    %3638 = vmatprep.subr.bf16.mxu0 0
    %3639 = vmatpush1.bf16.msra.mxu0 0
    %3640 = vmatprep.subr.bf16.mxu0 0
    %3641 = vmatpush1.bf16.msra.mxu0 0
    %3642 = vmatprep.subr.bf16.mxu0 0
    %3643 = vmatpush1.bf16.msra.mxu0 0
    %3644 = vmatprep.subr.bf16.mxu0 0
    %3645 = vmatpush1.bf16.msra.mxu0 0
    %3646 = vmatprep.subr.bf16.mxu0 0
    %3647 = vmatpush1.bf16.msra.mxu0 0
    %3648 = vmatprep.subr.bf16.mxu0 0
    %3649 = vmatpush1.bf16.msra.mxu0 0
    %3650 = vmatprep.subr.bf16.mxu0 0
    %3651 = vmatpush1.bf16.msra.mxu0 0
    %3652 = vmatprep.mubr.bf16.mxu0 0
    %3653 = vmatmul.mubr.bf16.gmra.mrb[0].mxu0 %v3577
    %v3654 = vpop.f32.mrb[0].mxu0
    %v3655 = vadd.f32 0.0, %v3654
    %v3656 = vpop.f32.mrb[0].mxu0
    %v3657 = vadd.f32 0.0, %v3656
    %v3658 = vpop.f32.mrb[0].mxu0
    %v3659 = vpop.f32.mrb[0].mxu0
    %3660 = vdwg.mxu0
    %3661 = vmatprep.subr.bf16.mxu0 %v3557
    %3662 = vmatpush1.bf16.msra.mxu0 %v3556
    %3663 = vmatprep.subr.bf16.mxu0 0
    %3664 = vmatpush1.bf16.msra.mxu0 0
    %3665 = vmatprep.subr.bf16.mxu0 0
    %3666 = vmatpush1.bf16.msra.mxu0 0
    %3667 = vmatprep.subr.bf16.mxu0 0
    %3668 = vmatpush1.bf16.msra.mxu0 0
    %3669 = vmatprep.subr.bf16.mxu0 0
    %3670 = vmatpush1.bf16.msra.mxu0 0
    %3671 = vmatprep.subr.bf16.mxu0 0
    %3672 = vmatpush1.bf16.msra.mxu0 0
    %3673 = vmatprep.subr.bf16.mxu0 0
    %3674 = vmatpush1.bf16.msra.mxu0 0
    %3675 = vmatprep.subr.bf16.mxu0 0
    %3676 = vmatpush1.bf16.msra.mxu0 0
    %3677 = vmatprep.subr.bf16.mxu0 0
    %3678 = vmatpush1.bf16.msra.mxu0 0
    %3679 = vmatprep.subr.bf16.mxu0 0
    %3680 = vmatpush1.bf16.msra.mxu0 0
    %3681 = vmatprep.subr.bf16.mxu0 0
    %3682 = vmatpush1.bf16.msra.mxu0 0
    %3683 = vmatprep.subr.bf16.mxu0 0
    %3684 = vmatpush1.bf16.msra.mxu0 0
    %3685 = vmatprep.subr.bf16.mxu0 0
    %3686 = vmatpush1.bf16.msra.mxu0 0
    %3687 = vmatprep.subr.bf16.mxu0 0
    %3688 = vmatpush1.bf16.msra.mxu0 0
    %3689 = vmatprep.subr.bf16.mxu0 0
    %3690 = vmatpush1.bf16.msra.mxu0 0
    %3691 = vmatprep.subr.bf16.mxu0 0
    %3692 = vmatpush1.bf16.msra.mxu0 0
    %3693 = vmatprep.mubr.bf16.mxu0 0
    %3694 = vmatmul.mubr.bf16.gmra.mrb[0].mxu0 %v3577
    %v3695 = vpop.f32.mrb[0].mxu0
    %v3696 = vadd.f32 0.0, %v3695
    %v3697 = vpop.f32.mrb[0].mxu0
    %v3698 = vadd.f32 0.0, %v3697
    %v3699 = vpop.f32.mrb[0].mxu0
    %v3700 = vpop.f32.mrb[0].mxu0
    %3701 = vdwg.mxu0
    %3702 = vmatprep.subr.bf16.mxu0 %v3559
    %3703 = vmatpush1.bf16.msra.mxu0 %v3558
    %3704 = vmatprep.subr.bf16.mxu0 0
    %3705 = vmatpush1.bf16.msra.mxu0 0
    %3706 = vmatprep.subr.bf16.mxu0 0
    %3707 = vmatpush1.bf16.msra.mxu0 0
    %3708 = vmatprep.subr.bf16.mxu0 0
    %3709 = vmatpush1.bf16.msra.mxu0 0
    %3710 = vmatprep.subr.bf16.mxu0 0
    %3711 = vmatpush1.bf16.msra.mxu0 0
    %3712 = vmatprep.subr.bf16.mxu0 0
    %3713 = vmatpush1.bf16.msra.mxu0 0
    %3714 = vmatprep.subr.bf16.mxu0 0
    %3715 = vmatpush1.bf16.msra.mxu0 0
    %3716 = vmatprep.subr.bf16.mxu0 0
    %3717 = vmatpush1.bf16.msra.mxu0 0
    %3718 = vmatprep.subr.bf16.mxu0 0
    %3719 = vmatpush1.bf16.msra.mxu0 0
    %3720 = vmatprep.subr.bf16.mxu0 0
    %3721 = vmatpush1.bf16.msra.mxu0 0
    %3722 = vmatprep.subr.bf16.mxu0 0
    %3723 = vmatpush1.bf16.msra.mxu0 0
    %3724 = vmatprep.subr.bf16.mxu0 0
    %3725 = vmatpush1.bf16.msra.mxu0 0
    %3726 = vmatprep.subr.bf16.mxu0 0
    %3727 = vmatpush1.bf16.msra.mxu0 0
    %3728 = vmatprep.subr.bf16.mxu0 0
    %3729 = vmatpush1.bf16.msra.mxu0 0
    %3730 = vmatprep.subr.bf16.mxu0 0
    %3731 = vmatpush1.bf16.msra.mxu0 0
    %3732 = vmatprep.subr.bf16.mxu0 0
    %3733 = vmatpush1.bf16.msra.mxu0 0
    %3734 = vmatprep.mubr.bf16.mxu0 0
    %3735 = vmatmul.mubr.bf16.gmra.mrb[0].mxu0 %v3577
    %v3736 = vpop.f32.mrb[0].mxu0
    %v3737 = vadd.f32 0.0, %v3736
    %v3738 = vpop.f32.mrb[0].mxu0
    %v3739 = vadd.f32 0.0, %v3738
    %v3740 = vpop.f32.mrb[0].mxu0
    %v3741 = vpop.f32.mrb[0].mxu0
    %3742 = vdwg.mxu0
    %3743 = vmatprep.subr.bf16.mxu0 %v3561
    %3744 = vmatpush1.bf16.msra.mxu0 %v3560
    %3745 = vmatprep.subr.bf16.mxu0 0
    %3746 = vmatpush1.bf16.msra.mxu0 0
    %3747 = vmatprep.subr.bf16.mxu0 0
    %3748 = vmatpush1.bf16.msra.mxu0 0
    %3749 = vmatprep.subr.bf16.mxu0 0
    %3750 = vmatpush1.bf16.msra.mxu0 0
    %3751 = vmatprep.subr.bf16.mxu0 0
    %3752 = vmatpush1.bf16.msra.mxu0 0
    %3753 = vmatprep.subr.bf16.mxu0 0
    %3754 = vmatpush1.bf16.msra.mxu0 0
    %3755 = vmatprep.subr.bf16.mxu0 0
    %3756 = vmatpush1.bf16.msra.mxu0 0
    %3757 = vmatprep.subr.bf16.mxu0 0
    %3758 = vmatpush1.bf16.msra.mxu0 0
    %3759 = vmatprep.subr.bf16.mxu0 0
    %3760 = vmatpush1.bf16.msra.mxu0 0
    %3761 = vmatprep.subr.bf16.mxu0 0
    %3762 = vmatpush1.bf16.msra.mxu0 0
    %3763 = vmatprep.subr.bf16.mxu0 0
    %3764 = vmatpush1.bf16.msra.mxu0 0
    %3765 = vmatprep.subr.bf16.mxu0 0
    %3766 = vmatpush1.bf16.msra.mxu0 0
    %3767 = vmatprep.subr.bf16.mxu0 0
    %3768 = vmatpush1.bf16.msra.mxu0 0
    %3769 = vmatprep.subr.bf16.mxu0 0
    %3770 = vmatpush1.bf16.msra.mxu0 0
    %3771 = vmatprep.subr.bf16.mxu0 0
    %3772 = vmatpush1.bf16.msra.mxu0 0
    %3773 = vmatprep.subr.bf16.mxu0 0
    %3774 = vmatpush1.bf16.msra.mxu0 0
    %3775 = vmatprep.mubr.bf16.mxu0 0
    %3776 = vmatmul.mubr.bf16.gmra.mrb[0].mxu0 %v3577
    %v3777 = vpop.f32.mrb[0].mxu0
    %v3778 = vadd.f32 0.0, %v3777
    %v3779 = vpop.f32.mrb[0].mxu0
    %v3780 = vadd.f32 0.0, %v3779
    %v3781 = vpop.f32.mrb[0].mxu0
    %v3782 = vpop.f32.mrb[0].mxu0
    %3783 = vdwg.mxu0
    %3784 = vmatprep.subr.bf16.mxu0 %v3563
    %3785 = vmatpush1.bf16.msra.mxu0 %v3562
    %3786 = vmatprep.subr.bf16.mxu0 0
    %3787 = vmatpush1.bf16.msra.mxu0 0
    %3788 = vmatprep.subr.bf16.mxu0 0
    %3789 = vmatpush1.bf16.msra.mxu0 0
    %3790 = vmatprep.subr.bf16.mxu0 0
    %3791 = vmatpush1.bf16.msra.mxu0 0
    %3792 = vmatprep.subr.bf16.mxu0 0
    %3793 = vmatpush1.bf16.msra.mxu0 0
    %3794 = vmatprep.subr.bf16.mxu0 0
    %3795 = vmatpush1.bf16.msra.mxu0 0
    %3796 = vmatprep.subr.bf16.mxu0 0
    %3797 = vmatpush1.bf16.msra.mxu0 0
    %3798 = vmatprep.subr.bf16.mxu0 0
    %3799 = vmatpush1.bf16.msra.mxu0 0
    %3800 = vmatprep.subr.bf16.mxu0 0
    %3801 = vmatpush1.bf16.msra.mxu0 0
    %3802 = vmatprep.subr.bf16.mxu0 0
    %3803 = vmatpush1.bf16.msra.mxu0 0
    %3804 = vmatprep.subr.bf16.mxu0 0
    %3805 = vmatpush1.bf16.msra.mxu0 0
    %3806 = vmatprep.subr.bf16.mxu0 0
    %3807 = vmatpush1.bf16.msra.mxu0 0
    %3808 = vmatprep.subr.bf16.mxu0 0
    %3809 = vmatpush1.bf16.msra.mxu0 0
    %3810 = vmatprep.subr.bf16.mxu0 0
    %3811 = vmatpush1.bf16.msra.mxu0 0
    %3812 = vmatprep.subr.bf16.mxu0 0
    %3813 = vmatpush1.bf16.msra.mxu0 0
    %3814 = vmatprep.subr.bf16.mxu0 0
    %3815 = vmatpush1.bf16.msra.mxu0 0
    %3816 = vmatprep.mubr.bf16.mxu0 0
    %3817 = vmatmul.mubr.bf16.gmra.mrb[0].mxu0 %v3577
    %v3818 = vpop.f32.mrb[0].mxu0
    %v3819 = vadd.f32 0.0, %v3818
    %v3820 = vpop.f32.mrb[0].mxu0
    %v3821 = vadd.f32 0.0, %v3820
    %v3822 = vpop.f32.mrb[0].mxu0
    %v3823 = vpop.f32.mrb[0].mxu0
    %3824 = vdwg.mxu0
    %v3825 = vld [vmem:[%s10] sm:$0xf]
    %v3827 = vlaneseq
    %v3828 = vshrl.u32 %v3827, 7
    %v3829 = vsub.s32 0, %v3828
    %v3830 = vrot.slane %v3825, %v3829
    %v3831 = vlaneseq
    %v3832 = vshrl.u32 %v3831, 7
    %v3833 = vsub.s32 1, %v3832
    %v3834 = vrot.slane %v3825, %v3833
    %v3835 = vlaneseq
    %v3836 = vshrl.u32 %v3835, 7
    %v3837 = vsub.s32 2, %v3836
    %v3838 = vrot.slane %v3825, %v3837
    %v3839 = vlaneseq
    %v3840 = vshrl.u32 %v3839, 7
    %v3841 = vsub.s32 3, %v3840
    %v3842 = vrot.slane %v3825, %v3841
    %v3847 = vadd.f32 %v3614, %v3830
    %v3848 = vadd.f32 %v3616, %v3834
    %v3849 = vadd.f32 %v3655, %v3838
    %v3850 = vadd.f32 %v3657, %v3842
    %v3851 = vld [vmem:[%s11] sm:$0xf]
    %v3853 = vlaneseq
    %v3854 = vshrl.u32 %v3853, 7
    %v3855 = vsub.s32 0, %v3854
    %v3856 = vrot.slane %v3851, %v3855
    %v3857 = vlaneseq
    %v3858 = vshrl.u32 %v3857, 7
    %v3859 = vsub.s32 1, %v3858
    %v3860 = vrot.slane %v3851, %v3859
    %v3861 = vlaneseq
    %v3862 = vshrl.u32 %v3861, 7
    %v3863 = vsub.s32 2, %v3862
    %v3864 = vrot.slane %v3851, %v3863
    %v3865 = vlaneseq
    %v3866 = vshrl.u32 %v3865, 7
    %v3867 = vsub.s32 3, %v3866
    %v3868 = vrot.slane %v3851, %v3867
    %v3873 = vadd.f32 %v3696, %v3856
    %v3874 = vadd.f32 %v3698, %v3860
    %v3875 = vadd.f32 %v3737, %v3864
    %v3876 = vadd.f32 %v3739, %v3868
    %v3877 = vld [vmem:[%s12] sm:$0xf]
    %v3879 = vlaneseq
    %v3880 = vshrl.u32 %v3879, 7
    %v3881 = vsub.s32 0, %v3880
    %v3882 = vrot.slane %v3877, %v3881
    %v3883 = vlaneseq
    %v3884 = vshrl.u32 %v3883, 7
    %v3885 = vsub.s32 1, %v3884
    %v3886 = vrot.slane %v3877, %v3885
    %v3887 = vlaneseq
    %v3888 = vshrl.u32 %v3887, 7
    %v3889 = vsub.s32 2, %v3888
    %v3890 = vrot.slane %v3877, %v3889
    %v3891 = vlaneseq
    %v3892 = vshrl.u32 %v3891, 7
    %v3893 = vsub.s32 3, %v3892
    %v3894 = vrot.slane %v3877, %v3893
    %v3899 = vadd.f32 %v3778, %v3882
    %v3900 = vadd.f32 %v3780, %v3886
    %v3901 = vadd.f32 %v3819, %v3890
    %v3902 = vadd.f32 %v3821, %v3894
    %v3903 = vadd.f32 %v2101, %v3847
    %v3904 = vadd.f32 %v2103, %v3848
    %v3905 = vadd.f32 %v2183, %v3849
    %v3906 = vadd.f32 %v2185, %v3850
    %vm3907 = vcmp.gt.f32.partialorder %v3903, 0.0
    %vm3908 = vcmp.gt.f32.partialorder %v3904, 0.0
    %vm3909 = vcmp.gt.f32.partialorder %v3905, 0.0
    %vm3910 = vcmp.gt.f32.partialorder %v3906, 0.0
    %v3911 = vmul.f32 %v3903, 0.01
    %v3912 = vmul.f32 %v3904, 0.01
    %v3913 = vmul.f32 %v3905, 0.01
    %v3914 = vmul.f32 %v3906, 0.01
    %v3915 = vsel %vm3907, %v3903, %v3911
    %v3916 = vsel %vm3908, %v3904, %v3912
    %v3917 = vsel %vm3909, %v3905, %v3913
    %v3918 = vsel %vm3910, %v3906, %v3914
    %v3919 = vld [vmem:[#allocation7] sm:$0xff]
    %v3920 = vld [vmem:[#allocation7 + $0x8] sm:$0xff]
    %v3921 = vld [vmem:[#allocation7 + $0x10] sm:$0xff]
    %v3922 = vld [vmem:[#allocation7 + $0x18] sm:$0xff]
    %v3923 = vld [vmem:[#allocation7 + $0x20] sm:$0xff]
    %v3924 = vld [vmem:[#allocation7 + $0x28] sm:$0xff]
    %v3925 = vld [vmem:[#allocation7 + $0x30] sm:$0xff]
    %v3926 = vld [vmem:[#allocation7 + $0x38] sm:$0xff]
    %v3927 = vld [vmem:[#allocation7 + $0x40] sm:$0xff]
    %v3928 = vld [vmem:[#allocation7 + $0x48] sm:$0xff]
    %v3929 = vld [vmem:[#allocation7 + $0x50] sm:$0xff]
    %v3930 = vld [vmem:[#allocation7 + $0x58] sm:$0xff]
    %v3931 = vld [vmem:[#allocation7 + $0x60] sm:$0xff]
    %v3932 = vld [vmem:[#allocation7 + $0x68] sm:$0xff]
    %v3933 = vld [vmem:[#allocation7 + $0x70] sm:$0xff]
    %v3934 = vld [vmem:[#allocation7 + $0x78] sm:$0xff]
    %v3935 = vld [vmem:[#allocation7 + $0x80] sm:$0xff]
    %v3936 = vld [vmem:[#allocation7 + $0x88] sm:$0xff]
    %v3937 = vld [vmem:[#allocation7 + $0x90] sm:$0xff]
    %v3938 = vld [vmem:[#allocation7 + $0x98] sm:$0xff]
    %v3939 = vld [vmem:[#allocation7 + $0xa0] sm:$0xff]
    %v3940 = vld [vmem:[#allocation7 + $0xa8] sm:$0xff]
    %v3941 = vld [vmem:[#allocation7 + $0xb0] sm:$0xff]
    %v3942 = vld [vmem:[#allocation7 + $0xb8] sm:$0xff]
    %v3943 = vld [vmem:[#allocation7 + $0xc0] sm:$0xff]
    %v3944 = vld [vmem:[#allocation7 + $0xc8] sm:$0xff]
    %v3945 = vld [vmem:[#allocation7 + $0xd0] sm:$0xff]
    %v3946 = vld [vmem:[#allocation7 + $0xd8] sm:$0xff]
    %v3947 = vld [vmem:[#allocation7 + $0xe0] sm:$0xff]
    %v3948 = vld [vmem:[#allocation7 + $0xe8] sm:$0xff]
    %v3949 = vld [vmem:[#allocation7 + $0xf0] sm:$0xff]
    %v3950 = vld [vmem:[#allocation7 + $0xf8] sm:$0xff]
    %v3951 = vld [vmem:[#allocation7 + $0x100] sm:$0xff]
    %v3952 = vld [vmem:[#allocation7 + $0x108] sm:$0xff]
    %v3953 = vld [vmem:[#allocation7 + $0x110] sm:$0xff]
    %v3954 = vld [vmem:[#allocation7 + $0x118] sm:$0xff]
    %v3955 = vld [vmem:[#allocation7 + $0x120] sm:$0xff]
    %v3956 = vld [vmem:[#allocation7 + $0x128] sm:$0xff]
    %v3957 = vld [vmem:[#allocation7 + $0x130] sm:$0xff]
    %v3958 = vld [vmem:[#allocation7 + $0x138] sm:$0xff]
    %v3959 = vld [vmem:[#allocation7 + $0x140] sm:$0xff]
    %v3960 = vld [vmem:[#allocation7 + $0x148] sm:$0xff]
    %v3961 = vld [vmem:[#allocation7 + $0x150] sm:$0xff]
    %v3962 = vld [vmem:[#allocation7 + $0x158] sm:$0xff]
    %v3963 = vld [vmem:[#allocation7 + $0x160] sm:$0xff]
    %v3964 = vld [vmem:[#allocation7 + $0x168] sm:$0xff]
    %v3965 = vld [vmem:[#allocation7 + $0x170] sm:$0xff]
    %v3966 = vld [vmem:[#allocation7 + $0x178] sm:$0xff]
    %v3967 = vld [vmem:[#allocation7 + $0x180] sm:$0xff]
    %v3968 = vld [vmem:[#allocation7 + $0x188] sm:$0xff]
    %v3969 = vld [vmem:[#allocation7 + $0x190] sm:$0xff]
    %v3970 = vld [vmem:[#allocation7 + $0x198] sm:$0xff]
    %v3971 = vld [vmem:[#allocation7 + $0x1a0] sm:$0xff]
    %v3972 = vld [vmem:[#allocation7 + $0x1a8] sm:$0xff]
    %v3973 = vld [vmem:[#allocation7 + $0x1b0] sm:$0xff]
    %v3974 = vld [vmem:[#allocation7 + $0x1b8] sm:$0xff]
    %v3975 = vld [vmem:[#allocation7 + $0x1c0] sm:$0xff]
    %v3976 = vld [vmem:[#allocation7 + $0x1c8] sm:$0xff]
    %v3977 = vld [vmem:[#allocation7 + $0x1d0] sm:$0xff]
    %v3978 = vld [vmem:[#allocation7 + $0x1d8] sm:$0xff]
    %v3979 = vld [vmem:[#allocation7 + $0x1e0] sm:$0xff]
    %v3980 = vld [vmem:[#allocation7 + $0x1e8] sm:$0xff]
    %v3981 = vld [vmem:[#allocation7 + $0x1f0] sm:$0xff]
    %v3982 = vld [vmem:[#allocation7 + $0x1f8] sm:$0xff]
    %v3983 = vld [vmem:[#allocation7 + $0x200] sm:$0xff]
    %v3984 = vld [vmem:[#allocation7 + $0x208] sm:$0xff]
    %v3985 = vld [vmem:[#allocation7 + $0x210] sm:$0xff]
    %v3986 = vld [vmem:[#allocation7 + $0x218] sm:$0xff]
    %v3987 = vld [vmem:[#allocation7 + $0x220] sm:$0xff]
    %v3988 = vld [vmem:[#allocation7 + $0x228] sm:$0xff]
    %v3989 = vld [vmem:[#allocation7 + $0x230] sm:$0xff]
    %v3990 = vld [vmem:[#allocation7 + $0x238] sm:$0xff]
    %v3991 = vld [vmem:[#allocation7 + $0x240] sm:$0xff]
    %v3992 = vld [vmem:[#allocation7 + $0x248] sm:$0xff]
    %v3993 = vld [vmem:[#allocation7 + $0x250] sm:$0xff]
    %v3994 = vld [vmem:[#allocation7 + $0x258] sm:$0xff]
    %v3995 = vld [vmem:[#allocation7 + $0x260] sm:$0xff]
    %v3996 = vld [vmem:[#allocation7 + $0x268] sm:$0xff]
    %v3997 = vld [vmem:[#allocation7 + $0x270] sm:$0xff]
    %v3998 = vld [vmem:[#allocation7 + $0x278] sm:$0xff]
    %v3999 = vld [vmem:[#allocation7 + $0x280] sm:$0xff]
    %v4000 = vld [vmem:[#allocation7 + $0x288] sm:$0xff]
    %v4001 = vld [vmem:[#allocation7 + $0x290] sm:$0xff]
    %v4002 = vld [vmem:[#allocation7 + $0x298] sm:$0xff]
    %v4003 = vld [vmem:[#allocation7 + $0x2a0] sm:$0xff]
    %v4004 = vld [vmem:[#allocation7 + $0x2a8] sm:$0xff]
    %v4005 = vld [vmem:[#allocation7 + $0x2b0] sm:$0xff]
    %v4006 = vld [vmem:[#allocation7 + $0x2b8] sm:$0xff]
    %v4007 = vld [vmem:[#allocation7 + $0x2c0] sm:$0xff]
    %v4008 = vld [vmem:[#allocation7 + $0x2c8] sm:$0xff]
    %v4009 = vld [vmem:[#allocation7 + $0x2d0] sm:$0xff]
    %v4010 = vld [vmem:[#allocation7 + $0x2d8] sm:$0xff]
    %v4011 = vld [vmem:[#allocation7 + $0x2e0] sm:$0xff]
    %v4012 = vld [vmem:[#allocation7 + $0x2e8] sm:$0xff]
    %v4013 = vld [vmem:[#allocation7 + $0x2f0] sm:$0xff]
    %v4014 = vld [vmem:[#allocation7 + $0x2f8] sm:$0xff]
    %v4015 = vld [vmem:[#allocation7 + $0x300] sm:$0xff]
    %v4016 = vld [vmem:[#allocation7 + $0x308] sm:$0xff]
    %v4017 = vld [vmem:[#allocation7 + $0x310] sm:$0xff]
    %v4018 = vld [vmem:[#allocation7 + $0x318] sm:$0xff]
    %v4019 = vld [vmem:[#allocation7 + $0x320] sm:$0xff]
    %v4020 = vld [vmem:[#allocation7 + $0x328] sm:$0xff]
    %v4021 = vld [vmem:[#allocation7 + $0x330] sm:$0xff]
    %v4022 = vld [vmem:[#allocation7 + $0x338] sm:$0xff]
    %v4023 = vld [vmem:[#allocation7 + $0x340] sm:$0xff]
    %v4024 = vld [vmem:[#allocation7 + $0x348] sm:$0xff]
    %v4025 = vld [vmem:[#allocation7 + $0x350] sm:$0xff]
    %v4026 = vld [vmem:[#allocation7 + $0x358] sm:$0xff]
    %v4027 = vld [vmem:[#allocation7 + $0x360] sm:$0xff]
    %v4028 = vld [vmem:[#allocation7 + $0x368] sm:$0xff]
    %v4029 = vld [vmem:[#allocation7 + $0x370] sm:$0xff]
    %v4030 = vld [vmem:[#allocation7 + $0x378] sm:$0xff]
    %v4031 = vld [vmem:[#allocation7 + $0x380] sm:$0xff]
    %v4032 = vld [vmem:[#allocation7 + $0x388] sm:$0xff]
    %v4033 = vld [vmem:[#allocation7 + $0x390] sm:$0xff]
    %v4034 = vld [vmem:[#allocation7 + $0x398] sm:$0xff]
    %v4035 = vld [vmem:[#allocation7 + $0x3a0] sm:$0xff]
    %v4036 = vld [vmem:[#allocation7 + $0x3a8] sm:$0xff]
    %v4037 = vld [vmem:[#allocation7 + $0x3b0] sm:$0xff]
    %v4038 = vld [vmem:[#allocation7 + $0x3b8] sm:$0xff]
    %v4039 = vld [vmem:[#allocation7 + $0x3c0] sm:$0xff]
    %v4040 = vld [vmem:[#allocation7 + $0x3c8] sm:$0xff]
    %v4041 = vld [vmem:[#allocation7 + $0x3d0] sm:$0xff]
    %v4042 = vld [vmem:[#allocation7 + $0x3d8] sm:$0xff]
    %v4043 = vld [vmem:[#allocation7 + $0x3e0] sm:$0xff]
    %v4044 = vld [vmem:[#allocation7 + $0x3e8] sm:$0xff]
    %v4045 = vld [vmem:[#allocation7 + $0x3f0] sm:$0xff]
    %v4046 = vld [vmem:[#allocation7 + $0x3f8] sm:$0xff]
    %v4047 = vld [vmem:[#allocation8] sm:$0xff]
    %v4048 = vld [vmem:[#allocation8 + $0x8] sm:$0xff]
    %v4049 = vld [vmem:[#allocation8 + $0x10] sm:$0xff]
    %v4050 = vld [vmem:[#allocation8 + $0x18] sm:$0xff]
    %v4051 = vld [vmem:[#allocation8 + $0x20] sm:$0xff]
    %v4052 = vld [vmem:[#allocation8 + $0x28] sm:$0xff]
    %v4053 = vld [vmem:[#allocation8 + $0x30] sm:$0xff]
    %v4054 = vld [vmem:[#allocation8 + $0x38] sm:$0xff]
    %v4055 = vld [vmem:[#allocation8 + $0x40] sm:$0xff]
    %v4056 = vld [vmem:[#allocation8 + $0x48] sm:$0xff]
    %v4057 = vld [vmem:[#allocation8 + $0x50] sm:$0xff]
    %v4058 = vld [vmem:[#allocation8 + $0x58] sm:$0xff]
    %v4059 = vld [vmem:[#allocation8 + $0x60] sm:$0xff]
    %v4060 = vld [vmem:[#allocation8 + $0x68] sm:$0xff]
    %v4061 = vld [vmem:[#allocation8 + $0x70] sm:$0xff]
    %v4062 = vld [vmem:[#allocation8 + $0x78] sm:$0xff]
    %v4063 = vld [vmem:[#allocation8 + $0x80] sm:$0xff]
    %v4064 = vld [vmem:[#allocation8 + $0x88] sm:$0xff]
    %v4065 = vld [vmem:[#allocation8 + $0x90] sm:$0xff]
    %v4066 = vld [vmem:[#allocation8 + $0x98] sm:$0xff]
    %v4067 = vld [vmem:[#allocation8 + $0xa0] sm:$0xff]
    %v4068 = vld [vmem:[#allocation8 + $0xa8] sm:$0xff]
    %v4069 = vld [vmem:[#allocation8 + $0xb0] sm:$0xff]
    %v4070 = vld [vmem:[#allocation8 + $0xb8] sm:$0xff]
    %v4071 = vld [vmem:[#allocation8 + $0xc0] sm:$0xff]
    %v4072 = vld [vmem:[#allocation8 + $0xc8] sm:$0xff]
    %v4073 = vld [vmem:[#allocation8 + $0xd0] sm:$0xff]
    %v4074 = vld [vmem:[#allocation8 + $0xd8] sm:$0xff]
    %v4075 = vld [vmem:[#allocation8 + $0xe0] sm:$0xff]
    %v4076 = vld [vmem:[#allocation8 + $0xe8] sm:$0xff]
    %v4077 = vld [vmem:[#allocation8 + $0xf0] sm:$0xff]
    %v4078 = vld [vmem:[#allocation8 + $0xf8] sm:$0xff]
    %v4079 = vld [vmem:[#allocation8 + $0x100] sm:$0xff]
    %v4080 = vld [vmem:[#allocation8 + $0x108] sm:$0xff]
    %v4081 = vld [vmem:[#allocation8 + $0x110] sm:$0xff]
    %v4082 = vld [vmem:[#allocation8 + $0x118] sm:$0xff]
    %v4083 = vld [vmem:[#allocation8 + $0x120] sm:$0xff]
    %v4084 = vld [vmem:[#allocation8 + $0x128] sm:$0xff]
    %v4085 = vld [vmem:[#allocation8 + $0x130] sm:$0xff]
    %v4086 = vld [vmem:[#allocation8 + $0x138] sm:$0xff]
    %v4087 = vld [vmem:[#allocation8 + $0x140] sm:$0xff]
    %v4088 = vld [vmem:[#allocation8 + $0x148] sm:$0xff]
    %v4089 = vld [vmem:[#allocation8 + $0x150] sm:$0xff]
    %v4090 = vld [vmem:[#allocation8 + $0x158] sm:$0xff]
    %v4091 = vld [vmem:[#allocation8 + $0x160] sm:$0xff]
    %v4092 = vld [vmem:[#allocation8 + $0x168] sm:$0xff]
    %v4093 = vld [vmem:[#allocation8 + $0x170] sm:$0xff]
    %v4094 = vld [vmem:[#allocation8 + $0x178] sm:$0xff]
    %v4095 = vld [vmem:[#allocation8 + $0x180] sm:$0xff]
    %v4096 = vld [vmem:[#allocation8 + $0x188] sm:$0xff]
    %v4097 = vld [vmem:[#allocation8 + $0x190] sm:$0xff]
    %v4098 = vld [vmem:[#allocation8 + $0x198] sm:$0xff]
    %v4099 = vld [vmem:[#allocation8 + $0x1a0] sm:$0xff]
    %v4100 = vld [vmem:[#allocation8 + $0x1a8] sm:$0xff]
    %v4101 = vld [vmem:[#allocation8 + $0x1b0] sm:$0xff]
    %v4102 = vld [vmem:[#allocation8 + $0x1b8] sm:$0xff]
    %v4103 = vld [vmem:[#allocation8 + $0x1c0] sm:$0xff]
    %v4104 = vld [vmem:[#allocation8 + $0x1c8] sm:$0xff]
    %v4105 = vld [vmem:[#allocation8 + $0x1d0] sm:$0xff]
    %v4106 = vld [vmem:[#allocation8 + $0x1d8] sm:$0xff]
    %v4107 = vld [vmem:[#allocation8 + $0x1e0] sm:$0xff]
    %v4108 = vld [vmem:[#allocation8 + $0x1e8] sm:$0xff]
    %v4109 = vld [vmem:[#allocation8 + $0x1f0] sm:$0xff]
    %v4110 = vld [vmem:[#allocation8 + $0x1f8] sm:$0xff]
    %v4111 = vld [vmem:[#allocation8 + $0x200] sm:$0xff]
    %v4112 = vld [vmem:[#allocation8 + $0x208] sm:$0xff]
    %v4113 = vld [vmem:[#allocation8 + $0x210] sm:$0xff]
    %v4114 = vld [vmem:[#allocation8 + $0x218] sm:$0xff]
    %v4115 = vld [vmem:[#allocation8 + $0x220] sm:$0xff]
    %v4116 = vld [vmem:[#allocation8 + $0x228] sm:$0xff]
    %v4117 = vld [vmem:[#allocation8 + $0x230] sm:$0xff]
    %v4118 = vld [vmem:[#allocation8 + $0x238] sm:$0xff]
    %v4119 = vld [vmem:[#allocation8 + $0x240] sm:$0xff]
    %v4120 = vld [vmem:[#allocation8 + $0x248] sm:$0xff]
    %v4121 = vld [vmem:[#allocation8 + $0x250] sm:$0xff]
    %v4122 = vld [vmem:[#allocation8 + $0x258] sm:$0xff]
    %v4123 = vld [vmem:[#allocation8 + $0x260] sm:$0xff]
    %v4124 = vld [vmem:[#allocation8 + $0x268] sm:$0xff]
    %v4125 = vld [vmem:[#allocation8 + $0x270] sm:$0xff]
    %v4126 = vld [vmem:[#allocation8 + $0x278] sm:$0xff]
    %v4127 = vld [vmem:[#allocation8 + $0x280] sm:$0xff]
    %v4128 = vld [vmem:[#allocation8 + $0x288] sm:$0xff]
    %v4129 = vld [vmem:[#allocation8 + $0x290] sm:$0xff]
    %v4130 = vld [vmem:[#allocation8 + $0x298] sm:$0xff]
    %v4131 = vld [vmem:[#allocation8 + $0x2a0] sm:$0xff]
    %v4132 = vld [vmem:[#allocation8 + $0x2a8] sm:$0xff]
    %v4133 = vld [vmem:[#allocation8 + $0x2b0] sm:$0xff]
    %v4134 = vld [vmem:[#allocation8 + $0x2b8] sm:$0xff]
    %v4135 = vld [vmem:[#allocation8 + $0x2c0] sm:$0xff]
    %v4136 = vld [vmem:[#allocation8 + $0x2c8] sm:$0xff]
    %v4137 = vld [vmem:[#allocation8 + $0x2d0] sm:$0xff]
    %v4138 = vld [vmem:[#allocation8 + $0x2d8] sm:$0xff]
    %v4139 = vld [vmem:[#allocation8 + $0x2e0] sm:$0xff]
    %v4140 = vld [vmem:[#allocation8 + $0x2e8] sm:$0xff]
    %v4141 = vld [vmem:[#allocation8 + $0x2f0] sm:$0xff]
    %v4142 = vld [vmem:[#allocation8 + $0x2f8] sm:$0xff]
    %v4143 = vld [vmem:[#allocation8 + $0x300] sm:$0xff]
    %v4144 = vld [vmem:[#allocation8 + $0x308] sm:$0xff]
    %v4145 = vld [vmem:[#allocation8 + $0x310] sm:$0xff]
    %v4146 = vld [vmem:[#allocation8 + $0x318] sm:$0xff]
    %v4147 = vld [vmem:[#allocation8 + $0x320] sm:$0xff]
    %v4148 = vld [vmem:[#allocation8 + $0x328] sm:$0xff]
    %v4149 = vld [vmem:[#allocation8 + $0x330] sm:$0xff]
    %v4150 = vld [vmem:[#allocation8 + $0x338] sm:$0xff]
    %v4151 = vld [vmem:[#allocation8 + $0x340] sm:$0xff]
    %v4152 = vld [vmem:[#allocation8 + $0x348] sm:$0xff]
    %v4153 = vld [vmem:[#allocation8 + $0x350] sm:$0xff]
    %v4154 = vld [vmem:[#allocation8 + $0x358] sm:$0xff]
    %v4155 = vld [vmem:[#allocation8 + $0x360] sm:$0xff]
    %v4156 = vld [vmem:[#allocation8 + $0x368] sm:$0xff]
    %v4157 = vld [vmem:[#allocation8 + $0x370] sm:$0xff]
    %v4158 = vld [vmem:[#allocation8 + $0x378] sm:$0xff]
    %v4159 = vld [vmem:[#allocation8 + $0x380] sm:$0xff]
    %v4160 = vld [vmem:[#allocation8 + $0x388] sm:$0xff]
    %v4161 = vld [vmem:[#allocation8 + $0x390] sm:$0xff]
    %v4162 = vld [vmem:[#allocation8 + $0x398] sm:$0xff]
    %v4163 = vld [vmem:[#allocation8 + $0x3a0] sm:$0xff]
    %v4164 = vld [vmem:[#allocation8 + $0x3a8] sm:$0xff]
    %v4165 = vld [vmem:[#allocation8 + $0x3b0] sm:$0xff]
    %v4166 = vld [vmem:[#allocation8 + $0x3b8] sm:$0xff]
    %v4167 = vld [vmem:[#allocation8 + $0x3c0] sm:$0xff]
    %v4168 = vld [vmem:[#allocation8 + $0x3c8] sm:$0xff]
    %v4169 = vld [vmem:[#allocation8 + $0x3d0] sm:$0xff]
    %v4170 = vld [vmem:[#allocation8 + $0x3d8] sm:$0xff]
    %v4171 = vld [vmem:[#allocation8 + $0x3e0] sm:$0xff]
    %v4172 = vld [vmem:[#allocation8 + $0x3e8] sm:$0xff]
    %v4173 = vld [vmem:[#allocation8 + $0x3f0] sm:$0xff]
    %v4174 = vld [vmem:[#allocation8 + $0x3f8] sm:$0xff]
    %v4175 = vld [vmem:[%s15] sm:$0xf]
    %v4176 = vpack.c.bf16 %v3915, %v3915
    %v4177 = vpack.c.bf16 %v3916, %v3916
    %v4178 = vpack.c.bf16 %v3917, %v3917
    %v4179 = vpack.c.bf16 %v3918, %v3918
    %v4308 = vunpack.c.l.b16 %v3919
    %v4309 = vunpack.c.h.b16 %v3919
    %v4310 = vunpack.c.l.b16 %v3920
    %v4311 = vunpack.c.h.b16 %v3920
    %v4312 = vunpack.c.l.b16 %v3921
    %v4313 = vunpack.c.h.b16 %v3921
    %v4314 = vunpack.c.l.b16 %v3922
    %v4315 = vunpack.c.h.b16 %v3922
    %v4316 = vunpack.c.l.b16 %v3923
    %v4317 = vunpack.c.h.b16 %v3923
    %v4318 = vunpack.c.l.b16 %v3924
    %v4319 = vunpack.c.h.b16 %v3924
    %v4320 = vunpack.c.l.b16 %v3925
    %v4321 = vunpack.c.h.b16 %v3925
    %v4322 = vunpack.c.l.b16 %v3926
    %v4323 = vunpack.c.h.b16 %v3926
    %v4324 = vunpack.c.l.b16 %v3927
    %v4325 = vunpack.c.h.b16 %v3927
    %v4326 = vunpack.c.l.b16 %v3928
    %v4327 = vunpack.c.h.b16 %v3928
    %v4328 = vunpack.c.l.b16 %v3929
    %v4329 = vunpack.c.h.b16 %v3929
    %v4330 = vunpack.c.l.b16 %v3930
    %v4331 = vunpack.c.h.b16 %v3930
    %v4332 = vunpack.c.l.b16 %v3931
    %v4333 = vunpack.c.h.b16 %v3931
    %v4334 = vunpack.c.l.b16 %v3932
    %v4335 = vunpack.c.h.b16 %v3932
    %v4336 = vunpack.c.l.b16 %v3933
    %v4337 = vunpack.c.h.b16 %v3933
    %v4338 = vunpack.c.l.b16 %v3934
    %v4339 = vunpack.c.h.b16 %v3934
    %v4340 = vunpack.c.l.b16 %v3935
    %v4341 = vunpack.c.h.b16 %v3935
    %v4342 = vunpack.c.l.b16 %v3936
    %v4343 = vunpack.c.h.b16 %v3936
    %v4344 = vunpack.c.l.b16 %v3937
    %v4345 = vunpack.c.h.b16 %v3937
    %v4346 = vunpack.c.l.b16 %v3938
    %v4347 = vunpack.c.h.b16 %v3938
    %v4348 = vunpack.c.l.b16 %v3939
    %v4349 = vunpack.c.h.b16 %v3939
    %v4350 = vunpack.c.l.b16 %v3940
    %v4351 = vunpack.c.h.b16 %v3940
    %v4352 = vunpack.c.l.b16 %v3941
    %v4353 = vunpack.c.h.b16 %v3941
    %v4354 = vunpack.c.l.b16 %v3942
    %v4355 = vunpack.c.h.b16 %v3942
    %v4356 = vunpack.c.l.b16 %v3943
    %v4357 = vunpack.c.h.b16 %v3943
    %v4358 = vunpack.c.l.b16 %v3944
    %v4359 = vunpack.c.h.b16 %v3944
    %v4360 = vunpack.c.l.b16 %v3945
    %v4361 = vunpack.c.h.b16 %v3945
    %v4362 = vunpack.c.l.b16 %v3946
    %v4363 = vunpack.c.h.b16 %v3946
    %v4364 = vunpack.c.l.b16 %v3947
    %v4365 = vunpack.c.h.b16 %v3947
    %v4366 = vunpack.c.l.b16 %v3948
    %v4367 = vunpack.c.h.b16 %v3948
    %v4368 = vunpack.c.l.b16 %v3949
    %v4369 = vunpack.c.h.b16 %v3949
    %v4370 = vunpack.c.l.b16 %v3950
    %v4371 = vunpack.c.h.b16 %v3950
    %v4372 = vunpack.c.l.b16 %v3951
    %v4373 = vunpack.c.h.b16 %v3951
    %v4374 = vunpack.c.l.b16 %v3952
    %v4375 = vunpack.c.h.b16 %v3952
    %v4376 = vunpack.c.l.b16 %v3953
    %v4377 = vunpack.c.h.b16 %v3953
    %v4378 = vunpack.c.l.b16 %v3954
    %v4379 = vunpack.c.h.b16 %v3954
    %v4380 = vunpack.c.l.b16 %v3955
    %v4381 = vunpack.c.h.b16 %v3955
    %v4382 = vunpack.c.l.b16 %v3956
    %v4383 = vunpack.c.h.b16 %v3956
    %v4384 = vunpack.c.l.b16 %v3957
    %v4385 = vunpack.c.h.b16 %v3957
    %v4386 = vunpack.c.l.b16 %v3958
    %v4387 = vunpack.c.h.b16 %v3958
    %v4388 = vunpack.c.l.b16 %v3959
    %v4389 = vunpack.c.h.b16 %v3959
    %v4390 = vunpack.c.l.b16 %v3960
    %v4391 = vunpack.c.h.b16 %v3960
    %v4392 = vunpack.c.l.b16 %v3961
    %v4393 = vunpack.c.h.b16 %v3961
    %v4394 = vunpack.c.l.b16 %v3962
    %v4395 = vunpack.c.h.b16 %v3962
    %v4396 = vunpack.c.l.b16 %v3963
    %v4397 = vunpack.c.h.b16 %v3963
    %v4398 = vunpack.c.l.b16 %v3964
    %v4399 = vunpack.c.h.b16 %v3964
    %v4400 = vunpack.c.l.b16 %v3965
    %v4401 = vunpack.c.h.b16 %v3965
    %v4402 = vunpack.c.l.b16 %v3966
    %v4403 = vunpack.c.h.b16 %v3966
    %v4404 = vunpack.c.l.b16 %v3967
    %v4405 = vunpack.c.h.b16 %v3967
    %v4406 = vunpack.c.l.b16 %v3968
    %v4407 = vunpack.c.h.b16 %v3968
    %v4408 = vunpack.c.l.b16 %v3969
    %v4409 = vunpack.c.h.b16 %v3969
    %v4410 = vunpack.c.l.b16 %v3970
    %v4411 = vunpack.c.h.b16 %v3970
    %v4412 = vunpack.c.l.b16 %v3971
    %v4413 = vunpack.c.h.b16 %v3971
    %v4414 = vunpack.c.l.b16 %v3972
    %v4415 = vunpack.c.h.b16 %v3972
    %v4416 = vunpack.c.l.b16 %v3973
    %v4417 = vunpack.c.h.b16 %v3973
    %v4418 = vunpack.c.l.b16 %v3974
    %v4419 = vunpack.c.h.b16 %v3974
    %v4420 = vunpack.c.l.b16 %v3975
    %v4421 = vunpack.c.h.b16 %v3975
    %v4422 = vunpack.c.l.b16 %v3976
    %v4423 = vunpack.c.h.b16 %v3976
    %v4424 = vunpack.c.l.b16 %v3977
    %v4425 = vunpack.c.h.b16 %v3977
    %v4426 = vunpack.c.l.b16 %v3978
    %v4427 = vunpack.c.h.b16 %v3978
    %v4428 = vunpack.c.l.b16 %v3979
    %v4429 = vunpack.c.h.b16 %v3979
    %v4430 = vunpack.c.l.b16 %v3980
    %v4431 = vunpack.c.h.b16 %v3980
    %v4432 = vunpack.c.l.b16 %v3981
    %v4433 = vunpack.c.h.b16 %v3981
    %v4434 = vunpack.c.l.b16 %v3982
    %v4435 = vunpack.c.h.b16 %v3982
    %v4436 = vunpack.c.l.b16 %v3983
    %v4437 = vunpack.c.h.b16 %v3983
    %v4438 = vunpack.c.l.b16 %v3984
    %v4439 = vunpack.c.h.b16 %v3984
    %v4440 = vunpack.c.l.b16 %v3985
    %v4441 = vunpack.c.h.b16 %v3985
    %v4442 = vunpack.c.l.b16 %v3986
    %v4443 = vunpack.c.h.b16 %v3986
    %v4444 = vunpack.c.l.b16 %v3987
    %v4445 = vunpack.c.h.b16 %v3987
    %v4446 = vunpack.c.l.b16 %v3988
    %v4447 = vunpack.c.h.b16 %v3988
    %v4448 = vunpack.c.l.b16 %v3989
    %v4449 = vunpack.c.h.b16 %v3989
    %v4450 = vunpack.c.l.b16 %v3990
    %v4451 = vunpack.c.h.b16 %v3990
    %v4452 = vunpack.c.l.b16 %v3991
    %v4453 = vunpack.c.h.b16 %v3991
    %v4454 = vunpack.c.l.b16 %v3992
    %v4455 = vunpack.c.h.b16 %v3992
    %v4456 = vunpack.c.l.b16 %v3993
    %v4457 = vunpack.c.h.b16 %v3993
    %v4458 = vunpack.c.l.b16 %v3994
    %v4459 = vunpack.c.h.b16 %v3994
    %v4460 = vunpack.c.l.b16 %v3995
    %v4461 = vunpack.c.h.b16 %v3995
    %v4462 = vunpack.c.l.b16 %v3996
    %v4463 = vunpack.c.h.b16 %v3996
    %v4464 = vunpack.c.l.b16 %v3997
    %v4465 = vunpack.c.h.b16 %v3997
    %v4466 = vunpack.c.l.b16 %v3998
    %v4467 = vunpack.c.h.b16 %v3998
    %v4468 = vunpack.c.l.b16 %v3999
    %v4469 = vunpack.c.h.b16 %v3999
    %v4470 = vunpack.c.l.b16 %v4000
    %v4471 = vunpack.c.h.b16 %v4000
    %v4472 = vunpack.c.l.b16 %v4001
    %v4473 = vunpack.c.h.b16 %v4001
    %v4474 = vunpack.c.l.b16 %v4002
    %v4475 = vunpack.c.h.b16 %v4002
    %v4476 = vunpack.c.l.b16 %v4003
    %v4477 = vunpack.c.h.b16 %v4003
    %v4478 = vunpack.c.l.b16 %v4004
    %v4479 = vunpack.c.h.b16 %v4004
    %v4480 = vunpack.c.l.b16 %v4005
    %v4481 = vunpack.c.h.b16 %v4005
    %v4482 = vunpack.c.l.b16 %v4006
    %v4483 = vunpack.c.h.b16 %v4006
    %v4484 = vunpack.c.l.b16 %v4007
    %v4485 = vunpack.c.h.b16 %v4007
    %v4486 = vunpack.c.l.b16 %v4008
    %v4487 = vunpack.c.h.b16 %v4008
    %v4488 = vunpack.c.l.b16 %v4009
    %v4489 = vunpack.c.h.b16 %v4009
    %v4490 = vunpack.c.l.b16 %v4010
    %v4491 = vunpack.c.h.b16 %v4010
    %v4492 = vunpack.c.l.b16 %v4011
    %v4493 = vunpack.c.h.b16 %v4011
    %v4494 = vunpack.c.l.b16 %v4012
    %v4495 = vunpack.c.h.b16 %v4012
    %v4496 = vunpack.c.l.b16 %v4013
    %v4497 = vunpack.c.h.b16 %v4013
    %v4498 = vunpack.c.l.b16 %v4014
    %v4499 = vunpack.c.h.b16 %v4014
    %v4500 = vunpack.c.l.b16 %v4015
    %v4501 = vunpack.c.h.b16 %v4015
    %v4502 = vunpack.c.l.b16 %v4016
    %v4503 = vunpack.c.h.b16 %v4016
    %v4504 = vunpack.c.l.b16 %v4017
    %v4505 = vunpack.c.h.b16 %v4017
    %v4506 = vunpack.c.l.b16 %v4018
    %v4507 = vunpack.c.h.b16 %v4018
    %v4508 = vunpack.c.l.b16 %v4019
    %v4509 = vunpack.c.h.b16 %v4019
    %v4510 = vunpack.c.l.b16 %v4020
    %v4511 = vunpack.c.h.b16 %v4020
    %v4512 = vunpack.c.l.b16 %v4021
    %v4513 = vunpack.c.h.b16 %v4021
    %v4514 = vunpack.c.l.b16 %v4022
    %v4515 = vunpack.c.h.b16 %v4022
    %v4516 = vunpack.c.l.b16 %v4023
    %v4517 = vunpack.c.h.b16 %v4023
    %v4518 = vunpack.c.l.b16 %v4024
    %v4519 = vunpack.c.h.b16 %v4024
    %v4520 = vunpack.c.l.b16 %v4025
    %v4521 = vunpack.c.h.b16 %v4025
    %v4522 = vunpack.c.l.b16 %v4026
    %v4523 = vunpack.c.h.b16 %v4026
    %v4524 = vunpack.c.l.b16 %v4027
    %v4525 = vunpack.c.h.b16 %v4027
    %v4526 = vunpack.c.l.b16 %v4028
    %v4527 = vunpack.c.h.b16 %v4028
    %v4528 = vunpack.c.l.b16 %v4029
    %v4529 = vunpack.c.h.b16 %v4029
    %v4530 = vunpack.c.l.b16 %v4030
    %v4531 = vunpack.c.h.b16 %v4030
    %v4532 = vunpack.c.l.b16 %v4031
    %v4533 = vunpack.c.h.b16 %v4031
    %v4534 = vunpack.c.l.b16 %v4032
    %v4535 = vunpack.c.h.b16 %v4032
    %v4536 = vunpack.c.l.b16 %v4033
    %v4537 = vunpack.c.h.b16 %v4033
    %v4538 = vunpack.c.l.b16 %v4034
    %v4539 = vunpack.c.h.b16 %v4034
    %v4540 = vunpack.c.l.b16 %v4035
    %v4541 = vunpack.c.h.b16 %v4035
    %v4542 = vunpack.c.l.b16 %v4036
    %v4543 = vunpack.c.h.b16 %v4036
    %v4544 = vunpack.c.l.b16 %v4037
    %v4545 = vunpack.c.h.b16 %v4037
    %v4546 = vunpack.c.l.b16 %v4038
    %v4547 = vunpack.c.h.b16 %v4038
    %v4548 = vunpack.c.l.b16 %v4039
    %v4549 = vunpack.c.h.b16 %v4039
    %v4550 = vunpack.c.l.b16 %v4040
    %v4551 = vunpack.c.h.b16 %v4040
    %v4552 = vunpack.c.l.b16 %v4041
    %v4553 = vunpack.c.h.b16 %v4041
    %v4554 = vunpack.c.l.b16 %v4042
    %v4555 = vunpack.c.h.b16 %v4042
    %v4556 = vunpack.c.l.b16 %v4043
    %v4557 = vunpack.c.h.b16 %v4043
    %v4558 = vunpack.c.l.b16 %v4044
    %v4559 = vunpack.c.h.b16 %v4044
    %v4560 = vunpack.c.l.b16 %v4045
    %v4561 = vunpack.c.h.b16 %v4045
    %v4562 = vunpack.c.l.b16 %v4046
    %v4563 = vunpack.c.h.b16 %v4046
    %v4564 = vpack.c.b16 %v4312, %v4308
    %v4565 = vpack.c.b16 %v4313, %v4309
    %v4566 = vpack.c.b16 %v4314, %v4310
    %v4567 = vpack.c.b16 %v4315, %v4311
    %v4568 = vpack.c.b16 %v4320, %v4316
    %v4569 = vpack.c.b16 %v4321, %v4317
    %v4570 = vpack.c.b16 %v4322, %v4318
    %v4571 = vpack.c.b16 %v4323, %v4319
    %v4572 = vpack.c.b16 %v4328, %v4324
    %v4573 = vpack.c.b16 %v4329, %v4325
    %v4574 = vpack.c.b16 %v4330, %v4326
    %v4575 = vpack.c.b16 %v4331, %v4327
    %v4576 = vpack.c.b16 %v4336, %v4332
    %v4577 = vpack.c.b16 %v4337, %v4333
    %v4578 = vpack.c.b16 %v4338, %v4334
    %v4579 = vpack.c.b16 %v4339, %v4335
    %v4580 = vpack.c.b16 %v4344, %v4340
    %v4581 = vpack.c.b16 %v4345, %v4341
    %v4582 = vpack.c.b16 %v4346, %v4342
    %v4583 = vpack.c.b16 %v4347, %v4343
    %v4584 = vpack.c.b16 %v4352, %v4348
    %v4585 = vpack.c.b16 %v4353, %v4349
    %v4586 = vpack.c.b16 %v4354, %v4350
    %v4587 = vpack.c.b16 %v4355, %v4351
    %v4588 = vpack.c.b16 %v4360, %v4356
    %v4589 = vpack.c.b16 %v4361, %v4357
    %v4590 = vpack.c.b16 %v4362, %v4358
    %v4591 = vpack.c.b16 %v4363, %v4359
    %v4592 = vpack.c.b16 %v4368, %v4364
    %v4593 = vpack.c.b16 %v4369, %v4365
    %v4594 = vpack.c.b16 %v4370, %v4366
    %v4595 = vpack.c.b16 %v4371, %v4367
    %v4596 = vpack.c.b16 %v4376, %v4372
    %v4597 = vpack.c.b16 %v4377, %v4373
    %v4598 = vpack.c.b16 %v4378, %v4374
    %v4599 = vpack.c.b16 %v4379, %v4375
    %v4600 = vpack.c.b16 %v4384, %v4380
    %v4601 = vpack.c.b16 %v4385, %v4381
    %v4602 = vpack.c.b16 %v4386, %v4382
    %v4603 = vpack.c.b16 %v4387, %v4383
    %v4604 = vpack.c.b16 %v4392, %v4388
    %v4605 = vpack.c.b16 %v4393, %v4389
    %v4606 = vpack.c.b16 %v4394, %v4390
    %v4607 = vpack.c.b16 %v4395, %v4391
    %v4608 = vpack.c.b16 %v4400, %v4396
    %v4609 = vpack.c.b16 %v4401, %v4397
    %v4610 = vpack.c.b16 %v4402, %v4398
    %v4611 = vpack.c.b16 %v4403, %v4399
    %v4612 = vpack.c.b16 %v4408, %v4404
    %v4613 = vpack.c.b16 %v4409, %v4405
    %v4614 = vpack.c.b16 %v4410, %v4406
    %v4615 = vpack.c.b16 %v4411, %v4407
    %v4616 = vpack.c.b16 %v4416, %v4412
    %v4617 = vpack.c.b16 %v4417, %v4413
    %v4618 = vpack.c.b16 %v4418, %v4414
    %v4619 = vpack.c.b16 %v4419, %v4415
    %v4620 = vpack.c.b16 %v4424, %v4420
    %v4621 = vpack.c.b16 %v4425, %v4421
    %v4622 = vpack.c.b16 %v4426, %v4422
    %v4623 = vpack.c.b16 %v4427, %v4423
    %v4624 = vpack.c.b16 %v4432, %v4428
    %v4625 = vpack.c.b16 %v4433, %v4429
    %v4626 = vpack.c.b16 %v4434, %v4430
    %v4627 = vpack.c.b16 %v4435, %v4431
    %v4628 = vpack.c.b16 %v4440, %v4436
    %v4629 = vpack.c.b16 %v4441, %v4437
    %v4630 = vpack.c.b16 %v4442, %v4438
    %v4631 = vpack.c.b16 %v4443, %v4439
    %v4632 = vpack.c.b16 %v4448, %v4444
    %v4633 = vpack.c.b16 %v4449, %v4445
    %v4634 = vpack.c.b16 %v4450, %v4446
    %v4635 = vpack.c.b16 %v4451, %v4447
    %v4636 = vpack.c.b16 %v4456, %v4452
    %v4637 = vpack.c.b16 %v4457, %v4453
    %v4638 = vpack.c.b16 %v4458, %v4454
    %v4639 = vpack.c.b16 %v4459, %v4455
    %v4640 = vpack.c.b16 %v4464, %v4460
    %v4641 = vpack.c.b16 %v4465, %v4461
    %v4642 = vpack.c.b16 %v4466, %v4462
    %v4643 = vpack.c.b16 %v4467, %v4463
    %v4644 = vpack.c.b16 %v4472, %v4468
    %v4645 = vpack.c.b16 %v4473, %v4469
    %v4646 = vpack.c.b16 %v4474, %v4470
    %v4647 = vpack.c.b16 %v4475, %v4471
    %v4648 = vpack.c.b16 %v4480, %v4476
    %v4649 = vpack.c.b16 %v4481, %v4477
    %v4650 = vpack.c.b16 %v4482, %v4478
    %v4651 = vpack.c.b16 %v4483, %v4479
    %v4652 = vpack.c.b16 %v4488, %v4484
    %v4653 = vpack.c.b16 %v4489, %v4485
    %v4654 = vpack.c.b16 %v4490, %v4486
    %v4655 = vpack.c.b16 %v4491, %v4487
    %v4656 = vpack.c.b16 %v4496, %v4492
    %v4657 = vpack.c.b16 %v4497, %v4493
    %v4658 = vpack.c.b16 %v4498, %v4494
    %v4659 = vpack.c.b16 %v4499, %v4495
    %v4660 = vpack.c.b16 %v4504, %v4500
    %v4661 = vpack.c.b16 %v4505, %v4501
    %v4662 = vpack.c.b16 %v4506, %v4502
    %v4663 = vpack.c.b16 %v4507, %v4503
    %v4664 = vpack.c.b16 %v4512, %v4508
    %v4665 = vpack.c.b16 %v4513, %v4509
    %v4666 = vpack.c.b16 %v4514, %v4510
    %v4667 = vpack.c.b16 %v4515, %v4511
    %v4668 = vpack.c.b16 %v4520, %v4516
    %v4669 = vpack.c.b16 %v4521, %v4517
    %v4670 = vpack.c.b16 %v4522, %v4518
    %v4671 = vpack.c.b16 %v4523, %v4519
    %v4672 = vpack.c.b16 %v4528, %v4524
    %v4673 = vpack.c.b16 %v4529, %v4525
    %v4674 = vpack.c.b16 %v4530, %v4526
    %v4675 = vpack.c.b16 %v4531, %v4527
    %v4676 = vpack.c.b16 %v4536, %v4532
    %v4677 = vpack.c.b16 %v4537, %v4533
    %v4678 = vpack.c.b16 %v4538, %v4534
    %v4679 = vpack.c.b16 %v4539, %v4535
    %v4680 = vpack.c.b16 %v4544, %v4540
    %v4681 = vpack.c.b16 %v4545, %v4541
    %v4682 = vpack.c.b16 %v4546, %v4542
    %v4683 = vpack.c.b16 %v4547, %v4543
    %v4684 = vpack.c.b16 %v4552, %v4548
    %v4685 = vpack.c.b16 %v4553, %v4549
    %v4686 = vpack.c.b16 %v4554, %v4550
    %v4687 = vpack.c.b16 %v4555, %v4551
    %v4688 = vpack.c.b16 %v4560, %v4556
    %v4689 = vpack.c.b16 %v4561, %v4557
    %v4690 = vpack.c.b16 %v4562, %v4558
    %v4691 = vpack.c.b16 %v4563, %v4559
    %4820 = vmatprep.subr.bf16.mxu0 %v4565
    %4821 = vmatpush1.bf16.msra.mxu0 %v4564
    %4822 = vmatprep.subr.bf16.mxu0 %v4569
    %4823 = vmatpush1.bf16.msra.mxu0 %v4568
    %4824 = vmatprep.subr.bf16.mxu0 %v4573
    %4825 = vmatpush1.bf16.msra.mxu0 %v4572
    %4826 = vmatprep.subr.bf16.mxu0 %v4577
    %4827 = vmatpush1.bf16.msra.mxu0 %v4576
    %4828 = vmatprep.subr.bf16.mxu0 %v4581
    %4829 = vmatpush1.bf16.msra.mxu0 %v4580
    %4830 = vmatprep.subr.bf16.mxu0 %v4585
    %4831 = vmatpush1.bf16.msra.mxu0 %v4584
    %4832 = vmatprep.subr.bf16.mxu0 %v4589
    %4833 = vmatpush1.bf16.msra.mxu0 %v4588
    %4834 = vmatprep.subr.bf16.mxu0 %v4593
    %4835 = vmatpush1.bf16.msra.mxu0 %v4592
    %4836 = vmatprep.subr.bf16.mxu0 %v4597
    %4837 = vmatpush1.bf16.msra.mxu0 %v4596
    %4838 = vmatprep.subr.bf16.mxu0 %v4601
    %4839 = vmatpush1.bf16.msra.mxu0 %v4600
    %4840 = vmatprep.subr.bf16.mxu0 %v4605
    %4841 = vmatpush1.bf16.msra.mxu0 %v4604
    %4842 = vmatprep.subr.bf16.mxu0 %v4609
    %4843 = vmatpush1.bf16.msra.mxu0 %v4608
    %4844 = vmatprep.subr.bf16.mxu0 %v4613
    %4845 = vmatpush1.bf16.msra.mxu0 %v4612
    %4846 = vmatprep.subr.bf16.mxu0 %v4617
    %4847 = vmatpush1.bf16.msra.mxu0 %v4616
    %4848 = vmatprep.subr.bf16.mxu0 %v4621
    %4849 = vmatpush1.bf16.msra.mxu0 %v4620
    %4850 = vmatprep.subr.bf16.mxu0 %v4625
    %4851 = vmatpush1.bf16.msra.mxu0 %v4624
    %4852 = vmatprep.mubr.bf16.mxu0 %v4177
    %4853 = vmatmul.mubr.bf16.gmra.mrb[0].mxu0 %v4176
    %v4854 = vpop.f32.mrb[0].mxu0
    %v4855 = vadd.f32 %v3873, %v4854
    %v4856 = vpop.f32.mrb[0].mxu0
    %v4857 = vadd.f32 %v3874, %v4856
    %v4858 = vpop.f32.mrb[0].mxu0
    %v4859 = vpop.f32.mrb[0].mxu0
    %4860 = vdwg.mxu0
    %4861 = vmatprep.subr.bf16.mxu0 %v4629
    %4862 = vmatpush1.bf16.msra.mxu0 %v4628
    %4863 = vmatprep.subr.bf16.mxu0 %v4633
    %4864 = vmatpush1.bf16.msra.mxu0 %v4632
    %4865 = vmatprep.subr.bf16.mxu0 %v4637
    %4866 = vmatpush1.bf16.msra.mxu0 %v4636
    %4867 = vmatprep.subr.bf16.mxu0 %v4641
    %4868 = vmatpush1.bf16.msra.mxu0 %v4640
    %4869 = vmatprep.subr.bf16.mxu0 %v4645
    %4870 = vmatpush1.bf16.msra.mxu0 %v4644
    %4871 = vmatprep.subr.bf16.mxu0 %v4649
    %4872 = vmatpush1.bf16.msra.mxu0 %v4648
    %4873 = vmatprep.subr.bf16.mxu0 %v4653
    %4874 = vmatpush1.bf16.msra.mxu0 %v4652
    %4875 = vmatprep.subr.bf16.mxu0 %v4657
    %4876 = vmatpush1.bf16.msra.mxu0 %v4656
    %4877 = vmatprep.subr.bf16.mxu0 %v4661
    %4878 = vmatpush1.bf16.msra.mxu0 %v4660
    %4879 = vmatprep.subr.bf16.mxu0 %v4665
    %4880 = vmatpush1.bf16.msra.mxu0 %v4664
    %4881 = vmatprep.subr.bf16.mxu0 %v4669
    %4882 = vmatpush1.bf16.msra.mxu0 %v4668
    %4883 = vmatprep.subr.bf16.mxu0 %v4673
    %4884 = vmatpush1.bf16.msra.mxu0 %v4672
    %4885 = vmatprep.subr.bf16.mxu0 %v4677
    %4886 = vmatpush1.bf16.msra.mxu0 %v4676
    %4887 = vmatprep.subr.bf16.mxu0 %v4681
    %4888 = vmatpush1.bf16.msra.mxu0 %v4680
    %4889 = vmatprep.subr.bf16.mxu0 %v4685
    %4890 = vmatpush1.bf16.msra.mxu0 %v4684
    %4891 = vmatprep.subr.bf16.mxu0 %v4689
    %4892 = vmatpush1.bf16.msra.mxu0 %v4688
    %4893 = vmatprep.mubr.bf16.mxu0 %v4179
    %4894 = vmatmul.mubr.bf16.gmra.mrb[0].mxu0 %v4178
    %v4895 = vpop.f32.mrb[0].mxu0
    %v4896 = vadd.f32 %v4855, %v4895
    %v4897 = vpop.f32.mrb[0].mxu0
    %v4898 = vadd.f32 %v4857, %v4897
    %v4899 = vpop.f32.mrb[0].mxu0
    %v4900 = vpop.f32.mrb[0].mxu0
    %4901 = vdwg.mxu0
    %4902 = vmatprep.subr.bf16.mxu0 %v4567
    %4903 = vmatpush1.bf16.msra.mxu0 %v4566
    %4904 = vmatprep.subr.bf16.mxu0 %v4571
    %4905 = vmatpush1.bf16.msra.mxu0 %v4570
    %4906 = vmatprep.subr.bf16.mxu0 %v4575
    %4907 = vmatpush1.bf16.msra.mxu0 %v4574
    %4908 = vmatprep.subr.bf16.mxu0 %v4579
    %4909 = vmatpush1.bf16.msra.mxu0 %v4578
    %4910 = vmatprep.subr.bf16.mxu0 %v4583
    %4911 = vmatpush1.bf16.msra.mxu0 %v4582
    %4912 = vmatprep.subr.bf16.mxu0 %v4587
    %4913 = vmatpush1.bf16.msra.mxu0 %v4586
    %4914 = vmatprep.subr.bf16.mxu0 %v4591
    %4915 = vmatpush1.bf16.msra.mxu0 %v4590
    %4916 = vmatprep.subr.bf16.mxu0 %v4595
    %4917 = vmatpush1.bf16.msra.mxu0 %v4594
    %4918 = vmatprep.subr.bf16.mxu0 %v4599
    %4919 = vmatpush1.bf16.msra.mxu0 %v4598
    %4920 = vmatprep.subr.bf16.mxu0 %v4603
    %4921 = vmatpush1.bf16.msra.mxu0 %v4602
    %4922 = vmatprep.subr.bf16.mxu0 %v4607
    %4923 = vmatpush1.bf16.msra.mxu0 %v4606
    %4924 = vmatprep.subr.bf16.mxu0 %v4611
    %4925 = vmatpush1.bf16.msra.mxu0 %v4610
    %4926 = vmatprep.subr.bf16.mxu0 %v4615
    %4927 = vmatpush1.bf16.msra.mxu0 %v4614
    %4928 = vmatprep.subr.bf16.mxu0 %v4619
    %4929 = vmatpush1.bf16.msra.mxu0 %v4618
    %4930 = vmatprep.subr.bf16.mxu0 %v4623
    %4931 = vmatpush1.bf16.msra.mxu0 %v4622
    %4932 = vmatprep.subr.bf16.mxu0 %v4627
    %4933 = vmatpush1.bf16.msra.mxu0 %v4626
    %4934 = vmatprep.mubr.bf16.mxu0 %v4177
    %4935 = vmatmul.mubr.bf16.gmra.mrb[0].mxu0 %v4176
    %v4936 = vpop.f32.mrb[0].mxu0
    %v4937 = vadd.f32 %v3875, %v4936
    %v4938 = vpop.f32.mrb[0].mxu0
    %v4939 = vadd.f32 %v3876, %v4938
    %v4940 = vpop.f32.mrb[0].mxu0
    %v4941 = vpop.f32.mrb[0].mxu0
    %4942 = vdwg.mxu0
    %4943 = vmatprep.subr.bf16.mxu0 %v4631
    %4944 = vmatpush1.bf16.msra.mxu0 %v4630
    %4945 = vmatprep.subr.bf16.mxu0 %v4635
    %4946 = vmatpush1.bf16.msra.mxu0 %v4634
    %4947 = vmatprep.subr.bf16.mxu0 %v4639
    %4948 = vmatpush1.bf16.msra.mxu0 %v4638
    %4949 = vmatprep.subr.bf16.mxu0 %v4643
    %4950 = vmatpush1.bf16.msra.mxu0 %v4642
    %4951 = vmatprep.subr.bf16.mxu0 %v4647
    %4952 = vmatpush1.bf16.msra.mxu0 %v4646
    %4953 = vmatprep.subr.bf16.mxu0 %v4651
    %4954 = vmatpush1.bf16.msra.mxu0 %v4650
    %4955 = vmatprep.subr.bf16.mxu0 %v4655
    %4956 = vmatpush1.bf16.msra.mxu0 %v4654
    %4957 = vmatprep.subr.bf16.mxu0 %v4659
    %4958 = vmatpush1.bf16.msra.mxu0 %v4658
    %4959 = vmatprep.subr.bf16.mxu0 %v4663
    %4960 = vmatpush1.bf16.msra.mxu0 %v4662
    %4961 = vmatprep.subr.bf16.mxu0 %v4667
    %4962 = vmatpush1.bf16.msra.mxu0 %v4666
    %4963 = vmatprep.subr.bf16.mxu0 %v4671
    %4964 = vmatpush1.bf16.msra.mxu0 %v4670
    %4965 = vmatprep.subr.bf16.mxu0 %v4675
    %4966 = vmatpush1.bf16.msra.mxu0 %v4674
    %4967 = vmatprep.subr.bf16.mxu0 %v4679
    %4968 = vmatpush1.bf16.msra.mxu0 %v4678
    %4969 = vmatprep.subr.bf16.mxu0 %v4683
    %4970 = vmatpush1.bf16.msra.mxu0 %v4682
    %4971 = vmatprep.subr.bf16.mxu0 %v4687
    %4972 = vmatpush1.bf16.msra.mxu0 %v4686
    %4973 = vmatprep.subr.bf16.mxu0 %v4691
    %4974 = vmatpush1.bf16.msra.mxu0 %v4690
    %4975 = vmatprep.mubr.bf16.mxu0 %v4179
    %4976 = vmatmul.mubr.bf16.gmra.mrb[0].mxu0 %v4178
    %v4977 = vpop.f32.mrb[0].mxu0
    %v4978 = vadd.f32 %v4937, %v4977
    %v4979 = vpop.f32.mrb[0].mxu0
    %v4980 = vadd.f32 %v4939, %v4979
    %v4981 = vpop.f32.mrb[0].mxu0
    %v4982 = vpop.f32.mrb[0].mxu0
    %4983 = vdwg.mxu0
    %vm4984 = vcmp.gt.f32.partialorder %v4896, 0.0
    %vm4985 = vcmp.gt.f32.partialorder %v4898, 0.0
    %vm4986 = vcmp.gt.f32.partialorder %v4978, 0.0
    %vm4987 = vcmp.gt.f32.partialorder %v4980, 0.0
    %v4988 = vmul.f32 %v4896, 0.01
    %v4989 = vmul.f32 %v4898, 0.01
    %v4990 = vmul.f32 %v4978, 0.01
    %v4991 = vmul.f32 %v4980, 0.01
    %v4992 = vsel %vm4984, %v4896, %v4988
    %v4993 = vsel %vm4985, %v4898, %v4989
    %v4994 = vsel %vm4986, %v4978, %v4990
    %v4995 = vsel %vm4987, %v4980, %v4991
    %v4996 = vpack.c.bf16 %v4992, %v4992
    %v4997 = vpack.c.bf16 %v4993, %v4993
    %v4998 = vpack.c.bf16 %v4994, %v4994
    %v4999 = vpack.c.bf16 %v4995, %v4995
    %v5001 = vlaneseq
    %v5002 = vshrl.u32 %v5001, 7
    %v5003 = vsub.s32 0, %v5002
    %v5004 = vrot.slane %v4175, %v5003
    %v5005 = vlaneseq
    %v5006 = vshrl.u32 %v5005, 7
    %v5007 = vsub.s32 1, %v5006
    %v5008 = vrot.slane %v4175, %v5007
    %v5009 = vlaneseq
    %v5010 = vshrl.u32 %v5009, 7
    %v5011 = vsub.s32 2, %v5010
    %v5012 = vrot.slane %v4175, %v5011
    %v5013 = vlaneseq
    %v5014 = vshrl.u32 %v5013, 7
    %v5015 = vsub.s32 3, %v5014
    %v5016 = vrot.slane %v4175, %v5015
    %v5149 = vunpack.c.l.b16 %v4047
    %v5150 = vunpack.c.h.b16 %v4047
    %v5151 = vunpack.c.l.b16 %v4048
    %v5152 = vunpack.c.h.b16 %v4048
    %v5153 = vunpack.c.l.b16 %v4049
    %v5154 = vunpack.c.h.b16 %v4049
    %v5155 = vunpack.c.l.b16 %v4050
    %v5156 = vunpack.c.h.b16 %v4050
    %v5157 = vunpack.c.l.b16 %v4051
    %v5158 = vunpack.c.h.b16 %v4051
    %v5159 = vunpack.c.l.b16 %v4052
    %v5160 = vunpack.c.h.b16 %v4052
    %v5161 = vunpack.c.l.b16 %v4053
    %v5162 = vunpack.c.h.b16 %v4053
    %v5163 = vunpack.c.l.b16 %v4054
    %v5164 = vunpack.c.h.b16 %v4054
    %v5165 = vunpack.c.l.b16 %v4055
    %v5166 = vunpack.c.h.b16 %v4055
    %v5167 = vunpack.c.l.b16 %v4056
    %v5168 = vunpack.c.h.b16 %v4056
    %v5169 = vunpack.c.l.b16 %v4057
    %v5170 = vunpack.c.h.b16 %v4057
    %v5171 = vunpack.c.l.b16 %v4058
    %v5172 = vunpack.c.h.b16 %v4058
    %v5173 = vunpack.c.l.b16 %v4059
    %v5174 = vunpack.c.h.b16 %v4059
    %v5175 = vunpack.c.l.b16 %v4060
    %v5176 = vunpack.c.h.b16 %v4060
    %v5177 = vunpack.c.l.b16 %v4061
    %v5178 = vunpack.c.h.b16 %v4061
    %v5179 = vunpack.c.l.b16 %v4062
    %v5180 = vunpack.c.h.b16 %v4062
    %v5181 = vunpack.c.l.b16 %v4063
    %v5182 = vunpack.c.h.b16 %v4063
    %v5183 = vunpack.c.l.b16 %v4064
    %v5184 = vunpack.c.h.b16 %v4064
    %v5185 = vunpack.c.l.b16 %v4065
    %v5186 = vunpack.c.h.b16 %v4065
    %v5187 = vunpack.c.l.b16 %v4066
    %v5188 = vunpack.c.h.b16 %v4066
    %v5189 = vunpack.c.l.b16 %v4067
    %v5190 = vunpack.c.h.b16 %v4067
    %v5191 = vunpack.c.l.b16 %v4068
    %v5192 = vunpack.c.h.b16 %v4068
    %v5193 = vunpack.c.l.b16 %v4069
    %v5194 = vunpack.c.h.b16 %v4069
    %v5195 = vunpack.c.l.b16 %v4070
    %v5196 = vunpack.c.h.b16 %v4070
    %v5197 = vunpack.c.l.b16 %v4071
    %v5198 = vunpack.c.h.b16 %v4071
    %v5199 = vunpack.c.l.b16 %v4072
    %v5200 = vunpack.c.h.b16 %v4072
    %v5201 = vunpack.c.l.b16 %v4073
    %v5202 = vunpack.c.h.b16 %v4073
    %v5203 = vunpack.c.l.b16 %v4074
    %v5204 = vunpack.c.h.b16 %v4074
    %v5205 = vunpack.c.l.b16 %v4075
    %v5206 = vunpack.c.h.b16 %v4075
    %v5207 = vunpack.c.l.b16 %v4076
    %v5208 = vunpack.c.h.b16 %v4076
    %v5209 = vunpack.c.l.b16 %v4077
    %v5210 = vunpack.c.h.b16 %v4077
    %v5211 = vunpack.c.l.b16 %v4078
    %v5212 = vunpack.c.h.b16 %v4078
    %v5213 = vunpack.c.l.b16 %v4079
    %v5214 = vunpack.c.h.b16 %v4079
    %v5215 = vunpack.c.l.b16 %v4080
    %v5216 = vunpack.c.h.b16 %v4080
    %v5217 = vunpack.c.l.b16 %v4081
    %v5218 = vunpack.c.h.b16 %v4081
    %v5219 = vunpack.c.l.b16 %v4082
    %v5220 = vunpack.c.h.b16 %v4082
    %v5221 = vunpack.c.l.b16 %v4083
    %v5222 = vunpack.c.h.b16 %v4083
    %v5223 = vunpack.c.l.b16 %v4084
    %v5224 = vunpack.c.h.b16 %v4084
    %v5225 = vunpack.c.l.b16 %v4085
    %v5226 = vunpack.c.h.b16 %v4085
    %v5227 = vunpack.c.l.b16 %v4086
    %v5228 = vunpack.c.h.b16 %v4086
    %v5229 = vunpack.c.l.b16 %v4087
    %v5230 = vunpack.c.h.b16 %v4087
    %v5231 = vunpack.c.l.b16 %v4088
    %v5232 = vunpack.c.h.b16 %v4088
    %v5233 = vunpack.c.l.b16 %v4089
    %v5234 = vunpack.c.h.b16 %v4089
    %v5235 = vunpack.c.l.b16 %v4090
    %v5236 = vunpack.c.h.b16 %v4090
    %v5237 = vunpack.c.l.b16 %v4091
    %v5238 = vunpack.c.h.b16 %v4091
    %v5239 = vunpack.c.l.b16 %v4092
    %v5240 = vunpack.c.h.b16 %v4092
    %v5241 = vunpack.c.l.b16 %v4093
    %v5242 = vunpack.c.h.b16 %v4093
    %v5243 = vunpack.c.l.b16 %v4094
    %v5244 = vunpack.c.h.b16 %v4094
    %v5245 = vunpack.c.l.b16 %v4095
    %v5246 = vunpack.c.h.b16 %v4095
    %v5247 = vunpack.c.l.b16 %v4096
    %v5248 = vunpack.c.h.b16 %v4096
    %v5249 = vunpack.c.l.b16 %v4097
    %v5250 = vunpack.c.h.b16 %v4097
    %v5251 = vunpack.c.l.b16 %v4098
    %v5252 = vunpack.c.h.b16 %v4098
    %v5253 = vunpack.c.l.b16 %v4099
    %v5254 = vunpack.c.h.b16 %v4099
    %v5255 = vunpack.c.l.b16 %v4100
    %v5256 = vunpack.c.h.b16 %v4100
    %v5257 = vunpack.c.l.b16 %v4101
    %v5258 = vunpack.c.h.b16 %v4101
    %v5259 = vunpack.c.l.b16 %v4102
    %v5260 = vunpack.c.h.b16 %v4102
    %v5261 = vunpack.c.l.b16 %v4103
    %v5262 = vunpack.c.h.b16 %v4103
    %v5263 = vunpack.c.l.b16 %v4104
    %v5264 = vunpack.c.h.b16 %v4104
    %v5265 = vunpack.c.l.b16 %v4105
    %v5266 = vunpack.c.h.b16 %v4105
    %v5267 = vunpack.c.l.b16 %v4106
    %v5268 = vunpack.c.h.b16 %v4106
    %v5269 = vunpack.c.l.b16 %v4107
    %v5270 = vunpack.c.h.b16 %v4107
    %v5271 = vunpack.c.l.b16 %v4108
    %v5272 = vunpack.c.h.b16 %v4108
    %v5273 = vunpack.c.l.b16 %v4109
    %v5274 = vunpack.c.h.b16 %v4109
    %v5275 = vunpack.c.l.b16 %v4110
    %v5276 = vunpack.c.h.b16 %v4110
    %v5277 = vunpack.c.l.b16 %v4111
    %v5278 = vunpack.c.h.b16 %v4111
    %v5279 = vunpack.c.l.b16 %v4112
    %v5280 = vunpack.c.h.b16 %v4112
    %v5281 = vunpack.c.l.b16 %v4113
    %v5282 = vunpack.c.h.b16 %v4113
    %v5283 = vunpack.c.l.b16 %v4114
    %v5284 = vunpack.c.h.b16 %v4114
    %v5285 = vunpack.c.l.b16 %v4115
    %v5286 = vunpack.c.h.b16 %v4115
    %v5287 = vunpack.c.l.b16 %v4116
    %v5288 = vunpack.c.h.b16 %v4116
    %v5289 = vunpack.c.l.b16 %v4117
    %v5290 = vunpack.c.h.b16 %v4117
    %v5291 = vunpack.c.l.b16 %v4118
    %v5292 = vunpack.c.h.b16 %v4118
    %v5293 = vunpack.c.l.b16 %v4119
    %v5294 = vunpack.c.h.b16 %v4119
    %v5295 = vunpack.c.l.b16 %v4120
    %v5296 = vunpack.c.h.b16 %v4120
    %v5297 = vunpack.c.l.b16 %v4121
    %v5298 = vunpack.c.h.b16 %v4121
    %v5299 = vunpack.c.l.b16 %v4122
    %v5300 = vunpack.c.h.b16 %v4122
    %v5301 = vunpack.c.l.b16 %v4123
    %v5302 = vunpack.c.h.b16 %v4123
    %v5303 = vunpack.c.l.b16 %v4124
    %v5304 = vunpack.c.h.b16 %v4124
    %v5305 = vunpack.c.l.b16 %v4125
    %v5306 = vunpack.c.h.b16 %v4125
    %v5307 = vunpack.c.l.b16 %v4126
    %v5308 = vunpack.c.h.b16 %v4126
    %v5309 = vunpack.c.l.b16 %v4127
    %v5310 = vunpack.c.h.b16 %v4127
    %v5311 = vunpack.c.l.b16 %v4128
    %v5312 = vunpack.c.h.b16 %v4128
    %v5313 = vunpack.c.l.b16 %v4129
    %v5314 = vunpack.c.h.b16 %v4129
    %v5315 = vunpack.c.l.b16 %v4130
    %v5316 = vunpack.c.h.b16 %v4130
    %v5317 = vunpack.c.l.b16 %v4131
    %v5318 = vunpack.c.h.b16 %v4131
    %v5319 = vunpack.c.l.b16 %v4132
    %v5320 = vunpack.c.h.b16 %v4132
    %v5321 = vunpack.c.l.b16 %v4133
    %v5322 = vunpack.c.h.b16 %v4133
    %v5323 = vunpack.c.l.b16 %v4134
    %v5324 = vunpack.c.h.b16 %v4134
    %v5325 = vunpack.c.l.b16 %v4135
    %v5326 = vunpack.c.h.b16 %v4135
    %v5327 = vunpack.c.l.b16 %v4136
    %v5328 = vunpack.c.h.b16 %v4136
    %v5329 = vunpack.c.l.b16 %v4137
    %v5330 = vunpack.c.h.b16 %v4137
    %v5331 = vunpack.c.l.b16 %v4138
    %v5332 = vunpack.c.h.b16 %v4138
    %v5333 = vunpack.c.l.b16 %v4139
    %v5334 = vunpack.c.h.b16 %v4139
    %v5335 = vunpack.c.l.b16 %v4140
    %v5336 = vunpack.c.h.b16 %v4140
    %v5337 = vunpack.c.l.b16 %v4141
    %v5338 = vunpack.c.h.b16 %v4141
    %v5339 = vunpack.c.l.b16 %v4142
    %v5340 = vunpack.c.h.b16 %v4142
    %v5341 = vunpack.c.l.b16 %v4143
    %v5342 = vunpack.c.h.b16 %v4143
    %v5343 = vunpack.c.l.b16 %v4144
    %v5344 = vunpack.c.h.b16 %v4144
    %v5345 = vunpack.c.l.b16 %v4145
    %v5346 = vunpack.c.h.b16 %v4145
    %v5347 = vunpack.c.l.b16 %v4146
    %v5348 = vunpack.c.h.b16 %v4146
    %v5349 = vunpack.c.l.b16 %v4147
    %v5350 = vunpack.c.h.b16 %v4147
    %v5351 = vunpack.c.l.b16 %v4148
    %v5352 = vunpack.c.h.b16 %v4148
    %v5353 = vunpack.c.l.b16 %v4149
    %v5354 = vunpack.c.h.b16 %v4149
    %v5355 = vunpack.c.l.b16 %v4150
    %v5356 = vunpack.c.h.b16 %v4150
    %v5357 = vunpack.c.l.b16 %v4151
    %v5358 = vunpack.c.h.b16 %v4151
    %v5359 = vunpack.c.l.b16 %v4152
    %v5360 = vunpack.c.h.b16 %v4152
    %v5361 = vunpack.c.l.b16 %v4153
    %v5362 = vunpack.c.h.b16 %v4153
    %v5363 = vunpack.c.l.b16 %v4154
    %v5364 = vunpack.c.h.b16 %v4154
    %v5365 = vunpack.c.l.b16 %v4155
    %v5366 = vunpack.c.h.b16 %v4155
    %v5367 = vunpack.c.l.b16 %v4156
    %v5368 = vunpack.c.h.b16 %v4156
    %v5369 = vunpack.c.l.b16 %v4157
    %v5370 = vunpack.c.h.b16 %v4157
    %v5371 = vunpack.c.l.b16 %v4158
    %v5372 = vunpack.c.h.b16 %v4158
    %v5373 = vunpack.c.l.b16 %v4159
    %v5374 = vunpack.c.h.b16 %v4159
    %v5375 = vunpack.c.l.b16 %v4160
    %v5376 = vunpack.c.h.b16 %v4160
    %v5377 = vunpack.c.l.b16 %v4161
    %v5378 = vunpack.c.h.b16 %v4161
    %v5379 = vunpack.c.l.b16 %v4162
    %v5380 = vunpack.c.h.b16 %v4162
    %v5381 = vunpack.c.l.b16 %v4163
    %v5382 = vunpack.c.h.b16 %v4163
    %v5383 = vunpack.c.l.b16 %v4164
    %v5384 = vunpack.c.h.b16 %v4164
    %v5385 = vunpack.c.l.b16 %v4165
    %v5386 = vunpack.c.h.b16 %v4165
    %v5387 = vunpack.c.l.b16 %v4166
    %v5388 = vunpack.c.h.b16 %v4166
    %v5389 = vunpack.c.l.b16 %v4167
    %v5390 = vunpack.c.h.b16 %v4167
    %v5391 = vunpack.c.l.b16 %v4168
    %v5392 = vunpack.c.h.b16 %v4168
    %v5393 = vunpack.c.l.b16 %v4169
    %v5394 = vunpack.c.h.b16 %v4169
    %v5395 = vunpack.c.l.b16 %v4170
    %v5396 = vunpack.c.h.b16 %v4170
    %v5397 = vunpack.c.l.b16 %v4171
    %v5398 = vunpack.c.h.b16 %v4171
    %v5399 = vunpack.c.l.b16 %v4172
    %v5400 = vunpack.c.h.b16 %v4172
    %v5401 = vunpack.c.l.b16 %v4173
    %v5402 = vunpack.c.h.b16 %v4173
    %v5403 = vunpack.c.l.b16 %v4174
    %v5404 = vunpack.c.h.b16 %v4174
    %v5405 = vpack.c.b16 %v5153, %v5149
    %v5406 = vpack.c.b16 %v5154, %v5150
    %v5407 = vpack.c.b16 %v5155, %v5151
    %v5408 = vpack.c.b16 %v5156, %v5152
    %v5409 = vpack.c.b16 %v5161, %v5157
    %v5410 = vpack.c.b16 %v5162, %v5158
    %v5411 = vpack.c.b16 %v5163, %v5159
    %v5412 = vpack.c.b16 %v5164, %v5160
    %v5413 = vpack.c.b16 %v5169, %v5165
    %v5414 = vpack.c.b16 %v5170, %v5166
    %v5415 = vpack.c.b16 %v5171, %v5167
    %v5416 = vpack.c.b16 %v5172, %v5168
    %v5417 = vpack.c.b16 %v5177, %v5173
    %v5418 = vpack.c.b16 %v5178, %v5174
    %v5419 = vpack.c.b16 %v5179, %v5175
    %v5420 = vpack.c.b16 %v5180, %v5176
    %v5421 = vpack.c.b16 %v5185, %v5181
    %v5422 = vpack.c.b16 %v5186, %v5182
    %v5423 = vpack.c.b16 %v5187, %v5183
    %v5424 = vpack.c.b16 %v5188, %v5184
    %v5425 = vpack.c.b16 %v5193, %v5189
    %v5426 = vpack.c.b16 %v5194, %v5190
    %v5427 = vpack.c.b16 %v5195, %v5191
    %v5428 = vpack.c.b16 %v5196, %v5192
    %v5429 = vpack.c.b16 %v5201, %v5197
    %v5430 = vpack.c.b16 %v5202, %v5198
    %v5431 = vpack.c.b16 %v5203, %v5199
    %v5432 = vpack.c.b16 %v5204, %v5200
    %v5433 = vpack.c.b16 %v5209, %v5205
    %v5434 = vpack.c.b16 %v5210, %v5206
    %v5435 = vpack.c.b16 %v5211, %v5207
    %v5436 = vpack.c.b16 %v5212, %v5208
    %v5437 = vpack.c.b16 %v5217, %v5213
    %v5438 = vpack.c.b16 %v5218, %v5214
    %v5439 = vpack.c.b16 %v5219, %v5215
    %v5440 = vpack.c.b16 %v5220, %v5216
    %v5441 = vpack.c.b16 %v5225, %v5221
    %v5442 = vpack.c.b16 %v5226, %v5222
    %v5443 = vpack.c.b16 %v5227, %v5223
    %v5444 = vpack.c.b16 %v5228, %v5224
    %v5445 = vpack.c.b16 %v5233, %v5229
    %v5446 = vpack.c.b16 %v5234, %v5230
    %v5447 = vpack.c.b16 %v5235, %v5231
    %v5448 = vpack.c.b16 %v5236, %v5232
    %v5449 = vpack.c.b16 %v5241, %v5237
    %v5450 = vpack.c.b16 %v5242, %v5238
    %v5451 = vpack.c.b16 %v5243, %v5239
    %v5452 = vpack.c.b16 %v5244, %v5240
    %v5453 = vpack.c.b16 %v5249, %v5245
    %v5454 = vpack.c.b16 %v5250, %v5246
    %v5455 = vpack.c.b16 %v5251, %v5247
    %v5456 = vpack.c.b16 %v5252, %v5248
    %v5457 = vpack.c.b16 %v5257, %v5253
    %v5458 = vpack.c.b16 %v5258, %v5254
    %v5459 = vpack.c.b16 %v5259, %v5255
    %v5460 = vpack.c.b16 %v5260, %v5256
    %v5461 = vpack.c.b16 %v5265, %v5261
    %v5462 = vpack.c.b16 %v5266, %v5262
    %v5463 = vpack.c.b16 %v5267, %v5263
    %v5464 = vpack.c.b16 %v5268, %v5264
    %v5465 = vpack.c.b16 %v5273, %v5269
    %v5466 = vpack.c.b16 %v5274, %v5270
    %v5467 = vpack.c.b16 %v5275, %v5271
    %v5468 = vpack.c.b16 %v5276, %v5272
    %v5469 = vpack.c.b16 %v5281, %v5277
    %v5470 = vpack.c.b16 %v5282, %v5278
    %v5471 = vpack.c.b16 %v5283, %v5279
    %v5472 = vpack.c.b16 %v5284, %v5280
    %v5473 = vpack.c.b16 %v5289, %v5285
    %v5474 = vpack.c.b16 %v5290, %v5286
    %v5475 = vpack.c.b16 %v5291, %v5287
    %v5476 = vpack.c.b16 %v5292, %v5288
    %v5477 = vpack.c.b16 %v5297, %v5293
    %v5478 = vpack.c.b16 %v5298, %v5294
    %v5479 = vpack.c.b16 %v5299, %v5295
    %v5480 = vpack.c.b16 %v5300, %v5296
    %v5481 = vpack.c.b16 %v5305, %v5301
    %v5482 = vpack.c.b16 %v5306, %v5302
    %v5483 = vpack.c.b16 %v5307, %v5303
    %v5484 = vpack.c.b16 %v5308, %v5304
    %v5485 = vpack.c.b16 %v5313, %v5309
    %v5486 = vpack.c.b16 %v5314, %v5310
    %v5487 = vpack.c.b16 %v5315, %v5311
    %v5488 = vpack.c.b16 %v5316, %v5312
    %v5489 = vpack.c.b16 %v5321, %v5317
    %v5490 = vpack.c.b16 %v5322, %v5318
    %v5491 = vpack.c.b16 %v5323, %v5319
    %v5492 = vpack.c.b16 %v5324, %v5320
    %v5493 = vpack.c.b16 %v5329, %v5325
    %v5494 = vpack.c.b16 %v5330, %v5326
    %v5495 = vpack.c.b16 %v5331, %v5327
    %v5496 = vpack.c.b16 %v5332, %v5328
    %v5497 = vpack.c.b16 %v5337, %v5333
    %v5498 = vpack.c.b16 %v5338, %v5334
    %v5499 = vpack.c.b16 %v5339, %v5335
    %v5500 = vpack.c.b16 %v5340, %v5336
    %v5501 = vpack.c.b16 %v5345, %v5341
    %v5502 = vpack.c.b16 %v5346, %v5342
    %v5503 = vpack.c.b16 %v5347, %v5343
    %v5504 = vpack.c.b16 %v5348, %v5344
    %v5505 = vpack.c.b16 %v5353, %v5349
    %v5506 = vpack.c.b16 %v5354, %v5350
    %v5507 = vpack.c.b16 %v5355, %v5351
    %v5508 = vpack.c.b16 %v5356, %v5352
    %v5509 = vpack.c.b16 %v5361, %v5357
    %v5510 = vpack.c.b16 %v5362, %v5358
    %v5511 = vpack.c.b16 %v5363, %v5359
    %v5512 = vpack.c.b16 %v5364, %v5360
    %v5513 = vpack.c.b16 %v5369, %v5365
    %v5514 = vpack.c.b16 %v5370, %v5366
    %v5515 = vpack.c.b16 %v5371, %v5367
    %v5516 = vpack.c.b16 %v5372, %v5368
    %v5517 = vpack.c.b16 %v5377, %v5373
    %v5518 = vpack.c.b16 %v5378, %v5374
    %v5519 = vpack.c.b16 %v5379, %v5375
    %v5520 = vpack.c.b16 %v5380, %v5376
    %v5521 = vpack.c.b16 %v5385, %v5381
    %v5522 = vpack.c.b16 %v5386, %v5382
    %v5523 = vpack.c.b16 %v5387, %v5383
    %v5524 = vpack.c.b16 %v5388, %v5384
    %v5525 = vpack.c.b16 %v5393, %v5389
    %v5526 = vpack.c.b16 %v5394, %v5390
    %v5527 = vpack.c.b16 %v5395, %v5391
    %v5528 = vpack.c.b16 %v5396, %v5392
    %v5529 = vpack.c.b16 %v5401, %v5397
    %v5530 = vpack.c.b16 %v5402, %v5398
    %v5531 = vpack.c.b16 %v5403, %v5399
    %v5532 = vpack.c.b16 %v5404, %v5400
    %5661 = vmatprep.subr.bf16.mxu0 %v5406
    %5662 = vmatpush1.bf16.msra.mxu0 %v5405
    %5663 = vmatprep.subr.bf16.mxu0 %v5410
    %5664 = vmatpush1.bf16.msra.mxu0 %v5409
    %5665 = vmatprep.subr.bf16.mxu0 %v5414
    %5666 = vmatpush1.bf16.msra.mxu0 %v5413
    %5667 = vmatprep.subr.bf16.mxu0 %v5418
    %5668 = vmatpush1.bf16.msra.mxu0 %v5417
    %5669 = vmatprep.subr.bf16.mxu0 %v5422
    %5670 = vmatpush1.bf16.msra.mxu0 %v5421
    %5671 = vmatprep.subr.bf16.mxu0 %v5426
    %5672 = vmatpush1.bf16.msra.mxu0 %v5425
    %5673 = vmatprep.subr.bf16.mxu0 %v5430
    %5674 = vmatpush1.bf16.msra.mxu0 %v5429
    %5675 = vmatprep.subr.bf16.mxu0 %v5434
    %5676 = vmatpush1.bf16.msra.mxu0 %v5433
    %5677 = vmatprep.subr.bf16.mxu0 %v5438
    %5678 = vmatpush1.bf16.msra.mxu0 %v5437
    %5679 = vmatprep.subr.bf16.mxu0 %v5442
    %5680 = vmatpush1.bf16.msra.mxu0 %v5441
    %5681 = vmatprep.subr.bf16.mxu0 %v5446
    %5682 = vmatpush1.bf16.msra.mxu0 %v5445
    %5683 = vmatprep.subr.bf16.mxu0 %v5450
    %5684 = vmatpush1.bf16.msra.mxu0 %v5449
    %5685 = vmatprep.subr.bf16.mxu0 %v5454
    %5686 = vmatpush1.bf16.msra.mxu0 %v5453
    %5687 = vmatprep.subr.bf16.mxu0 %v5458
    %5688 = vmatpush1.bf16.msra.mxu0 %v5457
    %5689 = vmatprep.subr.bf16.mxu0 %v5462
    %5690 = vmatpush1.bf16.msra.mxu0 %v5461
    %5691 = vmatprep.subr.bf16.mxu0 %v5466
    %5692 = vmatpush1.bf16.msra.mxu0 %v5465
    %5693 = vmatprep.mubr.bf16.mxu0 %v4997
    %5694 = vmatmul.mubr.bf16.gmra.mrb[0].mxu0 %v4996
    %v5695 = vpop.f32.mrb[0].mxu0
    %v5696 = vadd.f32 %v5004, %v5695
    %v5697 = vpop.f32.mrb[0].mxu0
    %v5698 = vadd.f32 %v5008, %v5697
    %v5699 = vpop.f32.mrb[0].mxu0
    %v5700 = vpop.f32.mrb[0].mxu0
    %5701 = vdwg.mxu0
    %5702 = vmatprep.subr.bf16.mxu0 %v5470
    %5703 = vmatpush1.bf16.msra.mxu0 %v5469
    %5704 = vmatprep.subr.bf16.mxu0 %v5474
    %5705 = vmatpush1.bf16.msra.mxu0 %v5473
    %5706 = vmatprep.subr.bf16.mxu0 %v5478
    %5707 = vmatpush1.bf16.msra.mxu0 %v5477
    %5708 = vmatprep.subr.bf16.mxu0 %v5482
    %5709 = vmatpush1.bf16.msra.mxu0 %v5481
    %5710 = vmatprep.subr.bf16.mxu0 %v5486
    %5711 = vmatpush1.bf16.msra.mxu0 %v5485
    %5712 = vmatprep.subr.bf16.mxu0 %v5490
    %5713 = vmatpush1.bf16.msra.mxu0 %v5489
    %5714 = vmatprep.subr.bf16.mxu0 %v5494
    %5715 = vmatpush1.bf16.msra.mxu0 %v5493
    %5716 = vmatprep.subr.bf16.mxu0 %v5498
    %5717 = vmatpush1.bf16.msra.mxu0 %v5497
    %5718 = vmatprep.subr.bf16.mxu0 %v5502
    %5719 = vmatpush1.bf16.msra.mxu0 %v5501
    %5720 = vmatprep.subr.bf16.mxu0 %v5506
    %5721 = vmatpush1.bf16.msra.mxu0 %v5505
    %5722 = vmatprep.subr.bf16.mxu0 %v5510
    %5723 = vmatpush1.bf16.msra.mxu0 %v5509
    %5724 = vmatprep.subr.bf16.mxu0 %v5514
    %5725 = vmatpush1.bf16.msra.mxu0 %v5513
    %5726 = vmatprep.subr.bf16.mxu0 %v5518
    %5727 = vmatpush1.bf16.msra.mxu0 %v5517
    %5728 = vmatprep.subr.bf16.mxu0 %v5522
    %5729 = vmatpush1.bf16.msra.mxu0 %v5521
    %5730 = vmatprep.subr.bf16.mxu0 %v5526
    %5731 = vmatpush1.bf16.msra.mxu0 %v5525
    %5732 = vmatprep.subr.bf16.mxu0 %v5530
    %5733 = vmatpush1.bf16.msra.mxu0 %v5529
    %5734 = vmatprep.mubr.bf16.mxu0 %v4999
    %5735 = vmatmul.mubr.bf16.gmra.mrb[0].mxu0 %v4998
    %v5736 = vpop.f32.mrb[0].mxu0
    %v5737 = vadd.f32 %v5696, %v5736
    %v5738 = vpop.f32.mrb[0].mxu0
    %v5739 = vadd.f32 %v5698, %v5738
    %v5740 = vpop.f32.mrb[0].mxu0
    %v5741 = vpop.f32.mrb[0].mxu0
    %5742 = vdwg.mxu0
    %5743 = vmatprep.subr.bf16.mxu0 %v5408
    %5744 = vmatpush1.bf16.msra.mxu0 %v5407
    %5745 = vmatprep.subr.bf16.mxu0 %v5412
    %5746 = vmatpush1.bf16.msra.mxu0 %v5411
    %5747 = vmatprep.subr.bf16.mxu0 %v5416
    %5748 = vmatpush1.bf16.msra.mxu0 %v5415
    %5749 = vmatprep.subr.bf16.mxu0 %v5420
    %5750 = vmatpush1.bf16.msra.mxu0 %v5419
    %5751 = vmatprep.subr.bf16.mxu0 %v5424
    %5752 = vmatpush1.bf16.msra.mxu0 %v5423
    %5753 = vmatprep.subr.bf16.mxu0 %v5428
    %5754 = vmatpush1.bf16.msra.mxu0 %v5427
    %5755 = vmatprep.subr.bf16.mxu0 %v5432
    %5756 = vmatpush1.bf16.msra.mxu0 %v5431
    %5757 = vmatprep.subr.bf16.mxu0 %v5436
    %5758 = vmatpush1.bf16.msra.mxu0 %v5435
    %5759 = vmatprep.subr.bf16.mxu0 %v5440
    %5760 = vmatpush1.bf16.msra.mxu0 %v5439
    %5761 = vmatprep.subr.bf16.mxu0 %v5444
    %5762 = vmatpush1.bf16.msra.mxu0 %v5443
    %5763 = vmatprep.subr.bf16.mxu0 %v5448
    %5764 = vmatpush1.bf16.msra.mxu0 %v5447
    %5765 = vmatprep.subr.bf16.mxu0 %v5452
    %5766 = vmatpush1.bf16.msra.mxu0 %v5451
    %5767 = vmatprep.subr.bf16.mxu0 %v5456
    %5768 = vmatpush1.bf16.msra.mxu0 %v5455
    %5769 = vmatprep.subr.bf16.mxu0 %v5460
    %5770 = vmatpush1.bf16.msra.mxu0 %v5459
    %5771 = vmatprep.subr.bf16.mxu0 %v5464
    %5772 = vmatpush1.bf16.msra.mxu0 %v5463
    %5773 = vmatprep.subr.bf16.mxu0 %v5468
    %5774 = vmatpush1.bf16.msra.mxu0 %v5467
    %5775 = vmatprep.mubr.bf16.mxu0 %v4997
    %5776 = vmatmul.mubr.bf16.gmra.mrb[0].mxu0 %v4996
    %v5777 = vpop.f32.mrb[0].mxu0
    %v5778 = vadd.f32 %v5012, %v5777
    %v5779 = vpop.f32.mrb[0].mxu0
    %v5780 = vadd.f32 %v5016, %v5779
    %v5781 = vpop.f32.mrb[0].mxu0
    %v5782 = vpop.f32.mrb[0].mxu0
    %5783 = vdwg.mxu0
    %5784 = vmatprep.subr.bf16.mxu0 %v5472
    %5785 = vmatpush1.bf16.msra.mxu0 %v5471
    %5786 = vmatprep.subr.bf16.mxu0 %v5476
    %5787 = vmatpush1.bf16.msra.mxu0 %v5475
    %5788 = vmatprep.subr.bf16.mxu0 %v5480
    %5789 = vmatpush1.bf16.msra.mxu0 %v5479
    %5790 = vmatprep.subr.bf16.mxu0 %v5484
    %5791 = vmatpush1.bf16.msra.mxu0 %v5483
    %5792 = vmatprep.subr.bf16.mxu0 %v5488
    %5793 = vmatpush1.bf16.msra.mxu0 %v5487
    %5794 = vmatprep.subr.bf16.mxu0 %v5492
    %5795 = vmatpush1.bf16.msra.mxu0 %v5491
    %5796 = vmatprep.subr.bf16.mxu0 %v5496
    %5797 = vmatpush1.bf16.msra.mxu0 %v5495
    %5798 = vmatprep.subr.bf16.mxu0 %v5500
    %5799 = vmatpush1.bf16.msra.mxu0 %v5499
    %5800 = vmatprep.subr.bf16.mxu0 %v5504
    %5801 = vmatpush1.bf16.msra.mxu0 %v5503
    %5802 = vmatprep.subr.bf16.mxu0 %v5508
    %5803 = vmatpush1.bf16.msra.mxu0 %v5507
    %5804 = vmatprep.subr.bf16.mxu0 %v5512
    %5805 = vmatpush1.bf16.msra.mxu0 %v5511
    %5806 = vmatprep.subr.bf16.mxu0 %v5516
    %5807 = vmatpush1.bf16.msra.mxu0 %v5515
    %5808 = vmatprep.subr.bf16.mxu0 %v5520
    %5809 = vmatpush1.bf16.msra.mxu0 %v5519
    %5810 = vmatprep.subr.bf16.mxu0 %v5524
    %5811 = vmatpush1.bf16.msra.mxu0 %v5523
    %5812 = vmatprep.subr.bf16.mxu0 %v5528
    %5813 = vmatpush1.bf16.msra.mxu0 %v5527
    %5814 = vmatprep.subr.bf16.mxu0 %v5532
    %5815 = vmatpush1.bf16.msra.mxu0 %v5531
    %5816 = vmatprep.mubr.bf16.mxu0 %v4999
    %5817 = vmatmul.mubr.bf16.gmra.mrb[0].mxu0 %v4998
    %v5818 = vpop.f32.mrb[0].mxu0
    %v5819 = vadd.f32 %v5778, %v5818
    %v5820 = vpop.f32.mrb[0].mxu0
    %v5821 = vadd.f32 %v5780, %v5820
    %v5822 = vpop.f32.mrb[0].mxu0
    %v5823 = vpop.f32.mrb[0].mxu0
    %5824 = vdwg.mxu0
    %v5825 = vpack.c.bf16 %v5737, %v5737
    %v5826 = vpack.c.bf16 %v5739, %v5739
    %v5827 = vpack.c.bf16 %v5819, %v5819
    %v5828 = vpack.c.bf16 %v5821, %v5821
    %5829 = vmatprep.subr.bf16.mxu0 %v4565
    %5830 = vmatpush1.bf16.msra.mxu0 %v4564
    %5831 = vmatprep.subr.bf16.mxu0 %v4569
    %5832 = vmatpush1.bf16.msra.mxu0 %v4568
    %5833 = vmatprep.subr.bf16.mxu0 %v4573
    %5834 = vmatpush1.bf16.msra.mxu0 %v4572
    %5835 = vmatprep.subr.bf16.mxu0 %v4577
    %5836 = vmatpush1.bf16.msra.mxu0 %v4576
    %5837 = vmatprep.subr.bf16.mxu0 %v4581
    %5838 = vmatpush1.bf16.msra.mxu0 %v4580
    %5839 = vmatprep.subr.bf16.mxu0 %v4585
    %5840 = vmatpush1.bf16.msra.mxu0 %v4584
    %5841 = vmatprep.subr.bf16.mxu0 %v4589
    %5842 = vmatpush1.bf16.msra.mxu0 %v4588
    %5843 = vmatprep.subr.bf16.mxu0 %v4593
    %5844 = vmatpush1.bf16.msra.mxu0 %v4592
    %5845 = vmatprep.subr.bf16.mxu0 %v4597
    %5846 = vmatpush1.bf16.msra.mxu0 %v4596
    %5847 = vmatprep.subr.bf16.mxu0 %v4601
    %5848 = vmatpush1.bf16.msra.mxu0 %v4600
    %5849 = vmatprep.subr.bf16.mxu0 %v4605
    %5850 = vmatpush1.bf16.msra.mxu0 %v4604
    %5851 = vmatprep.subr.bf16.mxu0 %v4609
    %5852 = vmatpush1.bf16.msra.mxu0 %v4608
    %5853 = vmatprep.subr.bf16.mxu0 %v4613
    %5854 = vmatpush1.bf16.msra.mxu0 %v4612
    %5855 = vmatprep.subr.bf16.mxu0 %v4617
    %5856 = vmatpush1.bf16.msra.mxu0 %v4616
    %5857 = vmatprep.subr.bf16.mxu0 %v4621
    %5858 = vmatpush1.bf16.msra.mxu0 %v4620
    %5859 = vmatprep.subr.bf16.mxu0 %v4625
    %5860 = vmatpush1.bf16.msra.mxu0 %v4624
    %5861 = vmatprep.mubr.bf16.mxu0 %v5826
    %5862 = vmatmul.mubr.bf16.gmra.mrb[0].mxu0 %v5825
    %v5863 = vpop.f32.mrb[0].mxu0
    %v5864 = vadd.f32 %v3873, %v5863
    %v5865 = vpop.f32.mrb[0].mxu0
    %v5866 = vadd.f32 %v3874, %v5865
    %v5867 = vpop.f32.mrb[0].mxu0
    %v5868 = vpop.f32.mrb[0].mxu0
    %5869 = vdwg.mxu0
    %5870 = vmatprep.subr.bf16.mxu0 %v4629
    %5871 = vmatpush1.bf16.msra.mxu0 %v4628
    %5872 = vmatprep.subr.bf16.mxu0 %v4633
    %5873 = vmatpush1.bf16.msra.mxu0 %v4632
    %5874 = vmatprep.subr.bf16.mxu0 %v4637
    %5875 = vmatpush1.bf16.msra.mxu0 %v4636
    %5876 = vmatprep.subr.bf16.mxu0 %v4641
    %5877 = vmatpush1.bf16.msra.mxu0 %v4640
    %5878 = vmatprep.subr.bf16.mxu0 %v4645
    %5879 = vmatpush1.bf16.msra.mxu0 %v4644
    %5880 = vmatprep.subr.bf16.mxu0 %v4649
    %5881 = vmatpush1.bf16.msra.mxu0 %v4648
    %5882 = vmatprep.subr.bf16.mxu0 %v4653
    %5883 = vmatpush1.bf16.msra.mxu0 %v4652
    %5884 = vmatprep.subr.bf16.mxu0 %v4657
    %5885 = vmatpush1.bf16.msra.mxu0 %v4656
    %5886 = vmatprep.subr.bf16.mxu0 %v4661
    %5887 = vmatpush1.bf16.msra.mxu0 %v4660
    %5888 = vmatprep.subr.bf16.mxu0 %v4665
    %5889 = vmatpush1.bf16.msra.mxu0 %v4664
    %5890 = vmatprep.subr.bf16.mxu0 %v4669
    %5891 = vmatpush1.bf16.msra.mxu0 %v4668
    %5892 = vmatprep.subr.bf16.mxu0 %v4673
    %5893 = vmatpush1.bf16.msra.mxu0 %v4672
    %5894 = vmatprep.subr.bf16.mxu0 %v4677
    %5895 = vmatpush1.bf16.msra.mxu0 %v4676
    %5896 = vmatprep.subr.bf16.mxu0 %v4681
    %5897 = vmatpush1.bf16.msra.mxu0 %v4680
    %5898 = vmatprep.subr.bf16.mxu0 %v4685
    %5899 = vmatpush1.bf16.msra.mxu0 %v4684
    %5900 = vmatprep.subr.bf16.mxu0 %v4689
    %5901 = vmatpush1.bf16.msra.mxu0 %v4688
    %5902 = vmatprep.mubr.bf16.mxu0 %v5828
    %5903 = vmatmul.mubr.bf16.gmra.mrb[0].mxu0 %v5827
    %v5904 = vpop.f32.mrb[0].mxu0
    %v5905 = vadd.f32 %v5864, %v5904
    %v5906 = vpop.f32.mrb[0].mxu0
    %v5907 = vadd.f32 %v5866, %v5906
    %v5908 = vpop.f32.mrb[0].mxu0
    %v5909 = vpop.f32.mrb[0].mxu0
    %5910 = vdwg.mxu0
    %5911 = vmatprep.subr.bf16.mxu0 %v4567
    %5912 = vmatpush1.bf16.msra.mxu0 %v4566
    %5913 = vmatprep.subr.bf16.mxu0 %v4571
    %5914 = vmatpush1.bf16.msra.mxu0 %v4570
    %5915 = vmatprep.subr.bf16.mxu0 %v4575
    %5916 = vmatpush1.bf16.msra.mxu0 %v4574
    %5917 = vmatprep.subr.bf16.mxu0 %v4579
    %5918 = vmatpush1.bf16.msra.mxu0 %v4578
    %5919 = vmatprep.subr.bf16.mxu0 %v4583
    %5920 = vmatpush1.bf16.msra.mxu0 %v4582
    %5921 = vmatprep.subr.bf16.mxu0 %v4587
    %5922 = vmatpush1.bf16.msra.mxu0 %v4586
    %5923 = vmatprep.subr.bf16.mxu0 %v4591
    %5924 = vmatpush1.bf16.msra.mxu0 %v4590
    %5925 = vmatprep.subr.bf16.mxu0 %v4595
    %5926 = vmatpush1.bf16.msra.mxu0 %v4594
    %5927 = vmatprep.subr.bf16.mxu0 %v4599
    %5928 = vmatpush1.bf16.msra.mxu0 %v4598
    %5929 = vmatprep.subr.bf16.mxu0 %v4603
    %5930 = vmatpush1.bf16.msra.mxu0 %v4602
    %5931 = vmatprep.subr.bf16.mxu0 %v4607
    %5932 = vmatpush1.bf16.msra.mxu0 %v4606
    %5933 = vmatprep.subr.bf16.mxu0 %v4611
    %5934 = vmatpush1.bf16.msra.mxu0 %v4610
    %5935 = vmatprep.subr.bf16.mxu0 %v4615
    %5936 = vmatpush1.bf16.msra.mxu0 %v4614
    %5937 = vmatprep.subr.bf16.mxu0 %v4619
    %5938 = vmatpush1.bf16.msra.mxu0 %v4618
    %5939 = vmatprep.subr.bf16.mxu0 %v4623
    %5940 = vmatpush1.bf16.msra.mxu0 %v4622
    %5941 = vmatprep.subr.bf16.mxu0 %v4627
    %5942 = vmatpush1.bf16.msra.mxu0 %v4626
    %5943 = vmatprep.mubr.bf16.mxu0 %v5826
    %5944 = vmatmul.mubr.bf16.gmra.mrb[0].mxu0 %v5825
    %v5945 = vpop.f32.mrb[0].mxu0
    %v5946 = vadd.f32 %v3875, %v5945
    %v5947 = vpop.f32.mrb[0].mxu0
    %v5948 = vadd.f32 %v3876, %v5947
    %v5949 = vpop.f32.mrb[0].mxu0
    %v5950 = vpop.f32.mrb[0].mxu0
    %5951 = vdwg.mxu0
    %5952 = vmatprep.subr.bf16.mxu0 %v4631
    %5953 = vmatpush1.bf16.msra.mxu0 %v4630
    %5954 = vmatprep.subr.bf16.mxu0 %v4635
    %5955 = vmatpush1.bf16.msra.mxu0 %v4634
    %5956 = vmatprep.subr.bf16.mxu0 %v4639
    %5957 = vmatpush1.bf16.msra.mxu0 %v4638
    %5958 = vmatprep.subr.bf16.mxu0 %v4643
    %5959 = vmatpush1.bf16.msra.mxu0 %v4642
    %5960 = vmatprep.subr.bf16.mxu0 %v4647
    %5961 = vmatpush1.bf16.msra.mxu0 %v4646
    %5962 = vmatprep.subr.bf16.mxu0 %v4651
    %5963 = vmatpush1.bf16.msra.mxu0 %v4650
    %5964 = vmatprep.subr.bf16.mxu0 %v4655
    %5965 = vmatpush1.bf16.msra.mxu0 %v4654
    %5966 = vmatprep.subr.bf16.mxu0 %v4659
    %5967 = vmatpush1.bf16.msra.mxu0 %v4658
    %5968 = vmatprep.subr.bf16.mxu0 %v4663
    %5969 = vmatpush1.bf16.msra.mxu0 %v4662
    %5970 = vmatprep.subr.bf16.mxu0 %v4667
    %5971 = vmatpush1.bf16.msra.mxu0 %v4666
    %5972 = vmatprep.subr.bf16.mxu0 %v4671
    %5973 = vmatpush1.bf16.msra.mxu0 %v4670
    %5974 = vmatprep.subr.bf16.mxu0 %v4675
    %5975 = vmatpush1.bf16.msra.mxu0 %v4674
    %5976 = vmatprep.subr.bf16.mxu0 %v4679
    %5977 = vmatpush1.bf16.msra.mxu0 %v4678
    %5978 = vmatprep.subr.bf16.mxu0 %v4683
    %5979 = vmatpush1.bf16.msra.mxu0 %v4682
    %5980 = vmatprep.subr.bf16.mxu0 %v4687
    %5981 = vmatpush1.bf16.msra.mxu0 %v4686
    %5982 = vmatprep.subr.bf16.mxu0 %v4691
    %5983 = vmatpush1.bf16.msra.mxu0 %v4690
    %5984 = vmatprep.mubr.bf16.mxu0 %v5828
    %5985 = vmatmul.mubr.bf16.gmra.mrb[0].mxu0 %v5827
    %v5986 = vpop.f32.mrb[0].mxu0
    %v5987 = vadd.f32 %v5946, %v5986
    %v5988 = vpop.f32.mrb[0].mxu0
    %v5989 = vadd.f32 %v5948, %v5988
    %v5990 = vpop.f32.mrb[0].mxu0
    %v5991 = vpop.f32.mrb[0].mxu0
    %5992 = vdwg.mxu0
    %vm5993 = vcmp.gt.f32.partialorder %v5905, 0.0
    %vm5994 = vcmp.gt.f32.partialorder %v5907, 0.0
    %vm5995 = vcmp.gt.f32.partialorder %v5987, 0.0
    %vm5996 = vcmp.gt.f32.partialorder %v5989, 0.0
    %v5997 = vmul.f32 %v5905, 0.01
    %v5998 = vmul.f32 %v5907, 0.01
    %v5999 = vmul.f32 %v5987, 0.01
    %v6000 = vmul.f32 %v5989, 0.01
    %v6001 = vsel %vm5993, %v5905, %v5997
    %v6002 = vsel %vm5994, %v5907, %v5998
    %v6003 = vsel %vm5995, %v5987, %v5999
    %v6004 = vsel %vm5996, %v5989, %v6000
    %v6005 = vpack.c.bf16 %v6001, %v6001
    %v6006 = vpack.c.bf16 %v6002, %v6002
    %v6007 = vpack.c.bf16 %v6003, %v6003
    %v6008 = vpack.c.bf16 %v6004, %v6004
    %6009 = vmatprep.subr.bf16.mxu0 %v5406
    %6010 = vmatpush1.bf16.msra.mxu0 %v5405
    %6011 = vmatprep.subr.bf16.mxu0 %v5410
    %6012 = vmatpush1.bf16.msra.mxu0 %v5409
    %6013 = vmatprep.subr.bf16.mxu0 %v5414
    %6014 = vmatpush1.bf16.msra.mxu0 %v5413
    %6015 = vmatprep.subr.bf16.mxu0 %v5418
    %6016 = vmatpush1.bf16.msra.mxu0 %v5417
    %6017 = vmatprep.subr.bf16.mxu0 %v5422
    %6018 = vmatpush1.bf16.msra.mxu0 %v5421
    %6019 = vmatprep.subr.bf16.mxu0 %v5426
    %6020 = vmatpush1.bf16.msra.mxu0 %v5425
    %6021 = vmatprep.subr.bf16.mxu0 %v5430
    %6022 = vmatpush1.bf16.msra.mxu0 %v5429
    %6023 = vmatprep.subr.bf16.mxu0 %v5434
    %6024 = vmatpush1.bf16.msra.mxu0 %v5433
    %6025 = vmatprep.subr.bf16.mxu0 %v5438
    %6026 = vmatpush1.bf16.msra.mxu0 %v5437
    %6027 = vmatprep.subr.bf16.mxu0 %v5442
    %6028 = vmatpush1.bf16.msra.mxu0 %v5441
    %6029 = vmatprep.subr.bf16.mxu0 %v5446
    %6030 = vmatpush1.bf16.msra.mxu0 %v5445
    %6031 = vmatprep.subr.bf16.mxu0 %v5450
    %6032 = vmatpush1.bf16.msra.mxu0 %v5449
    %6033 = vmatprep.subr.bf16.mxu0 %v5454
    %6034 = vmatpush1.bf16.msra.mxu0 %v5453
    %6035 = vmatprep.subr.bf16.mxu0 %v5458
    %6036 = vmatpush1.bf16.msra.mxu0 %v5457
    %6037 = vmatprep.subr.bf16.mxu0 %v5462
    %6038 = vmatpush1.bf16.msra.mxu0 %v5461
    %6039 = vmatprep.subr.bf16.mxu0 %v5466
    %6040 = vmatpush1.bf16.msra.mxu0 %v5465
    %6041 = vmatprep.mubr.bf16.mxu0 %v6006
    %6042 = vmatmul.mubr.bf16.gmra.mrb[0].mxu0 %v6005
    %v6043 = vpop.f32.mrb[0].mxu0
    %v6044 = vadd.f32 %v5004, %v6043
    %v6045 = vpop.f32.mrb[0].mxu0
    %v6046 = vadd.f32 %v5008, %v6045
    %v6047 = vpop.f32.mrb[0].mxu0
    %v6048 = vpop.f32.mrb[0].mxu0
    %6049 = vdwg.mxu0
    %6050 = vmatprep.subr.bf16.mxu0 %v5470
    %6051 = vmatpush1.bf16.msra.mxu0 %v5469
    %6052 = vmatprep.subr.bf16.mxu0 %v5474
    %6053 = vmatpush1.bf16.msra.mxu0 %v5473
    %6054 = vmatprep.subr.bf16.mxu0 %v5478
    %6055 = vmatpush1.bf16.msra.mxu0 %v5477
    %6056 = vmatprep.subr.bf16.mxu0 %v5482
    %6057 = vmatpush1.bf16.msra.mxu0 %v5481
    %6058 = vmatprep.subr.bf16.mxu0 %v5486
    %6059 = vmatpush1.bf16.msra.mxu0 %v5485
    %6060 = vmatprep.subr.bf16.mxu0 %v5490
    %6061 = vmatpush1.bf16.msra.mxu0 %v5489
    %6062 = vmatprep.subr.bf16.mxu0 %v5494
    %6063 = vmatpush1.bf16.msra.mxu0 %v5493
    %6064 = vmatprep.subr.bf16.mxu0 %v5498
    %6065 = vmatpush1.bf16.msra.mxu0 %v5497
    %6066 = vmatprep.subr.bf16.mxu0 %v5502
    %6067 = vmatpush1.bf16.msra.mxu0 %v5501
    %6068 = vmatprep.subr.bf16.mxu0 %v5506
    %6069 = vmatpush1.bf16.msra.mxu0 %v5505
    %6070 = vmatprep.subr.bf16.mxu0 %v5510
    %6071 = vmatpush1.bf16.msra.mxu0 %v5509
    %6072 = vmatprep.subr.bf16.mxu0 %v5514
    %6073 = vmatpush1.bf16.msra.mxu0 %v5513
    %6074 = vmatprep.subr.bf16.mxu0 %v5518
    %6075 = vmatpush1.bf16.msra.mxu0 %v5517
    %6076 = vmatprep.subr.bf16.mxu0 %v5522
    %6077 = vmatpush1.bf16.msra.mxu0 %v5521
    %6078 = vmatprep.subr.bf16.mxu0 %v5526
    %6079 = vmatpush1.bf16.msra.mxu0 %v5525
    %6080 = vmatprep.subr.bf16.mxu0 %v5530
    %6081 = vmatpush1.bf16.msra.mxu0 %v5529
    %6082 = vmatprep.mubr.bf16.mxu0 %v6008
    %6083 = vmatmul.mubr.bf16.gmra.mrb[0].mxu0 %v6007
    %v6084 = vpop.f32.mrb[0].mxu0
    %v6085 = vadd.f32 %v6044, %v6084
    %v6086 = vpop.f32.mrb[0].mxu0
    %v6087 = vadd.f32 %v6046, %v6086
    %v6088 = vpop.f32.mrb[0].mxu0
    %v6089 = vpop.f32.mrb[0].mxu0
    %6090 = vdwg.mxu0
    %6091 = vmatprep.subr.bf16.mxu0 %v5408
    %6092 = vmatpush1.bf16.msra.mxu0 %v5407
    %6093 = vmatprep.subr.bf16.mxu0 %v5412
    %6094 = vmatpush1.bf16.msra.mxu0 %v5411
    %6095 = vmatprep.subr.bf16.mxu0 %v5416
    %6096 = vmatpush1.bf16.msra.mxu0 %v5415
    %6097 = vmatprep.subr.bf16.mxu0 %v5420
    %6098 = vmatpush1.bf16.msra.mxu0 %v5419
    %6099 = vmatprep.subr.bf16.mxu0 %v5424
    %6100 = vmatpush1.bf16.msra.mxu0 %v5423
    %6101 = vmatprep.subr.bf16.mxu0 %v5428
    %6102 = vmatpush1.bf16.msra.mxu0 %v5427
    %6103 = vmatprep.subr.bf16.mxu0 %v5432
    %6104 = vmatpush1.bf16.msra.mxu0 %v5431
    %6105 = vmatprep.subr.bf16.mxu0 %v5436
    %6106 = vmatpush1.bf16.msra.mxu0 %v5435
    %6107 = vmatprep.subr.bf16.mxu0 %v5440
    %6108 = vmatpush1.bf16.msra.mxu0 %v5439
    %6109 = vmatprep.subr.bf16.mxu0 %v5444
    %6110 = vmatpush1.bf16.msra.mxu0 %v5443
    %6111 = vmatprep.subr.bf16.mxu0 %v5448
    %6112 = vmatpush1.bf16.msra.mxu0 %v5447
    %6113 = vmatprep.subr.bf16.mxu0 %v5452
    %6114 = vmatpush1.bf16.msra.mxu0 %v5451
    %6115 = vmatprep.subr.bf16.mxu0 %v5456
    %6116 = vmatpush1.bf16.msra.mxu0 %v5455
    %6117 = vmatprep.subr.bf16.mxu0 %v5460
    %6118 = vmatpush1.bf16.msra.mxu0 %v5459
    %6119 = vmatprep.subr.bf16.mxu0 %v5464
    %6120 = vmatpush1.bf16.msra.mxu0 %v5463
    %6121 = vmatprep.subr.bf16.mxu0 %v5468
    %6122 = vmatpush1.bf16.msra.mxu0 %v5467
    %6123 = vmatprep.mubr.bf16.mxu0 %v6006
    %6124 = vmatmul.mubr.bf16.gmra.mrb[0].mxu0 %v6005
    %v6125 = vpop.f32.mrb[0].mxu0
    %v6126 = vadd.f32 %v5012, %v6125
    %v6127 = vpop.f32.mrb[0].mxu0
    %v6128 = vadd.f32 %v5016, %v6127
    %v6129 = vpop.f32.mrb[0].mxu0
    %v6130 = vpop.f32.mrb[0].mxu0
    %6131 = vdwg.mxu0
    %6132 = vmatprep.subr.bf16.mxu0 %v5472
    %6133 = vmatpush1.bf16.msra.mxu0 %v5471
    %6134 = vmatprep.subr.bf16.mxu0 %v5476
    %6135 = vmatpush1.bf16.msra.mxu0 %v5475
    %6136 = vmatprep.subr.bf16.mxu0 %v5480
    %6137 = vmatpush1.bf16.msra.mxu0 %v5479
    %6138 = vmatprep.subr.bf16.mxu0 %v5484
    %6139 = vmatpush1.bf16.msra.mxu0 %v5483
    %6140 = vmatprep.subr.bf16.mxu0 %v5488
    %6141 = vmatpush1.bf16.msra.mxu0 %v5487
    %6142 = vmatprep.subr.bf16.mxu0 %v5492
    %6143 = vmatpush1.bf16.msra.mxu0 %v5491
    %6144 = vmatprep.subr.bf16.mxu0 %v5496
    %6145 = vmatpush1.bf16.msra.mxu0 %v5495
    %6146 = vmatprep.subr.bf16.mxu0 %v5500
    %6147 = vmatpush1.bf16.msra.mxu0 %v5499
    %6148 = vmatprep.subr.bf16.mxu0 %v5504
    %6149 = vmatpush1.bf16.msra.mxu0 %v5503
    %6150 = vmatprep.subr.bf16.mxu0 %v5508
    %6151 = vmatpush1.bf16.msra.mxu0 %v5507
    %6152 = vmatprep.subr.bf16.mxu0 %v5512
    %6153 = vmatpush1.bf16.msra.mxu0 %v5511
    %6154 = vmatprep.subr.bf16.mxu0 %v5516
    %6155 = vmatpush1.bf16.msra.mxu0 %v5515
    %6156 = vmatprep.subr.bf16.mxu0 %v5520
    %6157 = vmatpush1.bf16.msra.mxu0 %v5519
    %6158 = vmatprep.subr.bf16.mxu0 %v5524
    %6159 = vmatpush1.bf16.msra.mxu0 %v5523
    %6160 = vmatprep.subr.bf16.mxu0 %v5528
    %6161 = vmatpush1.bf16.msra.mxu0 %v5527
    %6162 = vmatprep.subr.bf16.mxu0 %v5532
    %6163 = vmatpush1.bf16.msra.mxu0 %v5531
    %6164 = vmatprep.mubr.bf16.mxu0 %v6008
    %6165 = vmatmul.mubr.bf16.gmra.mrb[0].mxu0 %v6007
    %v6166 = vpop.f32.mrb[0].mxu0
    %v6167 = vadd.f32 %v6126, %v6166
    %v6168 = vpop.f32.mrb[0].mxu0
    %v6169 = vadd.f32 %v6128, %v6168
    %v6170 = vpop.f32.mrb[0].mxu0
    %v6171 = vpop.f32.mrb[0].mxu0
    %6172 = vdwg.mxu0
    %v6173 = vadd.f32 %v6085, %v3915
    %v6174 = vadd.f32 %v6087, %v3916
    %v6175 = vadd.f32 %v6167, %v3917
    %v6176 = vadd.f32 %v6169, %v3918
    %v6177 = vpack.c.bf16 %v6173, %v6173
    %v6178 = vpack.c.bf16 %v6174, %v6174
    %v6179 = vpack.c.bf16 %v6175, %v6175
    %v6180 = vpack.c.bf16 %v6176, %v6176
    %6181 = vmatprep.subr.bf16.mxu0 %v4565
    %6182 = vmatpush1.bf16.msra.mxu0 %v4564
    %6183 = vmatprep.subr.bf16.mxu0 %v4569
    %6184 = vmatpush1.bf16.msra.mxu0 %v4568
    %6185 = vmatprep.subr.bf16.mxu0 %v4573
    %6186 = vmatpush1.bf16.msra.mxu0 %v4572
    %6187 = vmatprep.subr.bf16.mxu0 %v4577
    %6188 = vmatpush1.bf16.msra.mxu0 %v4576
    %6189 = vmatprep.subr.bf16.mxu0 %v4581
    %6190 = vmatpush1.bf16.msra.mxu0 %v4580
    %6191 = vmatprep.subr.bf16.mxu0 %v4585
    %6192 = vmatpush1.bf16.msra.mxu0 %v4584
    %6193 = vmatprep.subr.bf16.mxu0 %v4589
    %6194 = vmatpush1.bf16.msra.mxu0 %v4588
    %6195 = vmatprep.subr.bf16.mxu0 %v4593
    %6196 = vmatpush1.bf16.msra.mxu0 %v4592
    %6197 = vmatprep.subr.bf16.mxu0 %v4597
    %6198 = vmatpush1.bf16.msra.mxu0 %v4596
    %6199 = vmatprep.subr.bf16.mxu0 %v4601
    %6200 = vmatpush1.bf16.msra.mxu0 %v4600
    %6201 = vmatprep.subr.bf16.mxu0 %v4605
    %6202 = vmatpush1.bf16.msra.mxu0 %v4604
    %6203 = vmatprep.subr.bf16.mxu0 %v4609
    %6204 = vmatpush1.bf16.msra.mxu0 %v4608
    %6205 = vmatprep.subr.bf16.mxu0 %v4613
    %6206 = vmatpush1.bf16.msra.mxu0 %v4612
    %6207 = vmatprep.subr.bf16.mxu0 %v4617
    %6208 = vmatpush1.bf16.msra.mxu0 %v4616
    %6209 = vmatprep.subr.bf16.mxu0 %v4621
    %6210 = vmatpush1.bf16.msra.mxu0 %v4620
    %6211 = vmatprep.subr.bf16.mxu0 %v4625
    %6212 = vmatpush1.bf16.msra.mxu0 %v4624
    %6213 = vmatprep.mubr.bf16.mxu0 %v6178
    %6214 = vmatmul.mubr.bf16.gmra.mrb[0].mxu0 %v6177
    %v6215 = vpop.f32.mrb[0].mxu0
    %v6216 = vadd.f32 %v3873, %v6215
    %v6217 = vpop.f32.mrb[0].mxu0
    %v6218 = vadd.f32 %v3874, %v6217
    %v6219 = vpop.f32.mrb[0].mxu0
    %v6220 = vpop.f32.mrb[0].mxu0
    %6221 = vdwg.mxu0
    %6222 = vmatprep.subr.bf16.mxu0 %v4629
    %6223 = vmatpush1.bf16.msra.mxu0 %v4628
    %6224 = vmatprep.subr.bf16.mxu0 %v4633
    %6225 = vmatpush1.bf16.msra.mxu0 %v4632
    %6226 = vmatprep.subr.bf16.mxu0 %v4637
    %6227 = vmatpush1.bf16.msra.mxu0 %v4636
    %6228 = vmatprep.subr.bf16.mxu0 %v4641
    %6229 = vmatpush1.bf16.msra.mxu0 %v4640
    %6230 = vmatprep.subr.bf16.mxu0 %v4645
    %6231 = vmatpush1.bf16.msra.mxu0 %v4644
    %6232 = vmatprep.subr.bf16.mxu0 %v4649
    %6233 = vmatpush1.bf16.msra.mxu0 %v4648
    %6234 = vmatprep.subr.bf16.mxu0 %v4653
    %6235 = vmatpush1.bf16.msra.mxu0 %v4652
    %6236 = vmatprep.subr.bf16.mxu0 %v4657
    %6237 = vmatpush1.bf16.msra.mxu0 %v4656
    %6238 = vmatprep.subr.bf16.mxu0 %v4661
    %6239 = vmatpush1.bf16.msra.mxu0 %v4660
    %6240 = vmatprep.subr.bf16.mxu0 %v4665
    %6241 = vmatpush1.bf16.msra.mxu0 %v4664
    %6242 = vmatprep.subr.bf16.mxu0 %v4669
    %6243 = vmatpush1.bf16.msra.mxu0 %v4668
    %6244 = vmatprep.subr.bf16.mxu0 %v4673
    %6245 = vmatpush1.bf16.msra.mxu0 %v4672
    %6246 = vmatprep.subr.bf16.mxu0 %v4677
    %6247 = vmatpush1.bf16.msra.mxu0 %v4676
    %6248 = vmatprep.subr.bf16.mxu0 %v4681
    %6249 = vmatpush1.bf16.msra.mxu0 %v4680
    %6250 = vmatprep.subr.bf16.mxu0 %v4685
    %6251 = vmatpush1.bf16.msra.mxu0 %v4684
    %6252 = vmatprep.subr.bf16.mxu0 %v4689
    %6253 = vmatpush1.bf16.msra.mxu0 %v4688
    %6254 = vmatprep.mubr.bf16.mxu0 %v6180
    %6255 = vmatmul.mubr.bf16.gmra.mrb[0].mxu0 %v6179
    %v6256 = vpop.f32.mrb[0].mxu0
    %v6257 = vadd.f32 %v6216, %v6256
    %v6258 = vpop.f32.mrb[0].mxu0
    %v6259 = vadd.f32 %v6218, %v6258
    %v6260 = vpop.f32.mrb[0].mxu0
    %v6261 = vpop.f32.mrb[0].mxu0
    %6262 = vdwg.mxu0
    %6263 = vmatprep.subr.bf16.mxu0 %v4567
    %6264 = vmatpush1.bf16.msra.mxu0 %v4566
    %6265 = vmatprep.subr.bf16.mxu0 %v4571
    %6266 = vmatpush1.bf16.msra.mxu0 %v4570
    %6267 = vmatprep.subr.bf16.mxu0 %v4575
    %6268 = vmatpush1.bf16.msra.mxu0 %v4574
    %6269 = vmatprep.subr.bf16.mxu0 %v4579
    %6270 = vmatpush1.bf16.msra.mxu0 %v4578
    %6271 = vmatprep.subr.bf16.mxu0 %v4583
    %6272 = vmatpush1.bf16.msra.mxu0 %v4582
    %6273 = vmatprep.subr.bf16.mxu0 %v4587
    %6274 = vmatpush1.bf16.msra.mxu0 %v4586
    %6275 = vmatprep.subr.bf16.mxu0 %v4591
    %6276 = vmatpush1.bf16.msra.mxu0 %v4590
    %6277 = vmatprep.subr.bf16.mxu0 %v4595
    %6278 = vmatpush1.bf16.msra.mxu0 %v4594
    %6279 = vmatprep.subr.bf16.mxu0 %v4599
    %6280 = vmatpush1.bf16.msra.mxu0 %v4598
    %6281 = vmatprep.subr.bf16.mxu0 %v4603
    %6282 = vmatpush1.bf16.msra.mxu0 %v4602
    %6283 = vmatprep.subr.bf16.mxu0 %v4607
    %6284 = vmatpush1.bf16.msra.mxu0 %v4606
    %6285 = vmatprep.subr.bf16.mxu0 %v4611
    %6286 = vmatpush1.bf16.msra.mxu0 %v4610
    %6287 = vmatprep.subr.bf16.mxu0 %v4615
    %6288 = vmatpush1.bf16.msra.mxu0 %v4614
    %6289 = vmatprep.subr.bf16.mxu0 %v4619
    %6290 = vmatpush1.bf16.msra.mxu0 %v4618
    %6291 = vmatprep.subr.bf16.mxu0 %v4623
    %6292 = vmatpush1.bf16.msra.mxu0 %v4622
    %6293 = vmatprep.subr.bf16.mxu0 %v4627
    %6294 = vmatpush1.bf16.msra.mxu0 %v4626
    %6295 = vmatprep.mubr.bf16.mxu0 %v6178
    %6296 = vmatmul.mubr.bf16.gmra.mrb[0].mxu0 %v6177
    %v6297 = vpop.f32.mrb[0].mxu0
    %v6298 = vadd.f32 %v3875, %v6297
    %v6299 = vpop.f32.mrb[0].mxu0
    %v6300 = vadd.f32 %v3876, %v6299
    %v6301 = vpop.f32.mrb[0].mxu0
    %v6302 = vpop.f32.mrb[0].mxu0
    %6303 = vdwg.mxu0
    %6304 = vmatprep.subr.bf16.mxu0 %v4631
    %6305 = vmatpush1.bf16.msra.mxu0 %v4630
    %6306 = vmatprep.subr.bf16.mxu0 %v4635
    %6307 = vmatpush1.bf16.msra.mxu0 %v4634
    %6308 = vmatprep.subr.bf16.mxu0 %v4639
    %6309 = vmatpush1.bf16.msra.mxu0 %v4638
    %6310 = vmatprep.subr.bf16.mxu0 %v4643
    %6311 = vmatpush1.bf16.msra.mxu0 %v4642
    %6312 = vmatprep.subr.bf16.mxu0 %v4647
    %6313 = vmatpush1.bf16.msra.mxu0 %v4646
    %6314 = vmatprep.subr.bf16.mxu0 %v4651
    %6315 = vmatpush1.bf16.msra.mxu0 %v4650
    %6316 = vmatprep.subr.bf16.mxu0 %v4655
    %6317 = vmatpush1.bf16.msra.mxu0 %v4654
    %6318 = vmatprep.subr.bf16.mxu0 %v4659
    %6319 = vmatpush1.bf16.msra.mxu0 %v4658
    %6320 = vmatprep.subr.bf16.mxu0 %v4663
    %6321 = vmatpush1.bf16.msra.mxu0 %v4662
    %6322 = vmatprep.subr.bf16.mxu0 %v4667
    %6323 = vmatpush1.bf16.msra.mxu0 %v4666
    %6324 = vmatprep.subr.bf16.mxu0 %v4671
    %6325 = vmatpush1.bf16.msra.mxu0 %v4670
    %6326 = vmatprep.subr.bf16.mxu0 %v4675
    %6327 = vmatpush1.bf16.msra.mxu0 %v4674
    %6328 = vmatprep.subr.bf16.mxu0 %v4679
    %6329 = vmatpush1.bf16.msra.mxu0 %v4678
    %6330 = vmatprep.subr.bf16.mxu0 %v4683
    %6331 = vmatpush1.bf16.msra.mxu0 %v4682
    %6332 = vmatprep.subr.bf16.mxu0 %v4687
    %6333 = vmatpush1.bf16.msra.mxu0 %v4686
    %6334 = vmatprep.subr.bf16.mxu0 %v4691
    %6335 = vmatpush1.bf16.msra.mxu0 %v4690
    %6336 = vmatprep.mubr.bf16.mxu0 %v6180
    %6337 = vmatmul.mubr.bf16.gmra.mrb[0].mxu0 %v6179
    %v6338 = vpop.f32.mrb[0].mxu0
    %v6339 = vadd.f32 %v6298, %v6338
    %v6340 = vpop.f32.mrb[0].mxu0
    %v6341 = vadd.f32 %v6300, %v6340
    %v6342 = vpop.f32.mrb[0].mxu0
    %v6343 = vpop.f32.mrb[0].mxu0
    %6344 = vdwg.mxu0
    %vm6345 = vcmp.gt.f32.partialorder %v6257, 0.0
    %vm6346 = vcmp.gt.f32.partialorder %v6259, 0.0
    %vm6347 = vcmp.gt.f32.partialorder %v6339, 0.0
    %vm6348 = vcmp.gt.f32.partialorder %v6341, 0.0
    %v6349 = vmul.f32 %v6257, 0.01
    %v6350 = vmul.f32 %v6259, 0.01
    %v6351 = vmul.f32 %v6339, 0.01
    %v6352 = vmul.f32 %v6341, 0.01
    %v6353 = vsel %vm6345, %v6257, %v6349
    %v6354 = vsel %vm6346, %v6259, %v6350
    %v6355 = vsel %vm6347, %v6339, %v6351
    %v6356 = vsel %vm6348, %v6341, %v6352
    %v6357 = vpack.c.bf16 %v6353, %v6353
    %v6358 = vpack.c.bf16 %v6354, %v6354
    %v6359 = vpack.c.bf16 %v6355, %v6355
    %v6360 = vpack.c.bf16 %v6356, %v6356
    %6361 = vmatprep.subr.bf16.mxu0 %v5406
    %6362 = vmatpush1.bf16.msra.mxu0 %v5405
    %6363 = vmatprep.subr.bf16.mxu0 %v5410
    %6364 = vmatpush1.bf16.msra.mxu0 %v5409
    %6365 = vmatprep.subr.bf16.mxu0 %v5414
    %6366 = vmatpush1.bf16.msra.mxu0 %v5413
    %6367 = vmatprep.subr.bf16.mxu0 %v5418
    %6368 = vmatpush1.bf16.msra.mxu0 %v5417
    %6369 = vmatprep.subr.bf16.mxu0 %v5422
    %6370 = vmatpush1.bf16.msra.mxu0 %v5421
    %6371 = vmatprep.subr.bf16.mxu0 %v5426
    %6372 = vmatpush1.bf16.msra.mxu0 %v5425
    %6373 = vmatprep.subr.bf16.mxu0 %v5430
    %6374 = vmatpush1.bf16.msra.mxu0 %v5429
    %6375 = vmatprep.subr.bf16.mxu0 %v5434
    %6376 = vmatpush1.bf16.msra.mxu0 %v5433
    %6377 = vmatprep.subr.bf16.mxu0 %v5438
    %6378 = vmatpush1.bf16.msra.mxu0 %v5437
    %6379 = vmatprep.subr.bf16.mxu0 %v5442
    %6380 = vmatpush1.bf16.msra.mxu0 %v5441
    %6381 = vmatprep.subr.bf16.mxu0 %v5446
    %6382 = vmatpush1.bf16.msra.mxu0 %v5445
    %6383 = vmatprep.subr.bf16.mxu0 %v5450
    %6384 = vmatpush1.bf16.msra.mxu0 %v5449
    %6385 = vmatprep.subr.bf16.mxu0 %v5454
    %6386 = vmatpush1.bf16.msra.mxu0 %v5453
    %6387 = vmatprep.subr.bf16.mxu0 %v5458
    %6388 = vmatpush1.bf16.msra.mxu0 %v5457
    %6389 = vmatprep.subr.bf16.mxu0 %v5462
    %6390 = vmatpush1.bf16.msra.mxu0 %v5461
    %6391 = vmatprep.subr.bf16.mxu0 %v5466
    %6392 = vmatpush1.bf16.msra.mxu0 %v5465
    %6393 = vmatprep.mubr.bf16.mxu0 %v6358
    %6394 = vmatmul.mubr.bf16.gmra.mrb[0].mxu0 %v6357
    %v6395 = vpop.f32.mrb[0].mxu0
    %v6396 = vadd.f32 %v5004, %v6395
    %v6397 = vpop.f32.mrb[0].mxu0
    %v6398 = vadd.f32 %v5008, %v6397
    %v6399 = vpop.f32.mrb[0].mxu0
    %v6400 = vpop.f32.mrb[0].mxu0
    %6401 = vdwg.mxu0
    %6402 = vmatprep.subr.bf16.mxu0 %v5470
    %6403 = vmatpush1.bf16.msra.mxu0 %v5469
    %6404 = vmatprep.subr.bf16.mxu0 %v5474
    %6405 = vmatpush1.bf16.msra.mxu0 %v5473
    %6406 = vmatprep.subr.bf16.mxu0 %v5478
    %6407 = vmatpush1.bf16.msra.mxu0 %v5477
    %6408 = vmatprep.subr.bf16.mxu0 %v5482
    %6409 = vmatpush1.bf16.msra.mxu0 %v5481
    %6410 = vmatprep.subr.bf16.mxu0 %v5486
    %6411 = vmatpush1.bf16.msra.mxu0 %v5485
    %6412 = vmatprep.subr.bf16.mxu0 %v5490
    %6413 = vmatpush1.bf16.msra.mxu0 %v5489
    %6414 = vmatprep.subr.bf16.mxu0 %v5494
    %6415 = vmatpush1.bf16.msra.mxu0 %v5493
    %6416 = vmatprep.subr.bf16.mxu0 %v5498
    %6417 = vmatpush1.bf16.msra.mxu0 %v5497
    %6418 = vmatprep.subr.bf16.mxu0 %v5502
    %6419 = vmatpush1.bf16.msra.mxu0 %v5501
    %6420 = vmatprep.subr.bf16.mxu0 %v5506
    %6421 = vmatpush1.bf16.msra.mxu0 %v5505
    %6422 = vmatprep.subr.bf16.mxu0 %v5510
    %6423 = vmatpush1.bf16.msra.mxu0 %v5509
    %6424 = vmatprep.subr.bf16.mxu0 %v5514
    %6425 = vmatpush1.bf16.msra.mxu0 %v5513
    %6426 = vmatprep.subr.bf16.mxu0 %v5518
    %6427 = vmatpush1.bf16.msra.mxu0 %v5517
    %6428 = vmatprep.subr.bf16.mxu0 %v5522
    %6429 = vmatpush1.bf16.msra.mxu0 %v5521
    %6430 = vmatprep.subr.bf16.mxu0 %v5526
    %6431 = vmatpush1.bf16.msra.mxu0 %v5525
    %6432 = vmatprep.subr.bf16.mxu0 %v5530
    %6433 = vmatpush1.bf16.msra.mxu0 %v5529
    %6434 = vmatprep.mubr.bf16.mxu0 %v6360
    %6435 = vmatmul.mubr.bf16.gmra.mrb[0].mxu0 %v6359
    %v6436 = vpop.f32.mrb[0].mxu0
    %v6437 = vadd.f32 %v6396, %v6436
    %v6438 = vpop.f32.mrb[0].mxu0
    %v6439 = vadd.f32 %v6398, %v6438
    %v6440 = vpop.f32.mrb[0].mxu0
    %v6441 = vpop.f32.mrb[0].mxu0
    %6442 = vdwg.mxu0
    %6443 = vmatprep.subr.bf16.mxu0 %v5408
    %6444 = vmatpush1.bf16.msra.mxu0 %v5407
    %6445 = vmatprep.subr.bf16.mxu0 %v5412
    %6446 = vmatpush1.bf16.msra.mxu0 %v5411
    %6447 = vmatprep.subr.bf16.mxu0 %v5416
    %6448 = vmatpush1.bf16.msra.mxu0 %v5415
    %6449 = vmatprep.subr.bf16.mxu0 %v5420
    %6450 = vmatpush1.bf16.msra.mxu0 %v5419
    %6451 = vmatprep.subr.bf16.mxu0 %v5424
    %6452 = vmatpush1.bf16.msra.mxu0 %v5423
    %6453 = vmatprep.subr.bf16.mxu0 %v5428
    %6454 = vmatpush1.bf16.msra.mxu0 %v5427
    %6455 = vmatprep.subr.bf16.mxu0 %v5432
    %6456 = vmatpush1.bf16.msra.mxu0 %v5431
    %6457 = vmatprep.subr.bf16.mxu0 %v5436
    %6458 = vmatpush1.bf16.msra.mxu0 %v5435
    %6459 = vmatprep.subr.bf16.mxu0 %v5440
    %6460 = vmatpush1.bf16.msra.mxu0 %v5439
    %6461 = vmatprep.subr.bf16.mxu0 %v5444
    %6462 = vmatpush1.bf16.msra.mxu0 %v5443
    %6463 = vmatprep.subr.bf16.mxu0 %v5448
    %6464 = vmatpush1.bf16.msra.mxu0 %v5447
    %6465 = vmatprep.subr.bf16.mxu0 %v5452
    %6466 = vmatpush1.bf16.msra.mxu0 %v5451
    %6467 = vmatprep.subr.bf16.mxu0 %v5456
    %6468 = vmatpush1.bf16.msra.mxu0 %v5455
    %6469 = vmatprep.subr.bf16.mxu0 %v5460
    %6470 = vmatpush1.bf16.msra.mxu0 %v5459
    %6471 = vmatprep.subr.bf16.mxu0 %v5464
    %6472 = vmatpush1.bf16.msra.mxu0 %v5463
    %6473 = vmatprep.subr.bf16.mxu0 %v5468
    %6474 = vmatpush1.bf16.msra.mxu0 %v5467
    %6475 = vmatprep.mubr.bf16.mxu0 %v6358
    %6476 = vmatmul.mubr.bf16.gmra.mrb[0].mxu0 %v6357
    %v6477 = vpop.f32.mrb[0].mxu0
    %v6478 = vadd.f32 %v5012, %v6477
    %v6479 = vpop.f32.mrb[0].mxu0
    %v6480 = vadd.f32 %v5016, %v6479
    %v6481 = vpop.f32.mrb[0].mxu0
    %v6482 = vpop.f32.mrb[0].mxu0
    %6483 = vdwg.mxu0
    %6484 = vmatprep.subr.bf16.mxu0 %v5472
    %6485 = vmatpush1.bf16.msra.mxu0 %v5471
    %6486 = vmatprep.subr.bf16.mxu0 %v5476
    %6487 = vmatpush1.bf16.msra.mxu0 %v5475
    %6488 = vmatprep.subr.bf16.mxu0 %v5480
    %6489 = vmatpush1.bf16.msra.mxu0 %v5479
    %6490 = vmatprep.subr.bf16.mxu0 %v5484
    %6491 = vmatpush1.bf16.msra.mxu0 %v5483
    %6492 = vmatprep.subr.bf16.mxu0 %v5488
    %6493 = vmatpush1.bf16.msra.mxu0 %v5487
    %6494 = vmatprep.subr.bf16.mxu0 %v5492
    %6495 = vmatpush1.bf16.msra.mxu0 %v5491
    %6496 = vmatprep.subr.bf16.mxu0 %v5496
    %6497 = vmatpush1.bf16.msra.mxu0 %v5495
    %6498 = vmatprep.subr.bf16.mxu0 %v5500
    %6499 = vmatpush1.bf16.msra.mxu0 %v5499
    %6500 = vmatprep.subr.bf16.mxu0 %v5504
    %6501 = vmatpush1.bf16.msra.mxu0 %v5503
    %6502 = vmatprep.subr.bf16.mxu0 %v5508
    %6503 = vmatpush1.bf16.msra.mxu0 %v5507
    %6504 = vmatprep.subr.bf16.mxu0 %v5512
    %6505 = vmatpush1.bf16.msra.mxu0 %v5511
    %6506 = vmatprep.subr.bf16.mxu0 %v5516
    %6507 = vmatpush1.bf16.msra.mxu0 %v5515
    %6508 = vmatprep.subr.bf16.mxu0 %v5520
    %6509 = vmatpush1.bf16.msra.mxu0 %v5519
    %6510 = vmatprep.subr.bf16.mxu0 %v5524
    %6511 = vmatpush1.bf16.msra.mxu0 %v5523
    %6512 = vmatprep.subr.bf16.mxu0 %v5528
    %6513 = vmatpush1.bf16.msra.mxu0 %v5527
    %6514 = vmatprep.subr.bf16.mxu0 %v5532
    %6515 = vmatpush1.bf16.msra.mxu0 %v5531
    %6516 = vmatprep.mubr.bf16.mxu0 %v6360
    %6517 = vmatmul.mubr.bf16.gmra.mrb[0].mxu0 %v6359
    %v6518 = vpop.f32.mrb[0].mxu0
    %v6519 = vadd.f32 %v6478, %v6518
    %v6520 = vpop.f32.mrb[0].mxu0
    %v6521 = vadd.f32 %v6480, %v6520
    %v6522 = vpop.f32.mrb[0].mxu0
    %v6523 = vpop.f32.mrb[0].mxu0
    %6524 = vdwg.mxu0
    %v6525 = vpack.c.bf16 %v6437, %v6437
    %v6526 = vpack.c.bf16 %v6439, %v6439
    %v6527 = vpack.c.bf16 %v6519, %v6519
    %v6528 = vpack.c.bf16 %v6521, %v6521
    %6529 = vmatprep.subr.bf16.mxu0 %v4565
    %6530 = vmatpush1.bf16.msra.mxu0 %v4564
    %6531 = vmatprep.subr.bf16.mxu0 %v4569
    %6532 = vmatpush1.bf16.msra.mxu0 %v4568
    %6533 = vmatprep.subr.bf16.mxu0 %v4573
    %6534 = vmatpush1.bf16.msra.mxu0 %v4572
    %6535 = vmatprep.subr.bf16.mxu0 %v4577
    %6536 = vmatpush1.bf16.msra.mxu0 %v4576
    %6537 = vmatprep.subr.bf16.mxu0 %v4581
    %6538 = vmatpush1.bf16.msra.mxu0 %v4580
    %6539 = vmatprep.subr.bf16.mxu0 %v4585
    %6540 = vmatpush1.bf16.msra.mxu0 %v4584
    %6541 = vmatprep.subr.bf16.mxu0 %v4589
    %6542 = vmatpush1.bf16.msra.mxu0 %v4588
    %6543 = vmatprep.subr.bf16.mxu0 %v4593
    %6544 = vmatpush1.bf16.msra.mxu0 %v4592
    %6545 = vmatprep.subr.bf16.mxu0 %v4597
    %6546 = vmatpush1.bf16.msra.mxu0 %v4596
    %6547 = vmatprep.subr.bf16.mxu0 %v4601
    %6548 = vmatpush1.bf16.msra.mxu0 %v4600
    %6549 = vmatprep.subr.bf16.mxu0 %v4605
    %6550 = vmatpush1.bf16.msra.mxu0 %v4604
    %6551 = vmatprep.subr.bf16.mxu0 %v4609
    %6552 = vmatpush1.bf16.msra.mxu0 %v4608
    %6553 = vmatprep.subr.bf16.mxu0 %v4613
    %6554 = vmatpush1.bf16.msra.mxu0 %v4612
    %6555 = vmatprep.subr.bf16.mxu0 %v4617
    %6556 = vmatpush1.bf16.msra.mxu0 %v4616
    %6557 = vmatprep.subr.bf16.mxu0 %v4621
    %6558 = vmatpush1.bf16.msra.mxu0 %v4620
    %6559 = vmatprep.subr.bf16.mxu0 %v4625
    %6560 = vmatpush1.bf16.msra.mxu0 %v4624
    %6561 = vmatprep.mubr.bf16.mxu0 %v6526
    %6562 = vmatmul.mubr.bf16.gmra.mrb[0].mxu0 %v6525
    %v6563 = vpop.f32.mrb[0].mxu0
    %v6564 = vadd.f32 %v3873, %v6563
    %v6565 = vpop.f32.mrb[0].mxu0
    %v6566 = vadd.f32 %v3874, %v6565
    %v6567 = vpop.f32.mrb[0].mxu0
    %v6568 = vpop.f32.mrb[0].mxu0
    %6569 = vdwg.mxu0
    %6570 = vmatprep.subr.bf16.mxu0 %v4629
    %6571 = vmatpush1.bf16.msra.mxu0 %v4628
    %6572 = vmatprep.subr.bf16.mxu0 %v4633
    %6573 = vmatpush1.bf16.msra.mxu0 %v4632
    %6574 = vmatprep.subr.bf16.mxu0 %v4637
    %6575 = vmatpush1.bf16.msra.mxu0 %v4636
    %6576 = vmatprep.subr.bf16.mxu0 %v4641
    %6577 = vmatpush1.bf16.msra.mxu0 %v4640
    %6578 = vmatprep.subr.bf16.mxu0 %v4645
    %6579 = vmatpush1.bf16.msra.mxu0 %v4644
    %6580 = vmatprep.subr.bf16.mxu0 %v4649
    %6581 = vmatpush1.bf16.msra.mxu0 %v4648
    %6582 = vmatprep.subr.bf16.mxu0 %v4653
    %6583 = vmatpush1.bf16.msra.mxu0 %v4652
    %6584 = vmatprep.subr.bf16.mxu0 %v4657
    %6585 = vmatpush1.bf16.msra.mxu0 %v4656
    %6586 = vmatprep.subr.bf16.mxu0 %v4661
    %6587 = vmatpush1.bf16.msra.mxu0 %v4660
    %6588 = vmatprep.subr.bf16.mxu0 %v4665
    %6589 = vmatpush1.bf16.msra.mxu0 %v4664
    %6590 = vmatprep.subr.bf16.mxu0 %v4669
    %6591 = vmatpush1.bf16.msra.mxu0 %v4668
    %6592 = vmatprep.subr.bf16.mxu0 %v4673
    %6593 = vmatpush1.bf16.msra.mxu0 %v4672
    %6594 = vmatprep.subr.bf16.mxu0 %v4677
    %6595 = vmatpush1.bf16.msra.mxu0 %v4676
    %6596 = vmatprep.subr.bf16.mxu0 %v4681
    %6597 = vmatpush1.bf16.msra.mxu0 %v4680
    %6598 = vmatprep.subr.bf16.mxu0 %v4685
    %6599 = vmatpush1.bf16.msra.mxu0 %v4684
    %6600 = vmatprep.subr.bf16.mxu0 %v4689
    %6601 = vmatpush1.bf16.msra.mxu0 %v4688
    %6602 = vmatprep.mubr.bf16.mxu0 %v6528
    %6603 = vmatmul.mubr.bf16.gmra.mrb[0].mxu0 %v6527
    %v6604 = vpop.f32.mrb[0].mxu0
    %v6605 = vadd.f32 %v6564, %v6604
    %v6606 = vpop.f32.mrb[0].mxu0
    %v6607 = vadd.f32 %v6566, %v6606
    %v6608 = vpop.f32.mrb[0].mxu0
    %v6609 = vpop.f32.mrb[0].mxu0
    %6610 = vdwg.mxu0
    %6611 = vmatprep.subr.bf16.mxu0 %v4567
    %6612 = vmatpush1.bf16.msra.mxu0 %v4566
    %6613 = vmatprep.subr.bf16.mxu0 %v4571
    %6614 = vmatpush1.bf16.msra.mxu0 %v4570
    %6615 = vmatprep.subr.bf16.mxu0 %v4575
    %6616 = vmatpush1.bf16.msra.mxu0 %v4574
    %6617 = vmatprep.subr.bf16.mxu0 %v4579
    %6618 = vmatpush1.bf16.msra.mxu0 %v4578
    %6619 = vmatprep.subr.bf16.mxu0 %v4583
    %6620 = vmatpush1.bf16.msra.mxu0 %v4582
    %6621 = vmatprep.subr.bf16.mxu0 %v4587
    %6622 = vmatpush1.bf16.msra.mxu0 %v4586
    %6623 = vmatprep.subr.bf16.mxu0 %v4591
    %6624 = vmatpush1.bf16.msra.mxu0 %v4590
    %6625 = vmatprep.subr.bf16.mxu0 %v4595
    %6626 = vmatpush1.bf16.msra.mxu0 %v4594
    %6627 = vmatprep.subr.bf16.mxu0 %v4599
    %6628 = vmatpush1.bf16.msra.mxu0 %v4598
    %6629 = vmatprep.subr.bf16.mxu0 %v4603
    %6630 = vmatpush1.bf16.msra.mxu0 %v4602
    %6631 = vmatprep.subr.bf16.mxu0 %v4607
    %6632 = vmatpush1.bf16.msra.mxu0 %v4606
    %6633 = vmatprep.subr.bf16.mxu0 %v4611
    %6634 = vmatpush1.bf16.msra.mxu0 %v4610
    %6635 = vmatprep.subr.bf16.mxu0 %v4615
    %6636 = vmatpush1.bf16.msra.mxu0 %v4614
    %6637 = vmatprep.subr.bf16.mxu0 %v4619
    %6638 = vmatpush1.bf16.msra.mxu0 %v4618
    %6639 = vmatprep.subr.bf16.mxu0 %v4623
    %6640 = vmatpush1.bf16.msra.mxu0 %v4622
    %6641 = vmatprep.subr.bf16.mxu0 %v4627
    %6642 = vmatpush1.bf16.msra.mxu0 %v4626
    %6643 = vmatprep.mubr.bf16.mxu0 %v6526
    %6644 = vmatmul.mubr.bf16.gmra.mrb[0].mxu0 %v6525
    %v6645 = vpop.f32.mrb[0].mxu0
    %v6646 = vadd.f32 %v3875, %v6645
    %v6647 = vpop.f32.mrb[0].mxu0
    %v6648 = vadd.f32 %v3876, %v6647
    %v6649 = vpop.f32.mrb[0].mxu0
    %v6650 = vpop.f32.mrb[0].mxu0
    %6651 = vdwg.mxu0
    %6652 = vmatprep.subr.bf16.mxu0 %v4631
    %6653 = vmatpush1.bf16.msra.mxu0 %v4630
    %6654 = vmatprep.subr.bf16.mxu0 %v4635
    %6655 = vmatpush1.bf16.msra.mxu0 %v4634
    %6656 = vmatprep.subr.bf16.mxu0 %v4639
    %6657 = vmatpush1.bf16.msra.mxu0 %v4638
    %6658 = vmatprep.subr.bf16.mxu0 %v4643
    %6659 = vmatpush1.bf16.msra.mxu0 %v4642
    %6660 = vmatprep.subr.bf16.mxu0 %v4647
    %6661 = vmatpush1.bf16.msra.mxu0 %v4646
    %6662 = vmatprep.subr.bf16.mxu0 %v4651
    %6663 = vmatpush1.bf16.msra.mxu0 %v4650
    %6664 = vmatprep.subr.bf16.mxu0 %v4655
    %6665 = vmatpush1.bf16.msra.mxu0 %v4654
    %6666 = vmatprep.subr.bf16.mxu0 %v4659
    %6667 = vmatpush1.bf16.msra.mxu0 %v4658
    %6668 = vmatprep.subr.bf16.mxu0 %v4663
    %6669 = vmatpush1.bf16.msra.mxu0 %v4662
    %6670 = vmatprep.subr.bf16.mxu0 %v4667
    %6671 = vmatpush1.bf16.msra.mxu0 %v4666
    %6672 = vmatprep.subr.bf16.mxu0 %v4671
    %6673 = vmatpush1.bf16.msra.mxu0 %v4670
    %6674 = vmatprep.subr.bf16.mxu0 %v4675
    %6675 = vmatpush1.bf16.msra.mxu0 %v4674
    %6676 = vmatprep.subr.bf16.mxu0 %v4679
    %6677 = vmatpush1.bf16.msra.mxu0 %v4678
    %6678 = vmatprep.subr.bf16.mxu0 %v4683
    %6679 = vmatpush1.bf16.msra.mxu0 %v4682
    %6680 = vmatprep.subr.bf16.mxu0 %v4687
    %6681 = vmatpush1.bf16.msra.mxu0 %v4686
    %6682 = vmatprep.subr.bf16.mxu0 %v4691
    %6683 = vmatpush1.bf16.msra.mxu0 %v4690
    %6684 = vmatprep.mubr.bf16.mxu0 %v6528
    %6685 = vmatmul.mubr.bf16.gmra.mrb[0].mxu0 %v6527
    %v6686 = vpop.f32.mrb[0].mxu0
    %v6687 = vadd.f32 %v6646, %v6686
    %v6688 = vpop.f32.mrb[0].mxu0
    %v6689 = vadd.f32 %v6648, %v6688
    %v6690 = vpop.f32.mrb[0].mxu0
    %v6691 = vpop.f32.mrb[0].mxu0
    %6692 = vdwg.mxu0
    %vm6693 = vcmp.gt.f32.partialorder %v6605, 0.0
    %vm6694 = vcmp.gt.f32.partialorder %v6607, 0.0
    %vm6695 = vcmp.gt.f32.partialorder %v6687, 0.0
    %vm6696 = vcmp.gt.f32.partialorder %v6689, 0.0
    %v6697 = vmul.f32 %v6605, 0.01
    %v6698 = vmul.f32 %v6607, 0.01
    %v6699 = vmul.f32 %v6687, 0.01
    %v6700 = vmul.f32 %v6689, 0.01
    %v6701 = vsel %vm6693, %v6605, %v6697
    %v6702 = vsel %vm6694, %v6607, %v6698
    %v6703 = vsel %vm6695, %v6687, %v6699
    %v6704 = vsel %vm6696, %v6689, %v6700
    %v6705 = vpack.c.bf16 %v6701, %v6701
    %v6706 = vpack.c.bf16 %v6702, %v6702
    %v6707 = vpack.c.bf16 %v6703, %v6703
    %v6708 = vpack.c.bf16 %v6704, %v6704
    %6709 = vmatprep.subr.bf16.mxu0 %v5406
    %6710 = vmatpush1.bf16.msra.mxu0 %v5405
    %6711 = vmatprep.subr.bf16.mxu0 %v5410
    %6712 = vmatpush1.bf16.msra.mxu0 %v5409
    %6713 = vmatprep.subr.bf16.mxu0 %v5414
    %6714 = vmatpush1.bf16.msra.mxu0 %v5413
    %6715 = vmatprep.subr.bf16.mxu0 %v5418
    %6716 = vmatpush1.bf16.msra.mxu0 %v5417
    %6717 = vmatprep.subr.bf16.mxu0 %v5422
    %6718 = vmatpush1.bf16.msra.mxu0 %v5421
    %6719 = vmatprep.subr.bf16.mxu0 %v5426
    %6720 = vmatpush1.bf16.msra.mxu0 %v5425
    %6721 = vmatprep.subr.bf16.mxu0 %v5430
    %6722 = vmatpush1.bf16.msra.mxu0 %v5429
    %6723 = vmatprep.subr.bf16.mxu0 %v5434
    %6724 = vmatpush1.bf16.msra.mxu0 %v5433
    %6725 = vmatprep.subr.bf16.mxu0 %v5438
    %6726 = vmatpush1.bf16.msra.mxu0 %v5437
    %6727 = vmatprep.subr.bf16.mxu0 %v5442
    %6728 = vmatpush1.bf16.msra.mxu0 %v5441
    %6729 = vmatprep.subr.bf16.mxu0 %v5446
    %6730 = vmatpush1.bf16.msra.mxu0 %v5445
    %6731 = vmatprep.subr.bf16.mxu0 %v5450
    %6732 = vmatpush1.bf16.msra.mxu0 %v5449
    %6733 = vmatprep.subr.bf16.mxu0 %v5454
    %6734 = vmatpush1.bf16.msra.mxu0 %v5453
    %6735 = vmatprep.subr.bf16.mxu0 %v5458
    %6736 = vmatpush1.bf16.msra.mxu0 %v5457
    %6737 = vmatprep.subr.bf16.mxu0 %v5462
    %6738 = vmatpush1.bf16.msra.mxu0 %v5461
    %6739 = vmatprep.subr.bf16.mxu0 %v5466
    %6740 = vmatpush1.bf16.msra.mxu0 %v5465
    %6741 = vmatprep.mubr.bf16.mxu0 %v6706
    %6742 = vmatmul.mubr.bf16.gmra.mrb[0].mxu0 %v6705
    %v6743 = vpop.f32.mrb[0].mxu0
    %v6744 = vadd.f32 %v5004, %v6743
    %v6745 = vpop.f32.mrb[0].mxu0
    %v6746 = vadd.f32 %v5008, %v6745
    %v6747 = vpop.f32.mrb[0].mxu0
    %v6748 = vpop.f32.mrb[0].mxu0
    %6749 = vdwg.mxu0
    %6750 = vmatprep.subr.bf16.mxu0 %v5470
    %6751 = vmatpush1.bf16.msra.mxu0 %v5469
    %6752 = vmatprep.subr.bf16.mxu0 %v5474
    %6753 = vmatpush1.bf16.msra.mxu0 %v5473
    %6754 = vmatprep.subr.bf16.mxu0 %v5478
    %6755 = vmatpush1.bf16.msra.mxu0 %v5477
    %6756 = vmatprep.subr.bf16.mxu0 %v5482
    %6757 = vmatpush1.bf16.msra.mxu0 %v5481
    %6758 = vmatprep.subr.bf16.mxu0 %v5486
    %6759 = vmatpush1.bf16.msra.mxu0 %v5485
    %6760 = vmatprep.subr.bf16.mxu0 %v5490
    %6761 = vmatpush1.bf16.msra.mxu0 %v5489
    %6762 = vmatprep.subr.bf16.mxu0 %v5494
    %6763 = vmatpush1.bf16.msra.mxu0 %v5493
    %6764 = vmatprep.subr.bf16.mxu0 %v5498
    %6765 = vmatpush1.bf16.msra.mxu0 %v5497
    %6766 = vmatprep.subr.bf16.mxu0 %v5502
    %6767 = vmatpush1.bf16.msra.mxu0 %v5501
    %6768 = vmatprep.subr.bf16.mxu0 %v5506
    %6769 = vmatpush1.bf16.msra.mxu0 %v5505
    %6770 = vmatprep.subr.bf16.mxu0 %v5510
    %6771 = vmatpush1.bf16.msra.mxu0 %v5509
    %6772 = vmatprep.subr.bf16.mxu0 %v5514
    %6773 = vmatpush1.bf16.msra.mxu0 %v5513
    %6774 = vmatprep.subr.bf16.mxu0 %v5518
    %6775 = vmatpush1.bf16.msra.mxu0 %v5517
    %6776 = vmatprep.subr.bf16.mxu0 %v5522
    %6777 = vmatpush1.bf16.msra.mxu0 %v5521
    %6778 = vmatprep.subr.bf16.mxu0 %v5526
    %6779 = vmatpush1.bf16.msra.mxu0 %v5525
    %6780 = vmatprep.subr.bf16.mxu0 %v5530
    %6781 = vmatpush1.bf16.msra.mxu0 %v5529
    %6782 = vmatprep.mubr.bf16.mxu0 %v6708
    %6783 = vmatmul.mubr.bf16.gmra.mrb[0].mxu0 %v6707
    %v6784 = vpop.f32.mrb[0].mxu0
    %v6785 = vadd.f32 %v6744, %v6784
    %v6786 = vpop.f32.mrb[0].mxu0
    %v6787 = vadd.f32 %v6746, %v6786
    %v6788 = vpop.f32.mrb[0].mxu0
    %v6789 = vpop.f32.mrb[0].mxu0
    %6790 = vdwg.mxu0
    %6791 = vmatprep.subr.bf16.mxu0 %v5408
    %6792 = vmatpush1.bf16.msra.mxu0 %v5407
    %6793 = vmatprep.subr.bf16.mxu0 %v5412
    %6794 = vmatpush1.bf16.msra.mxu0 %v5411
    %6795 = vmatprep.subr.bf16.mxu0 %v5416
    %6796 = vmatpush1.bf16.msra.mxu0 %v5415
    %6797 = vmatprep.subr.bf16.mxu0 %v5420
    %6798 = vmatpush1.bf16.msra.mxu0 %v5419
    %6799 = vmatprep.subr.bf16.mxu0 %v5424
    %6800 = vmatpush1.bf16.msra.mxu0 %v5423
    %6801 = vmatprep.subr.bf16.mxu0 %v5428
    %6802 = vmatpush1.bf16.msra.mxu0 %v5427
    %6803 = vmatprep.subr.bf16.mxu0 %v5432
    %6804 = vmatpush1.bf16.msra.mxu0 %v5431
    %6805 = vmatprep.subr.bf16.mxu0 %v5436
    %6806 = vmatpush1.bf16.msra.mxu0 %v5435
    %6807 = vmatprep.subr.bf16.mxu0 %v5440
    %6808 = vmatpush1.bf16.msra.mxu0 %v5439
    %6809 = vmatprep.subr.bf16.mxu0 %v5444
    %6810 = vmatpush1.bf16.msra.mxu0 %v5443
    %6811 = vmatprep.subr.bf16.mxu0 %v5448
    %6812 = vmatpush1.bf16.msra.mxu0 %v5447
    %6813 = vmatprep.subr.bf16.mxu0 %v5452
    %6814 = vmatpush1.bf16.msra.mxu0 %v5451
    %6815 = vmatprep.subr.bf16.mxu0 %v5456
    %6816 = vmatpush1.bf16.msra.mxu0 %v5455
    %6817 = vmatprep.subr.bf16.mxu0 %v5460
    %6818 = vmatpush1.bf16.msra.mxu0 %v5459
    %6819 = vmatprep.subr.bf16.mxu0 %v5464
    %6820 = vmatpush1.bf16.msra.mxu0 %v5463
    %6821 = vmatprep.subr.bf16.mxu0 %v5468
    %6822 = vmatpush1.bf16.msra.mxu0 %v5467
    %6823 = vmatprep.mubr.bf16.mxu0 %v6706
    %6824 = vmatmul.mubr.bf16.gmra.mrb[0].mxu0 %v6705
    %v6825 = vpop.f32.mrb[0].mxu0
    %v6826 = vadd.f32 %v5012, %v6825
    %v6827 = vpop.f32.mrb[0].mxu0
    %v6828 = vadd.f32 %v5016, %v6827
    %v6829 = vpop.f32.mrb[0].mxu0
    %v6830 = vpop.f32.mrb[0].mxu0
    %6831 = vdwg.mxu0
    %6832 = vmatprep.subr.bf16.mxu0 %v5472
    %6833 = vmatpush1.bf16.msra.mxu0 %v5471
    %6834 = vmatprep.subr.bf16.mxu0 %v5476
    %6835 = vmatpush1.bf16.msra.mxu0 %v5475
    %6836 = vmatprep.subr.bf16.mxu0 %v5480
    %6837 = vmatpush1.bf16.msra.mxu0 %v5479
    %6838 = vmatprep.subr.bf16.mxu0 %v5484
    %6839 = vmatpush1.bf16.msra.mxu0 %v5483
    %6840 = vmatprep.subr.bf16.mxu0 %v5488
    %6841 = vmatpush1.bf16.msra.mxu0 %v5487
    %6842 = vmatprep.subr.bf16.mxu0 %v5492
    %6843 = vmatpush1.bf16.msra.mxu0 %v5491
    %6844 = vmatprep.subr.bf16.mxu0 %v5496
    %6845 = vmatpush1.bf16.msra.mxu0 %v5495
    %6846 = vmatprep.subr.bf16.mxu0 %v5500
    %6847 = vmatpush1.bf16.msra.mxu0 %v5499
    %6848 = vmatprep.subr.bf16.mxu0 %v5504
    %6849 = vmatpush1.bf16.msra.mxu0 %v5503
    %6850 = vmatprep.subr.bf16.mxu0 %v5508
    %6851 = vmatpush1.bf16.msra.mxu0 %v5507
    %6852 = vmatprep.subr.bf16.mxu0 %v5512
    %6853 = vmatpush1.bf16.msra.mxu0 %v5511
    %6854 = vmatprep.subr.bf16.mxu0 %v5516
    %6855 = vmatpush1.bf16.msra.mxu0 %v5515
    %6856 = vmatprep.subr.bf16.mxu0 %v5520
    %6857 = vmatpush1.bf16.msra.mxu0 %v5519
    %6858 = vmatprep.subr.bf16.mxu0 %v5524
    %6859 = vmatpush1.bf16.msra.mxu0 %v5523
    %6860 = vmatprep.subr.bf16.mxu0 %v5528
    %6861 = vmatpush1.bf16.msra.mxu0 %v5527
    %6862 = vmatprep.subr.bf16.mxu0 %v5532
    %6863 = vmatpush1.bf16.msra.mxu0 %v5531
    %6864 = vmatprep.mubr.bf16.mxu0 %v6708
    %6865 = vmatmul.mubr.bf16.gmra.mrb[0].mxu0 %v6707
    %v6866 = vpop.f32.mrb[0].mxu0
    %v6867 = vadd.f32 %v6826, %v6866
    %v6868 = vpop.f32.mrb[0].mxu0
    %v6869 = vadd.f32 %v6828, %v6868
    %v6870 = vpop.f32.mrb[0].mxu0
    %v6871 = vpop.f32.mrb[0].mxu0
    %6872 = vdwg.mxu0
    %v6873 = vadd.f32 %v6785, %v6173
    %v6874 = vadd.f32 %v6787, %v6174
    %v6875 = vadd.f32 %v6867, %v6175
    %v6876 = vadd.f32 %v6869, %v6176
    %v6877 = vpack.c.bf16 %v6873, %v6873
    %v6878 = vpack.c.bf16 %v6874, %v6874
    %v6879 = vpack.c.bf16 %v6875, %v6875
    %v6880 = vpack.c.bf16 %v6876, %v6876
    %v6881 = vld [vmem:[#allocation10] sm:$0xff]
    %v6882 = vld [vmem:[#allocation10 + $0x8] sm:$0xff]
    %v6883 = vld [vmem:[#allocation10 + $0x10] sm:$0xff]
    %v6884 = vld [vmem:[#allocation10 + $0x18] sm:$0xff]
    %v6885 = vld [vmem:[#allocation10 + $0x20] sm:$0xff]
    %v6886 = vld [vmem:[#allocation10 + $0x28] sm:$0xff]
    %v6887 = vld [vmem:[#allocation10 + $0x30] sm:$0xff]
    %v6888 = vld [vmem:[#allocation10 + $0x38] sm:$0xff]
    %v6889 = vld [vmem:[#allocation10 + $0x40] sm:$0xff]
    %v6890 = vld [vmem:[#allocation10 + $0x48] sm:$0xff]
    %v6891 = vld [vmem:[#allocation10 + $0x50] sm:$0xff]
    %v6892 = vld [vmem:[#allocation10 + $0x58] sm:$0xff]
    %v6893 = vld [vmem:[#allocation10 + $0x60] sm:$0xff]
    %v6894 = vld [vmem:[#allocation10 + $0x68] sm:$0xff]
    %v6895 = vld [vmem:[#allocation10 + $0x70] sm:$0xff]
    %v6896 = vld [vmem:[#allocation10 + $0x78] sm:$0xff]
    %v6897 = vld [vmem:[#allocation10 + $0x80] sm:$0xff]
    %v6898 = vld [vmem:[#allocation10 + $0x88] sm:$0xff]
    %v6899 = vld [vmem:[#allocation10 + $0x90] sm:$0xff]
    %v6900 = vld [vmem:[#allocation10 + $0x98] sm:$0xff]
    %v6901 = vld [vmem:[#allocation10 + $0xa0] sm:$0xff]
    %v6902 = vld [vmem:[#allocation10 + $0xa8] sm:$0xff]
    %v6903 = vld [vmem:[#allocation10 + $0xb0] sm:$0xff]
    %v6904 = vld [vmem:[#allocation10 + $0xb8] sm:$0xff]
    %v6905 = vld [vmem:[#allocation10 + $0xc0] sm:$0xff]
    %v6906 = vld [vmem:[#allocation10 + $0xc8] sm:$0xff]
    %v6907 = vld [vmem:[#allocation10 + $0xd0] sm:$0xff]
    %v6908 = vld [vmem:[#allocation10 + $0xd8] sm:$0xff]
    %v6909 = vld [vmem:[#allocation10 + $0xe0] sm:$0xff]
    %v6910 = vld [vmem:[#allocation10 + $0xe8] sm:$0xff]
    %v6911 = vld [vmem:[#allocation10 + $0xf0] sm:$0xff]
    %v6912 = vld [vmem:[#allocation10 + $0xf8] sm:$0xff]
    %v6913 = vld [vmem:[#allocation10 + $0x100] sm:$0xff]
    %v6914 = vld [vmem:[#allocation10 + $0x108] sm:$0xff]
    %v6915 = vld [vmem:[#allocation10 + $0x110] sm:$0xff]
    %v6916 = vld [vmem:[#allocation10 + $0x118] sm:$0xff]
    %v6917 = vld [vmem:[#allocation10 + $0x120] sm:$0xff]
    %v6918 = vld [vmem:[#allocation10 + $0x128] sm:$0xff]
    %v6919 = vld [vmem:[#allocation10 + $0x130] sm:$0xff]
    %v6920 = vld [vmem:[#allocation10 + $0x138] sm:$0xff]
    %v6921 = vld [vmem:[#allocation10 + $0x140] sm:$0xff]
    %v6922 = vld [vmem:[#allocation10 + $0x148] sm:$0xff]
    %v6923 = vld [vmem:[#allocation10 + $0x150] sm:$0xff]
    %v6924 = vld [vmem:[#allocation10 + $0x158] sm:$0xff]
    %v6925 = vld [vmem:[#allocation10 + $0x160] sm:$0xff]
    %v6926 = vld [vmem:[#allocation10 + $0x168] sm:$0xff]
    %v6927 = vld [vmem:[#allocation10 + $0x170] sm:$0xff]
    %v6928 = vld [vmem:[#allocation10 + $0x178] sm:$0xff]
    %v6929 = vld [vmem:[#allocation10 + $0x180] sm:$0xff]
    %v6930 = vld [vmem:[#allocation10 + $0x188] sm:$0xff]
    %v6931 = vld [vmem:[#allocation10 + $0x190] sm:$0xff]
    %v6932 = vld [vmem:[#allocation10 + $0x198] sm:$0xff]
    %v6933 = vld [vmem:[#allocation10 + $0x1a0] sm:$0xff]
    %v6934 = vld [vmem:[#allocation10 + $0x1a8] sm:$0xff]
    %v6935 = vld [vmem:[#allocation10 + $0x1b0] sm:$0xff]
    %v6936 = vld [vmem:[#allocation10 + $0x1b8] sm:$0xff]
    %v6937 = vld [vmem:[#allocation10 + $0x1c0] sm:$0xff]
    %v6938 = vld [vmem:[#allocation10 + $0x1c8] sm:$0xff]
    %v6939 = vld [vmem:[#allocation10 + $0x1d0] sm:$0xff]
    %v6940 = vld [vmem:[#allocation10 + $0x1d8] sm:$0xff]
    %v6941 = vld [vmem:[#allocation10 + $0x1e0] sm:$0xff]
    %v6942 = vld [vmem:[#allocation10 + $0x1e8] sm:$0xff]
    %v6943 = vld [vmem:[#allocation10 + $0x1f0] sm:$0xff]
    %v6944 = vld [vmem:[#allocation10 + $0x1f8] sm:$0xff]
    %v6945 = vld [vmem:[#allocation10 + $0x200] sm:$0xff]
    %v6946 = vld [vmem:[#allocation10 + $0x208] sm:$0xff]
    %v6947 = vld [vmem:[#allocation10 + $0x210] sm:$0xff]
    %v6948 = vld [vmem:[#allocation10 + $0x218] sm:$0xff]
    %v6949 = vld [vmem:[#allocation10 + $0x220] sm:$0xff]
    %v6950 = vld [vmem:[#allocation10 + $0x228] sm:$0xff]
    %v6951 = vld [vmem:[#allocation10 + $0x230] sm:$0xff]
    %v6952 = vld [vmem:[#allocation10 + $0x238] sm:$0xff]
    %v6953 = vld [vmem:[#allocation10 + $0x240] sm:$0xff]
    %v6954 = vld [vmem:[#allocation10 + $0x248] sm:$0xff]
    %v6955 = vld [vmem:[#allocation10 + $0x250] sm:$0xff]
    %v6956 = vld [vmem:[#allocation10 + $0x258] sm:$0xff]
    %v6957 = vld [vmem:[#allocation10 + $0x260] sm:$0xff]
    %v6958 = vld [vmem:[#allocation10 + $0x268] sm:$0xff]
    %v6959 = vld [vmem:[#allocation10 + $0x270] sm:$0xff]
    %v6960 = vld [vmem:[#allocation10 + $0x278] sm:$0xff]
    %v6961 = vld [vmem:[#allocation10 + $0x280] sm:$0xff]
    %v6962 = vld [vmem:[#allocation10 + $0x288] sm:$0xff]
    %v6963 = vld [vmem:[#allocation10 + $0x290] sm:$0xff]
    %v6964 = vld [vmem:[#allocation10 + $0x298] sm:$0xff]
    %v6965 = vld [vmem:[#allocation10 + $0x2a0] sm:$0xff]
    %v6966 = vld [vmem:[#allocation10 + $0x2a8] sm:$0xff]
    %v6967 = vld [vmem:[#allocation10 + $0x2b0] sm:$0xff]
    %v6968 = vld [vmem:[#allocation10 + $0x2b8] sm:$0xff]
    %v6969 = vld [vmem:[#allocation10 + $0x2c0] sm:$0xff]
    %v6970 = vld [vmem:[#allocation10 + $0x2c8] sm:$0xff]
    %v6971 = vld [vmem:[#allocation10 + $0x2d0] sm:$0xff]
    %v6972 = vld [vmem:[#allocation10 + $0x2d8] sm:$0xff]
    %v6973 = vld [vmem:[#allocation10 + $0x2e0] sm:$0xff]
    %v6974 = vld [vmem:[#allocation10 + $0x2e8] sm:$0xff]
    %v6975 = vld [vmem:[#allocation10 + $0x2f0] sm:$0xff]
    %v6976 = vld [vmem:[#allocation10 + $0x2f8] sm:$0xff]
    %v6977 = vld [vmem:[#allocation10 + $0x300] sm:$0xff]
    %v6978 = vld [vmem:[#allocation10 + $0x308] sm:$0xff]
    %v6979 = vld [vmem:[#allocation10 + $0x310] sm:$0xff]
    %v6980 = vld [vmem:[#allocation10 + $0x318] sm:$0xff]
    %v6981 = vld [vmem:[#allocation10 + $0x320] sm:$0xff]
    %v6982 = vld [vmem:[#allocation10 + $0x328] sm:$0xff]
    %v6983 = vld [vmem:[#allocation10 + $0x330] sm:$0xff]
    %v6984 = vld [vmem:[#allocation10 + $0x338] sm:$0xff]
    %v6985 = vld [vmem:[#allocation10 + $0x340] sm:$0xff]
    %v6986 = vld [vmem:[#allocation10 + $0x348] sm:$0xff]
    %v6987 = vld [vmem:[#allocation10 + $0x350] sm:$0xff]
    %v6988 = vld [vmem:[#allocation10 + $0x358] sm:$0xff]
    %v6989 = vld [vmem:[#allocation10 + $0x360] sm:$0xff]
    %v6990 = vld [vmem:[#allocation10 + $0x368] sm:$0xff]
    %v6991 = vld [vmem:[#allocation10 + $0x370] sm:$0xff]
    %v6992 = vld [vmem:[#allocation10 + $0x378] sm:$0xff]
    %v6993 = vld [vmem:[#allocation10 + $0x380] sm:$0xff]
    %v6994 = vld [vmem:[#allocation10 + $0x388] sm:$0xff]
    %v6995 = vld [vmem:[#allocation10 + $0x390] sm:$0xff]
    %v6996 = vld [vmem:[#allocation10 + $0x398] sm:$0xff]
    %v6997 = vld [vmem:[#allocation10 + $0x3a0] sm:$0xff]
    %v6998 = vld [vmem:[#allocation10 + $0x3a8] sm:$0xff]
    %v6999 = vld [vmem:[#allocation10 + $0x3b0] sm:$0xff]
    %v7000 = vld [vmem:[#allocation10 + $0x3b8] sm:$0xff]
    %v7001 = vld [vmem:[#allocation10 + $0x3c0] sm:$0xff]
    %v7002 = vld [vmem:[#allocation10 + $0x3c8] sm:$0xff]
    %v7003 = vld [vmem:[#allocation10 + $0x3d0] sm:$0xff]
    %v7004 = vld [vmem:[#allocation10 + $0x3d8] sm:$0xff]
    %v7005 = vld [vmem:[#allocation10 + $0x3e0] sm:$0xff]
    %v7006 = vld [vmem:[#allocation10 + $0x3e8] sm:$0xff]
    %v7007 = vld [vmem:[#allocation10 + $0x3f0] sm:$0xff]
    %v7008 = vld [vmem:[#allocation10 + $0x3f8] sm:$0xff]
    %v7137 = vunpack.c.l.b16 %v6881
    %v7138 = vunpack.c.h.b16 %v6881
    %v7139 = vunpack.c.l.b16 %v6882
    %v7140 = vunpack.c.h.b16 %v6882
    %v7141 = vunpack.c.l.b16 %v6883
    %v7142 = vunpack.c.h.b16 %v6883
    %v7143 = vunpack.c.l.b16 %v6884
    %v7144 = vunpack.c.h.b16 %v6884
    %v7145 = vunpack.c.l.b16 %v6885
    %v7146 = vunpack.c.h.b16 %v6885
    %v7147 = vunpack.c.l.b16 %v6886
    %v7148 = vunpack.c.h.b16 %v6886
    %v7149 = vunpack.c.l.b16 %v6887
    %v7150 = vunpack.c.h.b16 %v6887
    %v7151 = vunpack.c.l.b16 %v6888
    %v7152 = vunpack.c.h.b16 %v6888
    %v7153 = vunpack.c.l.b16 %v6889
    %v7154 = vunpack.c.h.b16 %v6889
    %v7155 = vunpack.c.l.b16 %v6890
    %v7156 = vunpack.c.h.b16 %v6890
    %v7157 = vunpack.c.l.b16 %v6891
    %v7158 = vunpack.c.h.b16 %v6891
    %v7159 = vunpack.c.l.b16 %v6892
    %v7160 = vunpack.c.h.b16 %v6892
    %v7161 = vunpack.c.l.b16 %v6893
    %v7162 = vunpack.c.h.b16 %v6893
    %v7163 = vunpack.c.l.b16 %v6894
    %v7164 = vunpack.c.h.b16 %v6894
    %v7165 = vunpack.c.l.b16 %v6895
    %v7166 = vunpack.c.h.b16 %v6895
    %v7167 = vunpack.c.l.b16 %v6896
    %v7168 = vunpack.c.h.b16 %v6896
    %v7169 = vunpack.c.l.b16 %v6897
    %v7170 = vunpack.c.h.b16 %v6897
    %v7171 = vunpack.c.l.b16 %v6898
    %v7172 = vunpack.c.h.b16 %v6898
    %v7173 = vunpack.c.l.b16 %v6899
    %v7174 = vunpack.c.h.b16 %v6899
    %v7175 = vunpack.c.l.b16 %v6900
    %v7176 = vunpack.c.h.b16 %v6900
    %v7177 = vunpack.c.l.b16 %v6901
    %v7178 = vunpack.c.h.b16 %v6901
    %v7179 = vunpack.c.l.b16 %v6902
    %v7180 = vunpack.c.h.b16 %v6902
    %v7181 = vunpack.c.l.b16 %v6903
    %v7182 = vunpack.c.h.b16 %v6903
    %v7183 = vunpack.c.l.b16 %v6904
    %v7184 = vunpack.c.h.b16 %v6904
    %v7185 = vunpack.c.l.b16 %v6905
    %v7186 = vunpack.c.h.b16 %v6905
    %v7187 = vunpack.c.l.b16 %v6906
    %v7188 = vunpack.c.h.b16 %v6906
    %v7189 = vunpack.c.l.b16 %v6907
    %v7190 = vunpack.c.h.b16 %v6907
    %v7191 = vunpack.c.l.b16 %v6908
    %v7192 = vunpack.c.h.b16 %v6908
    %v7193 = vunpack.c.l.b16 %v6909
    %v7194 = vunpack.c.h.b16 %v6909
    %v7195 = vunpack.c.l.b16 %v6910
    %v7196 = vunpack.c.h.b16 %v6910
    %v7197 = vunpack.c.l.b16 %v6911
    %v7198 = vunpack.c.h.b16 %v6911
    %v7199 = vunpack.c.l.b16 %v6912
    %v7200 = vunpack.c.h.b16 %v6912
    %v7201 = vunpack.c.l.b16 %v6913
    %v7202 = vunpack.c.h.b16 %v6913
    %v7203 = vunpack.c.l.b16 %v6914
    %v7204 = vunpack.c.h.b16 %v6914
    %v7205 = vunpack.c.l.b16 %v6915
    %v7206 = vunpack.c.h.b16 %v6915
    %v7207 = vunpack.c.l.b16 %v6916
    %v7208 = vunpack.c.h.b16 %v6916
    %v7209 = vunpack.c.l.b16 %v6917
    %v7210 = vunpack.c.h.b16 %v6917
    %v7211 = vunpack.c.l.b16 %v6918
    %v7212 = vunpack.c.h.b16 %v6918
    %v7213 = vunpack.c.l.b16 %v6919
    %v7214 = vunpack.c.h.b16 %v6919
    %v7215 = vunpack.c.l.b16 %v6920
    %v7216 = vunpack.c.h.b16 %v6920
    %v7217 = vunpack.c.l.b16 %v6921
    %v7218 = vunpack.c.h.b16 %v6921
    %v7219 = vunpack.c.l.b16 %v6922
    %v7220 = vunpack.c.h.b16 %v6922
    %v7221 = vunpack.c.l.b16 %v6923
    %v7222 = vunpack.c.h.b16 %v6923
    %v7223 = vunpack.c.l.b16 %v6924
    %v7224 = vunpack.c.h.b16 %v6924
    %v7225 = vunpack.c.l.b16 %v6925
    %v7226 = vunpack.c.h.b16 %v6925
    %v7227 = vunpack.c.l.b16 %v6926
    %v7228 = vunpack.c.h.b16 %v6926
    %v7229 = vunpack.c.l.b16 %v6927
    %v7230 = vunpack.c.h.b16 %v6927
    %v7231 = vunpack.c.l.b16 %v6928
    %v7232 = vunpack.c.h.b16 %v6928
    %v7233 = vunpack.c.l.b16 %v6929
    %v7234 = vunpack.c.h.b16 %v6929
    %v7235 = vunpack.c.l.b16 %v6930
    %v7236 = vunpack.c.h.b16 %v6930
    %v7237 = vunpack.c.l.b16 %v6931
    %v7238 = vunpack.c.h.b16 %v6931
    %v7239 = vunpack.c.l.b16 %v6932
    %v7240 = vunpack.c.h.b16 %v6932
    %v7241 = vunpack.c.l.b16 %v6933
    %v7242 = vunpack.c.h.b16 %v6933
    %v7243 = vunpack.c.l.b16 %v6934
    %v7244 = vunpack.c.h.b16 %v6934
    %v7245 = vunpack.c.l.b16 %v6935
    %v7246 = vunpack.c.h.b16 %v6935
    %v7247 = vunpack.c.l.b16 %v6936
    %v7248 = vunpack.c.h.b16 %v6936
    %v7249 = vunpack.c.l.b16 %v6937
    %v7250 = vunpack.c.h.b16 %v6937
    %v7251 = vunpack.c.l.b16 %v6938
    %v7252 = vunpack.c.h.b16 %v6938
    %v7253 = vunpack.c.l.b16 %v6939
    %v7254 = vunpack.c.h.b16 %v6939
    %v7255 = vunpack.c.l.b16 %v6940
    %v7256 = vunpack.c.h.b16 %v6940
    %v7257 = vunpack.c.l.b16 %v6941
    %v7258 = vunpack.c.h.b16 %v6941
    %v7259 = vunpack.c.l.b16 %v6942
    %v7260 = vunpack.c.h.b16 %v6942
    %v7261 = vunpack.c.l.b16 %v6943
    %v7262 = vunpack.c.h.b16 %v6943
    %v7263 = vunpack.c.l.b16 %v6944
    %v7264 = vunpack.c.h.b16 %v6944
    %v7265 = vunpack.c.l.b16 %v6945
    %v7266 = vunpack.c.h.b16 %v6945
    %v7267 = vunpack.c.l.b16 %v6946
    %v7268 = vunpack.c.h.b16 %v6946
    %v7269 = vunpack.c.l.b16 %v6947
    %v7270 = vunpack.c.h.b16 %v6947
    %v7271 = vunpack.c.l.b16 %v6948
    %v7272 = vunpack.c.h.b16 %v6948
    %v7273 = vunpack.c.l.b16 %v6949
    %v7274 = vunpack.c.h.b16 %v6949
    %v7275 = vunpack.c.l.b16 %v6950
    %v7276 = vunpack.c.h.b16 %v6950
    %v7277 = vunpack.c.l.b16 %v6951
    %v7278 = vunpack.c.h.b16 %v6951
    %v7279 = vunpack.c.l.b16 %v6952
    %v7280 = vunpack.c.h.b16 %v6952
    %v7281 = vunpack.c.l.b16 %v6953
    %v7282 = vunpack.c.h.b16 %v6953
    %v7283 = vunpack.c.l.b16 %v6954
    %v7284 = vunpack.c.h.b16 %v6954
    %v7285 = vunpack.c.l.b16 %v6955
    %v7286 = vunpack.c.h.b16 %v6955
    %v7287 = vunpack.c.l.b16 %v6956
    %v7288 = vunpack.c.h.b16 %v6956
    %v7289 = vunpack.c.l.b16 %v6957
    %v7290 = vunpack.c.h.b16 %v6957
    %v7291 = vunpack.c.l.b16 %v6958
    %v7292 = vunpack.c.h.b16 %v6958
    %v7293 = vunpack.c.l.b16 %v6959
    %v7294 = vunpack.c.h.b16 %v6959
    %v7295 = vunpack.c.l.b16 %v6960
    %v7296 = vunpack.c.h.b16 %v6960
    %v7297 = vunpack.c.l.b16 %v6961
    %v7298 = vunpack.c.h.b16 %v6961
    %v7299 = vunpack.c.l.b16 %v6962
    %v7300 = vunpack.c.h.b16 %v6962
    %v7301 = vunpack.c.l.b16 %v6963
    %v7302 = vunpack.c.h.b16 %v6963
    %v7303 = vunpack.c.l.b16 %v6964
    %v7304 = vunpack.c.h.b16 %v6964
    %v7305 = vunpack.c.l.b16 %v6965
    %v7306 = vunpack.c.h.b16 %v6965
    %v7307 = vunpack.c.l.b16 %v6966
    %v7308 = vunpack.c.h.b16 %v6966
    %v7309 = vunpack.c.l.b16 %v6967
    %v7310 = vunpack.c.h.b16 %v6967
    %v7311 = vunpack.c.l.b16 %v6968
    %v7312 = vunpack.c.h.b16 %v6968
    %v7313 = vunpack.c.l.b16 %v6969
    %v7314 = vunpack.c.h.b16 %v6969
    %v7315 = vunpack.c.l.b16 %v6970
    %v7316 = vunpack.c.h.b16 %v6970
    %v7317 = vunpack.c.l.b16 %v6971
    %v7318 = vunpack.c.h.b16 %v6971
    %v7319 = vunpack.c.l.b16 %v6972
    %v7320 = vunpack.c.h.b16 %v6972
    %v7321 = vunpack.c.l.b16 %v6973
    %v7322 = vunpack.c.h.b16 %v6973
    %v7323 = vunpack.c.l.b16 %v6974
    %v7324 = vunpack.c.h.b16 %v6974
    %v7325 = vunpack.c.l.b16 %v6975
    %v7326 = vunpack.c.h.b16 %v6975
    %v7327 = vunpack.c.l.b16 %v6976
    %v7328 = vunpack.c.h.b16 %v6976
    %v7329 = vunpack.c.l.b16 %v6977
    %v7330 = vunpack.c.h.b16 %v6977
    %v7331 = vunpack.c.l.b16 %v6978
    %v7332 = vunpack.c.h.b16 %v6978
    %v7333 = vunpack.c.l.b16 %v6979
    %v7334 = vunpack.c.h.b16 %v6979
    %v7335 = vunpack.c.l.b16 %v6980
    %v7336 = vunpack.c.h.b16 %v6980
    %v7337 = vunpack.c.l.b16 %v6981
    %v7338 = vunpack.c.h.b16 %v6981
    %v7339 = vunpack.c.l.b16 %v6982
    %v7340 = vunpack.c.h.b16 %v6982
    %v7341 = vunpack.c.l.b16 %v6983
    %v7342 = vunpack.c.h.b16 %v6983
    %v7343 = vunpack.c.l.b16 %v6984
    %v7344 = vunpack.c.h.b16 %v6984
    %v7345 = vunpack.c.l.b16 %v6985
    %v7346 = vunpack.c.h.b16 %v6985
    %v7347 = vunpack.c.l.b16 %v6986
    %v7348 = vunpack.c.h.b16 %v6986
    %v7349 = vunpack.c.l.b16 %v6987
    %v7350 = vunpack.c.h.b16 %v6987
    %v7351 = vunpack.c.l.b16 %v6988
    %v7352 = vunpack.c.h.b16 %v6988
    %v7353 = vunpack.c.l.b16 %v6989
    %v7354 = vunpack.c.h.b16 %v6989
    %v7355 = vunpack.c.l.b16 %v6990
    %v7356 = vunpack.c.h.b16 %v6990
    %v7357 = vunpack.c.l.b16 %v6991
    %v7358 = vunpack.c.h.b16 %v6991
    %v7359 = vunpack.c.l.b16 %v6992
    %v7360 = vunpack.c.h.b16 %v6992
    %v7361 = vunpack.c.l.b16 %v6993
    %v7362 = vunpack.c.h.b16 %v6993
    %v7363 = vunpack.c.l.b16 %v6994
    %v7364 = vunpack.c.h.b16 %v6994
    %v7365 = vunpack.c.l.b16 %v6995
    %v7366 = vunpack.c.h.b16 %v6995
    %v7367 = vunpack.c.l.b16 %v6996
    %v7368 = vunpack.c.h.b16 %v6996
    %v7369 = vunpack.c.l.b16 %v6997
    %v7370 = vunpack.c.h.b16 %v6997
    %v7371 = vunpack.c.l.b16 %v6998
    %v7372 = vunpack.c.h.b16 %v6998
    %v7373 = vunpack.c.l.b16 %v6999
    %v7374 = vunpack.c.h.b16 %v6999
    %v7375 = vunpack.c.l.b16 %v7000
    %v7376 = vunpack.c.h.b16 %v7000
    %v7377 = vunpack.c.l.b16 %v7001
    %v7378 = vunpack.c.h.b16 %v7001
    %v7379 = vunpack.c.l.b16 %v7002
    %v7380 = vunpack.c.h.b16 %v7002
    %v7381 = vunpack.c.l.b16 %v7003
    %v7382 = vunpack.c.h.b16 %v7003
    %v7383 = vunpack.c.l.b16 %v7004
    %v7384 = vunpack.c.h.b16 %v7004
    %v7385 = vunpack.c.l.b16 %v7005
    %v7386 = vunpack.c.h.b16 %v7005
    %v7387 = vunpack.c.l.b16 %v7006
    %v7388 = vunpack.c.h.b16 %v7006
    %v7389 = vunpack.c.l.b16 %v7007
    %v7390 = vunpack.c.h.b16 %v7007
    %v7391 = vunpack.c.l.b16 %v7008
    %v7392 = vunpack.c.h.b16 %v7008
    %v7393 = vpack.c.b16 %v7141, %v7137
    %v7394 = vpack.c.b16 %v7142, %v7138
    %v7395 = vpack.c.b16 %v7143, %v7139
    %v7396 = vpack.c.b16 %v7144, %v7140
    %v7397 = vpack.c.b16 %v7149, %v7145
    %v7398 = vpack.c.b16 %v7150, %v7146
    %v7399 = vpack.c.b16 %v7151, %v7147
    %v7400 = vpack.c.b16 %v7152, %v7148
    %v7401 = vpack.c.b16 %v7157, %v7153
    %v7402 = vpack.c.b16 %v7158, %v7154
    %v7403 = vpack.c.b16 %v7159, %v7155
    %v7404 = vpack.c.b16 %v7160, %v7156
    %v7405 = vpack.c.b16 %v7165, %v7161
    %v7406 = vpack.c.b16 %v7166, %v7162
    %v7407 = vpack.c.b16 %v7167, %v7163
    %v7408 = vpack.c.b16 %v7168, %v7164
    %v7409 = vpack.c.b16 %v7173, %v7169
    %v7410 = vpack.c.b16 %v7174, %v7170
    %v7411 = vpack.c.b16 %v7175, %v7171
    %v7412 = vpack.c.b16 %v7176, %v7172
    %v7413 = vpack.c.b16 %v7181, %v7177
    %v7414 = vpack.c.b16 %v7182, %v7178
    %v7415 = vpack.c.b16 %v7183, %v7179
    %v7416 = vpack.c.b16 %v7184, %v7180
    %v7417 = vpack.c.b16 %v7189, %v7185
    %v7418 = vpack.c.b16 %v7190, %v7186
    %v7419 = vpack.c.b16 %v7191, %v7187
    %v7420 = vpack.c.b16 %v7192, %v7188
    %v7421 = vpack.c.b16 %v7197, %v7193
    %v7422 = vpack.c.b16 %v7198, %v7194
    %v7423 = vpack.c.b16 %v7199, %v7195
    %v7424 = vpack.c.b16 %v7200, %v7196
    %v7425 = vpack.c.b16 %v7205, %v7201
    %v7426 = vpack.c.b16 %v7206, %v7202
    %v7427 = vpack.c.b16 %v7207, %v7203
    %v7428 = vpack.c.b16 %v7208, %v7204
    %v7429 = vpack.c.b16 %v7213, %v7209
    %v7430 = vpack.c.b16 %v7214, %v7210
    %v7431 = vpack.c.b16 %v7215, %v7211
    %v7432 = vpack.c.b16 %v7216, %v7212
    %v7433 = vpack.c.b16 %v7221, %v7217
    %v7434 = vpack.c.b16 %v7222, %v7218
    %v7435 = vpack.c.b16 %v7223, %v7219
    %v7436 = vpack.c.b16 %v7224, %v7220
    %v7437 = vpack.c.b16 %v7229, %v7225
    %v7438 = vpack.c.b16 %v7230, %v7226
    %v7439 = vpack.c.b16 %v7231, %v7227
    %v7440 = vpack.c.b16 %v7232, %v7228
    %v7441 = vpack.c.b16 %v7237, %v7233
    %v7442 = vpack.c.b16 %v7238, %v7234
    %v7443 = vpack.c.b16 %v7239, %v7235
    %v7444 = vpack.c.b16 %v7240, %v7236
    %v7445 = vpack.c.b16 %v7245, %v7241
    %v7446 = vpack.c.b16 %v7246, %v7242
    %v7447 = vpack.c.b16 %v7247, %v7243
    %v7448 = vpack.c.b16 %v7248, %v7244
    %v7449 = vpack.c.b16 %v7253, %v7249
    %v7450 = vpack.c.b16 %v7254, %v7250
    %v7451 = vpack.c.b16 %v7255, %v7251
    %v7452 = vpack.c.b16 %v7256, %v7252
    %v7453 = vpack.c.b16 %v7261, %v7257
    %v7454 = vpack.c.b16 %v7262, %v7258
    %v7455 = vpack.c.b16 %v7263, %v7259
    %v7456 = vpack.c.b16 %v7264, %v7260
    %v7457 = vpack.c.b16 %v7269, %v7265
    %v7458 = vpack.c.b16 %v7270, %v7266
    %v7459 = vpack.c.b16 %v7271, %v7267
    %v7460 = vpack.c.b16 %v7272, %v7268
    %v7461 = vpack.c.b16 %v7277, %v7273
    %v7462 = vpack.c.b16 %v7278, %v7274
    %v7463 = vpack.c.b16 %v7279, %v7275
    %v7464 = vpack.c.b16 %v7280, %v7276
    %v7465 = vpack.c.b16 %v7285, %v7281
    %v7466 = vpack.c.b16 %v7286, %v7282
    %v7467 = vpack.c.b16 %v7287, %v7283
    %v7468 = vpack.c.b16 %v7288, %v7284
    %v7469 = vpack.c.b16 %v7293, %v7289
    %v7470 = vpack.c.b16 %v7294, %v7290
    %v7471 = vpack.c.b16 %v7295, %v7291
    %v7472 = vpack.c.b16 %v7296, %v7292
    %v7473 = vpack.c.b16 %v7301, %v7297
    %v7474 = vpack.c.b16 %v7302, %v7298
    %v7475 = vpack.c.b16 %v7303, %v7299
    %v7476 = vpack.c.b16 %v7304, %v7300
    %v7477 = vpack.c.b16 %v7309, %v7305
    %v7478 = vpack.c.b16 %v7310, %v7306
    %v7479 = vpack.c.b16 %v7311, %v7307
    %v7480 = vpack.c.b16 %v7312, %v7308
    %v7481 = vpack.c.b16 %v7317, %v7313
    %v7482 = vpack.c.b16 %v7318, %v7314
    %v7483 = vpack.c.b16 %v7319, %v7315
    %v7484 = vpack.c.b16 %v7320, %v7316
    %v7485 = vpack.c.b16 %v7325, %v7321
    %v7486 = vpack.c.b16 %v7326, %v7322
    %v7487 = vpack.c.b16 %v7327, %v7323
    %v7488 = vpack.c.b16 %v7328, %v7324
    %v7489 = vpack.c.b16 %v7333, %v7329
    %v7490 = vpack.c.b16 %v7334, %v7330
    %v7491 = vpack.c.b16 %v7335, %v7331
    %v7492 = vpack.c.b16 %v7336, %v7332
    %v7493 = vpack.c.b16 %v7341, %v7337
    %v7494 = vpack.c.b16 %v7342, %v7338
    %v7495 = vpack.c.b16 %v7343, %v7339
    %v7496 = vpack.c.b16 %v7344, %v7340
    %v7497 = vpack.c.b16 %v7349, %v7345
    %v7498 = vpack.c.b16 %v7350, %v7346
    %v7499 = vpack.c.b16 %v7351, %v7347
    %v7500 = vpack.c.b16 %v7352, %v7348
    %v7501 = vpack.c.b16 %v7357, %v7353
    %v7502 = vpack.c.b16 %v7358, %v7354
    %v7503 = vpack.c.b16 %v7359, %v7355
    %v7504 = vpack.c.b16 %v7360, %v7356
    %v7505 = vpack.c.b16 %v7365, %v7361
    %v7506 = vpack.c.b16 %v7366, %v7362
    %v7507 = vpack.c.b16 %v7367, %v7363
    %v7508 = vpack.c.b16 %v7368, %v7364
    %v7509 = vpack.c.b16 %v7373, %v7369
    %v7510 = vpack.c.b16 %v7374, %v7370
    %v7511 = vpack.c.b16 %v7375, %v7371
    %v7512 = vpack.c.b16 %v7376, %v7372
    %v7513 = vpack.c.b16 %v7381, %v7377
    %v7514 = vpack.c.b16 %v7382, %v7378
    %v7515 = vpack.c.b16 %v7383, %v7379
    %v7516 = vpack.c.b16 %v7384, %v7380
    %v7517 = vpack.c.b16 %v7389, %v7385
    %v7518 = vpack.c.b16 %v7390, %v7386
    %v7519 = vpack.c.b16 %v7391, %v7387
    %v7520 = vpack.c.b16 %v7392, %v7388
    %7649 = vmatprep.subr.bf16.mxu0 %v7394
    %7650 = vmatpush1.bf16.msra.mxu0 %v7393
    %7651 = vmatprep.subr.bf16.mxu0 %v7398
    %7652 = vmatpush1.bf16.msra.mxu0 %v7397
    %7653 = vmatprep.subr.bf16.mxu0 %v7402
    %7654 = vmatpush1.bf16.msra.mxu0 %v7401
    %7655 = vmatprep.subr.bf16.mxu0 %v7406
    %7656 = vmatpush1.bf16.msra.mxu0 %v7405
    %7657 = vmatprep.subr.bf16.mxu0 %v7410
    %7658 = vmatpush1.bf16.msra.mxu0 %v7409
    %7659 = vmatprep.subr.bf16.mxu0 %v7414
    %7660 = vmatpush1.bf16.msra.mxu0 %v7413
    %7661 = vmatprep.subr.bf16.mxu0 %v7418
    %7662 = vmatpush1.bf16.msra.mxu0 %v7417
    %7663 = vmatprep.subr.bf16.mxu0 %v7422
    %7664 = vmatpush1.bf16.msra.mxu0 %v7421
    %7665 = vmatprep.subr.bf16.mxu0 %v7426
    %7666 = vmatpush1.bf16.msra.mxu0 %v7425
    %7667 = vmatprep.subr.bf16.mxu0 %v7430
    %7668 = vmatpush1.bf16.msra.mxu0 %v7429
    %7669 = vmatprep.subr.bf16.mxu0 %v7434
    %7670 = vmatpush1.bf16.msra.mxu0 %v7433
    %7671 = vmatprep.subr.bf16.mxu0 %v7438
    %7672 = vmatpush1.bf16.msra.mxu0 %v7437
    %7673 = vmatprep.subr.bf16.mxu0 %v7442
    %7674 = vmatpush1.bf16.msra.mxu0 %v7441
    %7675 = vmatprep.subr.bf16.mxu0 %v7446
    %7676 = vmatpush1.bf16.msra.mxu0 %v7445
    %7677 = vmatprep.subr.bf16.mxu0 %v7450
    %7678 = vmatpush1.bf16.msra.mxu0 %v7449
    %7679 = vmatprep.subr.bf16.mxu0 %v7454
    %7680 = vmatpush1.bf16.msra.mxu0 %v7453
    %7681 = vmatprep.mubr.bf16.mxu0 %v6878
    %7682 = vmatmul.mubr.bf16.gmra.mrb[0].mxu0 %v6877
    %v7683 = vpop.f32.mrb[0].mxu0
    %v7684 = vadd.f32 %v3899, %v7683
    %v7685 = vpop.f32.mrb[0].mxu0
    %v7686 = vadd.f32 %v3900, %v7685
    %v7687 = vpop.f32.mrb[0].mxu0
    %v7688 = vpop.f32.mrb[0].mxu0
    %7689 = vdwg.mxu0
    %7690 = vmatprep.subr.bf16.mxu0 %v7458
    %7691 = vmatpush1.bf16.msra.mxu0 %v7457
    %7692 = vmatprep.subr.bf16.mxu0 %v7462
    %7693 = vmatpush1.bf16.msra.mxu0 %v7461
    %7694 = vmatprep.subr.bf16.mxu0 %v7466
    %7695 = vmatpush1.bf16.msra.mxu0 %v7465
    %7696 = vmatprep.subr.bf16.mxu0 %v7470
    %7697 = vmatpush1.bf16.msra.mxu0 %v7469
    %7698 = vmatprep.subr.bf16.mxu0 %v7474
    %7699 = vmatpush1.bf16.msra.mxu0 %v7473
    %7700 = vmatprep.subr.bf16.mxu0 %v7478
    %7701 = vmatpush1.bf16.msra.mxu0 %v7477
    %7702 = vmatprep.subr.bf16.mxu0 %v7482
    %7703 = vmatpush1.bf16.msra.mxu0 %v7481
    %7704 = vmatprep.subr.bf16.mxu0 %v7486
    %7705 = vmatpush1.bf16.msra.mxu0 %v7485
    %7706 = vmatprep.subr.bf16.mxu0 %v7490
    %7707 = vmatpush1.bf16.msra.mxu0 %v7489
    %7708 = vmatprep.subr.bf16.mxu0 %v7494
    %7709 = vmatpush1.bf16.msra.mxu0 %v7493
    %7710 = vmatprep.subr.bf16.mxu0 %v7498
    %7711 = vmatpush1.bf16.msra.mxu0 %v7497
    %7712 = vmatprep.subr.bf16.mxu0 %v7502
    %7713 = vmatpush1.bf16.msra.mxu0 %v7501
    %7714 = vmatprep.subr.bf16.mxu0 %v7506
    %7715 = vmatpush1.bf16.msra.mxu0 %v7505
    %7716 = vmatprep.subr.bf16.mxu0 %v7510
    %7717 = vmatpush1.bf16.msra.mxu0 %v7509
    %7718 = vmatprep.subr.bf16.mxu0 %v7514
    %7719 = vmatpush1.bf16.msra.mxu0 %v7513
    %7720 = vmatprep.subr.bf16.mxu0 %v7518
    %7721 = vmatpush1.bf16.msra.mxu0 %v7517
    %7722 = vmatprep.mubr.bf16.mxu0 %v6880
    %7723 = vmatmul.mubr.bf16.gmra.mrb[0].mxu0 %v6879
    %v7724 = vpop.f32.mrb[0].mxu0
    %v7725 = vadd.f32 %v7684, %v7724
    %v7726 = vpop.f32.mrb[0].mxu0
    %v7727 = vadd.f32 %v7686, %v7726
    %v7728 = vpop.f32.mrb[0].mxu0
    %v7729 = vpop.f32.mrb[0].mxu0
    %7730 = vdwg.mxu0
    %7731 = vmatprep.subr.bf16.mxu0 %v7396
    %7732 = vmatpush1.bf16.msra.mxu0 %v7395
    %7733 = vmatprep.subr.bf16.mxu0 %v7400
    %7734 = vmatpush1.bf16.msra.mxu0 %v7399
    %7735 = vmatprep.subr.bf16.mxu0 %v7404
    %7736 = vmatpush1.bf16.msra.mxu0 %v7403
    %7737 = vmatprep.subr.bf16.mxu0 %v7408
    %7738 = vmatpush1.bf16.msra.mxu0 %v7407
    %7739 = vmatprep.subr.bf16.mxu0 %v7412
    %7740 = vmatpush1.bf16.msra.mxu0 %v7411
    %7741 = vmatprep.subr.bf16.mxu0 %v7416
    %7742 = vmatpush1.bf16.msra.mxu0 %v7415
    %7743 = vmatprep.subr.bf16.mxu0 %v7420
    %7744 = vmatpush1.bf16.msra.mxu0 %v7419
    %7745 = vmatprep.subr.bf16.mxu0 %v7424
    %7746 = vmatpush1.bf16.msra.mxu0 %v7423
    %7747 = vmatprep.subr.bf16.mxu0 %v7428
    %7748 = vmatpush1.bf16.msra.mxu0 %v7427
    %7749 = vmatprep.subr.bf16.mxu0 %v7432
    %7750 = vmatpush1.bf16.msra.mxu0 %v7431
    %7751 = vmatprep.subr.bf16.mxu0 %v7436
    %7752 = vmatpush1.bf16.msra.mxu0 %v7435
    %7753 = vmatprep.subr.bf16.mxu0 %v7440
    %7754 = vmatpush1.bf16.msra.mxu0 %v7439
    %7755 = vmatprep.subr.bf16.mxu0 %v7444
    %7756 = vmatpush1.bf16.msra.mxu0 %v7443
    %7757 = vmatprep.subr.bf16.mxu0 %v7448
    %7758 = vmatpush1.bf16.msra.mxu0 %v7447
    %7759 = vmatprep.subr.bf16.mxu0 %v7452
    %7760 = vmatpush1.bf16.msra.mxu0 %v7451
    %7761 = vmatprep.subr.bf16.mxu0 %v7456
    %7762 = vmatpush1.bf16.msra.mxu0 %v7455
    %7763 = vmatprep.mubr.bf16.mxu0 %v6878
    %7764 = vmatmul.mubr.bf16.gmra.mrb[0].mxu0 %v6877
    %v7765 = vpop.f32.mrb[0].mxu0
    %v7766 = vadd.f32 %v3901, %v7765
    %v7767 = vpop.f32.mrb[0].mxu0
    %v7768 = vadd.f32 %v3902, %v7767
    %v7769 = vpop.f32.mrb[0].mxu0
    %v7770 = vpop.f32.mrb[0].mxu0
    %7771 = vdwg.mxu0
    %7772 = vmatprep.subr.bf16.mxu0 %v7460
    %7773 = vmatpush1.bf16.msra.mxu0 %v7459
    %7774 = vmatprep.subr.bf16.mxu0 %v7464
    %7775 = vmatpush1.bf16.msra.mxu0 %v7463
    %7776 = vmatprep.subr.bf16.mxu0 %v7468
    %7777 = vmatpush1.bf16.msra.mxu0 %v7467
    %7778 = vmatprep.subr.bf16.mxu0 %v7472
    %7779 = vmatpush1.bf16.msra.mxu0 %v7471
    %7780 = vmatprep.subr.bf16.mxu0 %v7476
    %7781 = vmatpush1.bf16.msra.mxu0 %v7475
    %7782 = vmatprep.subr.bf16.mxu0 %v7480
    %7783 = vmatpush1.bf16.msra.mxu0 %v7479
    %7784 = vmatprep.subr.bf16.mxu0 %v7484
    %7785 = vmatpush1.bf16.msra.mxu0 %v7483
    %7786 = vmatprep.subr.bf16.mxu0 %v7488
    %7787 = vmatpush1.bf16.msra.mxu0 %v7487
    %7788 = vmatprep.subr.bf16.mxu0 %v7492
    %7789 = vmatpush1.bf16.msra.mxu0 %v7491
    %7790 = vmatprep.subr.bf16.mxu0 %v7496
    %7791 = vmatpush1.bf16.msra.mxu0 %v7495
    %7792 = vmatprep.subr.bf16.mxu0 %v7500
    %7793 = vmatpush1.bf16.msra.mxu0 %v7499
    %7794 = vmatprep.subr.bf16.mxu0 %v7504
    %7795 = vmatpush1.bf16.msra.mxu0 %v7503
    %7796 = vmatprep.subr.bf16.mxu0 %v7508
    %7797 = vmatpush1.bf16.msra.mxu0 %v7507
    %7798 = vmatprep.subr.bf16.mxu0 %v7512
    %7799 = vmatpush1.bf16.msra.mxu0 %v7511
    %7800 = vmatprep.subr.bf16.mxu0 %v7516
    %7801 = vmatpush1.bf16.msra.mxu0 %v7515
    %7802 = vmatprep.subr.bf16.mxu0 %v7520
    %7803 = vmatpush1.bf16.msra.mxu0 %v7519
    %7804 = vmatprep.mubr.bf16.mxu0 %v6880
    %7805 = vmatmul.mubr.bf16.gmra.mrb[0].mxu0 %v6879
    %v7806 = vpop.f32.mrb[0].mxu0
    %v7807 = vadd.f32 %v7766, %v7806
    %v7808 = vpop.f32.mrb[0].mxu0
    %v7809 = vadd.f32 %v7768, %v7808
    %v7810 = vpop.f32.mrb[0].mxu0
    %v7811 = vpop.f32.mrb[0].mxu0
    %7812 = vdwg.mxu0
    %7813 = vst [vmem:[#allocation12] sm:$0xff] %v7725
    %7814 = vst [vmem:[#allocation12 + $0x8] sm:$0xff] %v7727
    %7815 = vst [vmem:[#allocation12 + $0x10] sm:$0xff] %v7807
    %7816 = vst [vmem:[#allocation12 + $0x18] sm:$0xff] %v7809
    // Predicated region
    $region90: #{tpu_custom_call.1} parent=1 // pred_check
      _
    $region91: #{tpu_custom_call.1} parent=1 // pred_check_branch
      %7818 = sbr.rel (0) target = $region93
    $region92: #{tpu_custom_call.1} parent=1 // pred_region
      %s7820 = ssub.s32 512, 512
      %7821 = vsyncadd [#allocation4], %s7820
      %s7823 = sshll.u32 [#allocation11], 4
      %s7824 = int_to_ptr.vmem [resolvable:$true] %s7823
      %7826 = dma.vmem_to_hbm [thread:$0]  %s7824, 512, %s17, [#allocation4]
    $region93: #{tpu_custom_call.1} parent=1 // pred_fallthru
      _
    // Predicated region
    $region94: #{tpu_custom_call.1} parent=1 // pred_check
      _
    $region95: #{tpu_custom_call.1} parent=1 // pred_check_branch
      %7828 = sbr.rel (0) target = $region97
    $region96: #{tpu_custom_call.1} parent=1 // pred_region
      %s7830 = ssub.s32 512, 512
      %7831 = vsyncadd [#allocation13], %s7830
      %s7833 = sshll.u32 [#allocation12], 4
      %s7834 = int_to_ptr.vmem [resolvable:$true] %s7833
      %7836 = dma.vmem_to_hbm [thread:$0]  %s7834, 512, %s18, [#allocation13]
    $region97: #{tpu_custom_call.1} parent=1 // pred_fallthru
      _
    // Predicated region
    $region98: #{tpu_custom_call.1} parent=1 // pred_check
      _
    $region99: #{tpu_custom_call.1} parent=1 // pred_check_branch
      %7838 = sbr.rel (0) target = $region101
    $region100: #{tpu_custom_call.1} parent=1 // pred_region
      %s7840 = ssub.s32 128, 128
      %7841 = vsyncadd [#allocation13], %s7840
      %s7843 = sshll.u32 [#allocation14], 4
      %s7844 = int_to_ptr.vmem [resolvable:$true] %s7843
      %7846 = dma.vmem_to_hbm [thread:$0]  %s7844, 128, %s19, [#allocation13]
    $region101: #{tpu_custom_call.1} parent=1 // pred_fallthru
      _
    // Predicated region
    $region102: #{tpu_custom_call.1} parent=1 // pred_check
      _
    $region103: #{tpu_custom_call.1} parent=1 // pred_check_branch
      %7848 = sbr.rel (0) target = $region105
    $region104: #{tpu_custom_call.1} parent=1 // pred_region
      _
    $region105: #{tpu_custom_call.1} parent=1 // pred_fallthru
      _
    // Predicated region
    $region106: #{tpu_custom_call.1} parent=1 // pred_check
      _
    $region107: #{tpu_custom_call.1} parent=1 // pred_check_branch
      %7850 = sbr.rel (0) target = $region109
    $region108: #{tpu_custom_call.1} parent=1 // pred_region
      %7851 = dma.done [#allocation4], 512
    $region109: #{tpu_custom_call.1} parent=1 // pred_fallthru
      _
    // Predicated region
    $region110: #{tpu_custom_call.1} parent=1 // pred_check
      _
    $region111: #{tpu_custom_call.1} parent=1 // pred_check_branch
      %7853 = sbr.rel (0) target = $region113
    $region112: #{tpu_custom_call.1} parent=1 // pred_region
      %7854 = dma.done [#allocation13], 512
    $region113: #{tpu_custom_call.1} parent=1 // pred_fallthru
      _
    // Predicated region
    $region114: #{tpu_custom_call.1} parent=1 // pred_check
      _
    $region115: #{tpu_custom_call.1} parent=1 // pred_check_branch
      %7856 = sbr.rel (0) target = $region117
    $region116: #{tpu_custom_call.1} parent=1 // pred_region
      %7857 = dma.done [#allocation13], 128
    $region117: #{tpu_custom_call.1} parent=1 // pred_fallthru
      _
    // Predicated region
    $region118: #{tpu_custom_call.1} parent=1 // pred_check
      _
    $region119: #{tpu_custom_call.1} parent=1 // pred_check_branch
      %7859 = sbr.rel (0) target = $region121
    $region120: #{tpu_custom_call.1} parent=1 // pred_region
      _
    $region121: #{tpu_custom_call.1} parent=1 // pred_fallthru
      _
    %7860 = vsyncpa [#allocation3], 1
    %7861 = vsyncpa [#allocation6], 1
    %7862 = vsyncpa [#allocation9], 1
    %7863 = vsyncpa [#allocation4], 1
    %7864 = vsyncpa [#allocation13], 1

</llo_original>
